<compile_context>
chip_gen: v7x
topology: tpu7x:2x2x1
jax: 0.10.0
libtpu: 0.0.40
codegen_flags: <defaults>
</compile_context>

<pallas_src>
import jax
import jax.numpy as jnp
from jax.experimental import pallas as pl
from jax.experimental.pallas import tpu as pltpu

IN_DIM = 4096
HID_DIM = 2048
OUT_DIM = 345
OUT_PAD = 384            # pad 345 -> 384 (multiple of 128) for lane-dense stores
K_TILE = 1024            # reduction tile over the 4096 input features
N_HID = 2                # hidden-dim split across the "parallel" grid axis
HID_BLK = HID_DIM // N_HID


def _predictor_kernel(x_ref, w1_ref, scale_ref, shift_ref, w2_ref,
                      o_ref, acc_ref):
    """Per (h, k) step: acc += x @ W1[:, h-slice]; at last k: BN+ReLU then
    partial layer-2 matmul with W2[h-slice, :] into this h-block's output."""
    k = pl.program_id(1)

    @pl.when(k == 0)
    def _():
        acc_ref[...] = jnp.zeros_like(acc_ref)

    # Layer-1 partial matmul on this (K, HID) tile (bf16 MXU, f32 accumulate).
    acc_ref[...] += jnp.dot(x_ref[...], w1_ref[...],
                            preferred_element_type=jnp.float32)

    @pl.when(k == pl.num_programs(1) - 1)
    def _():
        # Folded Linear-1 bias + BatchNorm affine (f32) + ReLU.
        h = jnp.maximum(acc_ref[...] * scale_ref[...] + shift_ref[...], 0.0)
        # Layer-2 partial matmul over this hidden slice (bias b2 is added in
        # the wrapper after summing the N_HID partials).
        out = jnp.dot(h.astype(jnp.bfloat16), w2_ref[...],
                      preferred_element_type=jnp.float32)
        o_ref[...] = out[None, :, :].astype(o_ref.dtype)


@jax.jit
def predictor_forward(feature, params):
    """feature: (B, 4096) float32 -> (B, 345) float32."""
    w1, b1, gamma, beta, run_mean, run_var, w2, b2 = (
        params["w1"], params["b1"], params["gamma"], params["beta"],
        params["running_mean"], params["running_var"], params["w2"],
        params["b2"])

    eps = 1e-5
    inv_std = jax.lax.rsqrt(run_var + eps)
    scale = (gamma * inv_std).reshape(1, HID_DIM)                    # (1, 2048)
    shift = ((b1 - run_mean) * gamma * inv_std + beta).reshape(1, HID_DIM)

    # bf16 weights for the MXU (f32 accumulation inside the kernel).
    w1_bf = w1.astype(jnp.bfloat16)
    w2_p = jnp.zeros((HID_DIM, OUT_PAD), jnp.bfloat16).at[:, :OUT_DIM].set(
        w2.astype(jnp.bfloat16))

    # Pad batch to a multiple of 16 (bf16 sublane tile) and cast to bf16.
    b = feature.shape[0]
    b_pad = ((b + 15) // 16) * 16
    x = jnp.zeros((b_pad, IN_DIM), jnp.bfloat16).at[:b].set(
        feature.astype(jnp.bfloat16))

    n_k = IN_DIM // K_TILE

    flops = 2 * b_pad * (IN_DIM * HID_DIM + HID_DIM * OUT_PAD)
    bytes_accessed = (x.size * 2 + w1_bf.size * 2 + w2_p.size * 2
                      + scale.size * 4 + shift.size * 4
                      + N_HID * b_pad * OUT_PAD * 4)

    partials = pl.pallas_call(
        _predictor_kernel,
        out_shape=jax.ShapeDtypeStruct((N_HID, b_pad, OUT_PAD), jnp.float32),
        grid_spec=pltpu.PrefetchScalarGridSpec(
            num_scalar_prefetch=0,
            grid=(N_HID, n_k),
            in_specs=[
                pl.BlockSpec((b_pad, K_TILE), lambda h, k: (0, k)),     # x tile
                pl.BlockSpec((K_TILE, HID_BLK), lambda h, k: (k, h)),   # W1 tile
                pl.BlockSpec((1, HID_BLK), lambda h, k: (0, h)),        # scale
                pl.BlockSpec((1, HID_BLK), lambda h, k: (0, h)),        # shift
                pl.BlockSpec((HID_BLK, OUT_PAD), lambda h, k: (h, 0)),  # W2 rows
            ],
            out_specs=pl.BlockSpec((1, b_pad, OUT_PAD),
                                   lambda h, k: (h, 0, 0)),
            scratch_shapes=[pltpu.VMEM((b_pad, HID_BLK), jnp.float32)],
        ),
        compiler_params=pltpu.CompilerParams(
            dimension_semantics=("parallel", "arbitrary"),
            vmem_limit_bytes=32 << 20,
        ),
        cost_estimate=pl.CostEstimate(
            flops=flops, transcendentals=0, bytes_accessed=bytes_accessed),
    )(x, w1_bf, scale, shift, w2_p)

    # Sum the hidden-split partials, add the layer-2 bias, drop padding.
    out = partials.sum(axis=0)[:b, :OUT_DIM] + b2
    return out


def init_params(key):
    """Deterministic synthetic parameters matching the PyTorch module shapes."""
    k1, k2, k3, k4, k5, k6, k7, k8 = jax.random.split(key, 8)
    w1 = jax.random.normal(k1, (IN_DIM, HID_DIM), jnp.float32) * (1.0 / IN_DIM ** 0.5)
    b1 = jax.random.normal(k2, (HID_DIM,), jnp.float32) * 0.01
    gamma = 1.0 + 0.1 * jax.random.normal(k3, (HID_DIM,), jnp.float32)
    beta = 0.1 * jax.random.normal(k4, (HID_DIM,), jnp.float32)
    running_mean = 0.05 * jax.random.normal(k5, (HID_DIM,), jnp.float32)
    running_var = 0.5 + jax.random.uniform(k6, (HID_DIM,), jnp.float32)
    w2 = jax.random.normal(k7, (HID_DIM, OUT_DIM), jnp.float32) * (1.0 / HID_DIM ** 0.5)
    b2 = jax.random.normal(k8, (OUT_DIM,), jnp.float32) * 0.01
    return dict(w1=w1, b1=b1, gamma=gamma, beta=beta,
                running_mean=running_mean, running_var=running_var,
                w2=w2, b2=b2)


def _reference(feature, p):
    """Pure-JAX f32 reference of the same forward pass (for sanity check)."""
    eps = 1e-5
    z = feature @ p["w1"] + p["b1"]
    z = (z - p["running_mean"]) * jax.lax.rsqrt(p["running_var"] + eps) * p["gamma"] + p["beta"]
    z = jnp.maximum(z, 0.0)
    return z @ p["w2"] + p["b2"]


if __name__ == "__main__":
    key = jax.random.PRNGKey(0)
    kx, kp = jax.random.split(key)
    params = init_params(kp)

    batch = 8
    feature = jax.random.normal(kx, (batch, IN_DIM), jnp.float32)

    out = predictor_forward(feature, params)
    out = jax.block_until_ready(out)
    assert out.shape == (batch, OUT_DIM), out.shape

    ref = _reference(feature, params)
    err = float(jnp.max(jnp.abs(out - ref)))
    # bf16 weights/activations vs f32 reference: loosened tolerance.
    assert err < 5e-2, f"max abs error {err}"

    print("KERNEL_OK")
</pallas_src>

<mosaic_0001>
module attributes {stable_mosaic.version = 11 : i64} {
  func.func @_predictor_kernel(%arg0: i32, %arg1: i32, %arg2: memref<16x1024xbf16, #tpu.memory_space<vmem>>, %arg3: memref<1024x1024xbf16, #tpu.memory_space<vmem>>, %arg4: memref<1x1024xf32, #tpu.memory_space<vmem>>, %arg5: memref<1x1024xf32, #tpu.memory_space<vmem>>, %arg6: memref<1024x384xbf16, #tpu.memory_space<vmem>>, %arg7: memref<1x16x384xf32, #tpu.memory_space<vmem>>, %arg8: memref<16x1024xf32, #tpu.memory_space<vmem>>) attributes {dimension_semantics = [#tpu.dimension_semantics<parallel>, #tpu.dimension_semantics<arbitrary>], iteration_bounds = array<i64: 2, 4>, scalar_prefetch = 0 : i64, scratch_operands = 1 : i64, tpu.core_type = #tpu.core_type<tc>, window_params = [{transform_indices = @transform_0, window_bounds = array<i64: 16, 1024>}, {transform_indices = @transform_1, window_bounds = array<i64: 1024, 1024>}, {transform_indices = @transform_2, window_bounds = array<i64: 1, 1024>}, {transform_indices = @transform_3, window_bounds = array<i64: 1, 1024>}, {transform_indices = @transform_4, window_bounds = array<i64: 1024, 384>}, {transform_indices = @transform_5, window_bounds = array<i64: 1, 16, 384>}]} {
    %c0_i32 = arith.constant 0 : i32
    %0 = arith.cmpi eq, %arg1, %c0_i32 : i32
    %1 = arith.extui %0 : i1 to i32
    %c0_i32_0 = arith.constant 0 : i32
    %2 = arith.cmpi ne, %1, %c0_i32_0 : i32
    scf.if %2 {
      %cst_9 = arith.constant 0.000000e+00 : f32
      %12 = vector.broadcast %cst_9 : f32 to vector<16x1024xf32>
      %c0_10 = arith.constant 0 : index
      %c0_11 = arith.constant 0 : index
      %13 = vector.load %arg8[%c0_10, %c0_11] : memref<16x1024xf32, #tpu.memory_space<vmem>>, vector<16x1024xf32>
      tpu.vector_store %arg8[%c0_10, %c0_11], %12 {strides = array<i32>} : memref<16x1024xf32, #tpu.memory_space<vmem>>, vector<16x1024xf32>,
    } else {
    }
    %c0 = arith.constant 0 : index
    %c0_1 = arith.constant 0 : index
    %3 = vector.load %arg8[%c0, %c0_1] : memref<16x1024xf32, #tpu.memory_space<vmem>>, vector<16x1024xf32>
    %c0_2 = arith.constant 0 : index
    %c0_3 = arith.constant 0 : index
    %4 = vector.load %arg2[%c0_2, %c0_3] : memref<16x1024xbf16, #tpu.memory_space<vmem>>, vector<16x1024xbf16>
    %c0_4 = arith.constant 0 : index
    %c0_5 = arith.constant 0 : index
    %5 = vector.load %arg3[%c0_4, %c0_5] : memref<1024x1024xbf16, #tpu.memory_space<vmem>>, vector<1024x1024xbf16>
    %cst = arith.constant dense<0.000000e+00> : vector<16x1024xf32>
    %6 = tpu.matmul %4, %5, %cst {dimension_numbers = #tpu.dot_dimension_numbers<[1], [0], [0], [1], [0, 0, 1, 1], [], []>} : vector<16x1024xbf16>, vector<1024x1024xbf16>, vector<16x1024xf32> -> vector<16x1024xf32>
    %7 = arith.addf %3, %6 : vector<16x1024xf32>
    %c0_6 = arith.constant 0 : index
    %c0_7 = arith.constant 0 : index
    %8 = vector.load %arg8[%c0_6, %c0_7] : memref<16x1024xf32, #tpu.memory_space<vmem>>, vector<16x1024xf32>
    tpu.vector_store %arg8[%c0_6, %c0_7], %7 {strides = array<i32>} : memref<16x1024xf32, #tpu.memory_space<vmem>>, vector<16x1024xf32>,
    %c3_i32 = arith.constant 3 : i32
    %9 = arith.cmpi eq, %arg1, %c3_i32 : i32
    %10 = arith.extui %9 : i1 to i32
    %c0_i32_8 = arith.constant 0 : i32
    %11 = arith.cmpi ne, %10, %c0_i32_8 : i32
    scf.if %11 {
      %c0_9 = arith.constant 0 : index
      %c0_10 = arith.constant 0 : index
      %12 = vector.load %arg8[%c0_9, %c0_10] : memref<16x1024xf32, #tpu.memory_space<vmem>>, vector<16x1024xf32>
      %c0_11 = arith.constant 0 : index
      %c0_12 = arith.constant 0 : index
      %13 = vector.load %arg4[%c0_11, %c0_12] : memref<1x1024xf32, #tpu.memory_space<vmem>>, vector<1x1024xf32>
      %14 = vector.broadcast %13 : vector<1x1024xf32> to vector<16x1024xf32>
      %15 = arith.mulf %12, %14 : vector<16x1024xf32>
      %c0_13 = arith.constant 0 : index
      %c0_14 = arith.constant 0 : index
      %16 = vector.load %arg5[%c0_13, %c0_14] : memref<1x1024xf32, #tpu.memory_space<vmem>>, vector<1x1024xf32>
      %17 = vector.broadcast %16 : vector<1x1024xf32> to vector<16x1024xf32>
      %18 = arith.addf %15, %17 : vector<16x1024xf32>
      %cst_15 = arith.constant 0.000000e+00 : f32
      %19 = vector.broadcast %cst_15 : f32 to vector<16x1024xf32>
      %20 = arith.maximumf %18, %19 : vector<16x1024xf32>
      %21 = arith.truncf %20 : vector<16x1024xf32> to vector<16x1024xbf16>
      %c0_16 = arith.constant 0 : index
      %c0_17 = arith.constant 0 : index
      %22 = vector.load %arg6[%c0_16, %c0_17] : memref<1024x384xbf16, #tpu.memory_space<vmem>>, vector<1024x384xbf16>
      %cst_18 = arith.constant dense<0.000000e+00> : vector<16x384xf32>
      %23 = tpu.matmul %21, %22, %cst_18 {dimension_numbers = #tpu.dot_dimension_numbers<[1], [0], [0], [1], [0, 0, 1, 1], [], []>} : vector<16x1024xbf16>, vector<1024x384xbf16>, vector<16x384xf32> -> vector<16x384xf32>
      %24 = vector.shape_cast %23 : vector<16x384xf32> to vector<1x16x384xf32>
      %c0_19 = arith.constant 0 : index
      %c0_20 = arith.constant 0 : index
      %c0_21 = arith.constant 0 : index
      %25 = vector.load %arg7[%c0_19, %c0_20, %c0_21] : memref<1x16x384xf32, #tpu.memory_space<vmem>>, vector<1x16x384xf32>
      tpu.vector_store %arg7[%c0_19, %c0_20, %c0_21], %24 {strides = array<i32>} : memref<1x16x384xf32, #tpu.memory_space<vmem>>, vector<1x16x384xf32>,
    } else {
    }
    return
  }
  func.func @transform_0(%arg0: i32, %arg1: i32) -> (i32, i32) {
    %c0_i32 = arith.constant 0 : i32
    %c0_i32_0 = arith.constant 0 : i32
    return %c0_i32, %arg1 : i32, i32
  }
  func.func @transform_1(%arg0: i32, %arg1: i32) -> (i32, i32) {
    %c0_i32 = arith.constant 0 : i32
    return %arg1, %arg0 : i32, i32
  }
  func.func @transform_2(%arg0: i32, %arg1: i32) -> (i32, i32) {
    %c0_i32 = arith.constant 0 : i32
    %c0_i32_0 = arith.constant 0 : i32
    return %c0_i32, %arg0 : i32, i32
  }
  func.func @transform_3(%arg0: i32, %arg1: i32) -> (i32, i32) {
    %c0_i32 = arith.constant 0 : i32
    %c0_i32_0 = arith.constant 0 : i32
    return %c0_i32, %arg0 : i32, i32
  }
  func.func @transform_4(%arg0: i32, %arg1: i32) -> (i32, i32) {
    %c0_i32 = arith.constant 0 : i32
    %c0_i32_0 = arith.constant 0 : i32
    return %arg0, %c0_i32 : i32, i32
  }
  func.func @transform_5(%arg0: i32, %arg1: i32) -> (i32, i32, i32) {
    %c0_i32 = arith.constant 0 : i32
    %c0_i32_0 = arith.constant 0 : i32
    %c0_i32_1 = arith.constant 0 : i32
    return %arg0, %c0_i32, %c0_i32_0 : i32, i32, i32
  }
}

</mosaic_0001>

<llo_original>
// kernel: predictor_forward.1
$region0: #{predictor_forward.1}
  #allocation0 [shape = 'u32[]', space=smem, size = 0x4, offset = 0x4, fixed_abs, tag = 'smem constant byte address 0x4 - core index']
  #allocation1 [shape = 'u32[144,128]{1,0:T(1,128)}', space=vmem, size = 0x12000, scoped, tag = 'internal scratch']
  #allocation2 [shape = 'f32[16,1024]{1,0:T(8,128)}', space=vmem, size = 0x10000, scoped, tag = 'scratch operand']
  %s0 = inlined_call_operand.vmem [shape: bf16[16,4096], index: 0, kind: input, shape index: {}]
  %s1 = inlined_call_operand.vmem [shape: bf16[4096,2048], index: 1, kind: input, shape index: {}]
  %s2 = inlined_call_operand.vmem [shape: f32[1,2048], index: 2, kind: input, shape index: {}]
  %s3 = inlined_call_operand.vmem [shape: f32[1,2048], index: 3, kind: input, shape index: {}]
  %s4 = inlined_call_operand.vmem [shape: bf16[2048,384], index: 4, kind: input, shape index: {}]
  %s5 = inlined_call_operand.vmem [shape: f32[2,16,384], index: 5, kind: output, shape index: {}]
  %s6 = sld [smem:[#allocation0]]
  $region107: #{predictor_forward.1} parent=0
    _
  %s8 = ssub.s32 1, %s6
  %s9 = scalar_select 0, %s8, %s6
  $region1: #{predictor_forward.1} parent=0
    #allocation3 [shape = 'u8[65536]{0}', space=vmem, size = 0x10000, scoped, tag = 'input window, operand 0']
    #allocation4 [shape = 'u8[4194304]{0}', space=vmem, size = 0x400000, scoped, tag = 'input window, operand 1']
    loop: start=0, step=1, limit=10
    $region2: #{predictor_forward.1} parent=1 // loop_pre_header
      _
    $region3: #{predictor_forward.1} parent=1 // loop_header
      %s11 = sphi 0, %s15
      %p12 = scmp.ge.s32.totalorder %s11, 10
      %s18 = sphi 0, %s30
      %s19 = sphi 0, %s26
      %s20 = sphi 0, %s18
      %s21 = sphi 0, %s19
      %s22 = sphi 0, %s20
      %s23 = sphi 0, %s21
      %s33 = sphi 0, %s35
      %s36 = sphi 0, %s33
      %s37 = sphi 0, %s36
      %s53 = sphi 0, %s37
      %s61 = sphi 0, %s63
      %s64 = sphi 0, %s61
      %s65 = sphi 0, %s64
      %s81 = sphi 0, %s65
      %s87 = sphi 0, %s89
      %s90 = sphi 0, %s87
      %s91 = sphi 0, %s90
      %s107 = sphi 0, %s91
      %s113 = sphi 0, %s115
      %s116 = sphi 0, %s113
      %s117 = sphi 0, %s116
      %s133 = sphi 0, %s117
      %s139 = sphi 0, %s141
      %s142 = sphi 0, %s139
      %s143 = sphi 0, %s142
      %s159 = sphi 0, %s143
      %s165 = sphi 0, %s167
      %s168 = sphi 0, %s165
      %s169 = sphi 0, %s168
      %s185 = sphi 0, %s169
    $region4: #{predictor_forward.1} parent=1 // loop_header_branch
      %14 = sbr.rel (%p12) target = $region8
    $region5: #{predictor_forward.1} parent=1 // loop_body
      %s16 = ssub.s32 %s11, 1
      %s17 = ssub.s32 %s11, 2
      %s24 = sadd.s32 1, %s19
      %p25 = scmp.ge.s32.totalorder %s24, 4
      %s26 = scalar_select %p25, 0, %s24
      %s27 = sadd.s32 1, %s18
      %s28 = scalar_select %p25, %s27, %s18
      %p29 = scmp.ge.s32.totalorder %s28, 2
      %s30 = scalar_select %p29, 0, %s28
      %s31 = ssub.s32 %s19, %s26
      %p32 = scmp.eq.s32.totalorder %s31, 0
      %s34 = sadd.s32 %s33, 1
      %s35 = scalar_select %p32, %s33, %s34
      %p38 = pneg %p32
      %p39 = scmp.eq.s32.totalorder %s11, 7
      %p40 = por %p38, %p39
      %p41 = scmp.ne.s32.totalorder %s33, %s36
      %p42 = scmp.eq.s32.totalorder %s11, 0
      %p43 = por %p41, %p42
      %p44 = scmp.ne.s32.totalorder %s33, %s36
      %p45 = scmp.eq.s32.totalorder %s16, 7
      %p46 = por %p44, %p45
      %p47 = scmp.ne.s32.totalorder %s36, %s37
      %p48 = scmp.eq.s32.totalorder %s16, 0
      %p49 = por %p47, %p48
      %p50 = scmp.ne.s32.totalorder %s36, %s37
      %p51 = scmp.eq.s32.totalorder %s17, 7
      %p52 = por %p50, %p51
      %p54 = scmp.ne.s32.totalorder %s37, %s53
      %p55 = scmp.eq.s32.totalorder %s17, 0
      %p56 = por %p54, %p55
      %s57 = ssub.s32 %s19, %s26
      %s58 = ssub.s32 %s18, %s30
      %s59 = sor.u32 %s57, %s58
      %p60 = scmp.eq.s32.totalorder %s59, 0
      %s62 = sadd.s32 %s61, 1
      %s63 = scalar_select %p60, %s61, %s62
      %p66 = pneg %p60
      %p67 = scmp.eq.s32.totalorder %s11, 7
      %p68 = por %p66, %p67
      %p69 = scmp.ne.s32.totalorder %s61, %s64
      %p70 = scmp.eq.s32.totalorder %s11, 0
      %p71 = por %p69, %p70
      %p72 = scmp.ne.s32.totalorder %s61, %s64
      %p73 = scmp.eq.s32.totalorder %s16, 7
      %p74 = por %p72, %p73
      %p75 = scmp.ne.s32.totalorder %s64, %s65
      %p76 = scmp.eq.s32.totalorder %s16, 0
      %p77 = por %p75, %p76
      %p78 = scmp.ne.s32.totalorder %s64, %s65
      %p79 = scmp.eq.s32.totalorder %s17, 7
      %p80 = por %p78, %p79
      %p82 = scmp.ne.s32.totalorder %s65, %s81
      %p83 = scmp.eq.s32.totalorder %s17, 0
      %p84 = por %p82, %p83
      %s85 = ssub.s32 %s18, %s30
      %p86 = scmp.eq.s32.totalorder %s85, 0
      %s88 = sadd.s32 %s87, 1
      %s89 = scalar_select %p86, %s87, %s88
      %p92 = pneg %p86
      %p93 = scmp.eq.s32.totalorder %s11, 7
      %p94 = por %p92, %p93
      %p95 = scmp.ne.s32.totalorder %s87, %s90
      %p96 = scmp.eq.s32.totalorder %s11, 0
      %p97 = por %p95, %p96
      %p98 = scmp.ne.s32.totalorder %s87, %s90
      %p99 = scmp.eq.s32.totalorder %s16, 7
      %p100 = por %p98, %p99
      %p101 = scmp.ne.s32.totalorder %s90, %s91
      %p102 = scmp.eq.s32.totalorder %s16, 0
      %p103 = por %p101, %p102
      %p104 = scmp.ne.s32.totalorder %s90, %s91
      %p105 = scmp.eq.s32.totalorder %s17, 7
      %p106 = por %p104, %p105
      %p108 = scmp.ne.s32.totalorder %s91, %s107
      %p109 = scmp.eq.s32.totalorder %s17, 0
      %p110 = por %p108, %p109
      %s111 = ssub.s32 %s18, %s30
      %p112 = scmp.eq.s32.totalorder %s111, 0
      %s114 = sadd.s32 %s113, 1
      %s115 = scalar_select %p112, %s113, %s114
      %p118 = pneg %p112
      %p119 = scmp.eq.s32.totalorder %s11, 7
      %p120 = por %p118, %p119
      %p121 = scmp.ne.s32.totalorder %s113, %s116
      %p122 = scmp.eq.s32.totalorder %s11, 0
      %p123 = por %p121, %p122
      %p124 = scmp.ne.s32.totalorder %s113, %s116
      %p125 = scmp.eq.s32.totalorder %s16, 7
      %p126 = por %p124, %p125
      %p127 = scmp.ne.s32.totalorder %s116, %s117
      %p128 = scmp.eq.s32.totalorder %s16, 0
      %p129 = por %p127, %p128
      %p130 = scmp.ne.s32.totalorder %s116, %s117
      %p131 = scmp.eq.s32.totalorder %s17, 7
      %p132 = por %p130, %p131
      %p134 = scmp.ne.s32.totalorder %s117, %s133
      %p135 = scmp.eq.s32.totalorder %s17, 0
      %p136 = por %p134, %p135
      %s137 = ssub.s32 %s18, %s30
      %p138 = scmp.eq.s32.totalorder %s137, 0
      %s140 = sadd.s32 %s139, 1
      %s141 = scalar_select %p138, %s139, %s140
      %p144 = pneg %p138
      %p145 = scmp.eq.s32.totalorder %s11, 7
      %p146 = por %p144, %p145
      %p147 = scmp.ne.s32.totalorder %s139, %s142
      %p148 = scmp.eq.s32.totalorder %s11, 0
      %p149 = por %p147, %p148
      %p150 = scmp.ne.s32.totalorder %s139, %s142
      %p151 = scmp.eq.s32.totalorder %s16, 7
      %p152 = por %p150, %p151
      %p153 = scmp.ne.s32.totalorder %s142, %s143
      %p154 = scmp.eq.s32.totalorder %s16, 0
      %p155 = por %p153, %p154
      %p156 = scmp.ne.s32.totalorder %s142, %s143
      %p157 = scmp.eq.s32.totalorder %s17, 7
      %p158 = por %p156, %p157
      %p160 = scmp.ne.s32.totalorder %s143, %s159
      %p161 = scmp.eq.s32.totalorder %s17, 0
      %p162 = por %p160, %p161
      %s163 = ssub.s32 %s18, %s30
      %p164 = scmp.eq.s32.totalorder %s163, 0
      %s166 = sadd.s32 %s165, 1
      %s167 = scalar_select %p164, %s165, %s166
      %p170 = pneg %p164
      %p171 = scmp.eq.s32.totalorder %s11, 7
      %p172 = por %p170, %p171
      %p173 = scmp.ne.s32.totalorder %s165, %s168
      %p174 = scmp.eq.s32.totalorder %s11, 0
      %p175 = por %p173, %p174
      %p176 = scmp.ne.s32.totalorder %s165, %s168
      %p177 = scmp.eq.s32.totalorder %s16, 7
      %p178 = por %p176, %p177
      %p179 = scmp.ne.s32.totalorder %s168, %s169
      %p180 = scmp.eq.s32.totalorder %s16, 0
      %p181 = por %p179, %p180
      %p182 = scmp.ne.s32.totalorder %s168, %s169
      %p183 = scmp.eq.s32.totalorder %s17, 7
      %p184 = por %p182, %p183
      %p186 = scmp.ne.s32.totalorder %s169, %s185
      %p187 = scmp.eq.s32.totalorder %s17, 0
      %p188 = por %p186, %p187
      %p189 = scmp.le.s32.totalorder 1, %s11
      %p190 = scmp.lt.s32.totalorder %s11, 9
      %p191 = pnand %p189, %p190
      %p192 = pneg %p191
      // Predicated region
      $region9: #{predictor_forward.1} parent=5 // pred_check
        _
      $region10: #{predictor_forward.1} parent=5 // pred_check_branch
        %194 = sbr.rel (%p191) target = $region12
      $region11: #{predictor_forward.1} parent=5 // pred_region
        %s195 = ssub.s32 %s11, 1
      $region12: #{predictor_forward.1} parent=5 // pred_fallthru
        _
      %p196 = scmp.lt.s32.totalorder %s11, 8
      // Predicated region
      $region13: #{predictor_forward.1} parent=5 // pred_check
        %p197 = pneg %p196
      $region14: #{predictor_forward.1} parent=5 // pred_check_branch
        %199 = sbr.rel (%p197) target = $region16
      $region15: #{predictor_forward.1} parent=5 // pred_region
        // Predicated region
        $region17: #{predictor_forward.1} parent=15 // pred_check
          %p200 = pneg %p43
        $region18: #{predictor_forward.1} parent=15 // pred_check_branch
          %202 = sbr.rel (%p200) target = $region20
        $region19: #{predictor_forward.1} parent=15 // pred_region
          %s203 = sand.u32 %s33, 1
          %s204 = sand.u32 %s33, 1
          %s205 = smul.addr %s204, 64
          %s206 = scalar_lea.vmem [#allocation3], %s205
          %s207 = smul.u32 8, %s19
          %s208 = smul.addr %s207, 4
          %s209 = scalar_lea.vmem %s0, %s208
          // Predicated region
          $region21: #{predictor_forward.1} parent=19 // pred_check
            _
          $region22: #{predictor_forward.1} parent=19 // pred_check_branch
            %211 = sbr.rel (0) target = $region24
          $region23: #{predictor_forward.1} parent=19 // pred_region
            // Predicated region
            $region25: #{predictor_forward.1} parent=23 // pred_check
              _
            $region26: #{predictor_forward.1} parent=23 // pred_check_branch
              %213 = sbr.rel (0) target = $region28
            $region27: #{predictor_forward.1} parent=23 // pred_region
              loop: start=0, step=1, limit=1
              $region29: #{predictor_forward.1} parent=27 // loop_pre_header
                _
              $region30: #{predictor_forward.1} parent=27 // loop_header
                %s215 = sphi 0, %s219
                %p216 = scmp.ge.s32.totalorder %s215, 1
                %s220 = sphi %s209, %s209
                %s221 = sphi %s206, %s206
              $region31: #{predictor_forward.1} parent=27 // loop_header_branch
                %218 = sbr.rel (%p216) target = $region35
              $region32: #{predictor_forward.1} parent=27 // loop_body
                %v222 = vld [vmem:[%s220] sm:$0xff]
                %223 = vst [vmem:[%s221] sm:$0xff] %v222
                %v224 = vld [vmem:[%s220 + $0x8] sm:$0xff]
                %225 = vst [vmem:[%s221 + $0x8] sm:$0xff] %v224
                %v226 = vld [vmem:[%s220 + $0x10] sm:$0xff]
                %227 = vst [vmem:[%s221 + $0x10] sm:$0xff] %v226
                %v228 = vld [vmem:[%s220 + $0x18] sm:$0xff]
                %229 = vst [vmem:[%s221 + $0x18] sm:$0xff] %v228
                %v230 = vld [vmem:[%s220 + $0x80] sm:$0xff]
                %231 = vst [vmem:[%s221 + $0x20] sm:$0xff] %v230
                %v232 = vld [vmem:[%s220 + $0x88] sm:$0xff]
                %233 = vst [vmem:[%s221 + $0x28] sm:$0xff] %v232
                %v234 = vld [vmem:[%s220 + $0x90] sm:$0xff]
                %235 = vst [vmem:[%s221 + $0x30] sm:$0xff] %v234
                %v236 = vld [vmem:[%s220 + $0x98] sm:$0xff]
                %237 = vst [vmem:[%s221 + $0x38] sm:$0xff] %v236
              $region33: #{predictor_forward.1} parent=27 // loop_footer
                %s219 = sadd.s32 1, %s215
              $region34: #{predictor_forward.1} parent=27 // loop_footer_branch
                %214 = sbr.rel target = $region30
              $region35: #{predictor_forward.1} parent=27 // loop_exit
                _
            $region28: #{predictor_forward.1} parent=23 // pred_fallthru
              _
            // Predicated region
            $region36: #{predictor_forward.1} parent=23 // pred_check
              _
            $region37: #{predictor_forward.1} parent=23 // pred_check_branch
              %239 = sbr.rel target = $region39
            $region38: #{predictor_forward.1} parent=23 // pred_region
              _
            $region39: #{predictor_forward.1} parent=23 // pred_fallthru
              _
          $region24: #{predictor_forward.1} parent=19 // pred_fallthru
            _
          %240 = vnop
        $region20: #{predictor_forward.1} parent=15 // pred_fallthru
          _
        // Predicated region
        $region40: #{predictor_forward.1} parent=15 // pred_check
          %p241 = pneg %p71
        $region41: #{predictor_forward.1} parent=15 // pred_check_branch
          %243 = sbr.rel (%p241) target = $region43
        $region42: #{predictor_forward.1} parent=15 // pred_region
          %s244 = sand.u32 %s61, 1
          %s245 = sand.u32 %s61, 1
          %s246 = smul.addr %s245, 4096
          %s247 = scalar_lea.vmem [#allocation4], %s246
          %s248 = smul.u32 128, %s19
          %s249 = smul.u32 8, %s18
          %s250 = smul.addr %s248, 16
          %s251 = sadd.s32 %s249, %s250
          %s252 = smul.addr %s251, 4
          %s253 = scalar_lea.vmem %s1, %s252
          // Predicated region
          $region44: #{predictor_forward.1} parent=42 // pred_check
            _
          $region45: #{predictor_forward.1} parent=42 // pred_check_branch
            %255 = sbr.rel (0) target = $region47
          $region46: #{predictor_forward.1} parent=42 // pred_region
            // Predicated region
            $region48: #{predictor_forward.1} parent=46 // pred_check
              _
            $region49: #{predictor_forward.1} parent=46 // pred_check_branch
              %257 = sbr.rel (0) target = $region51
            $region50: #{predictor_forward.1} parent=46 // pred_region
              loop: start=0, step=1, limit=1
              $region52: #{predictor_forward.1} parent=50 // loop_pre_header
                _
              $region53: #{predictor_forward.1} parent=50 // loop_header
                %s259 = sphi 0, %s263
                %p260 = scmp.ge.s32.totalorder %s259, 1
                %s264 = sphi %s253, %s253
                %s265 = sphi %s247, %s247
              $region54: #{predictor_forward.1} parent=50 // loop_header_branch
                %262 = sbr.rel (%p260) target = $region58
              $region55: #{predictor_forward.1} parent=50 // loop_body
                %v266 = vld [vmem:[%s264] sm:$0xff]
                %267 = vst [vmem:[%s265] sm:$0xff] %v266
                %v268 = vld [vmem:[%s264 + $0x8] sm:$0xff]
                %269 = vst [vmem:[%s265 + $0x8] sm:$0xff] %v268
                %v270 = vld [vmem:[%s264 + $0x10] sm:$0xff]
                %271 = vst [vmem:[%s265 + $0x10] sm:$0xff] %v270
                %v272 = vld [vmem:[%s264 + $0x18] sm:$0xff]
                %273 = vst [vmem:[%s265 + $0x18] sm:$0xff] %v272
                %v274 = vld [vmem:[%s264 + $0x40] sm:$0xff]
                %275 = vst [vmem:[%s265 + $0x20] sm:$0xff] %v274
                %v276 = vld [vmem:[%s264 + $0x48] sm:$0xff]
                %277 = vst [vmem:[%s265 + $0x28] sm:$0xff] %v276
                %v278 = vld [vmem:[%s264 + $0x50] sm:$0xff]
                %279 = vst [vmem:[%s265 + $0x30] sm:$0xff] %v278
                %v280 = vld [vmem:[%s264 + $0x58] sm:$0xff]
                %281 = vst [vmem:[%s265 + $0x38] sm:$0xff] %v280
                %v282 = vld [vmem:[%s264 + $0x80] sm:$0xff]
                %283 = vst [vmem:[%s265 + $0x40] sm:$0xff] %v282
                %v284 = vld [vmem:[%s264 + $0x88] sm:$0xff]
                %285 = vst [vmem:[%s265 + $0x48] sm:$0xff] %v284
                %v286 = vld [vmem:[%s264 + $0x90] sm:$0xff]
                %287 = vst [vmem:[%s265 + $0x50] sm:$0xff] %v286
                %v288 = vld [vmem:[%s264 + $0x98] sm:$0xff]
                %289 = vst [vmem:[%s265 + $0x58] sm:$0xff] %v288
                %v290 = vld [vmem:[%s264 + $0xc0] sm:$0xff]
                %291 = vst [vmem:[%s265 + $0x60] sm:$0xff] %v290
                %v292 = vld [vmem:[%s264 + $0xc8] sm:$0xff]
                %293 = vst [vmem:[%s265 + $0x68] sm:$0xff] %v292
                %v294 = vld [vmem:[%s264 + $0xd0] sm:$0xff]
                %295 = vst [vmem:[%s265 + $0x70] sm:$0xff] %v294
                %v296 = vld [vmem:[%s264 + $0xd8] sm:$0xff]
                %297 = vst [vmem:[%s265 + $0x78] sm:$0xff] %v296
                %v298 = vld [vmem:[%s264 + $0x100] sm:$0xff]
                %299 = vst [vmem:[%s265 + $0x80] sm:$0xff] %v298
                %v300 = vld [vmem:[%s264 + $0x108] sm:$0xff]
                %301 = vst [vmem:[%s265 + $0x88] sm:$0xff] %v300
                %v302 = vld [vmem:[%s264 + $0x110] sm:$0xff]
                %303 = vst [vmem:[%s265 + $0x90] sm:$0xff] %v302
                %v304 = vld [vmem:[%s264 + $0x118] sm:$0xff]
                %305 = vst [vmem:[%s265 + $0x98] sm:$0xff] %v304
                %v306 = vld [vmem:[%s264 + $0x140] sm:$0xff]
                %307 = vst [vmem:[%s265 + $0xa0] sm:$0xff] %v306
                %v308 = vld [vmem:[%s264 + $0x148] sm:$0xff]
                %309 = vst [vmem:[%s265 + $0xa8] sm:$0xff] %v308
                %v310 = vld [vmem:[%s264 + $0x150] sm:$0xff]
                %311 = vst [vmem:[%s265 + $0xb0] sm:$0xff] %v310
                %v312 = vld [vmem:[%s264 + $0x158] sm:$0xff]
                %313 = vst [vmem:[%s265 + $0xb8] sm:$0xff] %v312
                %v314 = vld [vmem:[%s264 + $0x180] sm:$0xff]
                %315 = vst [vmem:[%s265 + $0xc0] sm:$0xff] %v314
                %v316 = vld [vmem:[%s264 + $0x188] sm:$0xff]
                %317 = vst [vmem:[%s265 + $0xc8] sm:$0xff] %v316
                %v318 = vld [vmem:[%s264 + $0x190] sm:$0xff]
                %319 = vst [vmem:[%s265 + $0xd0] sm:$0xff] %v318
                %v320 = vld [vmem:[%s264 + $0x198] sm:$0xff]
                %321 = vst [vmem:[%s265 + $0xd8] sm:$0xff] %v320
                %v322 = vld [vmem:[%s264 + $0x1c0] sm:$0xff]
                %323 = vst [vmem:[%s265 + $0xe0] sm:$0xff] %v322
                %v324 = vld [vmem:[%s264 + $0x1c8] sm:$0xff]
                %325 = vst [vmem:[%s265 + $0xe8] sm:$0xff] %v324
                %v326 = vld [vmem:[%s264 + $0x1d0] sm:$0xff]
                %327 = vst [vmem:[%s265 + $0xf0] sm:$0xff] %v326
                %v328 = vld [vmem:[%s264 + $0x1d8] sm:$0xff]
                %329 = vst [vmem:[%s265 + $0xf8] sm:$0xff] %v328
                %v330 = vld [vmem:[%s264 + $0x200] sm:$0xff]
                %331 = vst [vmem:[%s265 + $0x100] sm:$0xff] %v330
                %v332 = vld [vmem:[%s264 + $0x208] sm:$0xff]
                %333 = vst [vmem:[%s265 + $0x108] sm:$0xff] %v332
                %v334 = vld [vmem:[%s264 + $0x210] sm:$0xff]
                %335 = vst [vmem:[%s265 + $0x110] sm:$0xff] %v334
                %v336 = vld [vmem:[%s264 + $0x218] sm:$0xff]
                %337 = vst [vmem:[%s265 + $0x118] sm:$0xff] %v336
                %v338 = vld [vmem:[%s264 + $0x240] sm:$0xff]
                %339 = vst [vmem:[%s265 + $0x120] sm:$0xff] %v338
                %v340 = vld [vmem:[%s264 + $0x248] sm:$0xff]
                %341 = vst [vmem:[%s265 + $0x128] sm:$0xff] %v340
                %v342 = vld [vmem:[%s264 + $0x250] sm:$0xff]
                %343 = vst [vmem:[%s265 + $0x130] sm:$0xff] %v342
                %v344 = vld [vmem:[%s264 + $0x258] sm:$0xff]
                %345 = vst [vmem:[%s265 + $0x138] sm:$0xff] %v344
                %v346 = vld [vmem:[%s264 + $0x280] sm:$0xff]
                %347 = vst [vmem:[%s265 + $0x140] sm:$0xff] %v346
                %v348 = vld [vmem:[%s264 + $0x288] sm:$0xff]
                %349 = vst [vmem:[%s265 + $0x148] sm:$0xff] %v348
                %v350 = vld [vmem:[%s264 + $0x290] sm:$0xff]
                %351 = vst [vmem:[%s265 + $0x150] sm:$0xff] %v350
                %v352 = vld [vmem:[%s264 + $0x298] sm:$0xff]
                %353 = vst [vmem:[%s265 + $0x158] sm:$0xff] %v352
                %v354 = vld [vmem:[%s264 + $0x2c0] sm:$0xff]
                %355 = vst [vmem:[%s265 + $0x160] sm:$0xff] %v354
                %v356 = vld [vmem:[%s264 + $0x2c8] sm:$0xff]
                %357 = vst [vmem:[%s265 + $0x168] sm:$0xff] %v356
                %v358 = vld [vmem:[%s264 + $0x2d0] sm:$0xff]
                %359 = vst [vmem:[%s265 + $0x170] sm:$0xff] %v358
                %v360 = vld [vmem:[%s264 + $0x2d8] sm:$0xff]
                %361 = vst [vmem:[%s265 + $0x178] sm:$0xff] %v360
                %v362 = vld [vmem:[%s264 + $0x300] sm:$0xff]
                %363 = vst [vmem:[%s265 + $0x180] sm:$0xff] %v362
                %v364 = vld [vmem:[%s264 + $0x308] sm:$0xff]
                %365 = vst [vmem:[%s265 + $0x188] sm:$0xff] %v364
                %v366 = vld [vmem:[%s264 + $0x310] sm:$0xff]
                %367 = vst [vmem:[%s265 + $0x190] sm:$0xff] %v366
                %v368 = vld [vmem:[%s264 + $0x318] sm:$0xff]
                %369 = vst [vmem:[%s265 + $0x198] sm:$0xff] %v368
                %v370 = vld [vmem:[%s264 + $0x340] sm:$0xff]
                %371 = vst [vmem:[%s265 + $0x1a0] sm:$0xff] %v370
                %v372 = vld [vmem:[%s264 + $0x348] sm:$0xff]
                %373 = vst [vmem:[%s265 + $0x1a8] sm:$0xff] %v372
                %v374 = vld [vmem:[%s264 + $0x350] sm:$0xff]
                %375 = vst [vmem:[%s265 + $0x1b0] sm:$0xff] %v374
                %v376 = vld [vmem:[%s264 + $0x358] sm:$0xff]
                %377 = vst [vmem:[%s265 + $0x1b8] sm:$0xff] %v376
                %v378 = vld [vmem:[%s264 + $0x380] sm:$0xff]
                %379 = vst [vmem:[%s265 + $0x1c0] sm:$0xff] %v378
                %v380 = vld [vmem:[%s264 + $0x388] sm:$0xff]
                %381 = vst [vmem:[%s265 + $0x1c8] sm:$0xff] %v380
                %v382 = vld [vmem:[%s264 + $0x390] sm:$0xff]
                %383 = vst [vmem:[%s265 + $0x1d0] sm:$0xff] %v382
                %v384 = vld [vmem:[%s264 + $0x398] sm:$0xff]
                %385 = vst [vmem:[%s265 + $0x1d8] sm:$0xff] %v384
                %v386 = vld [vmem:[%s264 + $0x3c0] sm:$0xff]
                %387 = vst [vmem:[%s265 + $0x1e0] sm:$0xff] %v386
                %v388 = vld [vmem:[%s264 + $0x3c8] sm:$0xff]
                %389 = vst [vmem:[%s265 + $0x1e8] sm:$0xff] %v388
                %v390 = vld [vmem:[%s264 + $0x3d0] sm:$0xff]
                %391 = vst [vmem:[%s265 + $0x1f0] sm:$0xff] %v390
                %v392 = vld [vmem:[%s264 + $0x3d8] sm:$0xff]
                %393 = vst [vmem:[%s265 + $0x1f8] sm:$0xff] %v392
                %v394 = vld [vmem:[%s264 + $0x400] sm:$0xff]
                %395 = vst [vmem:[%s265 + $0x200] sm:$0xff] %v394
                %v396 = vld [vmem:[%s264 + $0x408] sm:$0xff]
                %397 = vst [vmem:[%s265 + $0x208] sm:$0xff] %v396
                %v398 = vld [vmem:[%s264 + $0x410] sm:$0xff]
                %399 = vst [vmem:[%s265 + $0x210] sm:$0xff] %v398
                %v400 = vld [vmem:[%s264 + $0x418] sm:$0xff]
                %401 = vst [vmem:[%s265 + $0x218] sm:$0xff] %v400
                %v402 = vld [vmem:[%s264 + $0x440] sm:$0xff]
                %403 = vst [vmem:[%s265 + $0x220] sm:$0xff] %v402
                %v404 = vld [vmem:[%s264 + $0x448] sm:$0xff]
                %405 = vst [vmem:[%s265 + $0x228] sm:$0xff] %v404
                %v406 = vld [vmem:[%s264 + $0x450] sm:$0xff]
                %407 = vst [vmem:[%s265 + $0x230] sm:$0xff] %v406
                %v408 = vld [vmem:[%s264 + $0x458] sm:$0xff]
                %409 = vst [vmem:[%s265 + $0x238] sm:$0xff] %v408
                %v410 = vld [vmem:[%s264 + $0x480] sm:$0xff]
                %411 = vst [vmem:[%s265 + $0x240] sm:$0xff] %v410
                %v412 = vld [vmem:[%s264 + $0x488] sm:$0xff]
                %413 = vst [vmem:[%s265 + $0x248] sm:$0xff] %v412
                %v414 = vld [vmem:[%s264 + $0x490] sm:$0xff]
                %415 = vst [vmem:[%s265 + $0x250] sm:$0xff] %v414
                %v416 = vld [vmem:[%s264 + $0x498] sm:$0xff]
                %417 = vst [vmem:[%s265 + $0x258] sm:$0xff] %v416
                %v418 = vld [vmem:[%s264 + $0x4c0] sm:$0xff]
                %419 = vst [vmem:[%s265 + $0x260] sm:$0xff] %v418
                %v420 = vld [vmem:[%s264 + $0x4c8] sm:$0xff]
                %421 = vst [vmem:[%s265 + $0x268] sm:$0xff] %v420
                %v422 = vld [vmem:[%s264 + $0x4d0] sm:$0xff]
                %423 = vst [vmem:[%s265 + $0x270] sm:$0xff] %v422
                %v424 = vld [vmem:[%s264 + $0x4d8] sm:$0xff]
                %425 = vst [vmem:[%s265 + $0x278] sm:$0xff] %v424
                %v426 = vld [vmem:[%s264 + $0x500] sm:$0xff]
                %427 = vst [vmem:[%s265 + $0x280] sm:$0xff] %v426
                %v428 = vld [vmem:[%s264 + $0x508] sm:$0xff]
                %429 = vst [vmem:[%s265 + $0x288] sm:$0xff] %v428
                %v430 = vld [vmem:[%s264 + $0x510] sm:$0xff]
                %431 = vst [vmem:[%s265 + $0x290] sm:$0xff] %v430
                %v432 = vld [vmem:[%s264 + $0x518] sm:$0xff]
                %433 = vst [vmem:[%s265 + $0x298] sm:$0xff] %v432
                %v434 = vld [vmem:[%s264 + $0x540] sm:$0xff]
                %435 = vst [vmem:[%s265 + $0x2a0] sm:$0xff] %v434
                %v436 = vld [vmem:[%s264 + $0x548] sm:$0xff]
                %437 = vst [vmem:[%s265 + $0x2a8] sm:$0xff] %v436
                %v438 = vld [vmem:[%s264 + $0x550] sm:$0xff]
                %439 = vst [vmem:[%s265 + $0x2b0] sm:$0xff] %v438
                %v440 = vld [vmem:[%s264 + $0x558] sm:$0xff]
                %441 = vst [vmem:[%s265 + $0x2b8] sm:$0xff] %v440
                %v442 = vld [vmem:[%s264 + $0x580] sm:$0xff]
                %443 = vst [vmem:[%s265 + $0x2c0] sm:$0xff] %v442
                %v444 = vld [vmem:[%s264 + $0x588] sm:$0xff]
                %445 = vst [vmem:[%s265 + $0x2c8] sm:$0xff] %v444
                %v446 = vld [vmem:[%s264 + $0x590] sm:$0xff]
                %447 = vst [vmem:[%s265 + $0x2d0] sm:$0xff] %v446
                %v448 = vld [vmem:[%s264 + $0x598] sm:$0xff]
                %449 = vst [vmem:[%s265 + $0x2d8] sm:$0xff] %v448
                %v450 = vld [vmem:[%s264 + $0x5c0] sm:$0xff]
                %451 = vst [vmem:[%s265 + $0x2e0] sm:$0xff] %v450
                %v452 = vld [vmem:[%s264 + $0x5c8] sm:$0xff]
                %453 = vst [vmem:[%s265 + $0x2e8] sm:$0xff] %v452
                %v454 = vld [vmem:[%s264 + $0x5d0] sm:$0xff]
                %455 = vst [vmem:[%s265 + $0x2f0] sm:$0xff] %v454
                %v456 = vld [vmem:[%s264 + $0x5d8] sm:$0xff]
                %457 = vst [vmem:[%s265 + $0x2f8] sm:$0xff] %v456
                %v458 = vld [vmem:[%s264 + $0x600] sm:$0xff]
                %459 = vst [vmem:[%s265 + $0x300] sm:$0xff] %v458
                %v460 = vld [vmem:[%s264 + $0x608] sm:$0xff]
                %461 = vst [vmem:[%s265 + $0x308] sm:$0xff] %v460
                %v462 = vld [vmem:[%s264 + $0x610] sm:$0xff]
                %463 = vst [vmem:[%s265 + $0x310] sm:$0xff] %v462
                %v464 = vld [vmem:[%s264 + $0x618] sm:$0xff]
                %465 = vst [vmem:[%s265 + $0x318] sm:$0xff] %v464
                %v466 = vld [vmem:[%s264 + $0x640] sm:$0xff]
                %467 = vst [vmem:[%s265 + $0x320] sm:$0xff] %v466
                %v468 = vld [vmem:[%s264 + $0x648] sm:$0xff]
                %469 = vst [vmem:[%s265 + $0x328] sm:$0xff] %v468
                %v470 = vld [vmem:[%s264 + $0x650] sm:$0xff]
                %471 = vst [vmem:[%s265 + $0x330] sm:$0xff] %v470
                %v472 = vld [vmem:[%s264 + $0x658] sm:$0xff]
                %473 = vst [vmem:[%s265 + $0x338] sm:$0xff] %v472
                %v474 = vld [vmem:[%s264 + $0x680] sm:$0xff]
                %475 = vst [vmem:[%s265 + $0x340] sm:$0xff] %v474
                %v476 = vld [vmem:[%s264 + $0x688] sm:$0xff]
                %477 = vst [vmem:[%s265 + $0x348] sm:$0xff] %v476
                %v478 = vld [vmem:[%s264 + $0x690] sm:$0xff]
                %479 = vst [vmem:[%s265 + $0x350] sm:$0xff] %v478
                %v480 = vld [vmem:[%s264 + $0x698] sm:$0xff]
                %481 = vst [vmem:[%s265 + $0x358] sm:$0xff] %v480
                %v482 = vld [vmem:[%s264 + $0x6c0] sm:$0xff]
                %483 = vst [vmem:[%s265 + $0x360] sm:$0xff] %v482
                %v484 = vld [vmem:[%s264 + $0x6c8] sm:$0xff]
                %485 = vst [vmem:[%s265 + $0x368] sm:$0xff] %v484
                %v486 = vld [vmem:[%s264 + $0x6d0] sm:$0xff]
                %487 = vst [vmem:[%s265 + $0x370] sm:$0xff] %v486
                %v488 = vld [vmem:[%s264 + $0x6d8] sm:$0xff]
                %489 = vst [vmem:[%s265 + $0x378] sm:$0xff] %v488
                %v490 = vld [vmem:[%s264 + $0x700] sm:$0xff]
                %491 = vst [vmem:[%s265 + $0x380] sm:$0xff] %v490
                %v492 = vld [vmem:[%s264 + $0x708] sm:$0xff]
                %493 = vst [vmem:[%s265 + $0x388] sm:$0xff] %v492
                %v494 = vld [vmem:[%s264 + $0x710] sm:$0xff]
                %495 = vst [vmem:[%s265 + $0x390] sm:$0xff] %v494
                %v496 = vld [vmem:[%s264 + $0x718] sm:$0xff]
                %497 = vst [vmem:[%s265 + $0x398] sm:$0xff] %v496
                %v498 = vld [vmem:[%s264 + $0x740] sm:$0xff]
                %499 = vst [vmem:[%s265 + $0x3a0] sm:$0xff] %v498
                %v500 = vld [vmem:[%s264 + $0x748] sm:$0xff]
                %501 = vst [vmem:[%s265 + $0x3a8] sm:$0xff] %v500
                %v502 = vld [vmem:[%s264 + $0x750] sm:$0xff]
                %503 = vst [vmem:[%s265 + $0x3b0] sm:$0xff] %v502
                %v504 = vld [vmem:[%s264 + $0x758] sm:$0xff]
                %505 = vst [vmem:[%s265 + $0x3b8] sm:$0xff] %v504
                %v506 = vld [vmem:[%s264 + $0x780] sm:$0xff]
                %507 = vst [vmem:[%s265 + $0x3c0] sm:$0xff] %v506
                %v508 = vld [vmem:[%s264 + $0x788] sm:$0xff]
                %509 = vst [vmem:[%s265 + $0x3c8] sm:$0xff] %v508
                %v510 = vld [vmem:[%s264 + $0x790] sm:$0xff]
                %511 = vst [vmem:[%s265 + $0x3d0] sm:$0xff] %v510
                %v512 = vld [vmem:[%s264 + $0x798] sm:$0xff]
                %513 = vst [vmem:[%s265 + $0x3d8] sm:$0xff] %v512
                %v514 = vld [vmem:[%s264 + $0x7c0] sm:$0xff]
                %515 = vst [vmem:[%s265 + $0x3e0] sm:$0xff] %v514
                %v516 = vld [vmem:[%s264 + $0x7c8] sm:$0xff]
                %517 = vst [vmem:[%s265 + $0x3e8] sm:$0xff] %v516
                %v518 = vld [vmem:[%s264 + $0x7d0] sm:$0xff]
                %519 = vst [vmem:[%s265 + $0x3f0] sm:$0xff] %v518
                %v520 = vld [vmem:[%s264 + $0x7d8] sm:$0xff]
                %521 = vst [vmem:[%s265 + $0x3f8] sm:$0xff] %v520
                %v522 = vld [vmem:[%s264 + $0x800] sm:$0xff]
                %523 = vst [vmem:[%s265 + $0x400] sm:$0xff] %v522
                %v524 = vld [vmem:[%s264 + $0x808] sm:$0xff]
                %525 = vst [vmem:[%s265 + $0x408] sm:$0xff] %v524
                %v526 = vld [vmem:[%s264 + $0x810] sm:$0xff]
                %527 = vst [vmem:[%s265 + $0x410] sm:$0xff] %v526
                %v528 = vld [vmem:[%s264 + $0x818] sm:$0xff]
                %529 = vst [vmem:[%s265 + $0x418] sm:$0xff] %v528
                %v530 = vld [vmem:[%s264 + $0x840] sm:$0xff]
                %531 = vst [vmem:[%s265 + $0x420] sm:$0xff] %v530
                %v532 = vld [vmem:[%s264 + $0x848] sm:$0xff]
                %533 = vst [vmem:[%s265 + $0x428] sm:$0xff] %v532
                %v534 = vld [vmem:[%s264 + $0x850] sm:$0xff]
                %535 = vst [vmem:[%s265 + $0x430] sm:$0xff] %v534
                %v536 = vld [vmem:[%s264 + $0x858] sm:$0xff]
                %537 = vst [vmem:[%s265 + $0x438] sm:$0xff] %v536
                %v538 = vld [vmem:[%s264 + $0x880] sm:$0xff]
                %539 = vst [vmem:[%s265 + $0x440] sm:$0xff] %v538
                %v540 = vld [vmem:[%s264 + $0x888] sm:$0xff]
                %541 = vst [vmem:[%s265 + $0x448] sm:$0xff] %v540
                %v542 = vld [vmem:[%s264 + $0x890] sm:$0xff]
                %543 = vst [vmem:[%s265 + $0x450] sm:$0xff] %v542
                %v544 = vld [vmem:[%s264 + $0x898] sm:$0xff]
                %545 = vst [vmem:[%s265 + $0x458] sm:$0xff] %v544
                %v546 = vld [vmem:[%s264 + $0x8c0] sm:$0xff]
                %547 = vst [vmem:[%s265 + $0x460] sm:$0xff] %v546
                %v548 = vld [vmem:[%s264 + $0x8c8] sm:$0xff]
                %549 = vst [vmem:[%s265 + $0x468] sm:$0xff] %v548
                %v550 = vld [vmem:[%s264 + $0x8d0] sm:$0xff]
                %551 = vst [vmem:[%s265 + $0x470] sm:$0xff] %v550
                %v552 = vld [vmem:[%s264 + $0x8d8] sm:$0xff]
                %553 = vst [vmem:[%s265 + $0x478] sm:$0xff] %v552
                %v554 = vld [vmem:[%s264 + $0x900] sm:$0xff]
                %555 = vst [vmem:[%s265 + $0x480] sm:$0xff] %v554
                %v556 = vld [vmem:[%s264 + $0x908] sm:$0xff]
                %557 = vst [vmem:[%s265 + $0x488] sm:$0xff] %v556
                %v558 = vld [vmem:[%s264 + $0x910] sm:$0xff]
                %559 = vst [vmem:[%s265 + $0x490] sm:$0xff] %v558
                %v560 = vld [vmem:[%s264 + $0x918] sm:$0xff]
                %561 = vst [vmem:[%s265 + $0x498] sm:$0xff] %v560
                %v562 = vld [vmem:[%s264 + $0x940] sm:$0xff]
                %563 = vst [vmem:[%s265 + $0x4a0] sm:$0xff] %v562
                %v564 = vld [vmem:[%s264 + $0x948] sm:$0xff]
                %565 = vst [vmem:[%s265 + $0x4a8] sm:$0xff] %v564
                %v566 = vld [vmem:[%s264 + $0x950] sm:$0xff]
                %567 = vst [vmem:[%s265 + $0x4b0] sm:$0xff] %v566
                %v568 = vld [vmem:[%s264 + $0x958] sm:$0xff]
                %569 = vst [vmem:[%s265 + $0x4b8] sm:$0xff] %v568
                %v570 = vld [vmem:[%s264 + $0x980] sm:$0xff]
                %571 = vst [vmem:[%s265 + $0x4c0] sm:$0xff] %v570
                %v572 = vld [vmem:[%s264 + $0x988] sm:$0xff]
                %573 = vst [vmem:[%s265 + $0x4c8] sm:$0xff] %v572
                %v574 = vld [vmem:[%s264 + $0x990] sm:$0xff]
                %575 = vst [vmem:[%s265 + $0x4d0] sm:$0xff] %v574
                %v576 = vld [vmem:[%s264 + $0x998] sm:$0xff]
                %577 = vst [vmem:[%s265 + $0x4d8] sm:$0xff] %v576
                %v578 = vld [vmem:[%s264 + $0x9c0] sm:$0xff]
                %579 = vst [vmem:[%s265 + $0x4e0] sm:$0xff] %v578
                %v580 = vld [vmem:[%s264 + $0x9c8] sm:$0xff]
                %581 = vst [vmem:[%s265 + $0x4e8] sm:$0xff] %v580
                %v582 = vld [vmem:[%s264 + $0x9d0] sm:$0xff]
                %583 = vst [vmem:[%s265 + $0x4f0] sm:$0xff] %v582
                %v584 = vld [vmem:[%s264 + $0x9d8] sm:$0xff]
                %585 = vst [vmem:[%s265 + $0x4f8] sm:$0xff] %v584
                %v586 = vld [vmem:[%s264 + $0xa00] sm:$0xff]
                %587 = vst [vmem:[%s265 + $0x500] sm:$0xff] %v586
                %v588 = vld [vmem:[%s264 + $0xa08] sm:$0xff]
                %589 = vst [vmem:[%s265 + $0x508] sm:$0xff] %v588
                %v590 = vld [vmem:[%s264 + $0xa10] sm:$0xff]
                %591 = vst [vmem:[%s265 + $0x510] sm:$0xff] %v590
                %v592 = vld [vmem:[%s264 + $0xa18] sm:$0xff]
                %593 = vst [vmem:[%s265 + $0x518] sm:$0xff] %v592
                %v594 = vld [vmem:[%s264 + $0xa40] sm:$0xff]
                %595 = vst [vmem:[%s265 + $0x520] sm:$0xff] %v594
                %v596 = vld [vmem:[%s264 + $0xa48] sm:$0xff]
                %597 = vst [vmem:[%s265 + $0x528] sm:$0xff] %v596
                %v598 = vld [vmem:[%s264 + $0xa50] sm:$0xff]
                %599 = vst [vmem:[%s265 + $0x530] sm:$0xff] %v598
                %v600 = vld [vmem:[%s264 + $0xa58] sm:$0xff]
                %601 = vst [vmem:[%s265 + $0x538] sm:$0xff] %v600
                %v602 = vld [vmem:[%s264 + $0xa80] sm:$0xff]
                %603 = vst [vmem:[%s265 + $0x540] sm:$0xff] %v602
                %v604 = vld [vmem:[%s264 + $0xa88] sm:$0xff]
                %605 = vst [vmem:[%s265 + $0x548] sm:$0xff] %v604
                %v606 = vld [vmem:[%s264 + $0xa90] sm:$0xff]
                %607 = vst [vmem:[%s265 + $0x550] sm:$0xff] %v606
                %v608 = vld [vmem:[%s264 + $0xa98] sm:$0xff]
                %609 = vst [vmem:[%s265 + $0x558] sm:$0xff] %v608
                %v610 = vld [vmem:[%s264 + $0xac0] sm:$0xff]
                %611 = vst [vmem:[%s265 + $0x560] sm:$0xff] %v610
                %v612 = vld [vmem:[%s264 + $0xac8] sm:$0xff]
                %613 = vst [vmem:[%s265 + $0x568] sm:$0xff] %v612
                %v614 = vld [vmem:[%s264 + $0xad0] sm:$0xff]
                %615 = vst [vmem:[%s265 + $0x570] sm:$0xff] %v614
                %v616 = vld [vmem:[%s264 + $0xad8] sm:$0xff]
                %617 = vst [vmem:[%s265 + $0x578] sm:$0xff] %v616
                %v618 = vld [vmem:[%s264 + $0xb00] sm:$0xff]
                %619 = vst [vmem:[%s265 + $0x580] sm:$0xff] %v618
                %v620 = vld [vmem:[%s264 + $0xb08] sm:$0xff]
                %621 = vst [vmem:[%s265 + $0x588] sm:$0xff] %v620
                %v622 = vld [vmem:[%s264 + $0xb10] sm:$0xff]
                %623 = vst [vmem:[%s265 + $0x590] sm:$0xff] %v622
                %v624 = vld [vmem:[%s264 + $0xb18] sm:$0xff]
                %625 = vst [vmem:[%s265 + $0x598] sm:$0xff] %v624
                %v626 = vld [vmem:[%s264 + $0xb40] sm:$0xff]
                %627 = vst [vmem:[%s265 + $0x5a0] sm:$0xff] %v626
                %v628 = vld [vmem:[%s264 + $0xb48] sm:$0xff]
                %629 = vst [vmem:[%s265 + $0x5a8] sm:$0xff] %v628
                %v630 = vld [vmem:[%s264 + $0xb50] sm:$0xff]
                %631 = vst [vmem:[%s265 + $0x5b0] sm:$0xff] %v630
                %v632 = vld [vmem:[%s264 + $0xb58] sm:$0xff]
                %633 = vst [vmem:[%s265 + $0x5b8] sm:$0xff] %v632
                %v634 = vld [vmem:[%s264 + $0xb80] sm:$0xff]
                %635 = vst [vmem:[%s265 + $0x5c0] sm:$0xff] %v634
                %v636 = vld [vmem:[%s264 + $0xb88] sm:$0xff]
                %637 = vst [vmem:[%s265 + $0x5c8] sm:$0xff] %v636
                %v638 = vld [vmem:[%s264 + $0xb90] sm:$0xff]
                %639 = vst [vmem:[%s265 + $0x5d0] sm:$0xff] %v638
                %v640 = vld [vmem:[%s264 + $0xb98] sm:$0xff]
                %641 = vst [vmem:[%s265 + $0x5d8] sm:$0xff] %v640
                %v642 = vld [vmem:[%s264 + $0xbc0] sm:$0xff]
                %643 = vst [vmem:[%s265 + $0x5e0] sm:$0xff] %v642
                %v644 = vld [vmem:[%s264 + $0xbc8] sm:$0xff]
                %645 = vst [vmem:[%s265 + $0x5e8] sm:$0xff] %v644
                %v646 = vld [vmem:[%s264 + $0xbd0] sm:$0xff]
                %647 = vst [vmem:[%s265 + $0x5f0] sm:$0xff] %v646
                %v648 = vld [vmem:[%s264 + $0xbd8] sm:$0xff]
                %649 = vst [vmem:[%s265 + $0x5f8] sm:$0xff] %v648
                %v650 = vld [vmem:[%s264 + $0xc00] sm:$0xff]
                %651 = vst [vmem:[%s265 + $0x600] sm:$0xff] %v650
                %v652 = vld [vmem:[%s264 + $0xc08] sm:$0xff]
                %653 = vst [vmem:[%s265 + $0x608] sm:$0xff] %v652
                %v654 = vld [vmem:[%s264 + $0xc10] sm:$0xff]
                %655 = vst [vmem:[%s265 + $0x610] sm:$0xff] %v654
                %v656 = vld [vmem:[%s264 + $0xc18] sm:$0xff]
                %657 = vst [vmem:[%s265 + $0x618] sm:$0xff] %v656
                %v658 = vld [vmem:[%s264 + $0xc40] sm:$0xff]
                %659 = vst [vmem:[%s265 + $0x620] sm:$0xff] %v658
                %v660 = vld [vmem:[%s264 + $0xc48] sm:$0xff]
                %661 = vst [vmem:[%s265 + $0x628] sm:$0xff] %v660
                %v662 = vld [vmem:[%s264 + $0xc50] sm:$0xff]
                %663 = vst [vmem:[%s265 + $0x630] sm:$0xff] %v662
                %v664 = vld [vmem:[%s264 + $0xc58] sm:$0xff]
                %665 = vst [vmem:[%s265 + $0x638] sm:$0xff] %v664
                %v666 = vld [vmem:[%s264 + $0xc80] sm:$0xff]
                %667 = vst [vmem:[%s265 + $0x640] sm:$0xff] %v666
                %v668 = vld [vmem:[%s264 + $0xc88] sm:$0xff]
                %669 = vst [vmem:[%s265 + $0x648] sm:$0xff] %v668
                %v670 = vld [vmem:[%s264 + $0xc90] sm:$0xff]
                %671 = vst [vmem:[%s265 + $0x650] sm:$0xff] %v670
                %v672 = vld [vmem:[%s264 + $0xc98] sm:$0xff]
                %673 = vst [vmem:[%s265 + $0x658] sm:$0xff] %v672
                %v674 = vld [vmem:[%s264 + $0xcc0] sm:$0xff]
                %675 = vst [vmem:[%s265 + $0x660] sm:$0xff] %v674
                %v676 = vld [vmem:[%s264 + $0xcc8] sm:$0xff]
                %677 = vst [vmem:[%s265 + $0x668] sm:$0xff] %v676
                %v678 = vld [vmem:[%s264 + $0xcd0] sm:$0xff]
                %679 = vst [vmem:[%s265 + $0x670] sm:$0xff] %v678
                %v680 = vld [vmem:[%s264 + $0xcd8] sm:$0xff]
                %681 = vst [vmem:[%s265 + $0x678] sm:$0xff] %v680
                %v682 = vld [vmem:[%s264 + $0xd00] sm:$0xff]
                %683 = vst [vmem:[%s265 + $0x680] sm:$0xff] %v682
                %v684 = vld [vmem:[%s264 + $0xd08] sm:$0xff]
                %685 = vst [vmem:[%s265 + $0x688] sm:$0xff] %v684
                %v686 = vld [vmem:[%s264 + $0xd10] sm:$0xff]
                %687 = vst [vmem:[%s265 + $0x690] sm:$0xff] %v686
                %v688 = vld [vmem:[%s264 + $0xd18] sm:$0xff]
                %689 = vst [vmem:[%s265 + $0x698] sm:$0xff] %v688
                %v690 = vld [vmem:[%s264 + $0xd40] sm:$0xff]
                %691 = vst [vmem:[%s265 + $0x6a0] sm:$0xff] %v690
                %v692 = vld [vmem:[%s264 + $0xd48] sm:$0xff]
                %693 = vst [vmem:[%s265 + $0x6a8] sm:$0xff] %v692
                %v694 = vld [vmem:[%s264 + $0xd50] sm:$0xff]
                %695 = vst [vmem:[%s265 + $0x6b0] sm:$0xff] %v694
                %v696 = vld [vmem:[%s264 + $0xd58] sm:$0xff]
                %697 = vst [vmem:[%s265 + $0x6b8] sm:$0xff] %v696
                %v698 = vld [vmem:[%s264 + $0xd80] sm:$0xff]
                %699 = vst [vmem:[%s265 + $0x6c0] sm:$0xff] %v698
                %v700 = vld [vmem:[%s264 + $0xd88] sm:$0xff]
                %701 = vst [vmem:[%s265 + $0x6c8] sm:$0xff] %v700
                %v702 = vld [vmem:[%s264 + $0xd90] sm:$0xff]
                %703 = vst [vmem:[%s265 + $0x6d0] sm:$0xff] %v702
                %v704 = vld [vmem:[%s264 + $0xd98] sm:$0xff]
                %705 = vst [vmem:[%s265 + $0x6d8] sm:$0xff] %v704
                %v706 = vld [vmem:[%s264 + $0xdc0] sm:$0xff]
                %707 = vst [vmem:[%s265 + $0x6e0] sm:$0xff] %v706
                %v708 = vld [vmem:[%s264 + $0xdc8] sm:$0xff]
                %709 = vst [vmem:[%s265 + $0x6e8] sm:$0xff] %v708
                %v710 = vld [vmem:[%s264 + $0xdd0] sm:$0xff]
                %711 = vst [vmem:[%s265 + $0x6f0] sm:$0xff] %v710
                %v712 = vld [vmem:[%s264 + $0xdd8] sm:$0xff]
                %713 = vst [vmem:[%s265 + $0x6f8] sm:$0xff] %v712
                %v714 = vld [vmem:[%s264 + $0xe00] sm:$0xff]
                %715 = vst [vmem:[%s265 + $0x700] sm:$0xff] %v714
                %v716 = vld [vmem:[%s264 + $0xe08] sm:$0xff]
                %717 = vst [vmem:[%s265 + $0x708] sm:$0xff] %v716
                %v718 = vld [vmem:[%s264 + $0xe10] sm:$0xff]
                %719 = vst [vmem:[%s265 + $0x710] sm:$0xff] %v718
                %v720 = vld [vmem:[%s264 + $0xe18] sm:$0xff]
                %721 = vst [vmem:[%s265 + $0x718] sm:$0xff] %v720
                %v722 = vld [vmem:[%s264 + $0xe40] sm:$0xff]
                %723 = vst [vmem:[%s265 + $0x720] sm:$0xff] %v722
                %v724 = vld [vmem:[%s264 + $0xe48] sm:$0xff]
                %725 = vst [vmem:[%s265 + $0x728] sm:$0xff] %v724
                %v726 = vld [vmem:[%s264 + $0xe50] sm:$0xff]
                %727 = vst [vmem:[%s265 + $0x730] sm:$0xff] %v726
                %v728 = vld [vmem:[%s264 + $0xe58] sm:$0xff]
                %729 = vst [vmem:[%s265 + $0x738] sm:$0xff] %v728
                %v730 = vld [vmem:[%s264 + $0xe80] sm:$0xff]
                %731 = vst [vmem:[%s265 + $0x740] sm:$0xff] %v730
                %v732 = vld [vmem:[%s264 + $0xe88] sm:$0xff]
                %733 = vst [vmem:[%s265 + $0x748] sm:$0xff] %v732
                %v734 = vld [vmem:[%s264 + $0xe90] sm:$0xff]
                %735 = vst [vmem:[%s265 + $0x750] sm:$0xff] %v734
                %v736 = vld [vmem:[%s264 + $0xe98] sm:$0xff]
                %737 = vst [vmem:[%s265 + $0x758] sm:$0xff] %v736
                %v738 = vld [vmem:[%s264 + $0xec0] sm:$0xff]
                %739 = vst [vmem:[%s265 + $0x760] sm:$0xff] %v738
                %v740 = vld [vmem:[%s264 + $0xec8] sm:$0xff]
                %741 = vst [vmem:[%s265 + $0x768] sm:$0xff] %v740
                %v742 = vld [vmem:[%s264 + $0xed0] sm:$0xff]
                %743 = vst [vmem:[%s265 + $0x770] sm:$0xff] %v742
                %v744 = vld [vmem:[%s264 + $0xed8] sm:$0xff]
                %745 = vst [vmem:[%s265 + $0x778] sm:$0xff] %v744
                %v746 = vld [vmem:[%s264 + $0xf00] sm:$0xff]
                %747 = vst [vmem:[%s265 + $0x780] sm:$0xff] %v746
                %v748 = vld [vmem:[%s264 + $0xf08] sm:$0xff]
                %749 = vst [vmem:[%s265 + $0x788] sm:$0xff] %v748
                %v750 = vld [vmem:[%s264 + $0xf10] sm:$0xff]
                %751 = vst [vmem:[%s265 + $0x790] sm:$0xff] %v750
                %v752 = vld [vmem:[%s264 + $0xf18] sm:$0xff]
                %753 = vst [vmem:[%s265 + $0x798] sm:$0xff] %v752
                %v754 = vld [vmem:[%s264 + $0xf40] sm:$0xff]
                %755 = vst [vmem:[%s265 + $0x7a0] sm:$0xff] %v754
                %v756 = vld [vmem:[%s264 + $0xf48] sm:$0xff]
                %757 = vst [vmem:[%s265 + $0x7a8] sm:$0xff] %v756
                %v758 = vld [vmem:[%s264 + $0xf50] sm:$0xff]
                %759 = vst [vmem:[%s265 + $0x7b0] sm:$0xff] %v758
                %v760 = vld [vmem:[%s264 + $0xf58] sm:$0xff]
                %761 = vst [vmem:[%s265 + $0x7b8] sm:$0xff] %v760
                %v762 = vld [vmem:[%s264 + $0xf80] sm:$0xff]
                %763 = vst [vmem:[%s265 + $0x7c0] sm:$0xff] %v762
                %v764 = vld [vmem:[%s264 + $0xf88] sm:$0xff]
                %765 = vst [vmem:[%s265 + $0x7c8] sm:$0xff] %v764
                %v766 = vld [vmem:[%s264 + $0xf90] sm:$0xff]
                %767 = vst [vmem:[%s265 + $0x7d0] sm:$0xff] %v766
                %v768 = vld [vmem:[%s264 + $0xf98] sm:$0xff]
                %769 = vst [vmem:[%s265 + $0x7d8] sm:$0xff] %v768
                %v770 = vld [vmem:[%s264 + $0xfc0] sm:$0xff]
                %771 = vst [vmem:[%s265 + $0x7e0] sm:$0xff] %v770
                %v772 = vld [vmem:[%s264 + $0xfc8] sm:$0xff]
                %773 = vst [vmem:[%s265 + $0x7e8] sm:$0xff] %v772
                %v774 = vld [vmem:[%s264 + $0xfd0] sm:$0xff]
                %775 = vst [vmem:[%s265 + $0x7f0] sm:$0xff] %v774
                %v776 = vld [vmem:[%s264 + $0xfd8] sm:$0xff]
                %777 = vst [vmem:[%s265 + $0x7f8] sm:$0xff] %v776
                %v778 = vld [vmem:[%s264 + $0x1000] sm:$0xff]
                %779 = vst [vmem:[%s265 + $0x800] sm:$0xff] %v778
                %v780 = vld [vmem:[%s264 + $0x1008] sm:$0xff]
                %781 = vst [vmem:[%s265 + $0x808] sm:$0xff] %v780
                %v782 = vld [vmem:[%s264 + $0x1010] sm:$0xff]
                %783 = vst [vmem:[%s265 + $0x810] sm:$0xff] %v782
                %v784 = vld [vmem:[%s264 + $0x1018] sm:$0xff]
                %785 = vst [vmem:[%s265 + $0x818] sm:$0xff] %v784
                %v786 = vld [vmem:[%s264 + $0x1040] sm:$0xff]
                %787 = vst [vmem:[%s265 + $0x820] sm:$0xff] %v786
                %v788 = vld [vmem:[%s264 + $0x1048] sm:$0xff]
                %789 = vst [vmem:[%s265 + $0x828] sm:$0xff] %v788
                %v790 = vld [vmem:[%s264 + $0x1050] sm:$0xff]
                %791 = vst [vmem:[%s265 + $0x830] sm:$0xff] %v790
                %v792 = vld [vmem:[%s264 + $0x1058] sm:$0xff]
                %793 = vst [vmem:[%s265 + $0x838] sm:$0xff] %v792
                %v794 = vld [vmem:[%s264 + $0x1080] sm:$0xff]
                %795 = vst [vmem:[%s265 + $0x840] sm:$0xff] %v794
                %v796 = vld [vmem:[%s264 + $0x1088] sm:$0xff]
                %797 = vst [vmem:[%s265 + $0x848] sm:$0xff] %v796
                %v798 = vld [vmem:[%s264 + $0x1090] sm:$0xff]
                %799 = vst [vmem:[%s265 + $0x850] sm:$0xff] %v798
                %v800 = vld [vmem:[%s264 + $0x1098] sm:$0xff]
                %801 = vst [vmem:[%s265 + $0x858] sm:$0xff] %v800
                %v802 = vld [vmem:[%s264 + $0x10c0] sm:$0xff]
                %803 = vst [vmem:[%s265 + $0x860] sm:$0xff] %v802
                %v804 = vld [vmem:[%s264 + $0x10c8] sm:$0xff]
                %805 = vst [vmem:[%s265 + $0x868] sm:$0xff] %v804
                %v806 = vld [vmem:[%s264 + $0x10d0] sm:$0xff]
                %807 = vst [vmem:[%s265 + $0x870] sm:$0xff] %v806
                %v808 = vld [vmem:[%s264 + $0x10d8] sm:$0xff]
                %809 = vst [vmem:[%s265 + $0x878] sm:$0xff] %v808
                %v810 = vld [vmem:[%s264 + $0x1100] sm:$0xff]
                %811 = vst [vmem:[%s265 + $0x880] sm:$0xff] %v810
                %v812 = vld [vmem:[%s264 + $0x1108] sm:$0xff]
                %813 = vst [vmem:[%s265 + $0x888] sm:$0xff] %v812
                %v814 = vld [vmem:[%s264 + $0x1110] sm:$0xff]
                %815 = vst [vmem:[%s265 + $0x890] sm:$0xff] %v814
                %v816 = vld [vmem:[%s264 + $0x1118] sm:$0xff]
                %817 = vst [vmem:[%s265 + $0x898] sm:$0xff] %v816
                %v818 = vld [vmem:[%s264 + $0x1140] sm:$0xff]
                %819 = vst [vmem:[%s265 + $0x8a0] sm:$0xff] %v818
                %v820 = vld [vmem:[%s264 + $0x1148] sm:$0xff]
                %821 = vst [vmem:[%s265 + $0x8a8] sm:$0xff] %v820
                %v822 = vld [vmem:[%s264 + $0x1150] sm:$0xff]
                %823 = vst [vmem:[%s265 + $0x8b0] sm:$0xff] %v822
                %v824 = vld [vmem:[%s264 + $0x1158] sm:$0xff]
                %825 = vst [vmem:[%s265 + $0x8b8] sm:$0xff] %v824
                %v826 = vld [vmem:[%s264 + $0x1180] sm:$0xff]
                %827 = vst [vmem:[%s265 + $0x8c0] sm:$0xff] %v826
                %v828 = vld [vmem:[%s264 + $0x1188] sm:$0xff]
                %829 = vst [vmem:[%s265 + $0x8c8] sm:$0xff] %v828
                %v830 = vld [vmem:[%s264 + $0x1190] sm:$0xff]
                %831 = vst [vmem:[%s265 + $0x8d0] sm:$0xff] %v830
                %v832 = vld [vmem:[%s264 + $0x1198] sm:$0xff]
                %833 = vst [vmem:[%s265 + $0x8d8] sm:$0xff] %v832
                %v834 = vld [vmem:[%s264 + $0x11c0] sm:$0xff]
                %835 = vst [vmem:[%s265 + $0x8e0] sm:$0xff] %v834
                %v836 = vld [vmem:[%s264 + $0x11c8] sm:$0xff]
                %837 = vst [vmem:[%s265 + $0x8e8] sm:$0xff] %v836
                %v838 = vld [vmem:[%s264 + $0x11d0] sm:$0xff]
                %839 = vst [vmem:[%s265 + $0x8f0] sm:$0xff] %v838
                %v840 = vld [vmem:[%s264 + $0x11d8] sm:$0xff]
                %841 = vst [vmem:[%s265 + $0x8f8] sm:$0xff] %v840
                %v842 = vld [vmem:[%s264 + $0x1200] sm:$0xff]
                %843 = vst [vmem:[%s265 + $0x900] sm:$0xff] %v842
                %v844 = vld [vmem:[%s264 + $0x1208] sm:$0xff]
                %845 = vst [vmem:[%s265 + $0x908] sm:$0xff] %v844
                %v846 = vld [vmem:[%s264 + $0x1210] sm:$0xff]
                %847 = vst [vmem:[%s265 + $0x910] sm:$0xff] %v846
                %v848 = vld [vmem:[%s264 + $0x1218] sm:$0xff]
                %849 = vst [vmem:[%s265 + $0x918] sm:$0xff] %v848
                %v850 = vld [vmem:[%s264 + $0x1240] sm:$0xff]
                %851 = vst [vmem:[%s265 + $0x920] sm:$0xff] %v850
                %v852 = vld [vmem:[%s264 + $0x1248] sm:$0xff]
                %853 = vst [vmem:[%s265 + $0x928] sm:$0xff] %v852
                %v854 = vld [vmem:[%s264 + $0x1250] sm:$0xff]
                %855 = vst [vmem:[%s265 + $0x930] sm:$0xff] %v854
                %v856 = vld [vmem:[%s264 + $0x1258] sm:$0xff]
                %857 = vst [vmem:[%s265 + $0x938] sm:$0xff] %v856
                %v858 = vld [vmem:[%s264 + $0x1280] sm:$0xff]
                %859 = vst [vmem:[%s265 + $0x940] sm:$0xff] %v858
                %v860 = vld [vmem:[%s264 + $0x1288] sm:$0xff]
                %861 = vst [vmem:[%s265 + $0x948] sm:$0xff] %v860
                %v862 = vld [vmem:[%s264 + $0x1290] sm:$0xff]
                %863 = vst [vmem:[%s265 + $0x950] sm:$0xff] %v862
                %v864 = vld [vmem:[%s264 + $0x1298] sm:$0xff]
                %865 = vst [vmem:[%s265 + $0x958] sm:$0xff] %v864
                %v866 = vld [vmem:[%s264 + $0x12c0] sm:$0xff]
                %867 = vst [vmem:[%s265 + $0x960] sm:$0xff] %v866
                %v868 = vld [vmem:[%s264 + $0x12c8] sm:$0xff]
                %869 = vst [vmem:[%s265 + $0x968] sm:$0xff] %v868
                %v870 = vld [vmem:[%s264 + $0x12d0] sm:$0xff]
                %871 = vst [vmem:[%s265 + $0x970] sm:$0xff] %v870
                %v872 = vld [vmem:[%s264 + $0x12d8] sm:$0xff]
                %873 = vst [vmem:[%s265 + $0x978] sm:$0xff] %v872
                %v874 = vld [vmem:[%s264 + $0x1300] sm:$0xff]
                %875 = vst [vmem:[%s265 + $0x980] sm:$0xff] %v874
                %v876 = vld [vmem:[%s264 + $0x1308] sm:$0xff]
                %877 = vst [vmem:[%s265 + $0x988] sm:$0xff] %v876
                %v878 = vld [vmem:[%s264 + $0x1310] sm:$0xff]
                %879 = vst [vmem:[%s265 + $0x990] sm:$0xff] %v878
                %v880 = vld [vmem:[%s264 + $0x1318] sm:$0xff]
                %881 = vst [vmem:[%s265 + $0x998] sm:$0xff] %v880
                %v882 = vld [vmem:[%s264 + $0x1340] sm:$0xff]
                %883 = vst [vmem:[%s265 + $0x9a0] sm:$0xff] %v882
                %v884 = vld [vmem:[%s264 + $0x1348] sm:$0xff]
                %885 = vst [vmem:[%s265 + $0x9a8] sm:$0xff] %v884
                %v886 = vld [vmem:[%s264 + $0x1350] sm:$0xff]
                %887 = vst [vmem:[%s265 + $0x9b0] sm:$0xff] %v886
                %v888 = vld [vmem:[%s264 + $0x1358] sm:$0xff]
                %889 = vst [vmem:[%s265 + $0x9b8] sm:$0xff] %v888
                %v890 = vld [vmem:[%s264 + $0x1380] sm:$0xff]
                %891 = vst [vmem:[%s265 + $0x9c0] sm:$0xff] %v890
                %v892 = vld [vmem:[%s264 + $0x1388] sm:$0xff]
                %893 = vst [vmem:[%s265 + $0x9c8] sm:$0xff] %v892
                %v894 = vld [vmem:[%s264 + $0x1390] sm:$0xff]
                %895 = vst [vmem:[%s265 + $0x9d0] sm:$0xff] %v894
                %v896 = vld [vmem:[%s264 + $0x1398] sm:$0xff]
                %897 = vst [vmem:[%s265 + $0x9d8] sm:$0xff] %v896
                %v898 = vld [vmem:[%s264 + $0x13c0] sm:$0xff]
                %899 = vst [vmem:[%s265 + $0x9e0] sm:$0xff] %v898
                %v900 = vld [vmem:[%s264 + $0x13c8] sm:$0xff]
                %901 = vst [vmem:[%s265 + $0x9e8] sm:$0xff] %v900
                %v902 = vld [vmem:[%s264 + $0x13d0] sm:$0xff]
                %903 = vst [vmem:[%s265 + $0x9f0] sm:$0xff] %v902
                %v904 = vld [vmem:[%s264 + $0x13d8] sm:$0xff]
                %905 = vst [vmem:[%s265 + $0x9f8] sm:$0xff] %v904
                %v906 = vld [vmem:[%s264 + $0x1400] sm:$0xff]
                %907 = vst [vmem:[%s265 + $0xa00] sm:$0xff] %v906
                %v908 = vld [vmem:[%s264 + $0x1408] sm:$0xff]
                %909 = vst [vmem:[%s265 + $0xa08] sm:$0xff] %v908
                %v910 = vld [vmem:[%s264 + $0x1410] sm:$0xff]
                %911 = vst [vmem:[%s265 + $0xa10] sm:$0xff] %v910
                %v912 = vld [vmem:[%s264 + $0x1418] sm:$0xff]
                %913 = vst [vmem:[%s265 + $0xa18] sm:$0xff] %v912
                %v914 = vld [vmem:[%s264 + $0x1440] sm:$0xff]
                %915 = vst [vmem:[%s265 + $0xa20] sm:$0xff] %v914
                %v916 = vld [vmem:[%s264 + $0x1448] sm:$0xff]
                %917 = vst [vmem:[%s265 + $0xa28] sm:$0xff] %v916
                %v918 = vld [vmem:[%s264 + $0x1450] sm:$0xff]
                %919 = vst [vmem:[%s265 + $0xa30] sm:$0xff] %v918
                %v920 = vld [vmem:[%s264 + $0x1458] sm:$0xff]
                %921 = vst [vmem:[%s265 + $0xa38] sm:$0xff] %v920
                %v922 = vld [vmem:[%s264 + $0x1480] sm:$0xff]
                %923 = vst [vmem:[%s265 + $0xa40] sm:$0xff] %v922
                %v924 = vld [vmem:[%s264 + $0x1488] sm:$0xff]
                %925 = vst [vmem:[%s265 + $0xa48] sm:$0xff] %v924
                %v926 = vld [vmem:[%s264 + $0x1490] sm:$0xff]
                %927 = vst [vmem:[%s265 + $0xa50] sm:$0xff] %v926
                %v928 = vld [vmem:[%s264 + $0x1498] sm:$0xff]
                %929 = vst [vmem:[%s265 + $0xa58] sm:$0xff] %v928
                %v930 = vld [vmem:[%s264 + $0x14c0] sm:$0xff]
                %931 = vst [vmem:[%s265 + $0xa60] sm:$0xff] %v930
                %v932 = vld [vmem:[%s264 + $0x14c8] sm:$0xff]
                %933 = vst [vmem:[%s265 + $0xa68] sm:$0xff] %v932
                %v934 = vld [vmem:[%s264 + $0x14d0] sm:$0xff]
                %935 = vst [vmem:[%s265 + $0xa70] sm:$0xff] %v934
                %v936 = vld [vmem:[%s264 + $0x14d8] sm:$0xff]
                %937 = vst [vmem:[%s265 + $0xa78] sm:$0xff] %v936
                %v938 = vld [vmem:[%s264 + $0x1500] sm:$0xff]
                %939 = vst [vmem:[%s265 + $0xa80] sm:$0xff] %v938
                %v940 = vld [vmem:[%s264 + $0x1508] sm:$0xff]
                %941 = vst [vmem:[%s265 + $0xa88] sm:$0xff] %v940
                %v942 = vld [vmem:[%s264 + $0x1510] sm:$0xff]
                %943 = vst [vmem:[%s265 + $0xa90] sm:$0xff] %v942
                %v944 = vld [vmem:[%s264 + $0x1518] sm:$0xff]
                %945 = vst [vmem:[%s265 + $0xa98] sm:$0xff] %v944
                %v946 = vld [vmem:[%s264 + $0x1540] sm:$0xff]
                %947 = vst [vmem:[%s265 + $0xaa0] sm:$0xff] %v946
                %v948 = vld [vmem:[%s264 + $0x1548] sm:$0xff]
                %949 = vst [vmem:[%s265 + $0xaa8] sm:$0xff] %v948
                %v950 = vld [vmem:[%s264 + $0x1550] sm:$0xff]
                %951 = vst [vmem:[%s265 + $0xab0] sm:$0xff] %v950
                %v952 = vld [vmem:[%s264 + $0x1558] sm:$0xff]
                %953 = vst [vmem:[%s265 + $0xab8] sm:$0xff] %v952
                %v954 = vld [vmem:[%s264 + $0x1580] sm:$0xff]
                %955 = vst [vmem:[%s265 + $0xac0] sm:$0xff] %v954
                %v956 = vld [vmem:[%s264 + $0x1588] sm:$0xff]
                %957 = vst [vmem:[%s265 + $0xac8] sm:$0xff] %v956
                %v958 = vld [vmem:[%s264 + $0x1590] sm:$0xff]
                %959 = vst [vmem:[%s265 + $0xad0] sm:$0xff] %v958
                %v960 = vld [vmem:[%s264 + $0x1598] sm:$0xff]
                %961 = vst [vmem:[%s265 + $0xad8] sm:$0xff] %v960
                %v962 = vld [vmem:[%s264 + $0x15c0] sm:$0xff]
                %963 = vst [vmem:[%s265 + $0xae0] sm:$0xff] %v962
                %v964 = vld [vmem:[%s264 + $0x15c8] sm:$0xff]
                %965 = vst [vmem:[%s265 + $0xae8] sm:$0xff] %v964
                %v966 = vld [vmem:[%s264 + $0x15d0] sm:$0xff]
                %967 = vst [vmem:[%s265 + $0xaf0] sm:$0xff] %v966
                %v968 = vld [vmem:[%s264 + $0x15d8] sm:$0xff]
                %969 = vst [vmem:[%s265 + $0xaf8] sm:$0xff] %v968
                %v970 = vld [vmem:[%s264 + $0x1600] sm:$0xff]
                %971 = vst [vmem:[%s265 + $0xb00] sm:$0xff] %v970
                %v972 = vld [vmem:[%s264 + $0x1608] sm:$0xff]
                %973 = vst [vmem:[%s265 + $0xb08] sm:$0xff] %v972
                %v974 = vld [vmem:[%s264 + $0x1610] sm:$0xff]
                %975 = vst [vmem:[%s265 + $0xb10] sm:$0xff] %v974
                %v976 = vld [vmem:[%s264 + $0x1618] sm:$0xff]
                %977 = vst [vmem:[%s265 + $0xb18] sm:$0xff] %v976
                %v978 = vld [vmem:[%s264 + $0x1640] sm:$0xff]
                %979 = vst [vmem:[%s265 + $0xb20] sm:$0xff] %v978
                %v980 = vld [vmem:[%s264 + $0x1648] sm:$0xff]
                %981 = vst [vmem:[%s265 + $0xb28] sm:$0xff] %v980
                %v982 = vld [vmem:[%s264 + $0x1650] sm:$0xff]
                %983 = vst [vmem:[%s265 + $0xb30] sm:$0xff] %v982
                %v984 = vld [vmem:[%s264 + $0x1658] sm:$0xff]
                %985 = vst [vmem:[%s265 + $0xb38] sm:$0xff] %v984
                %v986 = vld [vmem:[%s264 + $0x1680] sm:$0xff]
                %987 = vst [vmem:[%s265 + $0xb40] sm:$0xff] %v986
                %v988 = vld [vmem:[%s264 + $0x1688] sm:$0xff]
                %989 = vst [vmem:[%s265 + $0xb48] sm:$0xff] %v988
                %v990 = vld [vmem:[%s264 + $0x1690] sm:$0xff]
                %991 = vst [vmem:[%s265 + $0xb50] sm:$0xff] %v990
                %v992 = vld [vmem:[%s264 + $0x1698] sm:$0xff]
                %993 = vst [vmem:[%s265 + $0xb58] sm:$0xff] %v992
                %v994 = vld [vmem:[%s264 + $0x16c0] sm:$0xff]
                %995 = vst [vmem:[%s265 + $0xb60] sm:$0xff] %v994
                %v996 = vld [vmem:[%s264 + $0x16c8] sm:$0xff]
                %997 = vst [vmem:[%s265 + $0xb68] sm:$0xff] %v996
                %v998 = vld [vmem:[%s264 + $0x16d0] sm:$0xff]
                %999 = vst [vmem:[%s265 + $0xb70] sm:$0xff] %v998
                %v1000 = vld [vmem:[%s264 + $0x16d8] sm:$0xff]
                %1001 = vst [vmem:[%s265 + $0xb78] sm:$0xff] %v1000
                %v1002 = vld [vmem:[%s264 + $0x1700] sm:$0xff]
                %1003 = vst [vmem:[%s265 + $0xb80] sm:$0xff] %v1002
                %v1004 = vld [vmem:[%s264 + $0x1708] sm:$0xff]
                %1005 = vst [vmem:[%s265 + $0xb88] sm:$0xff] %v1004
                %v1006 = vld [vmem:[%s264 + $0x1710] sm:$0xff]
                %1007 = vst [vmem:[%s265 + $0xb90] sm:$0xff] %v1006
                %v1008 = vld [vmem:[%s264 + $0x1718] sm:$0xff]
                %1009 = vst [vmem:[%s265 + $0xb98] sm:$0xff] %v1008
                %v1010 = vld [vmem:[%s264 + $0x1740] sm:$0xff]
                %1011 = vst [vmem:[%s265 + $0xba0] sm:$0xff] %v1010
                %v1012 = vld [vmem:[%s264 + $0x1748] sm:$0xff]
                %1013 = vst [vmem:[%s265 + $0xba8] sm:$0xff] %v1012
                %v1014 = vld [vmem:[%s264 + $0x1750] sm:$0xff]
                %1015 = vst [vmem:[%s265 + $0xbb0] sm:$0xff] %v1014
                %v1016 = vld [vmem:[%s264 + $0x1758] sm:$0xff]
                %1017 = vst [vmem:[%s265 + $0xbb8] sm:$0xff] %v1016
                %v1018 = vld [vmem:[%s264 + $0x1780] sm:$0xff]
                %1019 = vst [vmem:[%s265 + $0xbc0] sm:$0xff] %v1018
                %v1020 = vld [vmem:[%s264 + $0x1788] sm:$0xff]
                %1021 = vst [vmem:[%s265 + $0xbc8] sm:$0xff] %v1020
                %v1022 = vld [vmem:[%s264 + $0x1790] sm:$0xff]
                %1023 = vst [vmem:[%s265 + $0xbd0] sm:$0xff] %v1022
                %v1024 = vld [vmem:[%s264 + $0x1798] sm:$0xff]
                %1025 = vst [vmem:[%s265 + $0xbd8] sm:$0xff] %v1024
                %v1026 = vld [vmem:[%s264 + $0x17c0] sm:$0xff]
                %1027 = vst [vmem:[%s265 + $0xbe0] sm:$0xff] %v1026
                %v1028 = vld [vmem:[%s264 + $0x17c8] sm:$0xff]
                %1029 = vst [vmem:[%s265 + $0xbe8] sm:$0xff] %v1028
                %v1030 = vld [vmem:[%s264 + $0x17d0] sm:$0xff]
                %1031 = vst [vmem:[%s265 + $0xbf0] sm:$0xff] %v1030
                %v1032 = vld [vmem:[%s264 + $0x17d8] sm:$0xff]
                %1033 = vst [vmem:[%s265 + $0xbf8] sm:$0xff] %v1032
                %v1034 = vld [vmem:[%s264 + $0x1800] sm:$0xff]
                %1035 = vst [vmem:[%s265 + $0xc00] sm:$0xff] %v1034
                %v1036 = vld [vmem:[%s264 + $0x1808] sm:$0xff]
                %1037 = vst [vmem:[%s265 + $0xc08] sm:$0xff] %v1036
                %v1038 = vld [vmem:[%s264 + $0x1810] sm:$0xff]
                %1039 = vst [vmem:[%s265 + $0xc10] sm:$0xff] %v1038
                %v1040 = vld [vmem:[%s264 + $0x1818] sm:$0xff]
                %1041 = vst [vmem:[%s265 + $0xc18] sm:$0xff] %v1040
                %v1042 = vld [vmem:[%s264 + $0x1840] sm:$0xff]
                %1043 = vst [vmem:[%s265 + $0xc20] sm:$0xff] %v1042
                %v1044 = vld [vmem:[%s264 + $0x1848] sm:$0xff]
                %1045 = vst [vmem:[%s265 + $0xc28] sm:$0xff] %v1044
                %v1046 = vld [vmem:[%s264 + $0x1850] sm:$0xff]
                %1047 = vst [vmem:[%s265 + $0xc30] sm:$0xff] %v1046
                %v1048 = vld [vmem:[%s264 + $0x1858] sm:$0xff]
                %1049 = vst [vmem:[%s265 + $0xc38] sm:$0xff] %v1048
                %v1050 = vld [vmem:[%s264 + $0x1880] sm:$0xff]
                %1051 = vst [vmem:[%s265 + $0xc40] sm:$0xff] %v1050
                %v1052 = vld [vmem:[%s264 + $0x1888] sm:$0xff]
                %1053 = vst [vmem:[%s265 + $0xc48] sm:$0xff] %v1052
                %v1054 = vld [vmem:[%s264 + $0x1890] sm:$0xff]
                %1055 = vst [vmem:[%s265 + $0xc50] sm:$0xff] %v1054
                %v1056 = vld [vmem:[%s264 + $0x1898] sm:$0xff]
                %1057 = vst [vmem:[%s265 + $0xc58] sm:$0xff] %v1056
                %v1058 = vld [vmem:[%s264 + $0x18c0] sm:$0xff]
                %1059 = vst [vmem:[%s265 + $0xc60] sm:$0xff] %v1058
                %v1060 = vld [vmem:[%s264 + $0x18c8] sm:$0xff]
                %1061 = vst [vmem:[%s265 + $0xc68] sm:$0xff] %v1060
                %v1062 = vld [vmem:[%s264 + $0x18d0] sm:$0xff]
                %1063 = vst [vmem:[%s265 + $0xc70] sm:$0xff] %v1062
                %v1064 = vld [vmem:[%s264 + $0x18d8] sm:$0xff]
                %1065 = vst [vmem:[%s265 + $0xc78] sm:$0xff] %v1064
                %v1066 = vld [vmem:[%s264 + $0x1900] sm:$0xff]
                %1067 = vst [vmem:[%s265 + $0xc80] sm:$0xff] %v1066
                %v1068 = vld [vmem:[%s264 + $0x1908] sm:$0xff]
                %1069 = vst [vmem:[%s265 + $0xc88] sm:$0xff] %v1068
                %v1070 = vld [vmem:[%s264 + $0x1910] sm:$0xff]
                %1071 = vst [vmem:[%s265 + $0xc90] sm:$0xff] %v1070
                %v1072 = vld [vmem:[%s264 + $0x1918] sm:$0xff]
                %1073 = vst [vmem:[%s265 + $0xc98] sm:$0xff] %v1072
                %v1074 = vld [vmem:[%s264 + $0x1940] sm:$0xff]
                %1075 = vst [vmem:[%s265 + $0xca0] sm:$0xff] %v1074
                %v1076 = vld [vmem:[%s264 + $0x1948] sm:$0xff]
                %1077 = vst [vmem:[%s265 + $0xca8] sm:$0xff] %v1076
                %v1078 = vld [vmem:[%s264 + $0x1950] sm:$0xff]
                %1079 = vst [vmem:[%s265 + $0xcb0] sm:$0xff] %v1078
                %v1080 = vld [vmem:[%s264 + $0x1958] sm:$0xff]
                %1081 = vst [vmem:[%s265 + $0xcb8] sm:$0xff] %v1080
                %v1082 = vld [vmem:[%s264 + $0x1980] sm:$0xff]
                %1083 = vst [vmem:[%s265 + $0xcc0] sm:$0xff] %v1082
                %v1084 = vld [vmem:[%s264 + $0x1988] sm:$0xff]
                %1085 = vst [vmem:[%s265 + $0xcc8] sm:$0xff] %v1084
                %v1086 = vld [vmem:[%s264 + $0x1990] sm:$0xff]
                %1087 = vst [vmem:[%s265 + $0xcd0] sm:$0xff] %v1086
                %v1088 = vld [vmem:[%s264 + $0x1998] sm:$0xff]
                %1089 = vst [vmem:[%s265 + $0xcd8] sm:$0xff] %v1088
                %v1090 = vld [vmem:[%s264 + $0x19c0] sm:$0xff]
                %1091 = vst [vmem:[%s265 + $0xce0] sm:$0xff] %v1090
                %v1092 = vld [vmem:[%s264 + $0x19c8] sm:$0xff]
                %1093 = vst [vmem:[%s265 + $0xce8] sm:$0xff] %v1092
                %v1094 = vld [vmem:[%s264 + $0x19d0] sm:$0xff]
                %1095 = vst [vmem:[%s265 + $0xcf0] sm:$0xff] %v1094
                %v1096 = vld [vmem:[%s264 + $0x19d8] sm:$0xff]
                %1097 = vst [vmem:[%s265 + $0xcf8] sm:$0xff] %v1096
                %v1098 = vld [vmem:[%s264 + $0x1a00] sm:$0xff]
                %1099 = vst [vmem:[%s265 + $0xd00] sm:$0xff] %v1098
                %v1100 = vld [vmem:[%s264 + $0x1a08] sm:$0xff]
                %1101 = vst [vmem:[%s265 + $0xd08] sm:$0xff] %v1100
                %v1102 = vld [vmem:[%s264 + $0x1a10] sm:$0xff]
                %1103 = vst [vmem:[%s265 + $0xd10] sm:$0xff] %v1102
                %v1104 = vld [vmem:[%s264 + $0x1a18] sm:$0xff]
                %1105 = vst [vmem:[%s265 + $0xd18] sm:$0xff] %v1104
                %v1106 = vld [vmem:[%s264 + $0x1a40] sm:$0xff]
                %1107 = vst [vmem:[%s265 + $0xd20] sm:$0xff] %v1106
                %v1108 = vld [vmem:[%s264 + $0x1a48] sm:$0xff]
                %1109 = vst [vmem:[%s265 + $0xd28] sm:$0xff] %v1108
                %v1110 = vld [vmem:[%s264 + $0x1a50] sm:$0xff]
                %1111 = vst [vmem:[%s265 + $0xd30] sm:$0xff] %v1110
                %v1112 = vld [vmem:[%s264 + $0x1a58] sm:$0xff]
                %1113 = vst [vmem:[%s265 + $0xd38] sm:$0xff] %v1112
                %v1114 = vld [vmem:[%s264 + $0x1a80] sm:$0xff]
                %1115 = vst [vmem:[%s265 + $0xd40] sm:$0xff] %v1114
                %v1116 = vld [vmem:[%s264 + $0x1a88] sm:$0xff]
                %1117 = vst [vmem:[%s265 + $0xd48] sm:$0xff] %v1116
                %v1118 = vld [vmem:[%s264 + $0x1a90] sm:$0xff]
                %1119 = vst [vmem:[%s265 + $0xd50] sm:$0xff] %v1118
                %v1120 = vld [vmem:[%s264 + $0x1a98] sm:$0xff]
                %1121 = vst [vmem:[%s265 + $0xd58] sm:$0xff] %v1120
                %v1122 = vld [vmem:[%s264 + $0x1ac0] sm:$0xff]
                %1123 = vst [vmem:[%s265 + $0xd60] sm:$0xff] %v1122
                %v1124 = vld [vmem:[%s264 + $0x1ac8] sm:$0xff]
                %1125 = vst [vmem:[%s265 + $0xd68] sm:$0xff] %v1124
                %v1126 = vld [vmem:[%s264 + $0x1ad0] sm:$0xff]
                %1127 = vst [vmem:[%s265 + $0xd70] sm:$0xff] %v1126
                %v1128 = vld [vmem:[%s264 + $0x1ad8] sm:$0xff]
                %1129 = vst [vmem:[%s265 + $0xd78] sm:$0xff] %v1128
                %v1130 = vld [vmem:[%s264 + $0x1b00] sm:$0xff]
                %1131 = vst [vmem:[%s265 + $0xd80] sm:$0xff] %v1130
                %v1132 = vld [vmem:[%s264 + $0x1b08] sm:$0xff]
                %1133 = vst [vmem:[%s265 + $0xd88] sm:$0xff] %v1132
                %v1134 = vld [vmem:[%s264 + $0x1b10] sm:$0xff]
                %1135 = vst [vmem:[%s265 + $0xd90] sm:$0xff] %v1134
                %v1136 = vld [vmem:[%s264 + $0x1b18] sm:$0xff]
                %1137 = vst [vmem:[%s265 + $0xd98] sm:$0xff] %v1136
                %v1138 = vld [vmem:[%s264 + $0x1b40] sm:$0xff]
                %1139 = vst [vmem:[%s265 + $0xda0] sm:$0xff] %v1138
                %v1140 = vld [vmem:[%s264 + $0x1b48] sm:$0xff]
                %1141 = vst [vmem:[%s265 + $0xda8] sm:$0xff] %v1140
                %v1142 = vld [vmem:[%s264 + $0x1b50] sm:$0xff]
                %1143 = vst [vmem:[%s265 + $0xdb0] sm:$0xff] %v1142
                %v1144 = vld [vmem:[%s264 + $0x1b58] sm:$0xff]
                %1145 = vst [vmem:[%s265 + $0xdb8] sm:$0xff] %v1144
                %v1146 = vld [vmem:[%s264 + $0x1b80] sm:$0xff]
                %1147 = vst [vmem:[%s265 + $0xdc0] sm:$0xff] %v1146
                %v1148 = vld [vmem:[%s264 + $0x1b88] sm:$0xff]
                %1149 = vst [vmem:[%s265 + $0xdc8] sm:$0xff] %v1148
                %v1150 = vld [vmem:[%s264 + $0x1b90] sm:$0xff]
                %1151 = vst [vmem:[%s265 + $0xdd0] sm:$0xff] %v1150
                %v1152 = vld [vmem:[%s264 + $0x1b98] sm:$0xff]
                %1153 = vst [vmem:[%s265 + $0xdd8] sm:$0xff] %v1152
                %v1154 = vld [vmem:[%s264 + $0x1bc0] sm:$0xff]
                %1155 = vst [vmem:[%s265 + $0xde0] sm:$0xff] %v1154
                %v1156 = vld [vmem:[%s264 + $0x1bc8] sm:$0xff]
                %1157 = vst [vmem:[%s265 + $0xde8] sm:$0xff] %v1156
                %v1158 = vld [vmem:[%s264 + $0x1bd0] sm:$0xff]
                %1159 = vst [vmem:[%s265 + $0xdf0] sm:$0xff] %v1158
                %v1160 = vld [vmem:[%s264 + $0x1bd8] sm:$0xff]
                %1161 = vst [vmem:[%s265 + $0xdf8] sm:$0xff] %v1160
                %v1162 = vld [vmem:[%s264 + $0x1c00] sm:$0xff]
                %1163 = vst [vmem:[%s265 + $0xe00] sm:$0xff] %v1162
                %v1164 = vld [vmem:[%s264 + $0x1c08] sm:$0xff]
                %1165 = vst [vmem:[%s265 + $0xe08] sm:$0xff] %v1164
                %v1166 = vld [vmem:[%s264 + $0x1c10] sm:$0xff]
                %1167 = vst [vmem:[%s265 + $0xe10] sm:$0xff] %v1166
                %v1168 = vld [vmem:[%s264 + $0x1c18] sm:$0xff]
                %1169 = vst [vmem:[%s265 + $0xe18] sm:$0xff] %v1168
                %v1170 = vld [vmem:[%s264 + $0x1c40] sm:$0xff]
                %1171 = vst [vmem:[%s265 + $0xe20] sm:$0xff] %v1170
                %v1172 = vld [vmem:[%s264 + $0x1c48] sm:$0xff]
                %1173 = vst [vmem:[%s265 + $0xe28] sm:$0xff] %v1172
                %v1174 = vld [vmem:[%s264 + $0x1c50] sm:$0xff]
                %1175 = vst [vmem:[%s265 + $0xe30] sm:$0xff] %v1174
                %v1176 = vld [vmem:[%s264 + $0x1c58] sm:$0xff]
                %1177 = vst [vmem:[%s265 + $0xe38] sm:$0xff] %v1176
                %v1178 = vld [vmem:[%s264 + $0x1c80] sm:$0xff]
                %1179 = vst [vmem:[%s265 + $0xe40] sm:$0xff] %v1178
                %v1180 = vld [vmem:[%s264 + $0x1c88] sm:$0xff]
                %1181 = vst [vmem:[%s265 + $0xe48] sm:$0xff] %v1180
                %v1182 = vld [vmem:[%s264 + $0x1c90] sm:$0xff]
                %1183 = vst [vmem:[%s265 + $0xe50] sm:$0xff] %v1182
                %v1184 = vld [vmem:[%s264 + $0x1c98] sm:$0xff]
                %1185 = vst [vmem:[%s265 + $0xe58] sm:$0xff] %v1184
                %v1186 = vld [vmem:[%s264 + $0x1cc0] sm:$0xff]
                %1187 = vst [vmem:[%s265 + $0xe60] sm:$0xff] %v1186
                %v1188 = vld [vmem:[%s264 + $0x1cc8] sm:$0xff]
                %1189 = vst [vmem:[%s265 + $0xe68] sm:$0xff] %v1188
                %v1190 = vld [vmem:[%s264 + $0x1cd0] sm:$0xff]
                %1191 = vst [vmem:[%s265 + $0xe70] sm:$0xff] %v1190
                %v1192 = vld [vmem:[%s264 + $0x1cd8] sm:$0xff]
                %1193 = vst [vmem:[%s265 + $0xe78] sm:$0xff] %v1192
                %v1194 = vld [vmem:[%s264 + $0x1d00] sm:$0xff]
                %1195 = vst [vmem:[%s265 + $0xe80] sm:$0xff] %v1194
                %v1196 = vld [vmem:[%s264 + $0x1d08] sm:$0xff]
                %1197 = vst [vmem:[%s265 + $0xe88] sm:$0xff] %v1196
                %v1198 = vld [vmem:[%s264 + $0x1d10] sm:$0xff]
                %1199 = vst [vmem:[%s265 + $0xe90] sm:$0xff] %v1198
                %v1200 = vld [vmem:[%s264 + $0x1d18] sm:$0xff]
                %1201 = vst [vmem:[%s265 + $0xe98] sm:$0xff] %v1200
                %v1202 = vld [vmem:[%s264 + $0x1d40] sm:$0xff]
                %1203 = vst [vmem:[%s265 + $0xea0] sm:$0xff] %v1202
                %v1204 = vld [vmem:[%s264 + $0x1d48] sm:$0xff]
                %1205 = vst [vmem:[%s265 + $0xea8] sm:$0xff] %v1204
                %v1206 = vld [vmem:[%s264 + $0x1d50] sm:$0xff]
                %1207 = vst [vmem:[%s265 + $0xeb0] sm:$0xff] %v1206
                %v1208 = vld [vmem:[%s264 + $0x1d58] sm:$0xff]
                %1209 = vst [vmem:[%s265 + $0xeb8] sm:$0xff] %v1208
                %v1210 = vld [vmem:[%s264 + $0x1d80] sm:$0xff]
                %1211 = vst [vmem:[%s265 + $0xec0] sm:$0xff] %v1210
                %v1212 = vld [vmem:[%s264 + $0x1d88] sm:$0xff]
                %1213 = vst [vmem:[%s265 + $0xec8] sm:$0xff] %v1212
                %v1214 = vld [vmem:[%s264 + $0x1d90] sm:$0xff]
                %1215 = vst [vmem:[%s265 + $0xed0] sm:$0xff] %v1214
                %v1216 = vld [vmem:[%s264 + $0x1d98] sm:$0xff]
                %1217 = vst [vmem:[%s265 + $0xed8] sm:$0xff] %v1216
                %v1218 = vld [vmem:[%s264 + $0x1dc0] sm:$0xff]
                %1219 = vst [vmem:[%s265 + $0xee0] sm:$0xff] %v1218
                %v1220 = vld [vmem:[%s264 + $0x1dc8] sm:$0xff]
                %1221 = vst [vmem:[%s265 + $0xee8] sm:$0xff] %v1220
                %v1222 = vld [vmem:[%s264 + $0x1dd0] sm:$0xff]
                %1223 = vst [vmem:[%s265 + $0xef0] sm:$0xff] %v1222
                %v1224 = vld [vmem:[%s264 + $0x1dd8] sm:$0xff]
                %1225 = vst [vmem:[%s265 + $0xef8] sm:$0xff] %v1224
                %v1226 = vld [vmem:[%s264 + $0x1e00] sm:$0xff]
                %1227 = vst [vmem:[%s265 + $0xf00] sm:$0xff] %v1226
                %v1228 = vld [vmem:[%s264 + $0x1e08] sm:$0xff]
                %1229 = vst [vmem:[%s265 + $0xf08] sm:$0xff] %v1228
                %v1230 = vld [vmem:[%s264 + $0x1e10] sm:$0xff]
                %1231 = vst [vmem:[%s265 + $0xf10] sm:$0xff] %v1230
                %v1232 = vld [vmem:[%s264 + $0x1e18] sm:$0xff]
                %1233 = vst [vmem:[%s265 + $0xf18] sm:$0xff] %v1232
                %v1234 = vld [vmem:[%s264 + $0x1e40] sm:$0xff]
                %1235 = vst [vmem:[%s265 + $0xf20] sm:$0xff] %v1234
                %v1236 = vld [vmem:[%s264 + $0x1e48] sm:$0xff]
                %1237 = vst [vmem:[%s265 + $0xf28] sm:$0xff] %v1236
                %v1238 = vld [vmem:[%s264 + $0x1e50] sm:$0xff]
                %1239 = vst [vmem:[%s265 + $0xf30] sm:$0xff] %v1238
                %v1240 = vld [vmem:[%s264 + $0x1e58] sm:$0xff]
                %1241 = vst [vmem:[%s265 + $0xf38] sm:$0xff] %v1240
                %v1242 = vld [vmem:[%s264 + $0x1e80] sm:$0xff]
                %1243 = vst [vmem:[%s265 + $0xf40] sm:$0xff] %v1242
                %v1244 = vld [vmem:[%s264 + $0x1e88] sm:$0xff]
                %1245 = vst [vmem:[%s265 + $0xf48] sm:$0xff] %v1244
                %v1246 = vld [vmem:[%s264 + $0x1e90] sm:$0xff]
                %1247 = vst [vmem:[%s265 + $0xf50] sm:$0xff] %v1246
                %v1248 = vld [vmem:[%s264 + $0x1e98] sm:$0xff]
                %1249 = vst [vmem:[%s265 + $0xf58] sm:$0xff] %v1248
                %v1250 = vld [vmem:[%s264 + $0x1ec0] sm:$0xff]
                %1251 = vst [vmem:[%s265 + $0xf60] sm:$0xff] %v1250
                %v1252 = vld [vmem:[%s264 + $0x1ec8] sm:$0xff]
                %1253 = vst [vmem:[%s265 + $0xf68] sm:$0xff] %v1252
                %v1254 = vld [vmem:[%s264 + $0x1ed0] sm:$0xff]
                %1255 = vst [vmem:[%s265 + $0xf70] sm:$0xff] %v1254
                %v1256 = vld [vmem:[%s264 + $0x1ed8] sm:$0xff]
                %1257 = vst [vmem:[%s265 + $0xf78] sm:$0xff] %v1256
                %v1258 = vld [vmem:[%s264 + $0x1f00] sm:$0xff]
                %1259 = vst [vmem:[%s265 + $0xf80] sm:$0xff] %v1258
                %v1260 = vld [vmem:[%s264 + $0x1f08] sm:$0xff]
                %1261 = vst [vmem:[%s265 + $0xf88] sm:$0xff] %v1260
                %v1262 = vld [vmem:[%s264 + $0x1f10] sm:$0xff]
                %1263 = vst [vmem:[%s265 + $0xf90] sm:$0xff] %v1262
                %v1264 = vld [vmem:[%s264 + $0x1f18] sm:$0xff]
                %1265 = vst [vmem:[%s265 + $0xf98] sm:$0xff] %v1264
                %v1266 = vld [vmem:[%s264 + $0x1f40] sm:$0xff]
                %1267 = vst [vmem:[%s265 + $0xfa0] sm:$0xff] %v1266
                %v1268 = vld [vmem:[%s264 + $0x1f48] sm:$0xff]
                %1269 = vst [vmem:[%s265 + $0xfa8] sm:$0xff] %v1268
                %v1270 = vld [vmem:[%s264 + $0x1f50] sm:$0xff]
                %1271 = vst [vmem:[%s265 + $0xfb0] sm:$0xff] %v1270
                %v1272 = vld [vmem:[%s264 + $0x1f58] sm:$0xff]
                %1273 = vst [vmem:[%s265 + $0xfb8] sm:$0xff] %v1272
                %v1274 = vld [vmem:[%s264 + $0x1f80] sm:$0xff]
                %1275 = vst [vmem:[%s265 + $0xfc0] sm:$0xff] %v1274
                %v1276 = vld [vmem:[%s264 + $0x1f88] sm:$0xff]
                %1277 = vst [vmem:[%s265 + $0xfc8] sm:$0xff] %v1276
                %v1278 = vld [vmem:[%s264 + $0x1f90] sm:$0xff]
                %1279 = vst [vmem:[%s265 + $0xfd0] sm:$0xff] %v1278
                %v1280 = vld [vmem:[%s264 + $0x1f98] sm:$0xff]
                %1281 = vst [vmem:[%s265 + $0xfd8] sm:$0xff] %v1280
                %v1282 = vld [vmem:[%s264 + $0x1fc0] sm:$0xff]
                %1283 = vst [vmem:[%s265 + $0xfe0] sm:$0xff] %v1282
                %v1284 = vld [vmem:[%s264 + $0x1fc8] sm:$0xff]
                %1285 = vst [vmem:[%s265 + $0xfe8] sm:$0xff] %v1284
                %v1286 = vld [vmem:[%s264 + $0x1fd0] sm:$0xff]
                %1287 = vst [vmem:[%s265 + $0xff0] sm:$0xff] %v1286
                %v1288 = vld [vmem:[%s264 + $0x1fd8] sm:$0xff]
                %1289 = vst [vmem:[%s265 + $0xff8] sm:$0xff] %v1288
              $region56: #{predictor_forward.1} parent=50 // loop_footer
                %s263 = sadd.s32 1, %s259
              $region57: #{predictor_forward.1} parent=50 // loop_footer_branch
                %258 = sbr.rel target = $region53
              $region58: #{predictor_forward.1} parent=50 // loop_exit
                _
            $region51: #{predictor_forward.1} parent=46 // pred_fallthru
              _
            // Predicated region
            $region59: #{predictor_forward.1} parent=46 // pred_check
              _
            $region60: #{predictor_forward.1} parent=46 // pred_check_branch
              %1291 = sbr.rel target = $region62
            $region61: #{predictor_forward.1} parent=46 // pred_region
              _
            $region62: #{predictor_forward.1} parent=46 // pred_fallthru
              _
          $region47: #{predictor_forward.1} parent=42 // pred_fallthru
            _
          %1292 = vnop
        $region43: #{predictor_forward.1} parent=15 // pred_fallthru
          _
        // Predicated region
        $region63: #{predictor_forward.1} parent=15 // pred_check
          %p1293 = pneg %p97
        $region64: #{predictor_forward.1} parent=15 // pred_check_branch
          %1295 = sbr.rel (%p1293) target = $region66
        $region65: #{predictor_forward.1} parent=15 // pred_region
          %s1296 = smul.u32 8, %s18
          %p1297 = scmp.lt.s32.totalorder %s1296, 15
          %s1298 = scalar_select %p1297, %s1296, 15
          %s1299 = scalar_lea.vmem %s2, %s1298
          %s1300 = smul.u32 8, %s18
        $region66: #{predictor_forward.1} parent=15 // pred_fallthru
          _
        // Predicated region
        $region67: #{predictor_forward.1} parent=15 // pred_check
          %p1301 = pneg %p123
        $region68: #{predictor_forward.1} parent=15 // pred_check_branch
          %1303 = sbr.rel (%p1301) target = $region70
        $region69: #{predictor_forward.1} parent=15 // pred_region
          %s1304 = smul.u32 8, %s18
          %p1305 = scmp.lt.s32.totalorder %s1304, 15
          %s1306 = scalar_select %p1305, %s1304, 15
          %s1307 = scalar_lea.vmem %s3, %s1306
          %s1308 = smul.u32 8, %s18
        $region70: #{predictor_forward.1} parent=15 // pred_fallthru
          _
        // Predicated region
        $region71: #{predictor_forward.1} parent=15 // pred_check
          %p1309 = pneg %p149
        $region72: #{predictor_forward.1} parent=15 // pred_check_branch
          %1311 = sbr.rel (%p1309) target = $region74
        $region73: #{predictor_forward.1} parent=15 // pred_region
          %s1312 = smul.u32 128, %s18
          %p1313 = scmp.lt.s32.totalorder %s1312, 255
          %s1314 = scalar_select %p1313, %s1312, 255
          %s1315 = smul.addr %s1314, 3
          %s1316 = smul.addr %s1315, 4
          %s1317 = scalar_lea.vmem %s4, %s1316
          %s1318 = smul.u32 128, %s18
        $region74: #{predictor_forward.1} parent=15 // pred_fallthru
          _
      $region16: #{predictor_forward.1} parent=5 // pred_fallthru
        _
      %p1319 = scmp.le.s32.totalorder 1, %s11
      %p1320 = scmp.lt.s32.totalorder %s11, 9
      %p1321 = pnand %p1319, %p1320
      %p1322 = pneg %p1321
      // Predicated region
      $region75: #{predictor_forward.1} parent=5 // pred_check
        _
      $region76: #{predictor_forward.1} parent=5 // pred_check_branch
        %1324 = sbr.rel (%p1321) target = $region78
      $region77: #{predictor_forward.1} parent=5 // pred_region
        %s1325 = ssub.s32 %s11, 1
        %s1326 = sand.u32 %s36, 1
        %s1327 = sand.u32 %s36, 1
        %s1328 = smul.addr %s1327, 64
        %s1329 = scalar_lea.vmem [#allocation3], %s1328
        // Predicated region
        $region79: #{predictor_forward.1} parent=77 // pred_check
          %p1330 = pneg %p49
        $region80: #{predictor_forward.1} parent=77 // pred_check_branch
          %1332 = sbr.rel (%p1330) target = $region82
        $region81: #{predictor_forward.1} parent=77 // pred_region
          _
        $region82: #{predictor_forward.1} parent=77 // pred_fallthru
          _
        %s1333 = sand.u32 %s64, 1
        %s1334 = sand.u32 %s64, 1
        %s1335 = smul.addr %s1334, 4096
        %s1336 = scalar_lea.vmem [#allocation4], %s1335
        // Predicated region
        $region83: #{predictor_forward.1} parent=77 // pred_check
          %p1337 = pneg %p77
        $region84: #{predictor_forward.1} parent=77 // pred_check_branch
          %1339 = sbr.rel (%p1337) target = $region86
        $region85: #{predictor_forward.1} parent=77 // pred_region
          _
        $region86: #{predictor_forward.1} parent=77 // pred_fallthru
          _
        %s1340 = sand.u32 %s36, 1
        %s1341 = sand.u32 %s36, 1
        %s1342 = smul.addr %s1341, 64
        %s1343 = scalar_lea.vmem [#allocation3], %s1342
        %p1344 = pneg %p49
        %p1345 = pneg %p46
        %s1346 = sand.u32 %s64, 1
        %s1347 = sand.u32 %s64, 1
        %s1348 = smul.addr %s1347, 4096
        %s1349 = scalar_lea.vmem [#allocation4], %s1348
        %p1350 = pneg %p77
        %p1351 = pneg %p74
        %s1352 = smul.u32 8, %s20
        %p1353 = scmp.lt.s32.totalorder %s1352, 15
        %s1354 = scalar_select %p1353, %s1352, 15
        %s1355 = scalar_lea.vmem %s2, %s1354
        %p1356 = pneg %p103
        %p1357 = pneg %p100
        %s1358 = smul.u32 8, %s20
        %p1359 = scmp.lt.s32.totalorder %s1358, 15
        %s1360 = scalar_select %p1359, %s1358, 15
        %s1361 = scalar_lea.vmem %s3, %s1360
        %p1362 = pneg %p129
        %p1363 = pneg %p126
        %s1364 = smul.u32 128, %s20
        %p1365 = scmp.lt.s32.totalorder %s1364, 255
        %s1366 = scalar_select %p1365, %s1364, 255
        %s1367 = smul.addr %s1366, 3
        %s1368 = smul.addr %s1367, 4
        %s1369 = scalar_lea.vmem %s4, %s1368
        %p1370 = pneg %p155
        %p1371 = pneg %p152
        %p1372 = pneg %p181
        %p1373 = pneg %p178
        %p1374 = scmp.lt.s32.totalorder %s20, 1
        %s1375 = scalar_select %p1374, %s20, 1
        %s1376 = smul.addr %s1375, 6
        %s1377 = smul.addr %s1376, 8
        %s1378 = scalar_lea.vmem %s5, %s1377
        %s1379 = smul.u32 8, %s21
        %s1380 = smul.u32 128, %s21
        %s1381 = smul.u32 8, %s20
        %s1382 = smul.u32 8, %s20
        %p1383 = scmp.lt.s32.totalorder %s1382, 15
        %s1384 = scalar_select %p1383, %s1382, 15
        %s1385 = scalar_lea.vmem %s2, %s1384
        %s1386 = smul.u32 8, %s20
        %s1387 = smul.u32 8, %s20
        %p1388 = scmp.lt.s32.totalorder %s1387, 15
        %s1389 = scalar_select %p1388, %s1387, 15
        %s1390 = scalar_lea.vmem %s3, %s1389
        %s1391 = smul.u32 8, %s20
        %s1392 = smul.u32 128, %s20
        %p1393 = scmp.lt.s32.totalorder %s1392, 255
        %s1394 = scalar_select %p1393, %s1392, 255
        %s1395 = smul.addr %s1394, 3
        %s1396 = smul.addr %s1395, 4
        %s1397 = scalar_lea.vmem %s4, %s1396
        %s1398 = smul.u32 128, %s20
        %p1399 = scmp.lt.s32.totalorder %s20, 1
        %s1400 = scalar_select %p1399, %s20, 1
        %s1401 = smul.addr %s1400, 6
        %s1402 = smul.addr %s1401, 8
        %s1403 = scalar_lea.vmem %s5, %s1402
        %p1405 = scmp.eq.s32.totalorder %s21, 0
        // Predicated region
        $region87: #{predictor_forward.1} parent=77 // pred_check
          %p1406 = pneg %p1405
        $region88: #{predictor_forward.1} parent=77 // pred_check_branch
          %1408 = sbr.rel (%p1406) target = $region90
        $region89: #{predictor_forward.1} parent=77 // pred_region
          %1409 = vst [vmem:[#allocation2] sm:$0xff] 0.0
          %1410 = vst [vmem:[#allocation2 + $0x8] sm:$0xff] 0.0
          %1411 = vst [vmem:[#allocation2 + $0x10] sm:$0xff] 0.0
          %1412 = vst [vmem:[#allocation2 + $0x18] sm:$0xff] 0.0
          %1413 = vst [vmem:[#allocation2 + $0x20] sm:$0xff] 0.0
          %1414 = vst [vmem:[#allocation2 + $0x28] sm:$0xff] 0.0
          %1415 = vst [vmem:[#allocation2 + $0x30] sm:$0xff] 0.0
          %1416 = vst [vmem:[#allocation2 + $0x38] sm:$0xff] 0.0
          %1417 = vst [vmem:[#allocation2 + $0x40] sm:$0xff] 0.0
          %1418 = vst [vmem:[#allocation2 + $0x48] sm:$0xff] 0.0
          %1419 = vst [vmem:[#allocation2 + $0x50] sm:$0xff] 0.0
          %1420 = vst [vmem:[#allocation2 + $0x58] sm:$0xff] 0.0
          %1421 = vst [vmem:[#allocation2 + $0x60] sm:$0xff] 0.0
          %1422 = vst [vmem:[#allocation2 + $0x68] sm:$0xff] 0.0
          %1423 = vst [vmem:[#allocation2 + $0x70] sm:$0xff] 0.0
          %1424 = vst [vmem:[#allocation2 + $0x78] sm:$0xff] 0.0
        $region90: #{predictor_forward.1} parent=77 // pred_fallthru
          _
        %v1425 = vld [vmem:[#allocation2] sm:$0xff]
        %v1426 = vld [vmem:[#allocation2 + $0x8] sm:$0xff]
        %v1427 = vld [vmem:[#allocation2 + $0x10] sm:$0xff]
        %v1428 = vld [vmem:[#allocation2 + $0x18] sm:$0xff]
        %v1429 = vld [vmem:[#allocation2 + $0x20] sm:$0xff]
        %v1430 = vld [vmem:[#allocation2 + $0x28] sm:$0xff]
        %v1431 = vld [vmem:[#allocation2 + $0x30] sm:$0xff]
        %v1432 = vld [vmem:[#allocation2 + $0x38] sm:$0xff]
        %v1433 = vld [vmem:[#allocation2 + $0x40] sm:$0xff]
        %v1434 = vld [vmem:[#allocation2 + $0x48] sm:$0xff]
        %v1435 = vld [vmem:[#allocation2 + $0x50] sm:$0xff]
        %v1436 = vld [vmem:[#allocation2 + $0x58] sm:$0xff]
        %v1437 = vld [vmem:[#allocation2 + $0x60] sm:$0xff]
        %v1438 = vld [vmem:[#allocation2 + $0x68] sm:$0xff]
        %v1439 = vld [vmem:[#allocation2 + $0x70] sm:$0xff]
        %v1440 = vld [vmem:[#allocation2 + $0x78] sm:$0xff]
        %v1441 = vld [vmem:[%s1329] sm:$0xff]
        %v1442 = vld [vmem:[%s1329 + $0x8] sm:$0xff]
        %v1443 = vld [vmem:[%s1329 + $0x10] sm:$0xff]
        %v1444 = vld [vmem:[%s1329 + $0x18] sm:$0xff]
        %v1445 = vld [vmem:[%s1329 + $0x20] sm:$0xff]
        %v1446 = vld [vmem:[%s1329 + $0x28] sm:$0xff]
        %v1447 = vld [vmem:[%s1329 + $0x30] sm:$0xff]
        %v1448 = vld [vmem:[%s1329 + $0x38] sm:$0xff]
        %v1449 = vld [vmem:[%s1336] sm:$0xff]
        %v1450 = vld [vmem:[%s1336 + $0x8] sm:$0xff]
        %v1451 = vld [vmem:[%s1336 + $0x10] sm:$0xff]
        %v1452 = vld [vmem:[%s1336 + $0x18] sm:$0xff]
        %v1453 = vld [vmem:[%s1336 + $0x20] sm:$0xff]
        %v1454 = vld [vmem:[%s1336 + $0x28] sm:$0xff]
        %v1455 = vld [vmem:[%s1336 + $0x30] sm:$0xff]
        %v1456 = vld [vmem:[%s1336 + $0x38] sm:$0xff]
        %v1457 = vld [vmem:[%s1336 + $0x40] sm:$0xff]
        %v1458 = vld [vmem:[%s1336 + $0x48] sm:$0xff]
        %v1459 = vld [vmem:[%s1336 + $0x50] sm:$0xff]
        %v1460 = vld [vmem:[%s1336 + $0x58] sm:$0xff]
        %v1461 = vld [vmem:[%s1336 + $0x60] sm:$0xff]
        %v1462 = vld [vmem:[%s1336 + $0x68] sm:$0xff]
        %v1463 = vld [vmem:[%s1336 + $0x70] sm:$0xff]
        %v1464 = vld [vmem:[%s1336 + $0x78] sm:$0xff]
        %v1465 = vld [vmem:[%s1336 + $0x80] sm:$0xff]
        %v1466 = vld [vmem:[%s1336 + $0x88] sm:$0xff]
        %v1467 = vld [vmem:[%s1336 + $0x90] sm:$0xff]
        %v1468 = vld [vmem:[%s1336 + $0x98] sm:$0xff]
        %v1469 = vld [vmem:[%s1336 + $0xa0] sm:$0xff]
        %v1470 = vld [vmem:[%s1336 + $0xa8] sm:$0xff]
        %v1471 = vld [vmem:[%s1336 + $0xb0] sm:$0xff]
        %v1472 = vld [vmem:[%s1336 + $0xb8] sm:$0xff]
        %v1473 = vld [vmem:[%s1336 + $0xc0] sm:$0xff]
        %v1474 = vld [vmem:[%s1336 + $0xc8] sm:$0xff]
        %v1475 = vld [vmem:[%s1336 + $0xd0] sm:$0xff]
        %v1476 = vld [vmem:[%s1336 + $0xd8] sm:$0xff]
        %v1477 = vld [vmem:[%s1336 + $0xe0] sm:$0xff]
        %v1478 = vld [vmem:[%s1336 + $0xe8] sm:$0xff]
        %v1479 = vld [vmem:[%s1336 + $0xf0] sm:$0xff]
        %v1480 = vld [vmem:[%s1336 + $0xf8] sm:$0xff]
        %v1481 = vld [vmem:[%s1336 + $0x100] sm:$0xff]
        %v1482 = vld [vmem:[%s1336 + $0x108] sm:$0xff]
        %v1483 = vld [vmem:[%s1336 + $0x110] sm:$0xff]
        %v1484 = vld [vmem:[%s1336 + $0x118] sm:$0xff]
        %v1485 = vld [vmem:[%s1336 + $0x120] sm:$0xff]
        %v1486 = vld [vmem:[%s1336 + $0x128] sm:$0xff]
        %v1487 = vld [vmem:[%s1336 + $0x130] sm:$0xff]
        %v1488 = vld [vmem:[%s1336 + $0x138] sm:$0xff]
        %v1489 = vld [vmem:[%s1336 + $0x140] sm:$0xff]
        %v1490 = vld [vmem:[%s1336 + $0x148] sm:$0xff]
        %v1491 = vld [vmem:[%s1336 + $0x150] sm:$0xff]
        %v1492 = vld [vmem:[%s1336 + $0x158] sm:$0xff]
        %v1493 = vld [vmem:[%s1336 + $0x160] sm:$0xff]
        %v1494 = vld [vmem:[%s1336 + $0x168] sm:$0xff]
        %v1495 = vld [vmem:[%s1336 + $0x170] sm:$0xff]
        %v1496 = vld [vmem:[%s1336 + $0x178] sm:$0xff]
        %v1497 = vld [vmem:[%s1336 + $0x180] sm:$0xff]
        %v1498 = vld [vmem:[%s1336 + $0x188] sm:$0xff]
        %v1499 = vld [vmem:[%s1336 + $0x190] sm:$0xff]
        %v1500 = vld [vmem:[%s1336 + $0x198] sm:$0xff]
        %v1501 = vld [vmem:[%s1336 + $0x1a0] sm:$0xff]
        %v1502 = vld [vmem:[%s1336 + $0x1a8] sm:$0xff]
        %v1503 = vld [vmem:[%s1336 + $0x1b0] sm:$0xff]
        %v1504 = vld [vmem:[%s1336 + $0x1b8] sm:$0xff]
        %v1505 = vld [vmem:[%s1336 + $0x1c0] sm:$0xff]
        %v1506 = vld [vmem:[%s1336 + $0x1c8] sm:$0xff]
        %v1507 = vld [vmem:[%s1336 + $0x1d0] sm:$0xff]
        %v1508 = vld [vmem:[%s1336 + $0x1d8] sm:$0xff]
        %v1509 = vld [vmem:[%s1336 + $0x1e0] sm:$0xff]
        %v1510 = vld [vmem:[%s1336 + $0x1e8] sm:$0xff]
        %v1511 = vld [vmem:[%s1336 + $0x1f0] sm:$0xff]
        %v1512 = vld [vmem:[%s1336 + $0x1f8] sm:$0xff]
        %v1513 = vld [vmem:[%s1336 + $0x200] sm:$0xff]
        %v1514 = vld [vmem:[%s1336 + $0x208] sm:$0xff]
        %v1515 = vld [vmem:[%s1336 + $0x210] sm:$0xff]
        %v1516 = vld [vmem:[%s1336 + $0x218] sm:$0xff]
        %v1517 = vld [vmem:[%s1336 + $0x220] sm:$0xff]
        %v1518 = vld [vmem:[%s1336 + $0x228] sm:$0xff]
        %v1519 = vld [vmem:[%s1336 + $0x230] sm:$0xff]
        %v1520 = vld [vmem:[%s1336 + $0x238] sm:$0xff]
        %v1521 = vld [vmem:[%s1336 + $0x240] sm:$0xff]
        %v1522 = vld [vmem:[%s1336 + $0x248] sm:$0xff]
        %v1523 = vld [vmem:[%s1336 + $0x250] sm:$0xff]
        %v1524 = vld [vmem:[%s1336 + $0x258] sm:$0xff]
        %v1525 = vld [vmem:[%s1336 + $0x260] sm:$0xff]
        %v1526 = vld [vmem:[%s1336 + $0x268] sm:$0xff]
        %v1527 = vld [vmem:[%s1336 + $0x270] sm:$0xff]
        %v1528 = vld [vmem:[%s1336 + $0x278] sm:$0xff]
        %v1529 = vld [vmem:[%s1336 + $0x280] sm:$0xff]
        %v1530 = vld [vmem:[%s1336 + $0x288] sm:$0xff]
        %v1531 = vld [vmem:[%s1336 + $0x290] sm:$0xff]
        %v1532 = vld [vmem:[%s1336 + $0x298] sm:$0xff]
        %v1533 = vld [vmem:[%s1336 + $0x2a0] sm:$0xff]
        %v1534 = vld [vmem:[%s1336 + $0x2a8] sm:$0xff]
        %v1535 = vld [vmem:[%s1336 + $0x2b0] sm:$0xff]
        %v1536 = vld [vmem:[%s1336 + $0x2b8] sm:$0xff]
        %v1537 = vld [vmem:[%s1336 + $0x2c0] sm:$0xff]
        %v1538 = vld [vmem:[%s1336 + $0x2c8] sm:$0xff]
        %v1539 = vld [vmem:[%s1336 + $0x2d0] sm:$0xff]
        %v1540 = vld [vmem:[%s1336 + $0x2d8] sm:$0xff]
        %v1541 = vld [vmem:[%s1336 + $0x2e0] sm:$0xff]
        %v1542 = vld [vmem:[%s1336 + $0x2e8] sm:$0xff]
        %v1543 = vld [vmem:[%s1336 + $0x2f0] sm:$0xff]
        %v1544 = vld [vmem:[%s1336 + $0x2f8] sm:$0xff]
        %v1545 = vld [vmem:[%s1336 + $0x300] sm:$0xff]
        %v1546 = vld [vmem:[%s1336 + $0x308] sm:$0xff]
        %v1547 = vld [vmem:[%s1336 + $0x310] sm:$0xff]
        %v1548 = vld [vmem:[%s1336 + $0x318] sm:$0xff]
        %v1549 = vld [vmem:[%s1336 + $0x320] sm:$0xff]
        %v1550 = vld [vmem:[%s1336 + $0x328] sm:$0xff]
        %v1551 = vld [vmem:[%s1336 + $0x330] sm:$0xff]
        %v1552 = vld [vmem:[%s1336 + $0x338] sm:$0xff]
        %v1553 = vld [vmem:[%s1336 + $0x340] sm:$0xff]
        %v1554 = vld [vmem:[%s1336 + $0x348] sm:$0xff]
        %v1555 = vld [vmem:[%s1336 + $0x350] sm:$0xff]
        %v1556 = vld [vmem:[%s1336 + $0x358] sm:$0xff]
        %v1557 = vld [vmem:[%s1336 + $0x360] sm:$0xff]
        %v1558 = vld [vmem:[%s1336 + $0x368] sm:$0xff]
        %v1559 = vld [vmem:[%s1336 + $0x370] sm:$0xff]
        %v1560 = vld [vmem:[%s1336 + $0x378] sm:$0xff]
        %v1561 = vld [vmem:[%s1336 + $0x380] sm:$0xff]
        %v1562 = vld [vmem:[%s1336 + $0x388] sm:$0xff]
        %v1563 = vld [vmem:[%s1336 + $0x390] sm:$0xff]
        %v1564 = vld [vmem:[%s1336 + $0x398] sm:$0xff]
        %v1565 = vld [vmem:[%s1336 + $0x3a0] sm:$0xff]
        %v1566 = vld [vmem:[%s1336 + $0x3a8] sm:$0xff]
        %v1567 = vld [vmem:[%s1336 + $0x3b0] sm:$0xff]
        %v1568 = vld [vmem:[%s1336 + $0x3b8] sm:$0xff]
        %v1569 = vld [vmem:[%s1336 + $0x3c0] sm:$0xff]
        %v1570 = vld [vmem:[%s1336 + $0x3c8] sm:$0xff]
        %v1571 = vld [vmem:[%s1336 + $0x3d0] sm:$0xff]
        %v1572 = vld [vmem:[%s1336 + $0x3d8] sm:$0xff]
        %v1573 = vld [vmem:[%s1336 + $0x3e0] sm:$0xff]
        %v1574 = vld [vmem:[%s1336 + $0x3e8] sm:$0xff]
        %v1575 = vld [vmem:[%s1336 + $0x3f0] sm:$0xff]
        %v1576 = vld [vmem:[%s1336 + $0x3f8] sm:$0xff]
        %v1577 = vld [vmem:[%s1336 + $0x400] sm:$0xff]
        %v1578 = vld [vmem:[%s1336 + $0x408] sm:$0xff]
        %v1579 = vld [vmem:[%s1336 + $0x410] sm:$0xff]
        %v1580 = vld [vmem:[%s1336 + $0x418] sm:$0xff]
        %v1581 = vld [vmem:[%s1336 + $0x420] sm:$0xff]
        %v1582 = vld [vmem:[%s1336 + $0x428] sm:$0xff]
        %v1583 = vld [vmem:[%s1336 + $0x430] sm:$0xff]
        %v1584 = vld [vmem:[%s1336 + $0x438] sm:$0xff]
        %v1585 = vld [vmem:[%s1336 + $0x440] sm:$0xff]
        %v1586 = vld [vmem:[%s1336 + $0x448] sm:$0xff]
        %v1587 = vld [vmem:[%s1336 + $0x450] sm:$0xff]
        %v1588 = vld [vmem:[%s1336 + $0x458] sm:$0xff]
        %v1589 = vld [vmem:[%s1336 + $0x460] sm:$0xff]
        %v1590 = vld [vmem:[%s1336 + $0x468] sm:$0xff]
        %v1591 = vld [vmem:[%s1336 + $0x470] sm:$0xff]
        %v1592 = vld [vmem:[%s1336 + $0x478] sm:$0xff]
        %v1593 = vld [vmem:[%s1336 + $0x480] sm:$0xff]
        %v1594 = vld [vmem:[%s1336 + $0x488] sm:$0xff]
        %v1595 = vld [vmem:[%s1336 + $0x490] sm:$0xff]
        %v1596 = vld [vmem:[%s1336 + $0x498] sm:$0xff]
        %v1597 = vld [vmem:[%s1336 + $0x4a0] sm:$0xff]
        %v1598 = vld [vmem:[%s1336 + $0x4a8] sm:$0xff]
        %v1599 = vld [vmem:[%s1336 + $0x4b0] sm:$0xff]
        %v1600 = vld [vmem:[%s1336 + $0x4b8] sm:$0xff]
        %v1601 = vld [vmem:[%s1336 + $0x4c0] sm:$0xff]
        %v1602 = vld [vmem:[%s1336 + $0x4c8] sm:$0xff]
        %v1603 = vld [vmem:[%s1336 + $0x4d0] sm:$0xff]
        %v1604 = vld [vmem:[%s1336 + $0x4d8] sm:$0xff]
        %v1605 = vld [vmem:[%s1336 + $0x4e0] sm:$0xff]
        %v1606 = vld [vmem:[%s1336 + $0x4e8] sm:$0xff]
        %v1607 = vld [vmem:[%s1336 + $0x4f0] sm:$0xff]
        %v1608 = vld [vmem:[%s1336 + $0x4f8] sm:$0xff]
        %v1609 = vld [vmem:[%s1336 + $0x500] sm:$0xff]
        %v1610 = vld [vmem:[%s1336 + $0x508] sm:$0xff]
        %v1611 = vld [vmem:[%s1336 + $0x510] sm:$0xff]
        %v1612 = vld [vmem:[%s1336 + $0x518] sm:$0xff]
        %v1613 = vld [vmem:[%s1336 + $0x520] sm:$0xff]
        %v1614 = vld [vmem:[%s1336 + $0x528] sm:$0xff]
        %v1615 = vld [vmem:[%s1336 + $0x530] sm:$0xff]
        %v1616 = vld [vmem:[%s1336 + $0x538] sm:$0xff]
        %v1617 = vld [vmem:[%s1336 + $0x540] sm:$0xff]
        %v1618 = vld [vmem:[%s1336 + $0x548] sm:$0xff]
        %v1619 = vld [vmem:[%s1336 + $0x550] sm:$0xff]
        %v1620 = vld [vmem:[%s1336 + $0x558] sm:$0xff]
        %v1621 = vld [vmem:[%s1336 + $0x560] sm:$0xff]
        %v1622 = vld [vmem:[%s1336 + $0x568] sm:$0xff]
        %v1623 = vld [vmem:[%s1336 + $0x570] sm:$0xff]
        %v1624 = vld [vmem:[%s1336 + $0x578] sm:$0xff]
        %v1625 = vld [vmem:[%s1336 + $0x580] sm:$0xff]
        %v1626 = vld [vmem:[%s1336 + $0x588] sm:$0xff]
        %v1627 = vld [vmem:[%s1336 + $0x590] sm:$0xff]
        %v1628 = vld [vmem:[%s1336 + $0x598] sm:$0xff]
        %v1629 = vld [vmem:[%s1336 + $0x5a0] sm:$0xff]
        %v1630 = vld [vmem:[%s1336 + $0x5a8] sm:$0xff]
        %v1631 = vld [vmem:[%s1336 + $0x5b0] sm:$0xff]
        %v1632 = vld [vmem:[%s1336 + $0x5b8] sm:$0xff]
        %v1633 = vld [vmem:[%s1336 + $0x5c0] sm:$0xff]
        %v1634 = vld [vmem:[%s1336 + $0x5c8] sm:$0xff]
        %v1635 = vld [vmem:[%s1336 + $0x5d0] sm:$0xff]
        %v1636 = vld [vmem:[%s1336 + $0x5d8] sm:$0xff]
        %v1637 = vld [vmem:[%s1336 + $0x5e0] sm:$0xff]
        %v1638 = vld [vmem:[%s1336 + $0x5e8] sm:$0xff]
        %v1639 = vld [vmem:[%s1336 + $0x5f0] sm:$0xff]
        %v1640 = vld [vmem:[%s1336 + $0x5f8] sm:$0xff]
        %v1641 = vld [vmem:[%s1336 + $0x600] sm:$0xff]
        %v1642 = vld [vmem:[%s1336 + $0x608] sm:$0xff]
        %v1643 = vld [vmem:[%s1336 + $0x610] sm:$0xff]
        %v1644 = vld [vmem:[%s1336 + $0x618] sm:$0xff]
        %v1645 = vld [vmem:[%s1336 + $0x620] sm:$0xff]
        %v1646 = vld [vmem:[%s1336 + $0x628] sm:$0xff]
        %v1647 = vld [vmem:[%s1336 + $0x630] sm:$0xff]
        %v1648 = vld [vmem:[%s1336 + $0x638] sm:$0xff]
        %v1649 = vld [vmem:[%s1336 + $0x640] sm:$0xff]
        %v1650 = vld [vmem:[%s1336 + $0x648] sm:$0xff]
        %v1651 = vld [vmem:[%s1336 + $0x650] sm:$0xff]
        %v1652 = vld [vmem:[%s1336 + $0x658] sm:$0xff]
        %v1653 = vld [vmem:[%s1336 + $0x660] sm:$0xff]
        %v1654 = vld [vmem:[%s1336 + $0x668] sm:$0xff]
        %v1655 = vld [vmem:[%s1336 + $0x670] sm:$0xff]
        %v1656 = vld [vmem:[%s1336 + $0x678] sm:$0xff]
        %v1657 = vld [vmem:[%s1336 + $0x680] sm:$0xff]
        %v1658 = vld [vmem:[%s1336 + $0x688] sm:$0xff]
        %v1659 = vld [vmem:[%s1336 + $0x690] sm:$0xff]
        %v1660 = vld [vmem:[%s1336 + $0x698] sm:$0xff]
        %v1661 = vld [vmem:[%s1336 + $0x6a0] sm:$0xff]
        %v1662 = vld [vmem:[%s1336 + $0x6a8] sm:$0xff]
        %v1663 = vld [vmem:[%s1336 + $0x6b0] sm:$0xff]
        %v1664 = vld [vmem:[%s1336 + $0x6b8] sm:$0xff]
        %v1665 = vld [vmem:[%s1336 + $0x6c0] sm:$0xff]
        %v1666 = vld [vmem:[%s1336 + $0x6c8] sm:$0xff]
        %v1667 = vld [vmem:[%s1336 + $0x6d0] sm:$0xff]
        %v1668 = vld [vmem:[%s1336 + $0x6d8] sm:$0xff]
        %v1669 = vld [vmem:[%s1336 + $0x6e0] sm:$0xff]
        %v1670 = vld [vmem:[%s1336 + $0x6e8] sm:$0xff]
        %v1671 = vld [vmem:[%s1336 + $0x6f0] sm:$0xff]
        %v1672 = vld [vmem:[%s1336 + $0x6f8] sm:$0xff]
        %v1673 = vld [vmem:[%s1336 + $0x700] sm:$0xff]
        %v1674 = vld [vmem:[%s1336 + $0x708] sm:$0xff]
        %v1675 = vld [vmem:[%s1336 + $0x710] sm:$0xff]
        %v1676 = vld [vmem:[%s1336 + $0x718] sm:$0xff]
        %v1677 = vld [vmem:[%s1336 + $0x720] sm:$0xff]
        %v1678 = vld [vmem:[%s1336 + $0x728] sm:$0xff]
        %v1679 = vld [vmem:[%s1336 + $0x730] sm:$0xff]
        %v1680 = vld [vmem:[%s1336 + $0x738] sm:$0xff]
        %v1681 = vld [vmem:[%s1336 + $0x740] sm:$0xff]
        %v1682 = vld [vmem:[%s1336 + $0x748] sm:$0xff]
        %v1683 = vld [vmem:[%s1336 + $0x750] sm:$0xff]
        %v1684 = vld [vmem:[%s1336 + $0x758] sm:$0xff]
        %v1685 = vld [vmem:[%s1336 + $0x760] sm:$0xff]
        %v1686 = vld [vmem:[%s1336 + $0x768] sm:$0xff]
        %v1687 = vld [vmem:[%s1336 + $0x770] sm:$0xff]
        %v1688 = vld [vmem:[%s1336 + $0x778] sm:$0xff]
        %v1689 = vld [vmem:[%s1336 + $0x780] sm:$0xff]
        %v1690 = vld [vmem:[%s1336 + $0x788] sm:$0xff]
        %v1691 = vld [vmem:[%s1336 + $0x790] sm:$0xff]
        %v1692 = vld [vmem:[%s1336 + $0x798] sm:$0xff]
        %v1693 = vld [vmem:[%s1336 + $0x7a0] sm:$0xff]
        %v1694 = vld [vmem:[%s1336 + $0x7a8] sm:$0xff]
        %v1695 = vld [vmem:[%s1336 + $0x7b0] sm:$0xff]
        %v1696 = vld [vmem:[%s1336 + $0x7b8] sm:$0xff]
        %v1697 = vld [vmem:[%s1336 + $0x7c0] sm:$0xff]
        %v1698 = vld [vmem:[%s1336 + $0x7c8] sm:$0xff]
        %v1699 = vld [vmem:[%s1336 + $0x7d0] sm:$0xff]
        %v1700 = vld [vmem:[%s1336 + $0x7d8] sm:$0xff]
        %v1701 = vld [vmem:[%s1336 + $0x7e0] sm:$0xff]
        %v1702 = vld [vmem:[%s1336 + $0x7e8] sm:$0xff]
        %v1703 = vld [vmem:[%s1336 + $0x7f0] sm:$0xff]
        %v1704 = vld [vmem:[%s1336 + $0x7f8] sm:$0xff]
        %v1705 = vld [vmem:[%s1336 + $0x800] sm:$0xff]
        %v1706 = vld [vmem:[%s1336 + $0x808] sm:$0xff]
        %v1707 = vld [vmem:[%s1336 + $0x810] sm:$0xff]
        %v1708 = vld [vmem:[%s1336 + $0x818] sm:$0xff]
        %v1709 = vld [vmem:[%s1336 + $0x820] sm:$0xff]
        %v1710 = vld [vmem:[%s1336 + $0x828] sm:$0xff]
        %v1711 = vld [vmem:[%s1336 + $0x830] sm:$0xff]
        %v1712 = vld [vmem:[%s1336 + $0x838] sm:$0xff]
        %v1713 = vld [vmem:[%s1336 + $0x840] sm:$0xff]
        %v1714 = vld [vmem:[%s1336 + $0x848] sm:$0xff]
        %v1715 = vld [vmem:[%s1336 + $0x850] sm:$0xff]
        %v1716 = vld [vmem:[%s1336 + $0x858] sm:$0xff]
        %v1717 = vld [vmem:[%s1336 + $0x860] sm:$0xff]
        %v1718 = vld [vmem:[%s1336 + $0x868] sm:$0xff]
        %v1719 = vld [vmem:[%s1336 + $0x870] sm:$0xff]
        %v1720 = vld [vmem:[%s1336 + $0x878] sm:$0xff]
        %v1721 = vld [vmem:[%s1336 + $0x880] sm:$0xff]
        %v1722 = vld [vmem:[%s1336 + $0x888] sm:$0xff]
        %v1723 = vld [vmem:[%s1336 + $0x890] sm:$0xff]
        %v1724 = vld [vmem:[%s1336 + $0x898] sm:$0xff]
        %v1725 = vld [vmem:[%s1336 + $0x8a0] sm:$0xff]
        %v1726 = vld [vmem:[%s1336 + $0x8a8] sm:$0xff]
        %v1727 = vld [vmem:[%s1336 + $0x8b0] sm:$0xff]
        %v1728 = vld [vmem:[%s1336 + $0x8b8] sm:$0xff]
        %v1729 = vld [vmem:[%s1336 + $0x8c0] sm:$0xff]
        %v1730 = vld [vmem:[%s1336 + $0x8c8] sm:$0xff]
        %v1731 = vld [vmem:[%s1336 + $0x8d0] sm:$0xff]
        %v1732 = vld [vmem:[%s1336 + $0x8d8] sm:$0xff]
        %v1733 = vld [vmem:[%s1336 + $0x8e0] sm:$0xff]
        %v1734 = vld [vmem:[%s1336 + $0x8e8] sm:$0xff]
        %v1735 = vld [vmem:[%s1336 + $0x8f0] sm:$0xff]
        %v1736 = vld [vmem:[%s1336 + $0x8f8] sm:$0xff]
        %v1737 = vld [vmem:[%s1336 + $0x900] sm:$0xff]
        %v1738 = vld [vmem:[%s1336 + $0x908] sm:$0xff]
        %v1739 = vld [vmem:[%s1336 + $0x910] sm:$0xff]
        %v1740 = vld [vmem:[%s1336 + $0x918] sm:$0xff]
        %v1741 = vld [vmem:[%s1336 + $0x920] sm:$0xff]
        %v1742 = vld [vmem:[%s1336 + $0x928] sm:$0xff]
        %v1743 = vld [vmem:[%s1336 + $0x930] sm:$0xff]
        %v1744 = vld [vmem:[%s1336 + $0x938] sm:$0xff]
        %v1745 = vld [vmem:[%s1336 + $0x940] sm:$0xff]
        %v1746 = vld [vmem:[%s1336 + $0x948] sm:$0xff]
        %v1747 = vld [vmem:[%s1336 + $0x950] sm:$0xff]
        %v1748 = vld [vmem:[%s1336 + $0x958] sm:$0xff]
        %v1749 = vld [vmem:[%s1336 + $0x960] sm:$0xff]
        %v1750 = vld [vmem:[%s1336 + $0x968] sm:$0xff]
        %v1751 = vld [vmem:[%s1336 + $0x970] sm:$0xff]
        %v1752 = vld [vmem:[%s1336 + $0x978] sm:$0xff]
        %v1753 = vld [vmem:[%s1336 + $0x980] sm:$0xff]
        %v1754 = vld [vmem:[%s1336 + $0x988] sm:$0xff]
        %v1755 = vld [vmem:[%s1336 + $0x990] sm:$0xff]
        %v1756 = vld [vmem:[%s1336 + $0x998] sm:$0xff]
        %v1757 = vld [vmem:[%s1336 + $0x9a0] sm:$0xff]
        %v1758 = vld [vmem:[%s1336 + $0x9a8] sm:$0xff]
        %v1759 = vld [vmem:[%s1336 + $0x9b0] sm:$0xff]
        %v1760 = vld [vmem:[%s1336 + $0x9b8] sm:$0xff]
        %v1761 = vld [vmem:[%s1336 + $0x9c0] sm:$0xff]
        %v1762 = vld [vmem:[%s1336 + $0x9c8] sm:$0xff]
        %v1763 = vld [vmem:[%s1336 + $0x9d0] sm:$0xff]
        %v1764 = vld [vmem:[%s1336 + $0x9d8] sm:$0xff]
        %v1765 = vld [vmem:[%s1336 + $0x9e0] sm:$0xff]
        %v1766 = vld [vmem:[%s1336 + $0x9e8] sm:$0xff]
        %v1767 = vld [vmem:[%s1336 + $0x9f0] sm:$0xff]
        %v1768 = vld [vmem:[%s1336 + $0x9f8] sm:$0xff]
        %v1769 = vld [vmem:[%s1336 + $0xa00] sm:$0xff]
        %v1770 = vld [vmem:[%s1336 + $0xa08] sm:$0xff]
        %v1771 = vld [vmem:[%s1336 + $0xa10] sm:$0xff]
        %v1772 = vld [vmem:[%s1336 + $0xa18] sm:$0xff]
        %v1773 = vld [vmem:[%s1336 + $0xa20] sm:$0xff]
        %v1774 = vld [vmem:[%s1336 + $0xa28] sm:$0xff]
        %v1775 = vld [vmem:[%s1336 + $0xa30] sm:$0xff]
        %v1776 = vld [vmem:[%s1336 + $0xa38] sm:$0xff]
        %v1777 = vld [vmem:[%s1336 + $0xa40] sm:$0xff]
        %v1778 = vld [vmem:[%s1336 + $0xa48] sm:$0xff]
        %v1779 = vld [vmem:[%s1336 + $0xa50] sm:$0xff]
        %v1780 = vld [vmem:[%s1336 + $0xa58] sm:$0xff]
        %v1781 = vld [vmem:[%s1336 + $0xa60] sm:$0xff]
        %v1782 = vld [vmem:[%s1336 + $0xa68] sm:$0xff]
        %v1783 = vld [vmem:[%s1336 + $0xa70] sm:$0xff]
        %v1784 = vld [vmem:[%s1336 + $0xa78] sm:$0xff]
        %v1785 = vld [vmem:[%s1336 + $0xa80] sm:$0xff]
        %v1786 = vld [vmem:[%s1336 + $0xa88] sm:$0xff]
        %v1787 = vld [vmem:[%s1336 + $0xa90] sm:$0xff]
        %v1788 = vld [vmem:[%s1336 + $0xa98] sm:$0xff]
        %v1789 = vld [vmem:[%s1336 + $0xaa0] sm:$0xff]
        %v1790 = vld [vmem:[%s1336 + $0xaa8] sm:$0xff]
        %v1791 = vld [vmem:[%s1336 + $0xab0] sm:$0xff]
        %v1792 = vld [vmem:[%s1336 + $0xab8] sm:$0xff]
        %v1793 = vld [vmem:[%s1336 + $0xac0] sm:$0xff]
        %v1794 = vld [vmem:[%s1336 + $0xac8] sm:$0xff]
        %v1795 = vld [vmem:[%s1336 + $0xad0] sm:$0xff]
        %v1796 = vld [vmem:[%s1336 + $0xad8] sm:$0xff]
        %v1797 = vld [vmem:[%s1336 + $0xae0] sm:$0xff]
        %v1798 = vld [vmem:[%s1336 + $0xae8] sm:$0xff]
        %v1799 = vld [vmem:[%s1336 + $0xaf0] sm:$0xff]
        %v1800 = vld [vmem:[%s1336 + $0xaf8] sm:$0xff]
        %v1801 = vld [vmem:[%s1336 + $0xb00] sm:$0xff]
        %v1802 = vld [vmem:[%s1336 + $0xb08] sm:$0xff]
        %v1803 = vld [vmem:[%s1336 + $0xb10] sm:$0xff]
        %v1804 = vld [vmem:[%s1336 + $0xb18] sm:$0xff]
        %v1805 = vld [vmem:[%s1336 + $0xb20] sm:$0xff]
        %v1806 = vld [vmem:[%s1336 + $0xb28] sm:$0xff]
        %v1807 = vld [vmem:[%s1336 + $0xb30] sm:$0xff]
        %v1808 = vld [vmem:[%s1336 + $0xb38] sm:$0xff]
        %v1809 = vld [vmem:[%s1336 + $0xb40] sm:$0xff]
        %v1810 = vld [vmem:[%s1336 + $0xb48] sm:$0xff]
        %v1811 = vld [vmem:[%s1336 + $0xb50] sm:$0xff]
        %v1812 = vld [vmem:[%s1336 + $0xb58] sm:$0xff]
        %v1813 = vld [vmem:[%s1336 + $0xb60] sm:$0xff]
        %v1814 = vld [vmem:[%s1336 + $0xb68] sm:$0xff]
        %v1815 = vld [vmem:[%s1336 + $0xb70] sm:$0xff]
        %v1816 = vld [vmem:[%s1336 + $0xb78] sm:$0xff]
        %v1817 = vld [vmem:[%s1336 + $0xb80] sm:$0xff]
        %v1818 = vld [vmem:[%s1336 + $0xb88] sm:$0xff]
        %v1819 = vld [vmem:[%s1336 + $0xb90] sm:$0xff]
        %v1820 = vld [vmem:[%s1336 + $0xb98] sm:$0xff]
        %v1821 = vld [vmem:[%s1336 + $0xba0] sm:$0xff]
        %v1822 = vld [vmem:[%s1336 + $0xba8] sm:$0xff]
        %v1823 = vld [vmem:[%s1336 + $0xbb0] sm:$0xff]
        %v1824 = vld [vmem:[%s1336 + $0xbb8] sm:$0xff]
        %v1825 = vld [vmem:[%s1336 + $0xbc0] sm:$0xff]
        %v1826 = vld [vmem:[%s1336 + $0xbc8] sm:$0xff]
        %v1827 = vld [vmem:[%s1336 + $0xbd0] sm:$0xff]
        %v1828 = vld [vmem:[%s1336 + $0xbd8] sm:$0xff]
        %v1829 = vld [vmem:[%s1336 + $0xbe0] sm:$0xff]
        %v1830 = vld [vmem:[%s1336 + $0xbe8] sm:$0xff]
        %v1831 = vld [vmem:[%s1336 + $0xbf0] sm:$0xff]
        %v1832 = vld [vmem:[%s1336 + $0xbf8] sm:$0xff]
        %v1833 = vld [vmem:[%s1336 + $0xc00] sm:$0xff]
        %v1834 = vld [vmem:[%s1336 + $0xc08] sm:$0xff]
        %v1835 = vld [vmem:[%s1336 + $0xc10] sm:$0xff]
        %v1836 = vld [vmem:[%s1336 + $0xc18] sm:$0xff]
        %v1837 = vld [vmem:[%s1336 + $0xc20] sm:$0xff]
        %v1838 = vld [vmem:[%s1336 + $0xc28] sm:$0xff]
        %v1839 = vld [vmem:[%s1336 + $0xc30] sm:$0xff]
        %v1840 = vld [vmem:[%s1336 + $0xc38] sm:$0xff]
        %v1841 = vld [vmem:[%s1336 + $0xc40] sm:$0xff]
        %v1842 = vld [vmem:[%s1336 + $0xc48] sm:$0xff]
        %v1843 = vld [vmem:[%s1336 + $0xc50] sm:$0xff]
        %v1844 = vld [vmem:[%s1336 + $0xc58] sm:$0xff]
        %v1845 = vld [vmem:[%s1336 + $0xc60] sm:$0xff]
        %v1846 = vld [vmem:[%s1336 + $0xc68] sm:$0xff]
        %v1847 = vld [vmem:[%s1336 + $0xc70] sm:$0xff]
        %v1848 = vld [vmem:[%s1336 + $0xc78] sm:$0xff]
        %v1849 = vld [vmem:[%s1336 + $0xc80] sm:$0xff]
        %v1850 = vld [vmem:[%s1336 + $0xc88] sm:$0xff]
        %v1851 = vld [vmem:[%s1336 + $0xc90] sm:$0xff]
        %v1852 = vld [vmem:[%s1336 + $0xc98] sm:$0xff]
        %v1853 = vld [vmem:[%s1336 + $0xca0] sm:$0xff]
        %v1854 = vld [vmem:[%s1336 + $0xca8] sm:$0xff]
        %v1855 = vld [vmem:[%s1336 + $0xcb0] sm:$0xff]
        %v1856 = vld [vmem:[%s1336 + $0xcb8] sm:$0xff]
        %v1857 = vld [vmem:[%s1336 + $0xcc0] sm:$0xff]
        %v1858 = vld [vmem:[%s1336 + $0xcc8] sm:$0xff]
        %v1859 = vld [vmem:[%s1336 + $0xcd0] sm:$0xff]
        %v1860 = vld [vmem:[%s1336 + $0xcd8] sm:$0xff]
        %v1861 = vld [vmem:[%s1336 + $0xce0] sm:$0xff]
        %v1862 = vld [vmem:[%s1336 + $0xce8] sm:$0xff]
        %v1863 = vld [vmem:[%s1336 + $0xcf0] sm:$0xff]
        %v1864 = vld [vmem:[%s1336 + $0xcf8] sm:$0xff]
        %v1865 = vld [vmem:[%s1336 + $0xd00] sm:$0xff]
        %v1866 = vld [vmem:[%s1336 + $0xd08] sm:$0xff]
        %v1867 = vld [vmem:[%s1336 + $0xd10] sm:$0xff]
        %v1868 = vld [vmem:[%s1336 + $0xd18] sm:$0xff]
        %v1869 = vld [vmem:[%s1336 + $0xd20] sm:$0xff]
        %v1870 = vld [vmem:[%s1336 + $0xd28] sm:$0xff]
        %v1871 = vld [vmem:[%s1336 + $0xd30] sm:$0xff]
        %v1872 = vld [vmem:[%s1336 + $0xd38] sm:$0xff]
        %v1873 = vld [vmem:[%s1336 + $0xd40] sm:$0xff]
        %v1874 = vld [vmem:[%s1336 + $0xd48] sm:$0xff]
        %v1875 = vld [vmem:[%s1336 + $0xd50] sm:$0xff]
        %v1876 = vld [vmem:[%s1336 + $0xd58] sm:$0xff]
        %v1877 = vld [vmem:[%s1336 + $0xd60] sm:$0xff]
        %v1878 = vld [vmem:[%s1336 + $0xd68] sm:$0xff]
        %v1879 = vld [vmem:[%s1336 + $0xd70] sm:$0xff]
        %v1880 = vld [vmem:[%s1336 + $0xd78] sm:$0xff]
        %v1881 = vld [vmem:[%s1336 + $0xd80] sm:$0xff]
        %v1882 = vld [vmem:[%s1336 + $0xd88] sm:$0xff]
        %v1883 = vld [vmem:[%s1336 + $0xd90] sm:$0xff]
        %v1884 = vld [vmem:[%s1336 + $0xd98] sm:$0xff]
        %v1885 = vld [vmem:[%s1336 + $0xda0] sm:$0xff]
        %v1886 = vld [vmem:[%s1336 + $0xda8] sm:$0xff]
        %v1887 = vld [vmem:[%s1336 + $0xdb0] sm:$0xff]
        %v1888 = vld [vmem:[%s1336 + $0xdb8] sm:$0xff]
        %v1889 = vld [vmem:[%s1336 + $0xdc0] sm:$0xff]
        %v1890 = vld [vmem:[%s1336 + $0xdc8] sm:$0xff]
        %v1891 = vld [vmem:[%s1336 + $0xdd0] sm:$0xff]
        %v1892 = vld [vmem:[%s1336 + $0xdd8] sm:$0xff]
        %v1893 = vld [vmem:[%s1336 + $0xde0] sm:$0xff]
        %v1894 = vld [vmem:[%s1336 + $0xde8] sm:$0xff]
        %v1895 = vld [vmem:[%s1336 + $0xdf0] sm:$0xff]
        %v1896 = vld [vmem:[%s1336 + $0xdf8] sm:$0xff]
        %v1897 = vld [vmem:[%s1336 + $0xe00] sm:$0xff]
        %v1898 = vld [vmem:[%s1336 + $0xe08] sm:$0xff]
        %v1899 = vld [vmem:[%s1336 + $0xe10] sm:$0xff]
        %v1900 = vld [vmem:[%s1336 + $0xe18] sm:$0xff]
        %v1901 = vld [vmem:[%s1336 + $0xe20] sm:$0xff]
        %v1902 = vld [vmem:[%s1336 + $0xe28] sm:$0xff]
        %v1903 = vld [vmem:[%s1336 + $0xe30] sm:$0xff]
        %v1904 = vld [vmem:[%s1336 + $0xe38] sm:$0xff]
        %v1905 = vld [vmem:[%s1336 + $0xe40] sm:$0xff]
        %v1906 = vld [vmem:[%s1336 + $0xe48] sm:$0xff]
        %v1907 = vld [vmem:[%s1336 + $0xe50] sm:$0xff]
        %v1908 = vld [vmem:[%s1336 + $0xe58] sm:$0xff]
        %v1909 = vld [vmem:[%s1336 + $0xe60] sm:$0xff]
        %v1910 = vld [vmem:[%s1336 + $0xe68] sm:$0xff]
        %v1911 = vld [vmem:[%s1336 + $0xe70] sm:$0xff]
        %v1912 = vld [vmem:[%s1336 + $0xe78] sm:$0xff]
        %v1913 = vld [vmem:[%s1336 + $0xe80] sm:$0xff]
        %v1914 = vld [vmem:[%s1336 + $0xe88] sm:$0xff]
        %v1915 = vld [vmem:[%s1336 + $0xe90] sm:$0xff]
        %v1916 = vld [vmem:[%s1336 + $0xe98] sm:$0xff]
        %v1917 = vld [vmem:[%s1336 + $0xea0] sm:$0xff]
        %v1918 = vld [vmem:[%s1336 + $0xea8] sm:$0xff]
        %v1919 = vld [vmem:[%s1336 + $0xeb0] sm:$0xff]
        %v1920 = vld [vmem:[%s1336 + $0xeb8] sm:$0xff]
        %v1921 = vld [vmem:[%s1336 + $0xec0] sm:$0xff]
        %v1922 = vld [vmem:[%s1336 + $0xec8] sm:$0xff]
        %v1923 = vld [vmem:[%s1336 + $0xed0] sm:$0xff]
        %v1924 = vld [vmem:[%s1336 + $0xed8] sm:$0xff]
        %v1925 = vld [vmem:[%s1336 + $0xee0] sm:$0xff]
        %v1926 = vld [vmem:[%s1336 + $0xee8] sm:$0xff]
        %v1927 = vld [vmem:[%s1336 + $0xef0] sm:$0xff]
        %v1928 = vld [vmem:[%s1336 + $0xef8] sm:$0xff]
        %v1929 = vld [vmem:[%s1336 + $0xf00] sm:$0xff]
        %v1930 = vld [vmem:[%s1336 + $0xf08] sm:$0xff]
        %v1931 = vld [vmem:[%s1336 + $0xf10] sm:$0xff]
        %v1932 = vld [vmem:[%s1336 + $0xf18] sm:$0xff]
        %v1933 = vld [vmem:[%s1336 + $0xf20] sm:$0xff]
        %v1934 = vld [vmem:[%s1336 + $0xf28] sm:$0xff]
        %v1935 = vld [vmem:[%s1336 + $0xf30] sm:$0xff]
        %v1936 = vld [vmem:[%s1336 + $0xf38] sm:$0xff]
        %v1937 = vld [vmem:[%s1336 + $0xf40] sm:$0xff]
        %v1938 = vld [vmem:[%s1336 + $0xf48] sm:$0xff]
        %v1939 = vld [vmem:[%s1336 + $0xf50] sm:$0xff]
        %v1940 = vld [vmem:[%s1336 + $0xf58] sm:$0xff]
        %v1941 = vld [vmem:[%s1336 + $0xf60] sm:$0xff]
        %v1942 = vld [vmem:[%s1336 + $0xf68] sm:$0xff]
        %v1943 = vld [vmem:[%s1336 + $0xf70] sm:$0xff]
        %v1944 = vld [vmem:[%s1336 + $0xf78] sm:$0xff]
        %v1945 = vld [vmem:[%s1336 + $0xf80] sm:$0xff]
        %v1946 = vld [vmem:[%s1336 + $0xf88] sm:$0xff]
        %v1947 = vld [vmem:[%s1336 + $0xf90] sm:$0xff]
        %v1948 = vld [vmem:[%s1336 + $0xf98] sm:$0xff]
        %v1949 = vld [vmem:[%s1336 + $0xfa0] sm:$0xff]
        %v1950 = vld [vmem:[%s1336 + $0xfa8] sm:$0xff]
        %v1951 = vld [vmem:[%s1336 + $0xfb0] sm:$0xff]
        %v1952 = vld [vmem:[%s1336 + $0xfb8] sm:$0xff]
        %v1953 = vld [vmem:[%s1336 + $0xfc0] sm:$0xff]
        %v1954 = vld [vmem:[%s1336 + $0xfc8] sm:$0xff]
        %v1955 = vld [vmem:[%s1336 + $0xfd0] sm:$0xff]
        %v1956 = vld [vmem:[%s1336 + $0xfd8] sm:$0xff]
        %v1957 = vld [vmem:[%s1336 + $0xfe0] sm:$0xff]
        %v1958 = vld [vmem:[%s1336 + $0xfe8] sm:$0xff]
        %v1959 = vld [vmem:[%s1336 + $0xff0] sm:$0xff]
        %v1960 = vld [vmem:[%s1336 + $0xff8] sm:$0xff]
        %v1969 = vunpack.c.l.b16 %v1441
        %v1970 = vunpack.c.h.b16 %v1441
        %v1971 = vunpack.c.l.b16 %v1442
        %v1972 = vunpack.c.h.b16 %v1442
        %v1973 = vunpack.c.l.b16 %v1443
        %v1974 = vunpack.c.h.b16 %v1443
        %v1975 = vunpack.c.l.b16 %v1444
        %v1976 = vunpack.c.h.b16 %v1444
        %v1977 = vunpack.c.l.b16 %v1445
        %v1978 = vunpack.c.h.b16 %v1445
        %v1979 = vunpack.c.l.b16 %v1446
        %v1980 = vunpack.c.h.b16 %v1446
        %v1981 = vunpack.c.l.b16 %v1447
        %v1982 = vunpack.c.h.b16 %v1447
        %v1983 = vunpack.c.l.b16 %v1448
        %v1984 = vunpack.c.h.b16 %v1448
        %v1985 = vpack.c.b16 %v1977, %v1969
        %v1986 = vpack.c.b16 %v1978, %v1970
        %v1987 = vpack.c.b16 %v1979, %v1971
        %v1988 = vpack.c.b16 %v1980, %v1972
        %v1989 = vpack.c.b16 %v1981, %v1973
        %v1990 = vpack.c.b16 %v1982, %v1974
        %v1991 = vpack.c.b16 %v1983, %v1975
        %v1992 = vpack.c.b16 %v1984, %v1976
        %v2513 = vunpack.c.l.b16 %v1449
        %v2514 = vunpack.c.h.b16 %v1449
        %v2515 = vunpack.c.l.b16 %v1450
        %v2516 = vunpack.c.h.b16 %v1450
        %v2517 = vunpack.c.l.b16 %v1451
        %v2518 = vunpack.c.h.b16 %v1451
        %v2519 = vunpack.c.l.b16 %v1452
        %v2520 = vunpack.c.h.b16 %v1452
        %v2521 = vunpack.c.l.b16 %v1453
        %v2522 = vunpack.c.h.b16 %v1453
        %v2523 = vunpack.c.l.b16 %v1454
        %v2524 = vunpack.c.h.b16 %v1454
        %v2525 = vunpack.c.l.b16 %v1455
        %v2526 = vunpack.c.h.b16 %v1455
        %v2527 = vunpack.c.l.b16 %v1456
        %v2528 = vunpack.c.h.b16 %v1456
        %v2529 = vunpack.c.l.b16 %v1457
        %v2530 = vunpack.c.h.b16 %v1457
        %v2531 = vunpack.c.l.b16 %v1458
        %v2532 = vunpack.c.h.b16 %v1458
        %v2533 = vunpack.c.l.b16 %v1459
        %v2534 = vunpack.c.h.b16 %v1459
        %v2535 = vunpack.c.l.b16 %v1460
        %v2536 = vunpack.c.h.b16 %v1460
        %v2537 = vunpack.c.l.b16 %v1461
        %v2538 = vunpack.c.h.b16 %v1461
        %v2539 = vunpack.c.l.b16 %v1462
        %v2540 = vunpack.c.h.b16 %v1462
        %v2541 = vunpack.c.l.b16 %v1463
        %v2542 = vunpack.c.h.b16 %v1463
        %v2543 = vunpack.c.l.b16 %v1464
        %v2544 = vunpack.c.h.b16 %v1464
        %v2545 = vunpack.c.l.b16 %v1465
        %v2546 = vunpack.c.h.b16 %v1465
        %v2547 = vunpack.c.l.b16 %v1466
        %v2548 = vunpack.c.h.b16 %v1466
        %v2549 = vunpack.c.l.b16 %v1467
        %v2550 = vunpack.c.h.b16 %v1467
        %v2551 = vunpack.c.l.b16 %v1468
        %v2552 = vunpack.c.h.b16 %v1468
        %v2553 = vunpack.c.l.b16 %v1469
        %v2554 = vunpack.c.h.b16 %v1469
        %v2555 = vunpack.c.l.b16 %v1470
        %v2556 = vunpack.c.h.b16 %v1470
        %v2557 = vunpack.c.l.b16 %v1471
        %v2558 = vunpack.c.h.b16 %v1471
        %v2559 = vunpack.c.l.b16 %v1472
        %v2560 = vunpack.c.h.b16 %v1472
        %v2561 = vunpack.c.l.b16 %v1473
        %v2562 = vunpack.c.h.b16 %v1473
        %v2563 = vunpack.c.l.b16 %v1474
        %v2564 = vunpack.c.h.b16 %v1474
        %v2565 = vunpack.c.l.b16 %v1475
        %v2566 = vunpack.c.h.b16 %v1475
        %v2567 = vunpack.c.l.b16 %v1476
        %v2568 = vunpack.c.h.b16 %v1476
        %v2569 = vunpack.c.l.b16 %v1477
        %v2570 = vunpack.c.h.b16 %v1477
        %v2571 = vunpack.c.l.b16 %v1478
        %v2572 = vunpack.c.h.b16 %v1478
        %v2573 = vunpack.c.l.b16 %v1479
        %v2574 = vunpack.c.h.b16 %v1479
        %v2575 = vunpack.c.l.b16 %v1480
        %v2576 = vunpack.c.h.b16 %v1480
        %v2577 = vunpack.c.l.b16 %v1481
        %v2578 = vunpack.c.h.b16 %v1481
        %v2579 = vunpack.c.l.b16 %v1482
        %v2580 = vunpack.c.h.b16 %v1482
        %v2581 = vunpack.c.l.b16 %v1483
        %v2582 = vunpack.c.h.b16 %v1483
        %v2583 = vunpack.c.l.b16 %v1484
        %v2584 = vunpack.c.h.b16 %v1484
        %v2585 = vunpack.c.l.b16 %v1485
        %v2586 = vunpack.c.h.b16 %v1485
        %v2587 = vunpack.c.l.b16 %v1486
        %v2588 = vunpack.c.h.b16 %v1486
        %v2589 = vunpack.c.l.b16 %v1487
        %v2590 = vunpack.c.h.b16 %v1487
        %v2591 = vunpack.c.l.b16 %v1488
        %v2592 = vunpack.c.h.b16 %v1488
        %v2593 = vunpack.c.l.b16 %v1489
        %v2594 = vunpack.c.h.b16 %v1489
        %v2595 = vunpack.c.l.b16 %v1490
        %v2596 = vunpack.c.h.b16 %v1490
        %v2597 = vunpack.c.l.b16 %v1491
        %v2598 = vunpack.c.h.b16 %v1491
        %v2599 = vunpack.c.l.b16 %v1492
        %v2600 = vunpack.c.h.b16 %v1492
        %v2601 = vunpack.c.l.b16 %v1493
        %v2602 = vunpack.c.h.b16 %v1493
        %v2603 = vunpack.c.l.b16 %v1494
        %v2604 = vunpack.c.h.b16 %v1494
        %v2605 = vunpack.c.l.b16 %v1495
        %v2606 = vunpack.c.h.b16 %v1495
        %v2607 = vunpack.c.l.b16 %v1496
        %v2608 = vunpack.c.h.b16 %v1496
        %v2609 = vunpack.c.l.b16 %v1497
        %v2610 = vunpack.c.h.b16 %v1497
        %v2611 = vunpack.c.l.b16 %v1498
        %v2612 = vunpack.c.h.b16 %v1498
        %v2613 = vunpack.c.l.b16 %v1499
        %v2614 = vunpack.c.h.b16 %v1499
        %v2615 = vunpack.c.l.b16 %v1500
        %v2616 = vunpack.c.h.b16 %v1500
        %v2617 = vunpack.c.l.b16 %v1501
        %v2618 = vunpack.c.h.b16 %v1501
        %v2619 = vunpack.c.l.b16 %v1502
        %v2620 = vunpack.c.h.b16 %v1502
        %v2621 = vunpack.c.l.b16 %v1503
        %v2622 = vunpack.c.h.b16 %v1503
        %v2623 = vunpack.c.l.b16 %v1504
        %v2624 = vunpack.c.h.b16 %v1504
        %v2625 = vunpack.c.l.b16 %v1505
        %v2626 = vunpack.c.h.b16 %v1505
        %v2627 = vunpack.c.l.b16 %v1506
        %v2628 = vunpack.c.h.b16 %v1506
        %v2629 = vunpack.c.l.b16 %v1507
        %v2630 = vunpack.c.h.b16 %v1507
        %v2631 = vunpack.c.l.b16 %v1508
        %v2632 = vunpack.c.h.b16 %v1508
        %v2633 = vunpack.c.l.b16 %v1509
        %v2634 = vunpack.c.h.b16 %v1509
        %v2635 = vunpack.c.l.b16 %v1510
        %v2636 = vunpack.c.h.b16 %v1510
        %v2637 = vunpack.c.l.b16 %v1511
        %v2638 = vunpack.c.h.b16 %v1511
        %v2639 = vunpack.c.l.b16 %v1512
        %v2640 = vunpack.c.h.b16 %v1512
        %v2641 = vunpack.c.l.b16 %v1513
        %v2642 = vunpack.c.h.b16 %v1513
        %v2643 = vunpack.c.l.b16 %v1514
        %v2644 = vunpack.c.h.b16 %v1514
        %v2645 = vunpack.c.l.b16 %v1515
        %v2646 = vunpack.c.h.b16 %v1515
        %v2647 = vunpack.c.l.b16 %v1516
        %v2648 = vunpack.c.h.b16 %v1516
        %v2649 = vunpack.c.l.b16 %v1517
        %v2650 = vunpack.c.h.b16 %v1517
        %v2651 = vunpack.c.l.b16 %v1518
        %v2652 = vunpack.c.h.b16 %v1518
        %v2653 = vunpack.c.l.b16 %v1519
        %v2654 = vunpack.c.h.b16 %v1519
        %v2655 = vunpack.c.l.b16 %v1520
        %v2656 = vunpack.c.h.b16 %v1520
        %v2657 = vunpack.c.l.b16 %v1521
        %v2658 = vunpack.c.h.b16 %v1521
        %v2659 = vunpack.c.l.b16 %v1522
        %v2660 = vunpack.c.h.b16 %v1522
        %v2661 = vunpack.c.l.b16 %v1523
        %v2662 = vunpack.c.h.b16 %v1523
        %v2663 = vunpack.c.l.b16 %v1524
        %v2664 = vunpack.c.h.b16 %v1524
        %v2665 = vunpack.c.l.b16 %v1525
        %v2666 = vunpack.c.h.b16 %v1525
        %v2667 = vunpack.c.l.b16 %v1526
        %v2668 = vunpack.c.h.b16 %v1526
        %v2669 = vunpack.c.l.b16 %v1527
        %v2670 = vunpack.c.h.b16 %v1527
        %v2671 = vunpack.c.l.b16 %v1528
        %v2672 = vunpack.c.h.b16 %v1528
        %v2673 = vunpack.c.l.b16 %v1529
        %v2674 = vunpack.c.h.b16 %v1529
        %v2675 = vunpack.c.l.b16 %v1530
        %v2676 = vunpack.c.h.b16 %v1530
        %v2677 = vunpack.c.l.b16 %v1531
        %v2678 = vunpack.c.h.b16 %v1531
        %v2679 = vunpack.c.l.b16 %v1532
        %v2680 = vunpack.c.h.b16 %v1532
        %v2681 = vunpack.c.l.b16 %v1533
        %v2682 = vunpack.c.h.b16 %v1533
        %v2683 = vunpack.c.l.b16 %v1534
        %v2684 = vunpack.c.h.b16 %v1534
        %v2685 = vunpack.c.l.b16 %v1535
        %v2686 = vunpack.c.h.b16 %v1535
        %v2687 = vunpack.c.l.b16 %v1536
        %v2688 = vunpack.c.h.b16 %v1536
        %v2689 = vunpack.c.l.b16 %v1537
        %v2690 = vunpack.c.h.b16 %v1537
        %v2691 = vunpack.c.l.b16 %v1538
        %v2692 = vunpack.c.h.b16 %v1538
        %v2693 = vunpack.c.l.b16 %v1539
        %v2694 = vunpack.c.h.b16 %v1539
        %v2695 = vunpack.c.l.b16 %v1540
        %v2696 = vunpack.c.h.b16 %v1540
        %v2697 = vunpack.c.l.b16 %v1541
        %v2698 = vunpack.c.h.b16 %v1541
        %v2699 = vunpack.c.l.b16 %v1542
        %v2700 = vunpack.c.h.b16 %v1542
        %v2701 = vunpack.c.l.b16 %v1543
        %v2702 = vunpack.c.h.b16 %v1543
        %v2703 = vunpack.c.l.b16 %v1544
        %v2704 = vunpack.c.h.b16 %v1544
        %v2705 = vunpack.c.l.b16 %v1545
        %v2706 = vunpack.c.h.b16 %v1545
        %v2707 = vunpack.c.l.b16 %v1546
        %v2708 = vunpack.c.h.b16 %v1546
        %v2709 = vunpack.c.l.b16 %v1547
        %v2710 = vunpack.c.h.b16 %v1547
        %v2711 = vunpack.c.l.b16 %v1548
        %v2712 = vunpack.c.h.b16 %v1548
        %v2713 = vunpack.c.l.b16 %v1549
        %v2714 = vunpack.c.h.b16 %v1549
        %v2715 = vunpack.c.l.b16 %v1550
        %v2716 = vunpack.c.h.b16 %v1550
        %v2717 = vunpack.c.l.b16 %v1551
        %v2718 = vunpack.c.h.b16 %v1551
        %v2719 = vunpack.c.l.b16 %v1552
        %v2720 = vunpack.c.h.b16 %v1552
        %v2721 = vunpack.c.l.b16 %v1553
        %v2722 = vunpack.c.h.b16 %v1553
        %v2723 = vunpack.c.l.b16 %v1554
        %v2724 = vunpack.c.h.b16 %v1554
        %v2725 = vunpack.c.l.b16 %v1555
        %v2726 = vunpack.c.h.b16 %v1555
        %v2727 = vunpack.c.l.b16 %v1556
        %v2728 = vunpack.c.h.b16 %v1556
        %v2729 = vunpack.c.l.b16 %v1557
        %v2730 = vunpack.c.h.b16 %v1557
        %v2731 = vunpack.c.l.b16 %v1558
        %v2732 = vunpack.c.h.b16 %v1558
        %v2733 = vunpack.c.l.b16 %v1559
        %v2734 = vunpack.c.h.b16 %v1559
        %v2735 = vunpack.c.l.b16 %v1560
        %v2736 = vunpack.c.h.b16 %v1560
        %v2737 = vunpack.c.l.b16 %v1561
        %v2738 = vunpack.c.h.b16 %v1561
        %v2739 = vunpack.c.l.b16 %v1562
        %v2740 = vunpack.c.h.b16 %v1562
        %v2741 = vunpack.c.l.b16 %v1563
        %v2742 = vunpack.c.h.b16 %v1563
        %v2743 = vunpack.c.l.b16 %v1564
        %v2744 = vunpack.c.h.b16 %v1564
        %v2745 = vunpack.c.l.b16 %v1565
        %v2746 = vunpack.c.h.b16 %v1565
        %v2747 = vunpack.c.l.b16 %v1566
        %v2748 = vunpack.c.h.b16 %v1566
        %v2749 = vunpack.c.l.b16 %v1567
        %v2750 = vunpack.c.h.b16 %v1567
        %v2751 = vunpack.c.l.b16 %v1568
        %v2752 = vunpack.c.h.b16 %v1568
        %v2753 = vunpack.c.l.b16 %v1569
        %v2754 = vunpack.c.h.b16 %v1569
        %v2755 = vunpack.c.l.b16 %v1570
        %v2756 = vunpack.c.h.b16 %v1570
        %v2757 = vunpack.c.l.b16 %v1571
        %v2758 = vunpack.c.h.b16 %v1571
        %v2759 = vunpack.c.l.b16 %v1572
        %v2760 = vunpack.c.h.b16 %v1572
        %v2761 = vunpack.c.l.b16 %v1573
        %v2762 = vunpack.c.h.b16 %v1573
        %v2763 = vunpack.c.l.b16 %v1574
        %v2764 = vunpack.c.h.b16 %v1574
        %v2765 = vunpack.c.l.b16 %v1575
        %v2766 = vunpack.c.h.b16 %v1575
        %v2767 = vunpack.c.l.b16 %v1576
        %v2768 = vunpack.c.h.b16 %v1576
        %v2769 = vunpack.c.l.b16 %v1577
        %v2770 = vunpack.c.h.b16 %v1577
        %v2771 = vunpack.c.l.b16 %v1578
        %v2772 = vunpack.c.h.b16 %v1578
        %v2773 = vunpack.c.l.b16 %v1579
        %v2774 = vunpack.c.h.b16 %v1579
        %v2775 = vunpack.c.l.b16 %v1580
        %v2776 = vunpack.c.h.b16 %v1580
        %v2777 = vunpack.c.l.b16 %v1581
        %v2778 = vunpack.c.h.b16 %v1581
        %v2779 = vunpack.c.l.b16 %v1582
        %v2780 = vunpack.c.h.b16 %v1582
        %v2781 = vunpack.c.l.b16 %v1583
        %v2782 = vunpack.c.h.b16 %v1583
        %v2783 = vunpack.c.l.b16 %v1584
        %v2784 = vunpack.c.h.b16 %v1584
        %v2785 = vunpack.c.l.b16 %v1585
        %v2786 = vunpack.c.h.b16 %v1585
        %v2787 = vunpack.c.l.b16 %v1586
        %v2788 = vunpack.c.h.b16 %v1586
        %v2789 = vunpack.c.l.b16 %v1587
        %v2790 = vunpack.c.h.b16 %v1587
        %v2791 = vunpack.c.l.b16 %v1588
        %v2792 = vunpack.c.h.b16 %v1588
        %v2793 = vunpack.c.l.b16 %v1589
        %v2794 = vunpack.c.h.b16 %v1589
        %v2795 = vunpack.c.l.b16 %v1590
        %v2796 = vunpack.c.h.b16 %v1590
        %v2797 = vunpack.c.l.b16 %v1591
        %v2798 = vunpack.c.h.b16 %v1591
        %v2799 = vunpack.c.l.b16 %v1592
        %v2800 = vunpack.c.h.b16 %v1592
        %v2801 = vunpack.c.l.b16 %v1593
        %v2802 = vunpack.c.h.b16 %v1593
        %v2803 = vunpack.c.l.b16 %v1594
        %v2804 = vunpack.c.h.b16 %v1594
        %v2805 = vunpack.c.l.b16 %v1595
        %v2806 = vunpack.c.h.b16 %v1595
        %v2807 = vunpack.c.l.b16 %v1596
        %v2808 = vunpack.c.h.b16 %v1596
        %v2809 = vunpack.c.l.b16 %v1597
        %v2810 = vunpack.c.h.b16 %v1597
        %v2811 = vunpack.c.l.b16 %v1598
        %v2812 = vunpack.c.h.b16 %v1598
        %v2813 = vunpack.c.l.b16 %v1599
        %v2814 = vunpack.c.h.b16 %v1599
        %v2815 = vunpack.c.l.b16 %v1600
        %v2816 = vunpack.c.h.b16 %v1600
        %v2817 = vunpack.c.l.b16 %v1601
        %v2818 = vunpack.c.h.b16 %v1601
        %v2819 = vunpack.c.l.b16 %v1602
        %v2820 = vunpack.c.h.b16 %v1602
        %v2821 = vunpack.c.l.b16 %v1603
        %v2822 = vunpack.c.h.b16 %v1603
        %v2823 = vunpack.c.l.b16 %v1604
        %v2824 = vunpack.c.h.b16 %v1604
        %v2825 = vunpack.c.l.b16 %v1605
        %v2826 = vunpack.c.h.b16 %v1605
        %v2827 = vunpack.c.l.b16 %v1606
        %v2828 = vunpack.c.h.b16 %v1606
        %v2829 = vunpack.c.l.b16 %v1607
        %v2830 = vunpack.c.h.b16 %v1607
        %v2831 = vunpack.c.l.b16 %v1608
        %v2832 = vunpack.c.h.b16 %v1608
        %v2833 = vunpack.c.l.b16 %v1609
        %v2834 = vunpack.c.h.b16 %v1609
        %v2835 = vunpack.c.l.b16 %v1610
        %v2836 = vunpack.c.h.b16 %v1610
        %v2837 = vunpack.c.l.b16 %v1611
        %v2838 = vunpack.c.h.b16 %v1611
        %v2839 = vunpack.c.l.b16 %v1612
        %v2840 = vunpack.c.h.b16 %v1612
        %v2841 = vunpack.c.l.b16 %v1613
        %v2842 = vunpack.c.h.b16 %v1613
        %v2843 = vunpack.c.l.b16 %v1614
        %v2844 = vunpack.c.h.b16 %v1614
        %v2845 = vunpack.c.l.b16 %v1615
        %v2846 = vunpack.c.h.b16 %v1615
        %v2847 = vunpack.c.l.b16 %v1616
        %v2848 = vunpack.c.h.b16 %v1616
        %v2849 = vunpack.c.l.b16 %v1617
        %v2850 = vunpack.c.h.b16 %v1617
        %v2851 = vunpack.c.l.b16 %v1618
        %v2852 = vunpack.c.h.b16 %v1618
        %v2853 = vunpack.c.l.b16 %v1619
        %v2854 = vunpack.c.h.b16 %v1619
        %v2855 = vunpack.c.l.b16 %v1620
        %v2856 = vunpack.c.h.b16 %v1620
        %v2857 = vunpack.c.l.b16 %v1621
        %v2858 = vunpack.c.h.b16 %v1621
        %v2859 = vunpack.c.l.b16 %v1622
        %v2860 = vunpack.c.h.b16 %v1622
        %v2861 = vunpack.c.l.b16 %v1623
        %v2862 = vunpack.c.h.b16 %v1623
        %v2863 = vunpack.c.l.b16 %v1624
        %v2864 = vunpack.c.h.b16 %v1624
        %v2865 = vunpack.c.l.b16 %v1625
        %v2866 = vunpack.c.h.b16 %v1625
        %v2867 = vunpack.c.l.b16 %v1626
        %v2868 = vunpack.c.h.b16 %v1626
        %v2869 = vunpack.c.l.b16 %v1627
        %v2870 = vunpack.c.h.b16 %v1627
        %v2871 = vunpack.c.l.b16 %v1628
        %v2872 = vunpack.c.h.b16 %v1628
        %v2873 = vunpack.c.l.b16 %v1629
        %v2874 = vunpack.c.h.b16 %v1629
        %v2875 = vunpack.c.l.b16 %v1630
        %v2876 = vunpack.c.h.b16 %v1630
        %v2877 = vunpack.c.l.b16 %v1631
        %v2878 = vunpack.c.h.b16 %v1631
        %v2879 = vunpack.c.l.b16 %v1632
        %v2880 = vunpack.c.h.b16 %v1632
        %v2881 = vunpack.c.l.b16 %v1633
        %v2882 = vunpack.c.h.b16 %v1633
        %v2883 = vunpack.c.l.b16 %v1634
        %v2884 = vunpack.c.h.b16 %v1634
        %v2885 = vunpack.c.l.b16 %v1635
        %v2886 = vunpack.c.h.b16 %v1635
        %v2887 = vunpack.c.l.b16 %v1636
        %v2888 = vunpack.c.h.b16 %v1636
        %v2889 = vunpack.c.l.b16 %v1637
        %v2890 = vunpack.c.h.b16 %v1637
        %v2891 = vunpack.c.l.b16 %v1638
        %v2892 = vunpack.c.h.b16 %v1638
        %v2893 = vunpack.c.l.b16 %v1639
        %v2894 = vunpack.c.h.b16 %v1639
        %v2895 = vunpack.c.l.b16 %v1640
        %v2896 = vunpack.c.h.b16 %v1640
        %v2897 = vunpack.c.l.b16 %v1641
        %v2898 = vunpack.c.h.b16 %v1641
        %v2899 = vunpack.c.l.b16 %v1642
        %v2900 = vunpack.c.h.b16 %v1642
        %v2901 = vunpack.c.l.b16 %v1643
        %v2902 = vunpack.c.h.b16 %v1643
        %v2903 = vunpack.c.l.b16 %v1644
        %v2904 = vunpack.c.h.b16 %v1644
        %v2905 = vunpack.c.l.b16 %v1645
        %v2906 = vunpack.c.h.b16 %v1645
        %v2907 = vunpack.c.l.b16 %v1646
        %v2908 = vunpack.c.h.b16 %v1646
        %v2909 = vunpack.c.l.b16 %v1647
        %v2910 = vunpack.c.h.b16 %v1647
        %v2911 = vunpack.c.l.b16 %v1648
        %v2912 = vunpack.c.h.b16 %v1648
        %v2913 = vunpack.c.l.b16 %v1649
        %v2914 = vunpack.c.h.b16 %v1649
        %v2915 = vunpack.c.l.b16 %v1650
        %v2916 = vunpack.c.h.b16 %v1650
        %v2917 = vunpack.c.l.b16 %v1651
        %v2918 = vunpack.c.h.b16 %v1651
        %v2919 = vunpack.c.l.b16 %v1652
        %v2920 = vunpack.c.h.b16 %v1652
        %v2921 = vunpack.c.l.b16 %v1653
        %v2922 = vunpack.c.h.b16 %v1653
        %v2923 = vunpack.c.l.b16 %v1654
        %v2924 = vunpack.c.h.b16 %v1654
        %v2925 = vunpack.c.l.b16 %v1655
        %v2926 = vunpack.c.h.b16 %v1655
        %v2927 = vunpack.c.l.b16 %v1656
        %v2928 = vunpack.c.h.b16 %v1656
        %v2929 = vunpack.c.l.b16 %v1657
        %v2930 = vunpack.c.h.b16 %v1657
        %v2931 = vunpack.c.l.b16 %v1658
        %v2932 = vunpack.c.h.b16 %v1658
        %v2933 = vunpack.c.l.b16 %v1659
        %v2934 = vunpack.c.h.b16 %v1659
        %v2935 = vunpack.c.l.b16 %v1660
        %v2936 = vunpack.c.h.b16 %v1660
        %v2937 = vunpack.c.l.b16 %v1661
        %v2938 = vunpack.c.h.b16 %v1661
        %v2939 = vunpack.c.l.b16 %v1662
        %v2940 = vunpack.c.h.b16 %v1662
        %v2941 = vunpack.c.l.b16 %v1663
        %v2942 = vunpack.c.h.b16 %v1663
        %v2943 = vunpack.c.l.b16 %v1664
        %v2944 = vunpack.c.h.b16 %v1664
        %v2945 = vunpack.c.l.b16 %v1665
        %v2946 = vunpack.c.h.b16 %v1665
        %v2947 = vunpack.c.l.b16 %v1666
        %v2948 = vunpack.c.h.b16 %v1666
        %v2949 = vunpack.c.l.b16 %v1667
        %v2950 = vunpack.c.h.b16 %v1667
        %v2951 = vunpack.c.l.b16 %v1668
        %v2952 = vunpack.c.h.b16 %v1668
        %v2953 = vunpack.c.l.b16 %v1669
        %v2954 = vunpack.c.h.b16 %v1669
        %v2955 = vunpack.c.l.b16 %v1670
        %v2956 = vunpack.c.h.b16 %v1670
        %v2957 = vunpack.c.l.b16 %v1671
        %v2958 = vunpack.c.h.b16 %v1671
        %v2959 = vunpack.c.l.b16 %v1672
        %v2960 = vunpack.c.h.b16 %v1672
        %v2961 = vunpack.c.l.b16 %v1673
        %v2962 = vunpack.c.h.b16 %v1673
        %v2963 = vunpack.c.l.b16 %v1674
        %v2964 = vunpack.c.h.b16 %v1674
        %v2965 = vunpack.c.l.b16 %v1675
        %v2966 = vunpack.c.h.b16 %v1675
        %v2967 = vunpack.c.l.b16 %v1676
        %v2968 = vunpack.c.h.b16 %v1676
        %v2969 = vunpack.c.l.b16 %v1677
        %v2970 = vunpack.c.h.b16 %v1677
        %v2971 = vunpack.c.l.b16 %v1678
        %v2972 = vunpack.c.h.b16 %v1678
        %v2973 = vunpack.c.l.b16 %v1679
        %v2974 = vunpack.c.h.b16 %v1679
        %v2975 = vunpack.c.l.b16 %v1680
        %v2976 = vunpack.c.h.b16 %v1680
        %v2977 = vunpack.c.l.b16 %v1681
        %v2978 = vunpack.c.h.b16 %v1681
        %v2979 = vunpack.c.l.b16 %v1682
        %v2980 = vunpack.c.h.b16 %v1682
        %v2981 = vunpack.c.l.b16 %v1683
        %v2982 = vunpack.c.h.b16 %v1683
        %v2983 = vunpack.c.l.b16 %v1684
        %v2984 = vunpack.c.h.b16 %v1684
        %v2985 = vunpack.c.l.b16 %v1685
        %v2986 = vunpack.c.h.b16 %v1685
        %v2987 = vunpack.c.l.b16 %v1686
        %v2988 = vunpack.c.h.b16 %v1686
        %v2989 = vunpack.c.l.b16 %v1687
        %v2990 = vunpack.c.h.b16 %v1687
        %v2991 = vunpack.c.l.b16 %v1688
        %v2992 = vunpack.c.h.b16 %v1688
        %v2993 = vunpack.c.l.b16 %v1689
        %v2994 = vunpack.c.h.b16 %v1689
        %v2995 = vunpack.c.l.b16 %v1690
        %v2996 = vunpack.c.h.b16 %v1690
        %v2997 = vunpack.c.l.b16 %v1691
        %v2998 = vunpack.c.h.b16 %v1691
        %v2999 = vunpack.c.l.b16 %v1692
        %v3000 = vunpack.c.h.b16 %v1692
        %v3001 = vunpack.c.l.b16 %v1693
        %v3002 = vunpack.c.h.b16 %v1693
        %v3003 = vunpack.c.l.b16 %v1694
        %v3004 = vunpack.c.h.b16 %v1694
        %v3005 = vunpack.c.l.b16 %v1695
        %v3006 = vunpack.c.h.b16 %v1695
        %v3007 = vunpack.c.l.b16 %v1696
        %v3008 = vunpack.c.h.b16 %v1696
        %v3009 = vunpack.c.l.b16 %v1697
        %v3010 = vunpack.c.h.b16 %v1697
        %v3011 = vunpack.c.l.b16 %v1698
        %v3012 = vunpack.c.h.b16 %v1698
        %v3013 = vunpack.c.l.b16 %v1699
        %v3014 = vunpack.c.h.b16 %v1699
        %v3015 = vunpack.c.l.b16 %v1700
        %v3016 = vunpack.c.h.b16 %v1700
        %v3017 = vunpack.c.l.b16 %v1701
        %v3018 = vunpack.c.h.b16 %v1701
        %v3019 = vunpack.c.l.b16 %v1702
        %v3020 = vunpack.c.h.b16 %v1702
        %v3021 = vunpack.c.l.b16 %v1703
        %v3022 = vunpack.c.h.b16 %v1703
        %v3023 = vunpack.c.l.b16 %v1704
        %v3024 = vunpack.c.h.b16 %v1704
        %v3025 = vunpack.c.l.b16 %v1705
        %v3026 = vunpack.c.h.b16 %v1705
        %v3027 = vunpack.c.l.b16 %v1706
        %v3028 = vunpack.c.h.b16 %v1706
        %v3029 = vunpack.c.l.b16 %v1707
        %v3030 = vunpack.c.h.b16 %v1707
        %v3031 = vunpack.c.l.b16 %v1708
        %v3032 = vunpack.c.h.b16 %v1708
        %v3033 = vunpack.c.l.b16 %v1709
        %v3034 = vunpack.c.h.b16 %v1709
        %v3035 = vunpack.c.l.b16 %v1710
        %v3036 = vunpack.c.h.b16 %v1710
        %v3037 = vunpack.c.l.b16 %v1711
        %v3038 = vunpack.c.h.b16 %v1711
        %v3039 = vunpack.c.l.b16 %v1712
        %v3040 = vunpack.c.h.b16 %v1712
        %v3041 = vunpack.c.l.b16 %v1713
        %v3042 = vunpack.c.h.b16 %v1713
        %v3043 = vunpack.c.l.b16 %v1714
        %v3044 = vunpack.c.h.b16 %v1714
        %v3045 = vunpack.c.l.b16 %v1715
        %v3046 = vunpack.c.h.b16 %v1715
        %v3047 = vunpack.c.l.b16 %v1716
        %v3048 = vunpack.c.h.b16 %v1716
        %v3049 = vunpack.c.l.b16 %v1717
        %v3050 = vunpack.c.h.b16 %v1717
        %v3051 = vunpack.c.l.b16 %v1718
        %v3052 = vunpack.c.h.b16 %v1718
        %v3053 = vunpack.c.l.b16 %v1719
        %v3054 = vunpack.c.h.b16 %v1719
        %v3055 = vunpack.c.l.b16 %v1720
        %v3056 = vunpack.c.h.b16 %v1720
        %v3057 = vunpack.c.l.b16 %v1721
        %v3058 = vunpack.c.h.b16 %v1721
        %v3059 = vunpack.c.l.b16 %v1722
        %v3060 = vunpack.c.h.b16 %v1722
        %v3061 = vunpack.c.l.b16 %v1723
        %v3062 = vunpack.c.h.b16 %v1723
        %v3063 = vunpack.c.l.b16 %v1724
        %v3064 = vunpack.c.h.b16 %v1724
        %v3065 = vunpack.c.l.b16 %v1725
        %v3066 = vunpack.c.h.b16 %v1725
        %v3067 = vunpack.c.l.b16 %v1726
        %v3068 = vunpack.c.h.b16 %v1726
        %v3069 = vunpack.c.l.b16 %v1727
        %v3070 = vunpack.c.h.b16 %v1727
        %v3071 = vunpack.c.l.b16 %v1728
        %v3072 = vunpack.c.h.b16 %v1728
        %v3073 = vunpack.c.l.b16 %v1729
        %v3074 = vunpack.c.h.b16 %v1729
        %v3075 = vunpack.c.l.b16 %v1730
        %v3076 = vunpack.c.h.b16 %v1730
        %v3077 = vunpack.c.l.b16 %v1731
        %v3078 = vunpack.c.h.b16 %v1731
        %v3079 = vunpack.c.l.b16 %v1732
        %v3080 = vunpack.c.h.b16 %v1732
        %v3081 = vunpack.c.l.b16 %v1733
        %v3082 = vunpack.c.h.b16 %v1733
        %v3083 = vunpack.c.l.b16 %v1734
        %v3084 = vunpack.c.h.b16 %v1734
        %v3085 = vunpack.c.l.b16 %v1735
        %v3086 = vunpack.c.h.b16 %v1735
        %v3087 = vunpack.c.l.b16 %v1736
        %v3088 = vunpack.c.h.b16 %v1736
        %v3089 = vunpack.c.l.b16 %v1737
        %v3090 = vunpack.c.h.b16 %v1737
        %v3091 = vunpack.c.l.b16 %v1738
        %v3092 = vunpack.c.h.b16 %v1738
        %v3093 = vunpack.c.l.b16 %v1739
        %v3094 = vunpack.c.h.b16 %v1739
        %v3095 = vunpack.c.l.b16 %v1740
        %v3096 = vunpack.c.h.b16 %v1740
        %v3097 = vunpack.c.l.b16 %v1741
        %v3098 = vunpack.c.h.b16 %v1741
        %v3099 = vunpack.c.l.b16 %v1742
        %v3100 = vunpack.c.h.b16 %v1742
        %v3101 = vunpack.c.l.b16 %v1743
        %v3102 = vunpack.c.h.b16 %v1743
        %v3103 = vunpack.c.l.b16 %v1744
        %v3104 = vunpack.c.h.b16 %v1744
        %v3105 = vunpack.c.l.b16 %v1745
        %v3106 = vunpack.c.h.b16 %v1745
        %v3107 = vunpack.c.l.b16 %v1746
        %v3108 = vunpack.c.h.b16 %v1746
        %v3109 = vunpack.c.l.b16 %v1747
        %v3110 = vunpack.c.h.b16 %v1747
        %v3111 = vunpack.c.l.b16 %v1748
        %v3112 = vunpack.c.h.b16 %v1748
        %v3113 = vunpack.c.l.b16 %v1749
        %v3114 = vunpack.c.h.b16 %v1749
        %v3115 = vunpack.c.l.b16 %v1750
        %v3116 = vunpack.c.h.b16 %v1750
        %v3117 = vunpack.c.l.b16 %v1751
        %v3118 = vunpack.c.h.b16 %v1751
        %v3119 = vunpack.c.l.b16 %v1752
        %v3120 = vunpack.c.h.b16 %v1752
        %v3121 = vunpack.c.l.b16 %v1753
        %v3122 = vunpack.c.h.b16 %v1753
        %v3123 = vunpack.c.l.b16 %v1754
        %v3124 = vunpack.c.h.b16 %v1754
        %v3125 = vunpack.c.l.b16 %v1755
        %v3126 = vunpack.c.h.b16 %v1755
        %v3127 = vunpack.c.l.b16 %v1756
        %v3128 = vunpack.c.h.b16 %v1756
        %v3129 = vunpack.c.l.b16 %v1757
        %v3130 = vunpack.c.h.b16 %v1757
        %v3131 = vunpack.c.l.b16 %v1758
        %v3132 = vunpack.c.h.b16 %v1758
        %v3133 = vunpack.c.l.b16 %v1759
        %v3134 = vunpack.c.h.b16 %v1759
        %v3135 = vunpack.c.l.b16 %v1760
        %v3136 = vunpack.c.h.b16 %v1760
        %v3137 = vunpack.c.l.b16 %v1761
        %v3138 = vunpack.c.h.b16 %v1761
        %v3139 = vunpack.c.l.b16 %v1762
        %v3140 = vunpack.c.h.b16 %v1762
        %v3141 = vunpack.c.l.b16 %v1763
        %v3142 = vunpack.c.h.b16 %v1763
        %v3143 = vunpack.c.l.b16 %v1764
        %v3144 = vunpack.c.h.b16 %v1764
        %v3145 = vunpack.c.l.b16 %v1765
        %v3146 = vunpack.c.h.b16 %v1765
        %v3147 = vunpack.c.l.b16 %v1766
        %v3148 = vunpack.c.h.b16 %v1766
        %v3149 = vunpack.c.l.b16 %v1767
        %v3150 = vunpack.c.h.b16 %v1767
        %v3151 = vunpack.c.l.b16 %v1768
        %v3152 = vunpack.c.h.b16 %v1768
        %v3153 = vunpack.c.l.b16 %v1769
        %v3154 = vunpack.c.h.b16 %v1769
        %v3155 = vunpack.c.l.b16 %v1770
        %v3156 = vunpack.c.h.b16 %v1770
        %v3157 = vunpack.c.l.b16 %v1771
        %v3158 = vunpack.c.h.b16 %v1771
        %v3159 = vunpack.c.l.b16 %v1772
        %v3160 = vunpack.c.h.b16 %v1772
        %v3161 = vunpack.c.l.b16 %v1773
        %v3162 = vunpack.c.h.b16 %v1773
        %v3163 = vunpack.c.l.b16 %v1774
        %v3164 = vunpack.c.h.b16 %v1774
        %v3165 = vunpack.c.l.b16 %v1775
        %v3166 = vunpack.c.h.b16 %v1775
        %v3167 = vunpack.c.l.b16 %v1776
        %v3168 = vunpack.c.h.b16 %v1776
        %v3169 = vunpack.c.l.b16 %v1777
        %v3170 = vunpack.c.h.b16 %v1777
        %v3171 = vunpack.c.l.b16 %v1778
        %v3172 = vunpack.c.h.b16 %v1778
        %v3173 = vunpack.c.l.b16 %v1779
        %v3174 = vunpack.c.h.b16 %v1779
        %v3175 = vunpack.c.l.b16 %v1780
        %v3176 = vunpack.c.h.b16 %v1780
        %v3177 = vunpack.c.l.b16 %v1781
        %v3178 = vunpack.c.h.b16 %v1781
        %v3179 = vunpack.c.l.b16 %v1782
        %v3180 = vunpack.c.h.b16 %v1782
        %v3181 = vunpack.c.l.b16 %v1783
        %v3182 = vunpack.c.h.b16 %v1783
        %v3183 = vunpack.c.l.b16 %v1784
        %v3184 = vunpack.c.h.b16 %v1784
        %v3185 = vunpack.c.l.b16 %v1785
        %v3186 = vunpack.c.h.b16 %v1785
        %v3187 = vunpack.c.l.b16 %v1786
        %v3188 = vunpack.c.h.b16 %v1786
        %v3189 = vunpack.c.l.b16 %v1787
        %v3190 = vunpack.c.h.b16 %v1787
        %v3191 = vunpack.c.l.b16 %v1788
        %v3192 = vunpack.c.h.b16 %v1788
        %v3193 = vunpack.c.l.b16 %v1789
        %v3194 = vunpack.c.h.b16 %v1789
        %v3195 = vunpack.c.l.b16 %v1790
        %v3196 = vunpack.c.h.b16 %v1790
        %v3197 = vunpack.c.l.b16 %v1791
        %v3198 = vunpack.c.h.b16 %v1791
        %v3199 = vunpack.c.l.b16 %v1792
        %v3200 = vunpack.c.h.b16 %v1792
        %v3201 = vunpack.c.l.b16 %v1793
        %v3202 = vunpack.c.h.b16 %v1793
        %v3203 = vunpack.c.l.b16 %v1794
        %v3204 = vunpack.c.h.b16 %v1794
        %v3205 = vunpack.c.l.b16 %v1795
        %v3206 = vunpack.c.h.b16 %v1795
        %v3207 = vunpack.c.l.b16 %v1796
        %v3208 = vunpack.c.h.b16 %v1796
        %v3209 = vunpack.c.l.b16 %v1797
        %v3210 = vunpack.c.h.b16 %v1797
        %v3211 = vunpack.c.l.b16 %v1798
        %v3212 = vunpack.c.h.b16 %v1798
        %v3213 = vunpack.c.l.b16 %v1799
        %v3214 = vunpack.c.h.b16 %v1799
        %v3215 = vunpack.c.l.b16 %v1800
        %v3216 = vunpack.c.h.b16 %v1800
        %v3217 = vunpack.c.l.b16 %v1801
        %v3218 = vunpack.c.h.b16 %v1801
        %v3219 = vunpack.c.l.b16 %v1802
        %v3220 = vunpack.c.h.b16 %v1802
        %v3221 = vunpack.c.l.b16 %v1803
        %v3222 = vunpack.c.h.b16 %v1803
        %v3223 = vunpack.c.l.b16 %v1804
        %v3224 = vunpack.c.h.b16 %v1804
        %v3225 = vunpack.c.l.b16 %v1805
        %v3226 = vunpack.c.h.b16 %v1805
        %v3227 = vunpack.c.l.b16 %v1806
        %v3228 = vunpack.c.h.b16 %v1806
        %v3229 = vunpack.c.l.b16 %v1807
        %v3230 = vunpack.c.h.b16 %v1807
        %v3231 = vunpack.c.l.b16 %v1808
        %v3232 = vunpack.c.h.b16 %v1808
        %v3233 = vunpack.c.l.b16 %v1809
        %v3234 = vunpack.c.h.b16 %v1809
        %v3235 = vunpack.c.l.b16 %v1810
        %v3236 = vunpack.c.h.b16 %v1810
        %v3237 = vunpack.c.l.b16 %v1811
        %v3238 = vunpack.c.h.b16 %v1811
        %v3239 = vunpack.c.l.b16 %v1812
        %v3240 = vunpack.c.h.b16 %v1812
        %v3241 = vunpack.c.l.b16 %v1813
        %v3242 = vunpack.c.h.b16 %v1813
        %v3243 = vunpack.c.l.b16 %v1814
        %v3244 = vunpack.c.h.b16 %v1814
        %v3245 = vunpack.c.l.b16 %v1815
        %v3246 = vunpack.c.h.b16 %v1815
        %v3247 = vunpack.c.l.b16 %v1816
        %v3248 = vunpack.c.h.b16 %v1816
        %v3249 = vunpack.c.l.b16 %v1817
        %v3250 = vunpack.c.h.b16 %v1817
        %v3251 = vunpack.c.l.b16 %v1818
        %v3252 = vunpack.c.h.b16 %v1818
        %v3253 = vunpack.c.l.b16 %v1819
        %v3254 = vunpack.c.h.b16 %v1819
        %v3255 = vunpack.c.l.b16 %v1820
        %v3256 = vunpack.c.h.b16 %v1820
        %v3257 = vunpack.c.l.b16 %v1821
        %v3258 = vunpack.c.h.b16 %v1821
        %v3259 = vunpack.c.l.b16 %v1822
        %v3260 = vunpack.c.h.b16 %v1822
        %v3261 = vunpack.c.l.b16 %v1823
        %v3262 = vunpack.c.h.b16 %v1823
        %v3263 = vunpack.c.l.b16 %v1824
        %v3264 = vunpack.c.h.b16 %v1824
        %v3265 = vunpack.c.l.b16 %v1825
        %v3266 = vunpack.c.h.b16 %v1825
        %v3267 = vunpack.c.l.b16 %v1826
        %v3268 = vunpack.c.h.b16 %v1826
        %v3269 = vunpack.c.l.b16 %v1827
        %v3270 = vunpack.c.h.b16 %v1827
        %v3271 = vunpack.c.l.b16 %v1828
        %v3272 = vunpack.c.h.b16 %v1828
        %v3273 = vunpack.c.l.b16 %v1829
        %v3274 = vunpack.c.h.b16 %v1829
        %v3275 = vunpack.c.l.b16 %v1830
        %v3276 = vunpack.c.h.b16 %v1830
        %v3277 = vunpack.c.l.b16 %v1831
        %v3278 = vunpack.c.h.b16 %v1831
        %v3279 = vunpack.c.l.b16 %v1832
        %v3280 = vunpack.c.h.b16 %v1832
        %v3281 = vunpack.c.l.b16 %v1833
        %v3282 = vunpack.c.h.b16 %v1833
        %v3283 = vunpack.c.l.b16 %v1834
        %v3284 = vunpack.c.h.b16 %v1834
        %v3285 = vunpack.c.l.b16 %v1835
        %v3286 = vunpack.c.h.b16 %v1835
        %v3287 = vunpack.c.l.b16 %v1836
        %v3288 = vunpack.c.h.b16 %v1836
        %v3289 = vunpack.c.l.b16 %v1837
        %v3290 = vunpack.c.h.b16 %v1837
        %v3291 = vunpack.c.l.b16 %v1838
        %v3292 = vunpack.c.h.b16 %v1838
        %v3293 = vunpack.c.l.b16 %v1839
        %v3294 = vunpack.c.h.b16 %v1839
        %v3295 = vunpack.c.l.b16 %v1840
        %v3296 = vunpack.c.h.b16 %v1840
        %v3297 = vunpack.c.l.b16 %v1841
        %v3298 = vunpack.c.h.b16 %v1841
        %v3299 = vunpack.c.l.b16 %v1842
        %v3300 = vunpack.c.h.b16 %v1842
        %v3301 = vunpack.c.l.b16 %v1843
        %v3302 = vunpack.c.h.b16 %v1843
        %v3303 = vunpack.c.l.b16 %v1844
        %v3304 = vunpack.c.h.b16 %v1844
        %v3305 = vunpack.c.l.b16 %v1845
        %v3306 = vunpack.c.h.b16 %v1845
        %v3307 = vunpack.c.l.b16 %v1846
        %v3308 = vunpack.c.h.b16 %v1846
        %v3309 = vunpack.c.l.b16 %v1847
        %v3310 = vunpack.c.h.b16 %v1847
        %v3311 = vunpack.c.l.b16 %v1848
        %v3312 = vunpack.c.h.b16 %v1848
        %v3313 = vunpack.c.l.b16 %v1849
        %v3314 = vunpack.c.h.b16 %v1849
        %v3315 = vunpack.c.l.b16 %v1850
        %v3316 = vunpack.c.h.b16 %v1850
        %v3317 = vunpack.c.l.b16 %v1851
        %v3318 = vunpack.c.h.b16 %v1851
        %v3319 = vunpack.c.l.b16 %v1852
        %v3320 = vunpack.c.h.b16 %v1852
        %v3321 = vunpack.c.l.b16 %v1853
        %v3322 = vunpack.c.h.b16 %v1853
        %v3323 = vunpack.c.l.b16 %v1854
        %v3324 = vunpack.c.h.b16 %v1854
        %v3325 = vunpack.c.l.b16 %v1855
        %v3326 = vunpack.c.h.b16 %v1855
        %v3327 = vunpack.c.l.b16 %v1856
        %v3328 = vunpack.c.h.b16 %v1856
        %v3329 = vunpack.c.l.b16 %v1857
        %v3330 = vunpack.c.h.b16 %v1857
        %v3331 = vunpack.c.l.b16 %v1858
        %v3332 = vunpack.c.h.b16 %v1858
        %v3333 = vunpack.c.l.b16 %v1859
        %v3334 = vunpack.c.h.b16 %v1859
        %v3335 = vunpack.c.l.b16 %v1860
        %v3336 = vunpack.c.h.b16 %v1860
        %v3337 = vunpack.c.l.b16 %v1861
        %v3338 = vunpack.c.h.b16 %v1861
        %v3339 = vunpack.c.l.b16 %v1862
        %v3340 = vunpack.c.h.b16 %v1862
        %v3341 = vunpack.c.l.b16 %v1863
        %v3342 = vunpack.c.h.b16 %v1863
        %v3343 = vunpack.c.l.b16 %v1864
        %v3344 = vunpack.c.h.b16 %v1864
        %v3345 = vunpack.c.l.b16 %v1865
        %v3346 = vunpack.c.h.b16 %v1865
        %v3347 = vunpack.c.l.b16 %v1866
        %v3348 = vunpack.c.h.b16 %v1866
        %v3349 = vunpack.c.l.b16 %v1867
        %v3350 = vunpack.c.h.b16 %v1867
        %v3351 = vunpack.c.l.b16 %v1868
        %v3352 = vunpack.c.h.b16 %v1868
        %v3353 = vunpack.c.l.b16 %v1869
        %v3354 = vunpack.c.h.b16 %v1869
        %v3355 = vunpack.c.l.b16 %v1870
        %v3356 = vunpack.c.h.b16 %v1870
        %v3357 = vunpack.c.l.b16 %v1871
        %v3358 = vunpack.c.h.b16 %v1871
        %v3359 = vunpack.c.l.b16 %v1872
        %v3360 = vunpack.c.h.b16 %v1872
        %v3361 = vunpack.c.l.b16 %v1873
        %v3362 = vunpack.c.h.b16 %v1873
        %v3363 = vunpack.c.l.b16 %v1874
        %v3364 = vunpack.c.h.b16 %v1874
        %v3365 = vunpack.c.l.b16 %v1875
        %v3366 = vunpack.c.h.b16 %v1875
        %v3367 = vunpack.c.l.b16 %v1876
        %v3368 = vunpack.c.h.b16 %v1876
        %v3369 = vunpack.c.l.b16 %v1877
        %v3370 = vunpack.c.h.b16 %v1877
        %v3371 = vunpack.c.l.b16 %v1878
        %v3372 = vunpack.c.h.b16 %v1878
        %v3373 = vunpack.c.l.b16 %v1879
        %v3374 = vunpack.c.h.b16 %v1879
        %v3375 = vunpack.c.l.b16 %v1880
        %v3376 = vunpack.c.h.b16 %v1880
        %v3377 = vunpack.c.l.b16 %v1881
        %v3378 = vunpack.c.h.b16 %v1881
        %v3379 = vunpack.c.l.b16 %v1882
        %v3380 = vunpack.c.h.b16 %v1882
        %v3381 = vunpack.c.l.b16 %v1883
        %v3382 = vunpack.c.h.b16 %v1883
        %v3383 = vunpack.c.l.b16 %v1884
        %v3384 = vunpack.c.h.b16 %v1884
        %v3385 = vunpack.c.l.b16 %v1885
        %v3386 = vunpack.c.h.b16 %v1885
        %v3387 = vunpack.c.l.b16 %v1886
        %v3388 = vunpack.c.h.b16 %v1886
        %v3389 = vunpack.c.l.b16 %v1887
        %v3390 = vunpack.c.h.b16 %v1887
        %v3391 = vunpack.c.l.b16 %v1888
        %v3392 = vunpack.c.h.b16 %v1888
        %v3393 = vunpack.c.l.b16 %v1889
        %v3394 = vunpack.c.h.b16 %v1889
        %v3395 = vunpack.c.l.b16 %v1890
        %v3396 = vunpack.c.h.b16 %v1890
        %v3397 = vunpack.c.l.b16 %v1891
        %v3398 = vunpack.c.h.b16 %v1891
        %v3399 = vunpack.c.l.b16 %v1892
        %v3400 = vunpack.c.h.b16 %v1892
        %v3401 = vunpack.c.l.b16 %v1893
        %v3402 = vunpack.c.h.b16 %v1893
        %v3403 = vunpack.c.l.b16 %v1894
        %v3404 = vunpack.c.h.b16 %v1894
        %v3405 = vunpack.c.l.b16 %v1895
        %v3406 = vunpack.c.h.b16 %v1895
        %v3407 = vunpack.c.l.b16 %v1896
        %v3408 = vunpack.c.h.b16 %v1896
        %v3409 = vunpack.c.l.b16 %v1897
        %v3410 = vunpack.c.h.b16 %v1897
        %v3411 = vunpack.c.l.b16 %v1898
        %v3412 = vunpack.c.h.b16 %v1898
        %v3413 = vunpack.c.l.b16 %v1899
        %v3414 = vunpack.c.h.b16 %v1899
        %v3415 = vunpack.c.l.b16 %v1900
        %v3416 = vunpack.c.h.b16 %v1900
        %v3417 = vunpack.c.l.b16 %v1901
        %v3418 = vunpack.c.h.b16 %v1901
        %v3419 = vunpack.c.l.b16 %v1902
        %v3420 = vunpack.c.h.b16 %v1902
        %v3421 = vunpack.c.l.b16 %v1903
        %v3422 = vunpack.c.h.b16 %v1903
        %v3423 = vunpack.c.l.b16 %v1904
        %v3424 = vunpack.c.h.b16 %v1904
        %v3425 = vunpack.c.l.b16 %v1905
        %v3426 = vunpack.c.h.b16 %v1905
        %v3427 = vunpack.c.l.b16 %v1906
        %v3428 = vunpack.c.h.b16 %v1906
        %v3429 = vunpack.c.l.b16 %v1907
        %v3430 = vunpack.c.h.b16 %v1907
        %v3431 = vunpack.c.l.b16 %v1908
        %v3432 = vunpack.c.h.b16 %v1908
        %v3433 = vunpack.c.l.b16 %v1909
        %v3434 = vunpack.c.h.b16 %v1909
        %v3435 = vunpack.c.l.b16 %v1910
        %v3436 = vunpack.c.h.b16 %v1910
        %v3437 = vunpack.c.l.b16 %v1911
        %v3438 = vunpack.c.h.b16 %v1911
        %v3439 = vunpack.c.l.b16 %v1912
        %v3440 = vunpack.c.h.b16 %v1912
        %v3441 = vunpack.c.l.b16 %v1913
        %v3442 = vunpack.c.h.b16 %v1913
        %v3443 = vunpack.c.l.b16 %v1914
        %v3444 = vunpack.c.h.b16 %v1914
        %v3445 = vunpack.c.l.b16 %v1915
        %v3446 = vunpack.c.h.b16 %v1915
        %v3447 = vunpack.c.l.b16 %v1916
        %v3448 = vunpack.c.h.b16 %v1916
        %v3449 = vunpack.c.l.b16 %v1917
        %v3450 = vunpack.c.h.b16 %v1917
        %v3451 = vunpack.c.l.b16 %v1918
        %v3452 = vunpack.c.h.b16 %v1918
        %v3453 = vunpack.c.l.b16 %v1919
        %v3454 = vunpack.c.h.b16 %v1919
        %v3455 = vunpack.c.l.b16 %v1920
        %v3456 = vunpack.c.h.b16 %v1920
        %v3457 = vunpack.c.l.b16 %v1921
        %v3458 = vunpack.c.h.b16 %v1921
        %v3459 = vunpack.c.l.b16 %v1922
        %v3460 = vunpack.c.h.b16 %v1922
        %v3461 = vunpack.c.l.b16 %v1923
        %v3462 = vunpack.c.h.b16 %v1923
        %v3463 = vunpack.c.l.b16 %v1924
        %v3464 = vunpack.c.h.b16 %v1924
        %v3465 = vunpack.c.l.b16 %v1925
        %v3466 = vunpack.c.h.b16 %v1925
        %v3467 = vunpack.c.l.b16 %v1926
        %v3468 = vunpack.c.h.b16 %v1926
        %v3469 = vunpack.c.l.b16 %v1927
        %v3470 = vunpack.c.h.b16 %v1927
        %v3471 = vunpack.c.l.b16 %v1928
        %v3472 = vunpack.c.h.b16 %v1928
        %v3473 = vunpack.c.l.b16 %v1929
        %v3474 = vunpack.c.h.b16 %v1929
        %v3475 = vunpack.c.l.b16 %v1930
        %v3476 = vunpack.c.h.b16 %v1930
        %v3477 = vunpack.c.l.b16 %v1931
        %v3478 = vunpack.c.h.b16 %v1931
        %v3479 = vunpack.c.l.b16 %v1932
        %v3480 = vunpack.c.h.b16 %v1932
        %v3481 = vunpack.c.l.b16 %v1933
        %v3482 = vunpack.c.h.b16 %v1933
        %v3483 = vunpack.c.l.b16 %v1934
        %v3484 = vunpack.c.h.b16 %v1934
        %v3485 = vunpack.c.l.b16 %v1935
        %v3486 = vunpack.c.h.b16 %v1935
        %v3487 = vunpack.c.l.b16 %v1936
        %v3488 = vunpack.c.h.b16 %v1936
        %v3489 = vunpack.c.l.b16 %v1937
        %v3490 = vunpack.c.h.b16 %v1937
        %v3491 = vunpack.c.l.b16 %v1938
        %v3492 = vunpack.c.h.b16 %v1938
        %v3493 = vunpack.c.l.b16 %v1939
        %v3494 = vunpack.c.h.b16 %v1939
        %v3495 = vunpack.c.l.b16 %v1940
        %v3496 = vunpack.c.h.b16 %v1940
        %v3497 = vunpack.c.l.b16 %v1941
        %v3498 = vunpack.c.h.b16 %v1941
        %v3499 = vunpack.c.l.b16 %v1942
        %v3500 = vunpack.c.h.b16 %v1942
        %v3501 = vunpack.c.l.b16 %v1943
        %v3502 = vunpack.c.h.b16 %v1943
        %v3503 = vunpack.c.l.b16 %v1944
        %v3504 = vunpack.c.h.b16 %v1944
        %v3505 = vunpack.c.l.b16 %v1945
        %v3506 = vunpack.c.h.b16 %v1945
        %v3507 = vunpack.c.l.b16 %v1946
        %v3508 = vunpack.c.h.b16 %v1946
        %v3509 = vunpack.c.l.b16 %v1947
        %v3510 = vunpack.c.h.b16 %v1947
        %v3511 = vunpack.c.l.b16 %v1948
        %v3512 = vunpack.c.h.b16 %v1948
        %v3513 = vunpack.c.l.b16 %v1949
        %v3514 = vunpack.c.h.b16 %v1949
        %v3515 = vunpack.c.l.b16 %v1950
        %v3516 = vunpack.c.h.b16 %v1950
        %v3517 = vunpack.c.l.b16 %v1951
        %v3518 = vunpack.c.h.b16 %v1951
        %v3519 = vunpack.c.l.b16 %v1952
        %v3520 = vunpack.c.h.b16 %v1952
        %v3521 = vunpack.c.l.b16 %v1953
        %v3522 = vunpack.c.h.b16 %v1953
        %v3523 = vunpack.c.l.b16 %v1954
        %v3524 = vunpack.c.h.b16 %v1954
        %v3525 = vunpack.c.l.b16 %v1955
        %v3526 = vunpack.c.h.b16 %v1955
        %v3527 = vunpack.c.l.b16 %v1956
        %v3528 = vunpack.c.h.b16 %v1956
        %v3529 = vunpack.c.l.b16 %v1957
        %v3530 = vunpack.c.h.b16 %v1957
        %v3531 = vunpack.c.l.b16 %v1958
        %v3532 = vunpack.c.h.b16 %v1958
        %v3533 = vunpack.c.l.b16 %v1959
        %v3534 = vunpack.c.h.b16 %v1959
        %v3535 = vunpack.c.l.b16 %v1960
        %v3536 = vunpack.c.h.b16 %v1960
        %v3537 = vpack.c.b16 %v2521, %v2513
        %v3538 = vpack.c.b16 %v2522, %v2514
        %v3539 = vpack.c.b16 %v2523, %v2515
        %v3540 = vpack.c.b16 %v2524, %v2516
        %v3541 = vpack.c.b16 %v2525, %v2517
        %v3542 = vpack.c.b16 %v2526, %v2518
        %v3543 = vpack.c.b16 %v2527, %v2519
        %v3544 = vpack.c.b16 %v2528, %v2520
        %v3545 = vpack.c.b16 %v2537, %v2529
        %v3546 = vpack.c.b16 %v2538, %v2530
        %v3547 = vpack.c.b16 %v2539, %v2531
        %v3548 = vpack.c.b16 %v2540, %v2532
        %v3549 = vpack.c.b16 %v2541, %v2533
        %v3550 = vpack.c.b16 %v2542, %v2534
        %v3551 = vpack.c.b16 %v2543, %v2535
        %v3552 = vpack.c.b16 %v2544, %v2536
        %v3553 = vpack.c.b16 %v2553, %v2545
        %v3554 = vpack.c.b16 %v2554, %v2546
        %v3555 = vpack.c.b16 %v2555, %v2547
        %v3556 = vpack.c.b16 %v2556, %v2548
        %v3557 = vpack.c.b16 %v2557, %v2549
        %v3558 = vpack.c.b16 %v2558, %v2550
        %v3559 = vpack.c.b16 %v2559, %v2551
        %v3560 = vpack.c.b16 %v2560, %v2552
        %v3561 = vpack.c.b16 %v2569, %v2561
        %v3562 = vpack.c.b16 %v2570, %v2562
        %v3563 = vpack.c.b16 %v2571, %v2563
        %v3564 = vpack.c.b16 %v2572, %v2564
        %v3565 = vpack.c.b16 %v2573, %v2565
        %v3566 = vpack.c.b16 %v2574, %v2566
        %v3567 = vpack.c.b16 %v2575, %v2567
        %v3568 = vpack.c.b16 %v2576, %v2568
        %v3569 = vpack.c.b16 %v2585, %v2577
        %v3570 = vpack.c.b16 %v2586, %v2578
        %v3571 = vpack.c.b16 %v2587, %v2579
        %v3572 = vpack.c.b16 %v2588, %v2580
        %v3573 = vpack.c.b16 %v2589, %v2581
        %v3574 = vpack.c.b16 %v2590, %v2582
        %v3575 = vpack.c.b16 %v2591, %v2583
        %v3576 = vpack.c.b16 %v2592, %v2584
        %v3577 = vpack.c.b16 %v2601, %v2593
        %v3578 = vpack.c.b16 %v2602, %v2594
        %v3579 = vpack.c.b16 %v2603, %v2595
        %v3580 = vpack.c.b16 %v2604, %v2596
        %v3581 = vpack.c.b16 %v2605, %v2597
        %v3582 = vpack.c.b16 %v2606, %v2598
        %v3583 = vpack.c.b16 %v2607, %v2599
        %v3584 = vpack.c.b16 %v2608, %v2600
        %v3585 = vpack.c.b16 %v2617, %v2609
        %v3586 = vpack.c.b16 %v2618, %v2610
        %v3587 = vpack.c.b16 %v2619, %v2611
        %v3588 = vpack.c.b16 %v2620, %v2612
        %v3589 = vpack.c.b16 %v2621, %v2613
        %v3590 = vpack.c.b16 %v2622, %v2614
        %v3591 = vpack.c.b16 %v2623, %v2615
        %v3592 = vpack.c.b16 %v2624, %v2616
        %v3593 = vpack.c.b16 %v2633, %v2625
        %v3594 = vpack.c.b16 %v2634, %v2626
        %v3595 = vpack.c.b16 %v2635, %v2627
        %v3596 = vpack.c.b16 %v2636, %v2628
        %v3597 = vpack.c.b16 %v2637, %v2629
        %v3598 = vpack.c.b16 %v2638, %v2630
        %v3599 = vpack.c.b16 %v2639, %v2631
        %v3600 = vpack.c.b16 %v2640, %v2632
        %v3601 = vpack.c.b16 %v2649, %v2641
        %v3602 = vpack.c.b16 %v2650, %v2642
        %v3603 = vpack.c.b16 %v2651, %v2643
        %v3604 = vpack.c.b16 %v2652, %v2644
        %v3605 = vpack.c.b16 %v2653, %v2645
        %v3606 = vpack.c.b16 %v2654, %v2646
        %v3607 = vpack.c.b16 %v2655, %v2647
        %v3608 = vpack.c.b16 %v2656, %v2648
        %v3609 = vpack.c.b16 %v2665, %v2657
        %v3610 = vpack.c.b16 %v2666, %v2658
        %v3611 = vpack.c.b16 %v2667, %v2659
        %v3612 = vpack.c.b16 %v2668, %v2660
        %v3613 = vpack.c.b16 %v2669, %v2661
        %v3614 = vpack.c.b16 %v2670, %v2662
        %v3615 = vpack.c.b16 %v2671, %v2663
        %v3616 = vpack.c.b16 %v2672, %v2664
        %v3617 = vpack.c.b16 %v2681, %v2673
        %v3618 = vpack.c.b16 %v2682, %v2674
        %v3619 = vpack.c.b16 %v2683, %v2675
        %v3620 = vpack.c.b16 %v2684, %v2676
        %v3621 = vpack.c.b16 %v2685, %v2677
        %v3622 = vpack.c.b16 %v2686, %v2678
        %v3623 = vpack.c.b16 %v2687, %v2679
        %v3624 = vpack.c.b16 %v2688, %v2680
        %v3625 = vpack.c.b16 %v2697, %v2689
        %v3626 = vpack.c.b16 %v2698, %v2690
        %v3627 = vpack.c.b16 %v2699, %v2691
        %v3628 = vpack.c.b16 %v2700, %v2692
        %v3629 = vpack.c.b16 %v2701, %v2693
        %v3630 = vpack.c.b16 %v2702, %v2694
        %v3631 = vpack.c.b16 %v2703, %v2695
        %v3632 = vpack.c.b16 %v2704, %v2696
        %v3633 = vpack.c.b16 %v2713, %v2705
        %v3634 = vpack.c.b16 %v2714, %v2706
        %v3635 = vpack.c.b16 %v2715, %v2707
        %v3636 = vpack.c.b16 %v2716, %v2708
        %v3637 = vpack.c.b16 %v2717, %v2709
        %v3638 = vpack.c.b16 %v2718, %v2710
        %v3639 = vpack.c.b16 %v2719, %v2711
        %v3640 = vpack.c.b16 %v2720, %v2712
        %v3641 = vpack.c.b16 %v2729, %v2721
        %v3642 = vpack.c.b16 %v2730, %v2722
        %v3643 = vpack.c.b16 %v2731, %v2723
        %v3644 = vpack.c.b16 %v2732, %v2724
        %v3645 = vpack.c.b16 %v2733, %v2725
        %v3646 = vpack.c.b16 %v2734, %v2726
        %v3647 = vpack.c.b16 %v2735, %v2727
        %v3648 = vpack.c.b16 %v2736, %v2728
        %v3649 = vpack.c.b16 %v2745, %v2737
        %v3650 = vpack.c.b16 %v2746, %v2738
        %v3651 = vpack.c.b16 %v2747, %v2739
        %v3652 = vpack.c.b16 %v2748, %v2740
        %v3653 = vpack.c.b16 %v2749, %v2741
        %v3654 = vpack.c.b16 %v2750, %v2742
        %v3655 = vpack.c.b16 %v2751, %v2743
        %v3656 = vpack.c.b16 %v2752, %v2744
        %v3657 = vpack.c.b16 %v2761, %v2753
        %v3658 = vpack.c.b16 %v2762, %v2754
        %v3659 = vpack.c.b16 %v2763, %v2755
        %v3660 = vpack.c.b16 %v2764, %v2756
        %v3661 = vpack.c.b16 %v2765, %v2757
        %v3662 = vpack.c.b16 %v2766, %v2758
        %v3663 = vpack.c.b16 %v2767, %v2759
        %v3664 = vpack.c.b16 %v2768, %v2760
        %v3665 = vpack.c.b16 %v2777, %v2769
        %v3666 = vpack.c.b16 %v2778, %v2770
        %v3667 = vpack.c.b16 %v2779, %v2771
        %v3668 = vpack.c.b16 %v2780, %v2772
        %v3669 = vpack.c.b16 %v2781, %v2773
        %v3670 = vpack.c.b16 %v2782, %v2774
        %v3671 = vpack.c.b16 %v2783, %v2775
        %v3672 = vpack.c.b16 %v2784, %v2776
        %v3673 = vpack.c.b16 %v2793, %v2785
        %v3674 = vpack.c.b16 %v2794, %v2786
        %v3675 = vpack.c.b16 %v2795, %v2787
        %v3676 = vpack.c.b16 %v2796, %v2788
        %v3677 = vpack.c.b16 %v2797, %v2789
        %v3678 = vpack.c.b16 %v2798, %v2790
        %v3679 = vpack.c.b16 %v2799, %v2791
        %v3680 = vpack.c.b16 %v2800, %v2792
        %v3681 = vpack.c.b16 %v2809, %v2801
        %v3682 = vpack.c.b16 %v2810, %v2802
        %v3683 = vpack.c.b16 %v2811, %v2803
        %v3684 = vpack.c.b16 %v2812, %v2804
        %v3685 = vpack.c.b16 %v2813, %v2805
        %v3686 = vpack.c.b16 %v2814, %v2806
        %v3687 = vpack.c.b16 %v2815, %v2807
        %v3688 = vpack.c.b16 %v2816, %v2808
        %v3689 = vpack.c.b16 %v2825, %v2817
        %v3690 = vpack.c.b16 %v2826, %v2818
        %v3691 = vpack.c.b16 %v2827, %v2819
        %v3692 = vpack.c.b16 %v2828, %v2820
        %v3693 = vpack.c.b16 %v2829, %v2821
        %v3694 = vpack.c.b16 %v2830, %v2822
        %v3695 = vpack.c.b16 %v2831, %v2823
        %v3696 = vpack.c.b16 %v2832, %v2824
        %v3697 = vpack.c.b16 %v2841, %v2833
        %v3698 = vpack.c.b16 %v2842, %v2834
        %v3699 = vpack.c.b16 %v2843, %v2835
        %v3700 = vpack.c.b16 %v2844, %v2836
        %v3701 = vpack.c.b16 %v2845, %v2837
        %v3702 = vpack.c.b16 %v2846, %v2838
        %v3703 = vpack.c.b16 %v2847, %v2839
        %v3704 = vpack.c.b16 %v2848, %v2840
        %v3705 = vpack.c.b16 %v2857, %v2849
        %v3706 = vpack.c.b16 %v2858, %v2850
        %v3707 = vpack.c.b16 %v2859, %v2851
        %v3708 = vpack.c.b16 %v2860, %v2852
        %v3709 = vpack.c.b16 %v2861, %v2853
        %v3710 = vpack.c.b16 %v2862, %v2854
        %v3711 = vpack.c.b16 %v2863, %v2855
        %v3712 = vpack.c.b16 %v2864, %v2856
        %v3713 = vpack.c.b16 %v2873, %v2865
        %v3714 = vpack.c.b16 %v2874, %v2866
        %v3715 = vpack.c.b16 %v2875, %v2867
        %v3716 = vpack.c.b16 %v2876, %v2868
        %v3717 = vpack.c.b16 %v2877, %v2869
        %v3718 = vpack.c.b16 %v2878, %v2870
        %v3719 = vpack.c.b16 %v2879, %v2871
        %v3720 = vpack.c.b16 %v2880, %v2872
        %v3721 = vpack.c.b16 %v2889, %v2881
        %v3722 = vpack.c.b16 %v2890, %v2882
        %v3723 = vpack.c.b16 %v2891, %v2883
        %v3724 = vpack.c.b16 %v2892, %v2884
        %v3725 = vpack.c.b16 %v2893, %v2885
        %v3726 = vpack.c.b16 %v2894, %v2886
        %v3727 = vpack.c.b16 %v2895, %v2887
        %v3728 = vpack.c.b16 %v2896, %v2888
        %v3729 = vpack.c.b16 %v2905, %v2897
        %v3730 = vpack.c.b16 %v2906, %v2898
        %v3731 = vpack.c.b16 %v2907, %v2899
        %v3732 = vpack.c.b16 %v2908, %v2900
        %v3733 = vpack.c.b16 %v2909, %v2901
        %v3734 = vpack.c.b16 %v2910, %v2902
        %v3735 = vpack.c.b16 %v2911, %v2903
        %v3736 = vpack.c.b16 %v2912, %v2904
        %v3737 = vpack.c.b16 %v2921, %v2913
        %v3738 = vpack.c.b16 %v2922, %v2914
        %v3739 = vpack.c.b16 %v2923, %v2915
        %v3740 = vpack.c.b16 %v2924, %v2916
        %v3741 = vpack.c.b16 %v2925, %v2917
        %v3742 = vpack.c.b16 %v2926, %v2918
        %v3743 = vpack.c.b16 %v2927, %v2919
        %v3744 = vpack.c.b16 %v2928, %v2920
        %v3745 = vpack.c.b16 %v2937, %v2929
        %v3746 = vpack.c.b16 %v2938, %v2930
        %v3747 = vpack.c.b16 %v2939, %v2931
        %v3748 = vpack.c.b16 %v2940, %v2932
        %v3749 = vpack.c.b16 %v2941, %v2933
        %v3750 = vpack.c.b16 %v2942, %v2934
        %v3751 = vpack.c.b16 %v2943, %v2935
        %v3752 = vpack.c.b16 %v2944, %v2936
        %v3753 = vpack.c.b16 %v2953, %v2945
        %v3754 = vpack.c.b16 %v2954, %v2946
        %v3755 = vpack.c.b16 %v2955, %v2947
        %v3756 = vpack.c.b16 %v2956, %v2948
        %v3757 = vpack.c.b16 %v2957, %v2949
        %v3758 = vpack.c.b16 %v2958, %v2950
        %v3759 = vpack.c.b16 %v2959, %v2951
        %v3760 = vpack.c.b16 %v2960, %v2952
        %v3761 = vpack.c.b16 %v2969, %v2961
        %v3762 = vpack.c.b16 %v2970, %v2962
        %v3763 = vpack.c.b16 %v2971, %v2963
        %v3764 = vpack.c.b16 %v2972, %v2964
        %v3765 = vpack.c.b16 %v2973, %v2965
        %v3766 = vpack.c.b16 %v2974, %v2966
        %v3767 = vpack.c.b16 %v2975, %v2967
        %v3768 = vpack.c.b16 %v2976, %v2968
        %v3769 = vpack.c.b16 %v2985, %v2977
        %v3770 = vpack.c.b16 %v2986, %v2978
        %v3771 = vpack.c.b16 %v2987, %v2979
        %v3772 = vpack.c.b16 %v2988, %v2980
        %v3773 = vpack.c.b16 %v2989, %v2981
        %v3774 = vpack.c.b16 %v2990, %v2982
        %v3775 = vpack.c.b16 %v2991, %v2983
        %v3776 = vpack.c.b16 %v2992, %v2984
        %v3777 = vpack.c.b16 %v3001, %v2993
        %v3778 = vpack.c.b16 %v3002, %v2994
        %v3779 = vpack.c.b16 %v3003, %v2995
        %v3780 = vpack.c.b16 %v3004, %v2996
        %v3781 = vpack.c.b16 %v3005, %v2997
        %v3782 = vpack.c.b16 %v3006, %v2998
        %v3783 = vpack.c.b16 %v3007, %v2999
        %v3784 = vpack.c.b16 %v3008, %v3000
        %v3785 = vpack.c.b16 %v3017, %v3009
        %v3786 = vpack.c.b16 %v3018, %v3010
        %v3787 = vpack.c.b16 %v3019, %v3011
        %v3788 = vpack.c.b16 %v3020, %v3012
        %v3789 = vpack.c.b16 %v3021, %v3013
        %v3790 = vpack.c.b16 %v3022, %v3014
        %v3791 = vpack.c.b16 %v3023, %v3015
        %v3792 = vpack.c.b16 %v3024, %v3016
        %v3793 = vpack.c.b16 %v3033, %v3025
        %v3794 = vpack.c.b16 %v3034, %v3026
        %v3795 = vpack.c.b16 %v3035, %v3027
        %v3796 = vpack.c.b16 %v3036, %v3028
        %v3797 = vpack.c.b16 %v3037, %v3029
        %v3798 = vpack.c.b16 %v3038, %v3030
        %v3799 = vpack.c.b16 %v3039, %v3031
        %v3800 = vpack.c.b16 %v3040, %v3032
        %v3801 = vpack.c.b16 %v3049, %v3041
        %v3802 = vpack.c.b16 %v3050, %v3042
        %v3803 = vpack.c.b16 %v3051, %v3043
        %v3804 = vpack.c.b16 %v3052, %v3044
        %v3805 = vpack.c.b16 %v3053, %v3045
        %v3806 = vpack.c.b16 %v3054, %v3046
        %v3807 = vpack.c.b16 %v3055, %v3047
        %v3808 = vpack.c.b16 %v3056, %v3048
        %v3809 = vpack.c.b16 %v3065, %v3057
        %v3810 = vpack.c.b16 %v3066, %v3058
        %v3811 = vpack.c.b16 %v3067, %v3059
        %v3812 = vpack.c.b16 %v3068, %v3060
        %v3813 = vpack.c.b16 %v3069, %v3061
        %v3814 = vpack.c.b16 %v3070, %v3062
        %v3815 = vpack.c.b16 %v3071, %v3063
        %v3816 = vpack.c.b16 %v3072, %v3064
        %v3817 = vpack.c.b16 %v3081, %v3073
        %v3818 = vpack.c.b16 %v3082, %v3074
        %v3819 = vpack.c.b16 %v3083, %v3075
        %v3820 = vpack.c.b16 %v3084, %v3076
        %v3821 = vpack.c.b16 %v3085, %v3077
        %v3822 = vpack.c.b16 %v3086, %v3078
        %v3823 = vpack.c.b16 %v3087, %v3079
        %v3824 = vpack.c.b16 %v3088, %v3080
        %v3825 = vpack.c.b16 %v3097, %v3089
        %v3826 = vpack.c.b16 %v3098, %v3090
        %v3827 = vpack.c.b16 %v3099, %v3091
        %v3828 = vpack.c.b16 %v3100, %v3092
        %v3829 = vpack.c.b16 %v3101, %v3093
        %v3830 = vpack.c.b16 %v3102, %v3094
        %v3831 = vpack.c.b16 %v3103, %v3095
        %v3832 = vpack.c.b16 %v3104, %v3096
        %v3833 = vpack.c.b16 %v3113, %v3105
        %v3834 = vpack.c.b16 %v3114, %v3106
        %v3835 = vpack.c.b16 %v3115, %v3107
        %v3836 = vpack.c.b16 %v3116, %v3108
        %v3837 = vpack.c.b16 %v3117, %v3109
        %v3838 = vpack.c.b16 %v3118, %v3110
        %v3839 = vpack.c.b16 %v3119, %v3111
        %v3840 = vpack.c.b16 %v3120, %v3112
        %v3841 = vpack.c.b16 %v3129, %v3121
        %v3842 = vpack.c.b16 %v3130, %v3122
        %v3843 = vpack.c.b16 %v3131, %v3123
        %v3844 = vpack.c.b16 %v3132, %v3124
        %v3845 = vpack.c.b16 %v3133, %v3125
        %v3846 = vpack.c.b16 %v3134, %v3126
        %v3847 = vpack.c.b16 %v3135, %v3127
        %v3848 = vpack.c.b16 %v3136, %v3128
        %v3849 = vpack.c.b16 %v3145, %v3137
        %v3850 = vpack.c.b16 %v3146, %v3138
        %v3851 = vpack.c.b16 %v3147, %v3139
        %v3852 = vpack.c.b16 %v3148, %v3140
        %v3853 = vpack.c.b16 %v3149, %v3141
        %v3854 = vpack.c.b16 %v3150, %v3142
        %v3855 = vpack.c.b16 %v3151, %v3143
        %v3856 = vpack.c.b16 %v3152, %v3144
        %v3857 = vpack.c.b16 %v3161, %v3153
        %v3858 = vpack.c.b16 %v3162, %v3154
        %v3859 = vpack.c.b16 %v3163, %v3155
        %v3860 = vpack.c.b16 %v3164, %v3156
        %v3861 = vpack.c.b16 %v3165, %v3157
        %v3862 = vpack.c.b16 %v3166, %v3158
        %v3863 = vpack.c.b16 %v3167, %v3159
        %v3864 = vpack.c.b16 %v3168, %v3160
        %v3865 = vpack.c.b16 %v3177, %v3169
        %v3866 = vpack.c.b16 %v3178, %v3170
        %v3867 = vpack.c.b16 %v3179, %v3171
        %v3868 = vpack.c.b16 %v3180, %v3172
        %v3869 = vpack.c.b16 %v3181, %v3173
        %v3870 = vpack.c.b16 %v3182, %v3174
        %v3871 = vpack.c.b16 %v3183, %v3175
        %v3872 = vpack.c.b16 %v3184, %v3176
        %v3873 = vpack.c.b16 %v3193, %v3185
        %v3874 = vpack.c.b16 %v3194, %v3186
        %v3875 = vpack.c.b16 %v3195, %v3187
        %v3876 = vpack.c.b16 %v3196, %v3188
        %v3877 = vpack.c.b16 %v3197, %v3189
        %v3878 = vpack.c.b16 %v3198, %v3190
        %v3879 = vpack.c.b16 %v3199, %v3191
        %v3880 = vpack.c.b16 %v3200, %v3192
        %v3881 = vpack.c.b16 %v3209, %v3201
        %v3882 = vpack.c.b16 %v3210, %v3202
        %v3883 = vpack.c.b16 %v3211, %v3203
        %v3884 = vpack.c.b16 %v3212, %v3204
        %v3885 = vpack.c.b16 %v3213, %v3205
        %v3886 = vpack.c.b16 %v3214, %v3206
        %v3887 = vpack.c.b16 %v3215, %v3207
        %v3888 = vpack.c.b16 %v3216, %v3208
        %v3889 = vpack.c.b16 %v3225, %v3217
        %v3890 = vpack.c.b16 %v3226, %v3218
        %v3891 = vpack.c.b16 %v3227, %v3219
        %v3892 = vpack.c.b16 %v3228, %v3220
        %v3893 = vpack.c.b16 %v3229, %v3221
        %v3894 = vpack.c.b16 %v3230, %v3222
        %v3895 = vpack.c.b16 %v3231, %v3223
        %v3896 = vpack.c.b16 %v3232, %v3224
        %v3897 = vpack.c.b16 %v3241, %v3233
        %v3898 = vpack.c.b16 %v3242, %v3234
        %v3899 = vpack.c.b16 %v3243, %v3235
        %v3900 = vpack.c.b16 %v3244, %v3236
        %v3901 = vpack.c.b16 %v3245, %v3237
        %v3902 = vpack.c.b16 %v3246, %v3238
        %v3903 = vpack.c.b16 %v3247, %v3239
        %v3904 = vpack.c.b16 %v3248, %v3240
        %v3905 = vpack.c.b16 %v3257, %v3249
        %v3906 = vpack.c.b16 %v3258, %v3250
        %v3907 = vpack.c.b16 %v3259, %v3251
        %v3908 = vpack.c.b16 %v3260, %v3252
        %v3909 = vpack.c.b16 %v3261, %v3253
        %v3910 = vpack.c.b16 %v3262, %v3254
        %v3911 = vpack.c.b16 %v3263, %v3255
        %v3912 = vpack.c.b16 %v3264, %v3256
        %v3913 = vpack.c.b16 %v3273, %v3265
        %v3914 = vpack.c.b16 %v3274, %v3266
        %v3915 = vpack.c.b16 %v3275, %v3267
        %v3916 = vpack.c.b16 %v3276, %v3268
        %v3917 = vpack.c.b16 %v3277, %v3269
        %v3918 = vpack.c.b16 %v3278, %v3270
        %v3919 = vpack.c.b16 %v3279, %v3271
        %v3920 = vpack.c.b16 %v3280, %v3272
        %v3921 = vpack.c.b16 %v3289, %v3281
        %v3922 = vpack.c.b16 %v3290, %v3282
        %v3923 = vpack.c.b16 %v3291, %v3283
        %v3924 = vpack.c.b16 %v3292, %v3284
        %v3925 = vpack.c.b16 %v3293, %v3285
        %v3926 = vpack.c.b16 %v3294, %v3286
        %v3927 = vpack.c.b16 %v3295, %v3287
        %v3928 = vpack.c.b16 %v3296, %v3288
        %v3929 = vpack.c.b16 %v3305, %v3297
        %v3930 = vpack.c.b16 %v3306, %v3298
        %v3931 = vpack.c.b16 %v3307, %v3299
        %v3932 = vpack.c.b16 %v3308, %v3300
        %v3933 = vpack.c.b16 %v3309, %v3301
        %v3934 = vpack.c.b16 %v3310, %v3302
        %v3935 = vpack.c.b16 %v3311, %v3303
        %v3936 = vpack.c.b16 %v3312, %v3304
        %v3937 = vpack.c.b16 %v3321, %v3313
        %v3938 = vpack.c.b16 %v3322, %v3314
        %v3939 = vpack.c.b16 %v3323, %v3315
        %v3940 = vpack.c.b16 %v3324, %v3316
        %v3941 = vpack.c.b16 %v3325, %v3317
        %v3942 = vpack.c.b16 %v3326, %v3318
        %v3943 = vpack.c.b16 %v3327, %v3319
        %v3944 = vpack.c.b16 %v3328, %v3320
        %v3945 = vpack.c.b16 %v3337, %v3329
        %v3946 = vpack.c.b16 %v3338, %v3330
        %v3947 = vpack.c.b16 %v3339, %v3331
        %v3948 = vpack.c.b16 %v3340, %v3332
        %v3949 = vpack.c.b16 %v3341, %v3333
        %v3950 = vpack.c.b16 %v3342, %v3334
        %v3951 = vpack.c.b16 %v3343, %v3335
        %v3952 = vpack.c.b16 %v3344, %v3336
        %v3953 = vpack.c.b16 %v3353, %v3345
        %v3954 = vpack.c.b16 %v3354, %v3346
        %v3955 = vpack.c.b16 %v3355, %v3347
        %v3956 = vpack.c.b16 %v3356, %v3348
        %v3957 = vpack.c.b16 %v3357, %v3349
        %v3958 = vpack.c.b16 %v3358, %v3350
        %v3959 = vpack.c.b16 %v3359, %v3351
        %v3960 = vpack.c.b16 %v3360, %v3352
        %v3961 = vpack.c.b16 %v3369, %v3361
        %v3962 = vpack.c.b16 %v3370, %v3362
        %v3963 = vpack.c.b16 %v3371, %v3363
        %v3964 = vpack.c.b16 %v3372, %v3364
        %v3965 = vpack.c.b16 %v3373, %v3365
        %v3966 = vpack.c.b16 %v3374, %v3366
        %v3967 = vpack.c.b16 %v3375, %v3367
        %v3968 = vpack.c.b16 %v3376, %v3368
        %v3969 = vpack.c.b16 %v3385, %v3377
        %v3970 = vpack.c.b16 %v3386, %v3378
        %v3971 = vpack.c.b16 %v3387, %v3379
        %v3972 = vpack.c.b16 %v3388, %v3380
        %v3973 = vpack.c.b16 %v3389, %v3381
        %v3974 = vpack.c.b16 %v3390, %v3382
        %v3975 = vpack.c.b16 %v3391, %v3383
        %v3976 = vpack.c.b16 %v3392, %v3384
        %v3977 = vpack.c.b16 %v3401, %v3393
        %v3978 = vpack.c.b16 %v3402, %v3394
        %v3979 = vpack.c.b16 %v3403, %v3395
        %v3980 = vpack.c.b16 %v3404, %v3396
        %v3981 = vpack.c.b16 %v3405, %v3397
        %v3982 = vpack.c.b16 %v3406, %v3398
        %v3983 = vpack.c.b16 %v3407, %v3399
        %v3984 = vpack.c.b16 %v3408, %v3400
        %v3985 = vpack.c.b16 %v3417, %v3409
        %v3986 = vpack.c.b16 %v3418, %v3410
        %v3987 = vpack.c.b16 %v3419, %v3411
        %v3988 = vpack.c.b16 %v3420, %v3412
        %v3989 = vpack.c.b16 %v3421, %v3413
        %v3990 = vpack.c.b16 %v3422, %v3414
        %v3991 = vpack.c.b16 %v3423, %v3415
        %v3992 = vpack.c.b16 %v3424, %v3416
        %v3993 = vpack.c.b16 %v3433, %v3425
        %v3994 = vpack.c.b16 %v3434, %v3426
        %v3995 = vpack.c.b16 %v3435, %v3427
        %v3996 = vpack.c.b16 %v3436, %v3428
        %v3997 = vpack.c.b16 %v3437, %v3429
        %v3998 = vpack.c.b16 %v3438, %v3430
        %v3999 = vpack.c.b16 %v3439, %v3431
        %v4000 = vpack.c.b16 %v3440, %v3432
        %v4001 = vpack.c.b16 %v3449, %v3441
        %v4002 = vpack.c.b16 %v3450, %v3442
        %v4003 = vpack.c.b16 %v3451, %v3443
        %v4004 = vpack.c.b16 %v3452, %v3444
        %v4005 = vpack.c.b16 %v3453, %v3445
        %v4006 = vpack.c.b16 %v3454, %v3446
        %v4007 = vpack.c.b16 %v3455, %v3447
        %v4008 = vpack.c.b16 %v3456, %v3448
        %v4009 = vpack.c.b16 %v3465, %v3457
        %v4010 = vpack.c.b16 %v3466, %v3458
        %v4011 = vpack.c.b16 %v3467, %v3459
        %v4012 = vpack.c.b16 %v3468, %v3460
        %v4013 = vpack.c.b16 %v3469, %v3461
        %v4014 = vpack.c.b16 %v3470, %v3462
        %v4015 = vpack.c.b16 %v3471, %v3463
        %v4016 = vpack.c.b16 %v3472, %v3464
        %v4017 = vpack.c.b16 %v3481, %v3473
        %v4018 = vpack.c.b16 %v3482, %v3474
        %v4019 = vpack.c.b16 %v3483, %v3475
        %v4020 = vpack.c.b16 %v3484, %v3476
        %v4021 = vpack.c.b16 %v3485, %v3477
        %v4022 = vpack.c.b16 %v3486, %v3478
        %v4023 = vpack.c.b16 %v3487, %v3479
        %v4024 = vpack.c.b16 %v3488, %v3480
        %v4025 = vpack.c.b16 %v3497, %v3489
        %v4026 = vpack.c.b16 %v3498, %v3490
        %v4027 = vpack.c.b16 %v3499, %v3491
        %v4028 = vpack.c.b16 %v3500, %v3492
        %v4029 = vpack.c.b16 %v3501, %v3493
        %v4030 = vpack.c.b16 %v3502, %v3494
        %v4031 = vpack.c.b16 %v3503, %v3495
        %v4032 = vpack.c.b16 %v3504, %v3496
        %v4033 = vpack.c.b16 %v3513, %v3505
        %v4034 = vpack.c.b16 %v3514, %v3506
        %v4035 = vpack.c.b16 %v3515, %v3507
        %v4036 = vpack.c.b16 %v3516, %v3508
        %v4037 = vpack.c.b16 %v3517, %v3509
        %v4038 = vpack.c.b16 %v3518, %v3510
        %v4039 = vpack.c.b16 %v3519, %v3511
        %v4040 = vpack.c.b16 %v3520, %v3512
        %v4041 = vpack.c.b16 %v3529, %v3521
        %v4042 = vpack.c.b16 %v3530, %v3522
        %v4043 = vpack.c.b16 %v3531, %v3523
        %v4044 = vpack.c.b16 %v3532, %v3524
        %v4045 = vpack.c.b16 %v3533, %v3525
        %v4046 = vpack.c.b16 %v3534, %v3526
        %v4047 = vpack.c.b16 %v3535, %v3527
        %v4048 = vpack.c.b16 %v3536, %v3528
        %4561 = vmatprep.subr.bf16.mxu0 %v3538
        %4562 = vmatpush1.bf16.msra.mxu0 %v3537
        %4563 = vmatprep.subr.bf16.mxu0 %v3546
        %4564 = vmatpush1.bf16.msra.mxu0 %v3545
        %4565 = vmatprep.subr.bf16.mxu0 %v3554
        %4566 = vmatpush1.bf16.msra.mxu0 %v3553
        %4567 = vmatprep.subr.bf16.mxu0 %v3562
        %4568 = vmatpush1.bf16.msra.mxu0 %v3561
        %4569 = vmatprep.subr.bf16.mxu0 %v3570
        %4570 = vmatpush1.bf16.msra.mxu0 %v3569
        %4571 = vmatprep.subr.bf16.mxu0 %v3578
        %4572 = vmatpush1.bf16.msra.mxu0 %v3577
        %4573 = vmatprep.subr.bf16.mxu0 %v3586
        %4574 = vmatpush1.bf16.msra.mxu0 %v3585
        %4575 = vmatprep.subr.bf16.mxu0 %v3594
        %4576 = vmatpush1.bf16.msra.mxu0 %v3593
        %4577 = vmatprep.subr.bf16.mxu0 %v3602
        %4578 = vmatpush1.bf16.msra.mxu0 %v3601
        %4579 = vmatprep.subr.bf16.mxu0 %v3610
        %4580 = vmatpush1.bf16.msra.mxu0 %v3609
        %4581 = vmatprep.subr.bf16.mxu0 %v3618
        %4582 = vmatpush1.bf16.msra.mxu0 %v3617
        %4583 = vmatprep.subr.bf16.mxu0 %v3626
        %4584 = vmatpush1.bf16.msra.mxu0 %v3625
        %4585 = vmatprep.subr.bf16.mxu0 %v3634
        %4586 = vmatpush1.bf16.msra.mxu0 %v3633
        %4587 = vmatprep.subr.bf16.mxu0 %v3642
        %4588 = vmatpush1.bf16.msra.mxu0 %v3641
        %4589 = vmatprep.subr.bf16.mxu0 %v3650
        %4590 = vmatpush1.bf16.msra.mxu0 %v3649
        %4591 = vmatprep.subr.bf16.mxu0 %v3658
        %4592 = vmatpush1.bf16.msra.mxu0 %v3657
        %4593 = vmatprep.mubr.bf16.mxu0 %v1986
        %4594 = vmatmul.mubr.bf16.gmra.mrb[0].mxu0 %v1985
        %v4595 = vpop.f32.mrb[0].mxu0
        %v4596 = vadd.f32 0.0, %v4595
        %v4597 = vpop.f32.mrb[0].mxu0
        %v4598 = vadd.f32 0.0, %v4597
        %v4599 = vpop.f32.mrb[0].mxu0
        %v4600 = vadd.f32 0.0, %v4599
        %v4601 = vpop.f32.mrb[0].mxu0
        %v4602 = vadd.f32 0.0, %v4601
        %4603 = vdwg.mxu0
        %4604 = vmatprep.subr.bf16.mxu0 %v3666
        %4605 = vmatpush1.bf16.msra.mxu0 %v3665
        %4606 = vmatprep.subr.bf16.mxu0 %v3674
        %4607 = vmatpush1.bf16.msra.mxu0 %v3673
        %4608 = vmatprep.subr.bf16.mxu0 %v3682
        %4609 = vmatpush1.bf16.msra.mxu0 %v3681
        %4610 = vmatprep.subr.bf16.mxu0 %v3690
        %4611 = vmatpush1.bf16.msra.mxu0 %v3689
        %4612 = vmatprep.subr.bf16.mxu0 %v3698
        %4613 = vmatpush1.bf16.msra.mxu0 %v3697
        %4614 = vmatprep.subr.bf16.mxu0 %v3706
        %4615 = vmatpush1.bf16.msra.mxu0 %v3705
        %4616 = vmatprep.subr.bf16.mxu0 %v3714
        %4617 = vmatpush1.bf16.msra.mxu0 %v3713
        %4618 = vmatprep.subr.bf16.mxu0 %v3722
        %4619 = vmatpush1.bf16.msra.mxu0 %v3721
        %4620 = vmatprep.subr.bf16.mxu0 %v3730
        %4621 = vmatpush1.bf16.msra.mxu0 %v3729
        %4622 = vmatprep.subr.bf16.mxu0 %v3738
        %4623 = vmatpush1.bf16.msra.mxu0 %v3737
        %4624 = vmatprep.subr.bf16.mxu0 %v3746
        %4625 = vmatpush1.bf16.msra.mxu0 %v3745
        %4626 = vmatprep.subr.bf16.mxu0 %v3754
        %4627 = vmatpush1.bf16.msra.mxu0 %v3753
        %4628 = vmatprep.subr.bf16.mxu0 %v3762
        %4629 = vmatpush1.bf16.msra.mxu0 %v3761
        %4630 = vmatprep.subr.bf16.mxu0 %v3770
        %4631 = vmatpush1.bf16.msra.mxu0 %v3769
        %4632 = vmatprep.subr.bf16.mxu0 %v3778
        %4633 = vmatpush1.bf16.msra.mxu0 %v3777
        %4634 = vmatprep.subr.bf16.mxu0 %v3786
        %4635 = vmatpush1.bf16.msra.mxu0 %v3785
        %4636 = vmatprep.mubr.bf16.mxu0 %v1988
        %4637 = vmatmul.mubr.bf16.gmra.mrb[0].mxu0 %v1987
        %v4638 = vpop.f32.mrb[0].mxu0
        %v4639 = vadd.f32 %v4596, %v4638
        %v4640 = vpop.f32.mrb[0].mxu0
        %v4641 = vadd.f32 %v4598, %v4640
        %v4642 = vpop.f32.mrb[0].mxu0
        %v4643 = vadd.f32 %v4600, %v4642
        %v4644 = vpop.f32.mrb[0].mxu0
        %v4645 = vadd.f32 %v4602, %v4644
        %4646 = vdwg.mxu0
        %4647 = vmatprep.subr.bf16.mxu0 %v3794
        %4648 = vmatpush1.bf16.msra.mxu0 %v3793
        %4649 = vmatprep.subr.bf16.mxu0 %v3802
        %4650 = vmatpush1.bf16.msra.mxu0 %v3801
        %4651 = vmatprep.subr.bf16.mxu0 %v3810
        %4652 = vmatpush1.bf16.msra.mxu0 %v3809
        %4653 = vmatprep.subr.bf16.mxu0 %v3818
        %4654 = vmatpush1.bf16.msra.mxu0 %v3817
        %4655 = vmatprep.subr.bf16.mxu0 %v3826
        %4656 = vmatpush1.bf16.msra.mxu0 %v3825
        %4657 = vmatprep.subr.bf16.mxu0 %v3834
        %4658 = vmatpush1.bf16.msra.mxu0 %v3833
        %4659 = vmatprep.subr.bf16.mxu0 %v3842
        %4660 = vmatpush1.bf16.msra.mxu0 %v3841
        %4661 = vmatprep.subr.bf16.mxu0 %v3850
        %4662 = vmatpush1.bf16.msra.mxu0 %v3849
        %4663 = vmatprep.subr.bf16.mxu0 %v3858
        %4664 = vmatpush1.bf16.msra.mxu0 %v3857
        %4665 = vmatprep.subr.bf16.mxu0 %v3866
        %4666 = vmatpush1.bf16.msra.mxu0 %v3865
        %4667 = vmatprep.subr.bf16.mxu0 %v3874
        %4668 = vmatpush1.bf16.msra.mxu0 %v3873
        %4669 = vmatprep.subr.bf16.mxu0 %v3882
        %4670 = vmatpush1.bf16.msra.mxu0 %v3881
        %4671 = vmatprep.subr.bf16.mxu0 %v3890
        %4672 = vmatpush1.bf16.msra.mxu0 %v3889
        %4673 = vmatprep.subr.bf16.mxu0 %v3898
        %4674 = vmatpush1.bf16.msra.mxu0 %v3897
        %4675 = vmatprep.subr.bf16.mxu0 %v3906
        %4676 = vmatpush1.bf16.msra.mxu0 %v3905
        %4677 = vmatprep.subr.bf16.mxu0 %v3914
        %4678 = vmatpush1.bf16.msra.mxu0 %v3913
        %4679 = vmatprep.mubr.bf16.mxu0 %v1990
        %4680 = vmatmul.mubr.bf16.gmra.mrb[0].mxu0 %v1989
        %v4681 = vpop.f32.mrb[0].mxu0
        %v4682 = vadd.f32 %v4639, %v4681
        %v4683 = vpop.f32.mrb[0].mxu0
        %v4684 = vadd.f32 %v4641, %v4683
        %v4685 = vpop.f32.mrb[0].mxu0
        %v4686 = vadd.f32 %v4643, %v4685
        %v4687 = vpop.f32.mrb[0].mxu0
        %v4688 = vadd.f32 %v4645, %v4687
        %4689 = vdwg.mxu0
        %4690 = vmatprep.subr.bf16.mxu0 %v3922
        %4691 = vmatpush1.bf16.msra.mxu0 %v3921
        %4692 = vmatprep.subr.bf16.mxu0 %v3930
        %4693 = vmatpush1.bf16.msra.mxu0 %v3929
        %4694 = vmatprep.subr.bf16.mxu0 %v3938
        %4695 = vmatpush1.bf16.msra.mxu0 %v3937
        %4696 = vmatprep.subr.bf16.mxu0 %v3946
        %4697 = vmatpush1.bf16.msra.mxu0 %v3945
        %4698 = vmatprep.subr.bf16.mxu0 %v3954
        %4699 = vmatpush1.bf16.msra.mxu0 %v3953
        %4700 = vmatprep.subr.bf16.mxu0 %v3962
        %4701 = vmatpush1.bf16.msra.mxu0 %v3961
        %4702 = vmatprep.subr.bf16.mxu0 %v3970
        %4703 = vmatpush1.bf16.msra.mxu0 %v3969
        %4704 = vmatprep.subr.bf16.mxu0 %v3978
        %4705 = vmatpush1.bf16.msra.mxu0 %v3977
        %4706 = vmatprep.subr.bf16.mxu0 %v3986
        %4707 = vmatpush1.bf16.msra.mxu0 %v3985
        %4708 = vmatprep.subr.bf16.mxu0 %v3994
        %4709 = vmatpush1.bf16.msra.mxu0 %v3993
        %4710 = vmatprep.subr.bf16.mxu0 %v4002
        %4711 = vmatpush1.bf16.msra.mxu0 %v4001
        %4712 = vmatprep.subr.bf16.mxu0 %v4010
        %4713 = vmatpush1.bf16.msra.mxu0 %v4009
        %4714 = vmatprep.subr.bf16.mxu0 %v4018
        %4715 = vmatpush1.bf16.msra.mxu0 %v4017
        %4716 = vmatprep.subr.bf16.mxu0 %v4026
        %4717 = vmatpush1.bf16.msra.mxu0 %v4025
        %4718 = vmatprep.subr.bf16.mxu0 %v4034
        %4719 = vmatpush1.bf16.msra.mxu0 %v4033
        %4720 = vmatprep.subr.bf16.mxu0 %v4042
        %4721 = vmatpush1.bf16.msra.mxu0 %v4041
        %4722 = vmatprep.mubr.bf16.mxu0 %v1992
        %4723 = vmatmul.mubr.bf16.gmra.mrb[0].mxu0 %v1991
        %v4724 = vpop.f32.mrb[0].mxu0
        %v4725 = vadd.f32 %v4682, %v4724
        %v4726 = vpop.f32.mrb[0].mxu0
        %v4727 = vadd.f32 %v4684, %v4726
        %v4728 = vpop.f32.mrb[0].mxu0
        %v4729 = vadd.f32 %v4686, %v4728
        %v4730 = vpop.f32.mrb[0].mxu0
        %v4731 = vadd.f32 %v4688, %v4730
        %4732 = vdwg.mxu0
        %4733 = vmatprep.subr.bf16.mxu0 %v3540
        %4734 = vmatpush1.bf16.msra.mxu0 %v3539
        %4735 = vmatprep.subr.bf16.mxu0 %v3548
        %4736 = vmatpush1.bf16.msra.mxu0 %v3547
        %4737 = vmatprep.subr.bf16.mxu0 %v3556
        %4738 = vmatpush1.bf16.msra.mxu0 %v3555
        %4739 = vmatprep.subr.bf16.mxu0 %v3564
        %4740 = vmatpush1.bf16.msra.mxu0 %v3563
        %4741 = vmatprep.subr.bf16.mxu0 %v3572
        %4742 = vmatpush1.bf16.msra.mxu0 %v3571
        %4743 = vmatprep.subr.bf16.mxu0 %v3580
        %4744 = vmatpush1.bf16.msra.mxu0 %v3579
        %4745 = vmatprep.subr.bf16.mxu0 %v3588
        %4746 = vmatpush1.bf16.msra.mxu0 %v3587
        %4747 = vmatprep.subr.bf16.mxu0 %v3596
        %4748 = vmatpush1.bf16.msra.mxu0 %v3595
        %4749 = vmatprep.subr.bf16.mxu0 %v3604
        %4750 = vmatpush1.bf16.msra.mxu0 %v3603
        %4751 = vmatprep.subr.bf16.mxu0 %v3612
        %4752 = vmatpush1.bf16.msra.mxu0 %v3611
        %4753 = vmatprep.subr.bf16.mxu0 %v3620
        %4754 = vmatpush1.bf16.msra.mxu0 %v3619
        %4755 = vmatprep.subr.bf16.mxu0 %v3628
        %4756 = vmatpush1.bf16.msra.mxu0 %v3627
        %4757 = vmatprep.subr.bf16.mxu0 %v3636
        %4758 = vmatpush1.bf16.msra.mxu0 %v3635
        %4759 = vmatprep.subr.bf16.mxu0 %v3644
        %4760 = vmatpush1.bf16.msra.mxu0 %v3643
        %4761 = vmatprep.subr.bf16.mxu0 %v3652
        %4762 = vmatpush1.bf16.msra.mxu0 %v3651
        %4763 = vmatprep.subr.bf16.mxu0 %v3660
        %4764 = vmatpush1.bf16.msra.mxu0 %v3659
        %4765 = vmatprep.mubr.bf16.mxu0 %v1986
        %4766 = vmatmul.mubr.bf16.gmra.mrb[0].mxu0 %v1985
        %v4767 = vpop.f32.mrb[0].mxu0
        %v4768 = vadd.f32 0.0, %v4767
        %v4769 = vpop.f32.mrb[0].mxu0
        %v4770 = vadd.f32 0.0, %v4769
        %v4771 = vpop.f32.mrb[0].mxu0
        %v4772 = vadd.f32 0.0, %v4771
        %v4773 = vpop.f32.mrb[0].mxu0
        %v4774 = vadd.f32 0.0, %v4773
        %4775 = vdwg.mxu0
        %4776 = vmatprep.subr.bf16.mxu0 %v3668
        %4777 = vmatpush1.bf16.msra.mxu0 %v3667
        %4778 = vmatprep.subr.bf16.mxu0 %v3676
        %4779 = vmatpush1.bf16.msra.mxu0 %v3675
        %4780 = vmatprep.subr.bf16.mxu0 %v3684
        %4781 = vmatpush1.bf16.msra.mxu0 %v3683
        %4782 = vmatprep.subr.bf16.mxu0 %v3692
        %4783 = vmatpush1.bf16.msra.mxu0 %v3691
        %4784 = vmatprep.subr.bf16.mxu0 %v3700
        %4785 = vmatpush1.bf16.msra.mxu0 %v3699
        %4786 = vmatprep.subr.bf16.mxu0 %v3708
        %4787 = vmatpush1.bf16.msra.mxu0 %v3707
        %4788 = vmatprep.subr.bf16.mxu0 %v3716
        %4789 = vmatpush1.bf16.msra.mxu0 %v3715
        %4790 = vmatprep.subr.bf16.mxu0 %v3724
        %4791 = vmatpush1.bf16.msra.mxu0 %v3723
        %4792 = vmatprep.subr.bf16.mxu0 %v3732
        %4793 = vmatpush1.bf16.msra.mxu0 %v3731
        %4794 = vmatprep.subr.bf16.mxu0 %v3740
        %4795 = vmatpush1.bf16.msra.mxu0 %v3739
        %4796 = vmatprep.subr.bf16.mxu0 %v3748
        %4797 = vmatpush1.bf16.msra.mxu0 %v3747
        %4798 = vmatprep.subr.bf16.mxu0 %v3756
        %4799 = vmatpush1.bf16.msra.mxu0 %v3755
        %4800 = vmatprep.subr.bf16.mxu0 %v3764
        %4801 = vmatpush1.bf16.msra.mxu0 %v3763
        %4802 = vmatprep.subr.bf16.mxu0 %v3772
        %4803 = vmatpush1.bf16.msra.mxu0 %v3771
        %4804 = vmatprep.subr.bf16.mxu0 %v3780
        %4805 = vmatpush1.bf16.msra.mxu0 %v3779
        %4806 = vmatprep.subr.bf16.mxu0 %v3788
        %4807 = vmatpush1.bf16.msra.mxu0 %v3787
        %4808 = vmatprep.mubr.bf16.mxu0 %v1988
        %4809 = vmatmul.mubr.bf16.gmra.mrb[0].mxu0 %v1987
        %v4810 = vpop.f32.mrb[0].mxu0
        %v4811 = vadd.f32 %v4768, %v4810
        %v4812 = vpop.f32.mrb[0].mxu0
        %v4813 = vadd.f32 %v4770, %v4812
        %v4814 = vpop.f32.mrb[0].mxu0
        %v4815 = vadd.f32 %v4772, %v4814
        %v4816 = vpop.f32.mrb[0].mxu0
        %v4817 = vadd.f32 %v4774, %v4816
        %4818 = vdwg.mxu0
        %4819 = vmatprep.subr.bf16.mxu0 %v3796
        %4820 = vmatpush1.bf16.msra.mxu0 %v3795
        %4821 = vmatprep.subr.bf16.mxu0 %v3804
        %4822 = vmatpush1.bf16.msra.mxu0 %v3803
        %4823 = vmatprep.subr.bf16.mxu0 %v3812
        %4824 = vmatpush1.bf16.msra.mxu0 %v3811
        %4825 = vmatprep.subr.bf16.mxu0 %v3820
        %4826 = vmatpush1.bf16.msra.mxu0 %v3819
        %4827 = vmatprep.subr.bf16.mxu0 %v3828
        %4828 = vmatpush1.bf16.msra.mxu0 %v3827
        %4829 = vmatprep.subr.bf16.mxu0 %v3836
        %4830 = vmatpush1.bf16.msra.mxu0 %v3835
        %4831 = vmatprep.subr.bf16.mxu0 %v3844
        %4832 = vmatpush1.bf16.msra.mxu0 %v3843
        %4833 = vmatprep.subr.bf16.mxu0 %v3852
        %4834 = vmatpush1.bf16.msra.mxu0 %v3851
        %4835 = vmatprep.subr.bf16.mxu0 %v3860
        %4836 = vmatpush1.bf16.msra.mxu0 %v3859
        %4837 = vmatprep.subr.bf16.mxu0 %v3868
        %4838 = vmatpush1.bf16.msra.mxu0 %v3867
        %4839 = vmatprep.subr.bf16.mxu0 %v3876
        %4840 = vmatpush1.bf16.msra.mxu0 %v3875
        %4841 = vmatprep.subr.bf16.mxu0 %v3884
        %4842 = vmatpush1.bf16.msra.mxu0 %v3883
        %4843 = vmatprep.subr.bf16.mxu0 %v3892
        %4844 = vmatpush1.bf16.msra.mxu0 %v3891
        %4845 = vmatprep.subr.bf16.mxu0 %v3900
        %4846 = vmatpush1.bf16.msra.mxu0 %v3899
        %4847 = vmatprep.subr.bf16.mxu0 %v3908
        %4848 = vmatpush1.bf16.msra.mxu0 %v3907
        %4849 = vmatprep.subr.bf16.mxu0 %v3916
        %4850 = vmatpush1.bf16.msra.mxu0 %v3915
        %4851 = vmatprep.mubr.bf16.mxu0 %v1990
        %4852 = vmatmul.mubr.bf16.gmra.mrb[0].mxu0 %v1989
        %v4853 = vpop.f32.mrb[0].mxu0
        %v4854 = vadd.f32 %v4811, %v4853
        %v4855 = vpop.f32.mrb[0].mxu0
        %v4856 = vadd.f32 %v4813, %v4855
        %v4857 = vpop.f32.mrb[0].mxu0
        %v4858 = vadd.f32 %v4815, %v4857
        %v4859 = vpop.f32.mrb[0].mxu0
        %v4860 = vadd.f32 %v4817, %v4859
        %4861 = vdwg.mxu0
        %4862 = vmatprep.subr.bf16.mxu0 %v3924
        %4863 = vmatpush1.bf16.msra.mxu0 %v3923
        %4864 = vmatprep.subr.bf16.mxu0 %v3932
        %4865 = vmatpush1.bf16.msra.mxu0 %v3931
        %4866 = vmatprep.subr.bf16.mxu0 %v3940
        %4867 = vmatpush1.bf16.msra.mxu0 %v3939
        %4868 = vmatprep.subr.bf16.mxu0 %v3948
        %4869 = vmatpush1.bf16.msra.mxu0 %v3947
        %4870 = vmatprep.subr.bf16.mxu0 %v3956
        %4871 = vmatpush1.bf16.msra.mxu0 %v3955
        %4872 = vmatprep.subr.bf16.mxu0 %v3964
        %4873 = vmatpush1.bf16.msra.mxu0 %v3963
        %4874 = vmatprep.subr.bf16.mxu0 %v3972
        %4875 = vmatpush1.bf16.msra.mxu0 %v3971
        %4876 = vmatprep.subr.bf16.mxu0 %v3980
        %4877 = vmatpush1.bf16.msra.mxu0 %v3979
        %4878 = vmatprep.subr.bf16.mxu0 %v3988
        %4879 = vmatpush1.bf16.msra.mxu0 %v3987
        %4880 = vmatprep.subr.bf16.mxu0 %v3996
        %4881 = vmatpush1.bf16.msra.mxu0 %v3995
        %4882 = vmatprep.subr.bf16.mxu0 %v4004
        %4883 = vmatpush1.bf16.msra.mxu0 %v4003
        %4884 = vmatprep.subr.bf16.mxu0 %v4012
        %4885 = vmatpush1.bf16.msra.mxu0 %v4011
        %4886 = vmatprep.subr.bf16.mxu0 %v4020
        %4887 = vmatpush1.bf16.msra.mxu0 %v4019
        %4888 = vmatprep.subr.bf16.mxu0 %v4028
        %4889 = vmatpush1.bf16.msra.mxu0 %v4027
        %4890 = vmatprep.subr.bf16.mxu0 %v4036
        %4891 = vmatpush1.bf16.msra.mxu0 %v4035
        %4892 = vmatprep.subr.bf16.mxu0 %v4044
        %4893 = vmatpush1.bf16.msra.mxu0 %v4043
        %4894 = vmatprep.mubr.bf16.mxu0 %v1992
        %4895 = vmatmul.mubr.bf16.gmra.mrb[0].mxu0 %v1991
        %v4896 = vpop.f32.mrb[0].mxu0
        %v4897 = vadd.f32 %v4854, %v4896
        %v4898 = vpop.f32.mrb[0].mxu0
        %v4899 = vadd.f32 %v4856, %v4898
        %v4900 = vpop.f32.mrb[0].mxu0
        %v4901 = vadd.f32 %v4858, %v4900
        %v4902 = vpop.f32.mrb[0].mxu0
        %v4903 = vadd.f32 %v4860, %v4902
        %4904 = vdwg.mxu0
        %4905 = vmatprep.subr.bf16.mxu0 %v3542
        %4906 = vmatpush1.bf16.msra.mxu0 %v3541
        %4907 = vmatprep.subr.bf16.mxu0 %v3550
        %4908 = vmatpush1.bf16.msra.mxu0 %v3549
        %4909 = vmatprep.subr.bf16.mxu0 %v3558
        %4910 = vmatpush1.bf16.msra.mxu0 %v3557
        %4911 = vmatprep.subr.bf16.mxu0 %v3566
        %4912 = vmatpush1.bf16.msra.mxu0 %v3565
        %4913 = vmatprep.subr.bf16.mxu0 %v3574
        %4914 = vmatpush1.bf16.msra.mxu0 %v3573
        %4915 = vmatprep.subr.bf16.mxu0 %v3582
        %4916 = vmatpush1.bf16.msra.mxu0 %v3581
        %4917 = vmatprep.subr.bf16.mxu0 %v3590
        %4918 = vmatpush1.bf16.msra.mxu0 %v3589
        %4919 = vmatprep.subr.bf16.mxu0 %v3598
        %4920 = vmatpush1.bf16.msra.mxu0 %v3597
        %4921 = vmatprep.subr.bf16.mxu0 %v3606
        %4922 = vmatpush1.bf16.msra.mxu0 %v3605
        %4923 = vmatprep.subr.bf16.mxu0 %v3614
        %4924 = vmatpush1.bf16.msra.mxu0 %v3613
        %4925 = vmatprep.subr.bf16.mxu0 %v3622
        %4926 = vmatpush1.bf16.msra.mxu0 %v3621
        %4927 = vmatprep.subr.bf16.mxu0 %v3630
        %4928 = vmatpush1.bf16.msra.mxu0 %v3629
        %4929 = vmatprep.subr.bf16.mxu0 %v3638
        %4930 = vmatpush1.bf16.msra.mxu0 %v3637
        %4931 = vmatprep.subr.bf16.mxu0 %v3646
        %4932 = vmatpush1.bf16.msra.mxu0 %v3645
        %4933 = vmatprep.subr.bf16.mxu0 %v3654
        %4934 = vmatpush1.bf16.msra.mxu0 %v3653
        %4935 = vmatprep.subr.bf16.mxu0 %v3662
        %4936 = vmatpush1.bf16.msra.mxu0 %v3661
        %4937 = vmatprep.mubr.bf16.mxu0 %v1986
        %4938 = vmatmul.mubr.bf16.gmra.mrb[0].mxu0 %v1985
        %v4939 = vpop.f32.mrb[0].mxu0
        %v4940 = vadd.f32 0.0, %v4939
        %v4941 = vpop.f32.mrb[0].mxu0
        %v4942 = vadd.f32 0.0, %v4941
        %v4943 = vpop.f32.mrb[0].mxu0
        %v4944 = vadd.f32 0.0, %v4943
        %v4945 = vpop.f32.mrb[0].mxu0
        %v4946 = vadd.f32 0.0, %v4945
        %4947 = vdwg.mxu0
        %4948 = vmatprep.subr.bf16.mxu0 %v3670
        %4949 = vmatpush1.bf16.msra.mxu0 %v3669
        %4950 = vmatprep.subr.bf16.mxu0 %v3678
        %4951 = vmatpush1.bf16.msra.mxu0 %v3677
        %4952 = vmatprep.subr.bf16.mxu0 %v3686
        %4953 = vmatpush1.bf16.msra.mxu0 %v3685
        %4954 = vmatprep.subr.bf16.mxu0 %v3694
        %4955 = vmatpush1.bf16.msra.mxu0 %v3693
        %4956 = vmatprep.subr.bf16.mxu0 %v3702
        %4957 = vmatpush1.bf16.msra.mxu0 %v3701
        %4958 = vmatprep.subr.bf16.mxu0 %v3710
        %4959 = vmatpush1.bf16.msra.mxu0 %v3709
        %4960 = vmatprep.subr.bf16.mxu0 %v3718
        %4961 = vmatpush1.bf16.msra.mxu0 %v3717
        %4962 = vmatprep.subr.bf16.mxu0 %v3726
        %4963 = vmatpush1.bf16.msra.mxu0 %v3725
        %4964 = vmatprep.subr.bf16.mxu0 %v3734
        %4965 = vmatpush1.bf16.msra.mxu0 %v3733
        %4966 = vmatprep.subr.bf16.mxu0 %v3742
        %4967 = vmatpush1.bf16.msra.mxu0 %v3741
        %4968 = vmatprep.subr.bf16.mxu0 %v3750
        %4969 = vmatpush1.bf16.msra.mxu0 %v3749
        %4970 = vmatprep.subr.bf16.mxu0 %v3758
        %4971 = vmatpush1.bf16.msra.mxu0 %v3757
        %4972 = vmatprep.subr.bf16.mxu0 %v3766
        %4973 = vmatpush1.bf16.msra.mxu0 %v3765
        %4974 = vmatprep.subr.bf16.mxu0 %v3774
        %4975 = vmatpush1.bf16.msra.mxu0 %v3773
        %4976 = vmatprep.subr.bf16.mxu0 %v3782
        %4977 = vmatpush1.bf16.msra.mxu0 %v3781
        %4978 = vmatprep.subr.bf16.mxu0 %v3790
        %4979 = vmatpush1.bf16.msra.mxu0 %v3789
        %4980 = vmatprep.mubr.bf16.mxu0 %v1988
        %4981 = vmatmul.mubr.bf16.gmra.mrb[0].mxu0 %v1987
        %v4982 = vpop.f32.mrb[0].mxu0
        %v4983 = vadd.f32 %v4940, %v4982
        %v4984 = vpop.f32.mrb[0].mxu0
        %v4985 = vadd.f32 %v4942, %v4984
        %v4986 = vpop.f32.mrb[0].mxu0
        %v4987 = vadd.f32 %v4944, %v4986
        %v4988 = vpop.f32.mrb[0].mxu0
        %v4989 = vadd.f32 %v4946, %v4988
        %4990 = vdwg.mxu0
        %4991 = vmatprep.subr.bf16.mxu0 %v3798
        %4992 = vmatpush1.bf16.msra.mxu0 %v3797
        %4993 = vmatprep.subr.bf16.mxu0 %v3806
        %4994 = vmatpush1.bf16.msra.mxu0 %v3805
        %4995 = vmatprep.subr.bf16.mxu0 %v3814
        %4996 = vmatpush1.bf16.msra.mxu0 %v3813
        %4997 = vmatprep.subr.bf16.mxu0 %v3822
        %4998 = vmatpush1.bf16.msra.mxu0 %v3821
        %4999 = vmatprep.subr.bf16.mxu0 %v3830
        %5000 = vmatpush1.bf16.msra.mxu0 %v3829
        %5001 = vmatprep.subr.bf16.mxu0 %v3838
        %5002 = vmatpush1.bf16.msra.mxu0 %v3837
        %5003 = vmatprep.subr.bf16.mxu0 %v3846
        %5004 = vmatpush1.bf16.msra.mxu0 %v3845
        %5005 = vmatprep.subr.bf16.mxu0 %v3854
        %5006 = vmatpush1.bf16.msra.mxu0 %v3853
        %5007 = vmatprep.subr.bf16.mxu0 %v3862
        %5008 = vmatpush1.bf16.msra.mxu0 %v3861
        %5009 = vmatprep.subr.bf16.mxu0 %v3870
        %5010 = vmatpush1.bf16.msra.mxu0 %v3869
        %5011 = vmatprep.subr.bf16.mxu0 %v3878
        %5012 = vmatpush1.bf16.msra.mxu0 %v3877
        %5013 = vmatprep.subr.bf16.mxu0 %v3886
        %5014 = vmatpush1.bf16.msra.mxu0 %v3885
        %5015 = vmatprep.subr.bf16.mxu0 %v3894
        %5016 = vmatpush1.bf16.msra.mxu0 %v3893
        %5017 = vmatprep.subr.bf16.mxu0 %v3902
        %5018 = vmatpush1.bf16.msra.mxu0 %v3901
        %5019 = vmatprep.subr.bf16.mxu0 %v3910
        %5020 = vmatpush1.bf16.msra.mxu0 %v3909
        %5021 = vmatprep.subr.bf16.mxu0 %v3918
        %5022 = vmatpush1.bf16.msra.mxu0 %v3917
        %5023 = vmatprep.mubr.bf16.mxu0 %v1990
        %5024 = vmatmul.mubr.bf16.gmra.mrb[0].mxu0 %v1989
        %v5025 = vpop.f32.mrb[0].mxu0
        %v5026 = vadd.f32 %v4983, %v5025
        %v5027 = vpop.f32.mrb[0].mxu0
        %v5028 = vadd.f32 %v4985, %v5027
        %v5029 = vpop.f32.mrb[0].mxu0
        %v5030 = vadd.f32 %v4987, %v5029
        %v5031 = vpop.f32.mrb[0].mxu0
        %v5032 = vadd.f32 %v4989, %v5031
        %5033 = vdwg.mxu0
        %5034 = vmatprep.subr.bf16.mxu0 %v3926
        %5035 = vmatpush1.bf16.msra.mxu0 %v3925
        %5036 = vmatprep.subr.bf16.mxu0 %v3934
        %5037 = vmatpush1.bf16.msra.mxu0 %v3933
        %5038 = vmatprep.subr.bf16.mxu0 %v3942
        %5039 = vmatpush1.bf16.msra.mxu0 %v3941
        %5040 = vmatprep.subr.bf16.mxu0 %v3950
        %5041 = vmatpush1.bf16.msra.mxu0 %v3949
        %5042 = vmatprep.subr.bf16.mxu0 %v3958
        %5043 = vmatpush1.bf16.msra.mxu0 %v3957
        %5044 = vmatprep.subr.bf16.mxu0 %v3966
        %5045 = vmatpush1.bf16.msra.mxu0 %v3965
        %5046 = vmatprep.subr.bf16.mxu0 %v3974
        %5047 = vmatpush1.bf16.msra.mxu0 %v3973
        %5048 = vmatprep.subr.bf16.mxu0 %v3982
        %5049 = vmatpush1.bf16.msra.mxu0 %v3981
        %5050 = vmatprep.subr.bf16.mxu0 %v3990
        %5051 = vmatpush1.bf16.msra.mxu0 %v3989
        %5052 = vmatprep.subr.bf16.mxu0 %v3998
        %5053 = vmatpush1.bf16.msra.mxu0 %v3997
        %5054 = vmatprep.subr.bf16.mxu0 %v4006
        %5055 = vmatpush1.bf16.msra.mxu0 %v4005
        %5056 = vmatprep.subr.bf16.mxu0 %v4014
        %5057 = vmatpush1.bf16.msra.mxu0 %v4013
        %5058 = vmatprep.subr.bf16.mxu0 %v4022
        %5059 = vmatpush1.bf16.msra.mxu0 %v4021
        %5060 = vmatprep.subr.bf16.mxu0 %v4030
        %5061 = vmatpush1.bf16.msra.mxu0 %v4029
        %5062 = vmatprep.subr.bf16.mxu0 %v4038
        %5063 = vmatpush1.bf16.msra.mxu0 %v4037
        %5064 = vmatprep.subr.bf16.mxu0 %v4046
        %5065 = vmatpush1.bf16.msra.mxu0 %v4045
        %5066 = vmatprep.mubr.bf16.mxu0 %v1992
        %5067 = vmatmul.mubr.bf16.gmra.mrb[0].mxu0 %v1991
        %v5068 = vpop.f32.mrb[0].mxu0
        %v5069 = vadd.f32 %v5026, %v5068
        %v5070 = vpop.f32.mrb[0].mxu0
        %v5071 = vadd.f32 %v5028, %v5070
        %v5072 = vpop.f32.mrb[0].mxu0
        %v5073 = vadd.f32 %v5030, %v5072
        %v5074 = vpop.f32.mrb[0].mxu0
        %v5075 = vadd.f32 %v5032, %v5074
        %5076 = vdwg.mxu0
        %5077 = vmatprep.subr.bf16.mxu0 %v3544
        %5078 = vmatpush1.bf16.msra.mxu0 %v3543
        %5079 = vmatprep.subr.bf16.mxu0 %v3552
        %5080 = vmatpush1.bf16.msra.mxu0 %v3551
        %5081 = vmatprep.subr.bf16.mxu0 %v3560
        %5082 = vmatpush1.bf16.msra.mxu0 %v3559
        %5083 = vmatprep.subr.bf16.mxu0 %v3568
        %5084 = vmatpush1.bf16.msra.mxu0 %v3567
        %5085 = vmatprep.subr.bf16.mxu0 %v3576
        %5086 = vmatpush1.bf16.msra.mxu0 %v3575
        %5087 = vmatprep.subr.bf16.mxu0 %v3584
        %5088 = vmatpush1.bf16.msra.mxu0 %v3583
        %5089 = vmatprep.subr.bf16.mxu0 %v3592
        %5090 = vmatpush1.bf16.msra.mxu0 %v3591
        %5091 = vmatprep.subr.bf16.mxu0 %v3600
        %5092 = vmatpush1.bf16.msra.mxu0 %v3599
        %5093 = vmatprep.subr.bf16.mxu0 %v3608
        %5094 = vmatpush1.bf16.msra.mxu0 %v3607
        %5095 = vmatprep.subr.bf16.mxu0 %v3616
        %5096 = vmatpush1.bf16.msra.mxu0 %v3615
        %5097 = vmatprep.subr.bf16.mxu0 %v3624
        %5098 = vmatpush1.bf16.msra.mxu0 %v3623
        %5099 = vmatprep.subr.bf16.mxu0 %v3632
        %5100 = vmatpush1.bf16.msra.mxu0 %v3631
        %5101 = vmatprep.subr.bf16.mxu0 %v3640
        %5102 = vmatpush1.bf16.msra.mxu0 %v3639
        %5103 = vmatprep.subr.bf16.mxu0 %v3648
        %5104 = vmatpush1.bf16.msra.mxu0 %v3647
        %5105 = vmatprep.subr.bf16.mxu0 %v3656
        %5106 = vmatpush1.bf16.msra.mxu0 %v3655
        %5107 = vmatprep.subr.bf16.mxu0 %v3664
        %5108 = vmatpush1.bf16.msra.mxu0 %v3663
        %5109 = vmatprep.mubr.bf16.mxu0 %v1986
        %5110 = vmatmul.mubr.bf16.gmra.mrb[0].mxu0 %v1985
        %v5111 = vpop.f32.mrb[0].mxu0
        %v5112 = vadd.f32 0.0, %v5111
        %v5113 = vpop.f32.mrb[0].mxu0
        %v5114 = vadd.f32 0.0, %v5113
        %v5115 = vpop.f32.mrb[0].mxu0
        %v5116 = vadd.f32 0.0, %v5115
        %v5117 = vpop.f32.mrb[0].mxu0
        %v5118 = vadd.f32 0.0, %v5117
        %5119 = vdwg.mxu0
        %5120 = vmatprep.subr.bf16.mxu0 %v3672
        %5121 = vmatpush1.bf16.msra.mxu0 %v3671
        %5122 = vmatprep.subr.bf16.mxu0 %v3680
        %5123 = vmatpush1.bf16.msra.mxu0 %v3679
        %5124 = vmatprep.subr.bf16.mxu0 %v3688
        %5125 = vmatpush1.bf16.msra.mxu0 %v3687
        %5126 = vmatprep.subr.bf16.mxu0 %v3696
        %5127 = vmatpush1.bf16.msra.mxu0 %v3695
        %5128 = vmatprep.subr.bf16.mxu0 %v3704
        %5129 = vmatpush1.bf16.msra.mxu0 %v3703
        %5130 = vmatprep.subr.bf16.mxu0 %v3712
        %5131 = vmatpush1.bf16.msra.mxu0 %v3711
        %5132 = vmatprep.subr.bf16.mxu0 %v3720
        %5133 = vmatpush1.bf16.msra.mxu0 %v3719
        %5134 = vmatprep.subr.bf16.mxu0 %v3728
        %5135 = vmatpush1.bf16.msra.mxu0 %v3727
        %5136 = vmatprep.subr.bf16.mxu0 %v3736
        %5137 = vmatpush1.bf16.msra.mxu0 %v3735
        %5138 = vmatprep.subr.bf16.mxu0 %v3744
        %5139 = vmatpush1.bf16.msra.mxu0 %v3743
        %5140 = vmatprep.subr.bf16.mxu0 %v3752
        %5141 = vmatpush1.bf16.msra.mxu0 %v3751
        %5142 = vmatprep.subr.bf16.mxu0 %v3760
        %5143 = vmatpush1.bf16.msra.mxu0 %v3759
        %5144 = vmatprep.subr.bf16.mxu0 %v3768
        %5145 = vmatpush1.bf16.msra.mxu0 %v3767
        %5146 = vmatprep.subr.bf16.mxu0 %v3776
        %5147 = vmatpush1.bf16.msra.mxu0 %v3775
        %5148 = vmatprep.subr.bf16.mxu0 %v3784
        %5149 = vmatpush1.bf16.msra.mxu0 %v3783
        %5150 = vmatprep.subr.bf16.mxu0 %v3792
        %5151 = vmatpush1.bf16.msra.mxu0 %v3791
        %5152 = vmatprep.mubr.bf16.mxu0 %v1988
        %5153 = vmatmul.mubr.bf16.gmra.mrb[0].mxu0 %v1987
        %v5154 = vpop.f32.mrb[0].mxu0
        %v5155 = vadd.f32 %v5112, %v5154
        %v5156 = vpop.f32.mrb[0].mxu0
        %v5157 = vadd.f32 %v5114, %v5156
        %v5158 = vpop.f32.mrb[0].mxu0
        %v5159 = vadd.f32 %v5116, %v5158
        %v5160 = vpop.f32.mrb[0].mxu0
        %v5161 = vadd.f32 %v5118, %v5160
        %5162 = vdwg.mxu0
        %5163 = vmatprep.subr.bf16.mxu0 %v3800
        %5164 = vmatpush1.bf16.msra.mxu0 %v3799
        %5165 = vmatprep.subr.bf16.mxu0 %v3808
        %5166 = vmatpush1.bf16.msra.mxu0 %v3807
        %5167 = vmatprep.subr.bf16.mxu0 %v3816
        %5168 = vmatpush1.bf16.msra.mxu0 %v3815
        %5169 = vmatprep.subr.bf16.mxu0 %v3824
        %5170 = vmatpush1.bf16.msra.mxu0 %v3823
        %5171 = vmatprep.subr.bf16.mxu0 %v3832
        %5172 = vmatpush1.bf16.msra.mxu0 %v3831
        %5173 = vmatprep.subr.bf16.mxu0 %v3840
        %5174 = vmatpush1.bf16.msra.mxu0 %v3839
        %5175 = vmatprep.subr.bf16.mxu0 %v3848
        %5176 = vmatpush1.bf16.msra.mxu0 %v3847
        %5177 = vmatprep.subr.bf16.mxu0 %v3856
        %5178 = vmatpush1.bf16.msra.mxu0 %v3855
        %5179 = vmatprep.subr.bf16.mxu0 %v3864
        %5180 = vmatpush1.bf16.msra.mxu0 %v3863
        %5181 = vmatprep.subr.bf16.mxu0 %v3872
        %5182 = vmatpush1.bf16.msra.mxu0 %v3871
        %5183 = vmatprep.subr.bf16.mxu0 %v3880
        %5184 = vmatpush1.bf16.msra.mxu0 %v3879
        %5185 = vmatprep.subr.bf16.mxu0 %v3888
        %5186 = vmatpush1.bf16.msra.mxu0 %v3887
        %5187 = vmatprep.subr.bf16.mxu0 %v3896
        %5188 = vmatpush1.bf16.msra.mxu0 %v3895
        %5189 = vmatprep.subr.bf16.mxu0 %v3904
        %5190 = vmatpush1.bf16.msra.mxu0 %v3903
        %5191 = vmatprep.subr.bf16.mxu0 %v3912
        %5192 = vmatpush1.bf16.msra.mxu0 %v3911
        %5193 = vmatprep.subr.bf16.mxu0 %v3920
        %5194 = vmatpush1.bf16.msra.mxu0 %v3919
        %5195 = vmatprep.mubr.bf16.mxu0 %v1990
        %5196 = vmatmul.mubr.bf16.gmra.mrb[0].mxu0 %v1989
        %v5197 = vpop.f32.mrb[0].mxu0
        %v5198 = vadd.f32 %v5155, %v5197
        %v5199 = vpop.f32.mrb[0].mxu0
        %v5200 = vadd.f32 %v5157, %v5199
        %v5201 = vpop.f32.mrb[0].mxu0
        %v5202 = vadd.f32 %v5159, %v5201
        %v5203 = vpop.f32.mrb[0].mxu0
        %v5204 = vadd.f32 %v5161, %v5203
        %5205 = vdwg.mxu0
        %5206 = vmatprep.subr.bf16.mxu0 %v3928
        %5207 = vmatpush1.bf16.msra.mxu0 %v3927
        %5208 = vmatprep.subr.bf16.mxu0 %v3936
        %5209 = vmatpush1.bf16.msra.mxu0 %v3935
        %5210 = vmatprep.subr.bf16.mxu0 %v3944
        %5211 = vmatpush1.bf16.msra.mxu0 %v3943
        %5212 = vmatprep.subr.bf16.mxu0 %v3952
        %5213 = vmatpush1.bf16.msra.mxu0 %v3951
        %5214 = vmatprep.subr.bf16.mxu0 %v3960
        %5215 = vmatpush1.bf16.msra.mxu0 %v3959
        %5216 = vmatprep.subr.bf16.mxu0 %v3968
        %5217 = vmatpush1.bf16.msra.mxu0 %v3967
        %5218 = vmatprep.subr.bf16.mxu0 %v3976
        %5219 = vmatpush1.bf16.msra.mxu0 %v3975
        %5220 = vmatprep.subr.bf16.mxu0 %v3984
        %5221 = vmatpush1.bf16.msra.mxu0 %v3983
        %5222 = vmatprep.subr.bf16.mxu0 %v3992
        %5223 = vmatpush1.bf16.msra.mxu0 %v3991
        %5224 = vmatprep.subr.bf16.mxu0 %v4000
        %5225 = vmatpush1.bf16.msra.mxu0 %v3999
        %5226 = vmatprep.subr.bf16.mxu0 %v4008
        %5227 = vmatpush1.bf16.msra.mxu0 %v4007
        %5228 = vmatprep.subr.bf16.mxu0 %v4016
        %5229 = vmatpush1.bf16.msra.mxu0 %v4015
        %5230 = vmatprep.subr.bf16.mxu0 %v4024
        %5231 = vmatpush1.bf16.msra.mxu0 %v4023
        %5232 = vmatprep.subr.bf16.mxu0 %v4032
        %5233 = vmatpush1.bf16.msra.mxu0 %v4031
        %5234 = vmatprep.subr.bf16.mxu0 %v4040
        %5235 = vmatpush1.bf16.msra.mxu0 %v4039
        %5236 = vmatprep.subr.bf16.mxu0 %v4048
        %5237 = vmatpush1.bf16.msra.mxu0 %v4047
        %5238 = vmatprep.mubr.bf16.mxu0 %v1992
        %5239 = vmatmul.mubr.bf16.gmra.mrb[0].mxu0 %v1991
        %v5240 = vpop.f32.mrb[0].mxu0
        %v5241 = vadd.f32 %v5198, %v5240
        %v5242 = vpop.f32.mrb[0].mxu0
        %v5243 = vadd.f32 %v5200, %v5242
        %v5244 = vpop.f32.mrb[0].mxu0
        %v5245 = vadd.f32 %v5202, %v5244
        %v5246 = vpop.f32.mrb[0].mxu0
        %v5247 = vadd.f32 %v5204, %v5246
        %5248 = vdwg.mxu0
        %v5249 = vadd.f32 %v1425, %v4725
        %v5250 = vadd.f32 %v1426, %v4727
        %v5251 = vadd.f32 %v1427, %v4897
        %v5252 = vadd.f32 %v1428, %v4899
        %v5253 = vadd.f32 %v1429, %v5069
        %v5254 = vadd.f32 %v1430, %v5071
        %v5255 = vadd.f32 %v1431, %v5241
        %v5256 = vadd.f32 %v1432, %v5243
        %v5257 = vadd.f32 %v1433, %v4729
        %v5258 = vadd.f32 %v1434, %v4731
        %v5259 = vadd.f32 %v1435, %v4901
        %v5260 = vadd.f32 %v1436, %v4903
        %v5261 = vadd.f32 %v1437, %v5073
        %v5262 = vadd.f32 %v1438, %v5075
        %v5263 = vadd.f32 %v1439, %v5245
        %v5264 = vadd.f32 %v1440, %v5247
        %5265 = vst [vmem:[#allocation2] sm:$0xff] %v5249
        %5266 = vst [vmem:[#allocation2 + $0x8] sm:$0xff] %v5250
        %5267 = vst [vmem:[#allocation2 + $0x10] sm:$0xff] %v5251
        %5268 = vst [vmem:[#allocation2 + $0x18] sm:$0xff] %v5252
        %5269 = vst [vmem:[#allocation2 + $0x20] sm:$0xff] %v5253
        %5270 = vst [vmem:[#allocation2 + $0x28] sm:$0xff] %v5254
        %5271 = vst [vmem:[#allocation2 + $0x30] sm:$0xff] %v5255
        %5272 = vst [vmem:[#allocation2 + $0x38] sm:$0xff] %v5256
        %5273 = vst [vmem:[#allocation2 + $0x40] sm:$0xff] %v5257
        %5274 = vst [vmem:[#allocation2 + $0x48] sm:$0xff] %v5258
        %5275 = vst [vmem:[#allocation2 + $0x50] sm:$0xff] %v5259
        %5276 = vst [vmem:[#allocation2 + $0x58] sm:$0xff] %v5260
        %5277 = vst [vmem:[#allocation2 + $0x60] sm:$0xff] %v5261
        %5278 = vst [vmem:[#allocation2 + $0x68] sm:$0xff] %v5262
        %5279 = vst [vmem:[#allocation2 + $0x70] sm:$0xff] %v5263
        %5280 = vst [vmem:[#allocation2 + $0x78] sm:$0xff] %v5264
        %p5281 = scmp.eq.s32.totalorder %s21, 3
        // Predicated region
        $region91: #{predictor_forward.1} parent=77 // pred_check
          %p5282 = pneg %p5281
        $region92: #{predictor_forward.1} parent=77 // pred_check_branch
          %5284 = sbr.rel (%p5282) target = $region94
        $region93: #{predictor_forward.1} parent=77 // pred_region
          %v5285 = vld [vmem:[#allocation2] sm:$0xff]
          %v5286 = vld [vmem:[#allocation2 + $0x8] sm:$0xff]
          %v5287 = vld [vmem:[#allocation2 + $0x10] sm:$0xff]
          %v5288 = vld [vmem:[#allocation2 + $0x18] sm:$0xff]
          %v5289 = vld [vmem:[#allocation2 + $0x20] sm:$0xff]
          %v5290 = vld [vmem:[#allocation2 + $0x28] sm:$0xff]
          %v5291 = vld [vmem:[#allocation2 + $0x30] sm:$0xff]
          %v5292 = vld [vmem:[#allocation2 + $0x38] sm:$0xff]
          %v5293 = vld [vmem:[#allocation2 + $0x40] sm:$0xff]
          %v5294 = vld [vmem:[#allocation2 + $0x48] sm:$0xff]
          %v5295 = vld [vmem:[#allocation2 + $0x50] sm:$0xff]
          %v5296 = vld [vmem:[#allocation2 + $0x58] sm:$0xff]
          %v5297 = vld [vmem:[#allocation2 + $0x60] sm:$0xff]
          %v5298 = vld [vmem:[#allocation2 + $0x68] sm:$0xff]
          %v5299 = vld [vmem:[#allocation2 + $0x70] sm:$0xff]
          %v5300 = vld [vmem:[#allocation2 + $0x78] sm:$0xff]
          %v5301 = vld [vmem:[%s1385] sm:$0xff]
          %v5303 = vlaneseq
          %v5304 = vshrl.u32 %v5303, 7
          %v5305 = vsub.s32 0, %v5304
          %v5306 = vrot.slane %v5301, %v5305
          %v5307 = vlaneseq
          %v5308 = vshrl.u32 %v5307, 7
          %v5309 = vsub.s32 1, %v5308
          %v5310 = vrot.slane %v5301, %v5309
          %v5311 = vlaneseq
          %v5312 = vshrl.u32 %v5311, 7
          %v5313 = vsub.s32 2, %v5312
          %v5314 = vrot.slane %v5301, %v5313
          %v5315 = vlaneseq
          %v5316 = vshrl.u32 %v5315, 7
          %v5317 = vsub.s32 3, %v5316
          %v5318 = vrot.slane %v5301, %v5317
          %v5319 = vlaneseq
          %v5320 = vshrl.u32 %v5319, 7
          %v5321 = vsub.s32 4, %v5320
          %v5322 = vrot.slane %v5301, %v5321
          %v5323 = vlaneseq
          %v5324 = vshrl.u32 %v5323, 7
          %v5325 = vsub.s32 5, %v5324
          %v5326 = vrot.slane %v5301, %v5325
          %v5327 = vlaneseq
          %v5328 = vshrl.u32 %v5327, 7
          %v5329 = vsub.s32 6, %v5328
          %v5330 = vrot.slane %v5301, %v5329
          %v5331 = vlaneseq
          %v5332 = vshrl.u32 %v5331, 7
          %v5333 = vsub.s32 7, %v5332
          %v5334 = vrot.slane %v5301, %v5333
          %v5343 = vmul.f32 %v5285, %v5306
          %v5344 = vmul.f32 %v5286, %v5310
          %v5345 = vmul.f32 %v5287, %v5314
          %v5346 = vmul.f32 %v5288, %v5318
          %v5347 = vmul.f32 %v5289, %v5322
          %v5348 = vmul.f32 %v5290, %v5326
          %v5349 = vmul.f32 %v5291, %v5330
          %v5350 = vmul.f32 %v5292, %v5334
          %v5351 = vmul.f32 %v5293, %v5306
          %v5352 = vmul.f32 %v5294, %v5310
          %v5353 = vmul.f32 %v5295, %v5314
          %v5354 = vmul.f32 %v5296, %v5318
          %v5355 = vmul.f32 %v5297, %v5322
          %v5356 = vmul.f32 %v5298, %v5326
          %v5357 = vmul.f32 %v5299, %v5330
          %v5358 = vmul.f32 %v5300, %v5334
          %v5359 = vld [vmem:[%s1390] sm:$0xff]
          %v5361 = vlaneseq
          %v5362 = vshrl.u32 %v5361, 7
          %v5363 = vsub.s32 0, %v5362
          %v5364 = vrot.slane %v5359, %v5363
          %v5365 = vlaneseq
          %v5366 = vshrl.u32 %v5365, 7
          %v5367 = vsub.s32 1, %v5366
          %v5368 = vrot.slane %v5359, %v5367
          %v5369 = vlaneseq
          %v5370 = vshrl.u32 %v5369, 7
          %v5371 = vsub.s32 2, %v5370
          %v5372 = vrot.slane %v5359, %v5371
          %v5373 = vlaneseq
          %v5374 = vshrl.u32 %v5373, 7
          %v5375 = vsub.s32 3, %v5374
          %v5376 = vrot.slane %v5359, %v5375
          %v5377 = vlaneseq
          %v5378 = vshrl.u32 %v5377, 7
          %v5379 = vsub.s32 4, %v5378
          %v5380 = vrot.slane %v5359, %v5379
          %v5381 = vlaneseq
          %v5382 = vshrl.u32 %v5381, 7
          %v5383 = vsub.s32 5, %v5382
          %v5384 = vrot.slane %v5359, %v5383
          %v5385 = vlaneseq
          %v5386 = vshrl.u32 %v5385, 7
          %v5387 = vsub.s32 6, %v5386
          %v5388 = vrot.slane %v5359, %v5387
          %v5389 = vlaneseq
          %v5390 = vshrl.u32 %v5389, 7
          %v5391 = vsub.s32 7, %v5390
          %v5392 = vrot.slane %v5359, %v5391
          %v5401 = vadd.f32 %v5343, %v5364
          %v5402 = vadd.f32 %v5344, %v5368
          %v5403 = vadd.f32 %v5345, %v5372
          %v5404 = vadd.f32 %v5346, %v5376
          %v5405 = vadd.f32 %v5347, %v5380
          %v5406 = vadd.f32 %v5348, %v5384
          %v5407 = vadd.f32 %v5349, %v5388
          %v5408 = vadd.f32 %v5350, %v5392
          %v5409 = vadd.f32 %v5351, %v5364
          %v5410 = vadd.f32 %v5352, %v5368
          %v5411 = vadd.f32 %v5353, %v5372
          %v5412 = vadd.f32 %v5354, %v5376
          %v5413 = vadd.f32 %v5355, %v5380
          %v5414 = vadd.f32 %v5356, %v5384
          %v5415 = vadd.f32 %v5357, %v5388
          %v5416 = vadd.f32 %v5358, %v5392
          %v5417 = vmax.f32 %v5401, 0.0
          %v5418 = vmax.f32 %v5402, 0.0
          %v5419 = vmax.f32 %v5403, 0.0
          %v5420 = vmax.f32 %v5404, 0.0
          %v5421 = vmax.f32 %v5405, 0.0
          %v5422 = vmax.f32 %v5406, 0.0
          %v5423 = vmax.f32 %v5407, 0.0
          %v5424 = vmax.f32 %v5408, 0.0
          %v5425 = vmax.f32 %v5409, 0.0
          %v5426 = vmax.f32 %v5410, 0.0
          %v5427 = vmax.f32 %v5411, 0.0
          %v5428 = vmax.f32 %v5412, 0.0
          %v5429 = vmax.f32 %v5413, 0.0
          %v5430 = vmax.f32 %v5414, 0.0
          %v5431 = vmax.f32 %v5415, 0.0
          %v5432 = vmax.f32 %v5416, 0.0
          %v5433 = vpack.c.bf16 %v5425, %v5417
          %v5434 = vpack.c.bf16 %v5426, %v5418
          %v5435 = vpack.c.bf16 %v5427, %v5419
          %v5436 = vpack.c.bf16 %v5428, %v5420
          %v5437 = vpack.c.bf16 %v5429, %v5421
          %v5438 = vpack.c.bf16 %v5430, %v5422
          %v5439 = vpack.c.bf16 %v5431, %v5423
          %v5440 = vpack.c.bf16 %v5432, %v5424
          %v5441 = vld [vmem:[%s1397] sm:$0xff]
          %v5442 = vld [vmem:[%s1397 + $0x8] sm:$0xf]
          %v5443 = vld [vmem:[%s1397 + $0xc] sm:$0xff]
          %v5444 = vld [vmem:[%s1397 + $0x14] sm:$0xf]
          %v5445 = vld [vmem:[%s1397 + $0x18] sm:$0xff]
          %v5446 = vld [vmem:[%s1397 + $0x20] sm:$0xf]
          %v5447 = vld [vmem:[%s1397 + $0x24] sm:$0xff]
          %v5448 = vld [vmem:[%s1397 + $0x2c] sm:$0xf]
          %v5449 = vld [vmem:[%s1397 + $0x30] sm:$0xff]
          %v5450 = vld [vmem:[%s1397 + $0x38] sm:$0xf]
          %v5451 = vld [vmem:[%s1397 + $0x3c] sm:$0xff]
          %v5452 = vld [vmem:[%s1397 + $0x44] sm:$0xf]
          %v5453 = vld [vmem:[%s1397 + $0x48] sm:$0xff]
          %v5454 = vld [vmem:[%s1397 + $0x50] sm:$0xf]
          %v5455 = vld [vmem:[%s1397 + $0x54] sm:$0xff]
          %v5456 = vld [vmem:[%s1397 + $0x5c] sm:$0xf]
          %v5457 = vld [vmem:[%s1397 + $0x60] sm:$0xff]
          %v5458 = vld [vmem:[%s1397 + $0x68] sm:$0xf]
          %v5459 = vld [vmem:[%s1397 + $0x6c] sm:$0xff]
          %v5460 = vld [vmem:[%s1397 + $0x74] sm:$0xf]
          %v5461 = vld [vmem:[%s1397 + $0x78] sm:$0xff]
          %v5462 = vld [vmem:[%s1397 + $0x80] sm:$0xf]
          %v5463 = vld [vmem:[%s1397 + $0x84] sm:$0xff]
          %v5464 = vld [vmem:[%s1397 + $0x8c] sm:$0xf]
          %v5465 = vld [vmem:[%s1397 + $0x90] sm:$0xff]
          %v5466 = vld [vmem:[%s1397 + $0x98] sm:$0xf]
          %v5467 = vld [vmem:[%s1397 + $0x9c] sm:$0xff]
          %v5468 = vld [vmem:[%s1397 + $0xa4] sm:$0xf]
          %v5469 = vld [vmem:[%s1397 + $0xa8] sm:$0xff]
          %v5470 = vld [vmem:[%s1397 + $0xb0] sm:$0xf]
          %v5471 = vld [vmem:[%s1397 + $0xb4] sm:$0xff]
          %v5472 = vld [vmem:[%s1397 + $0xbc] sm:$0xf]
          %v5473 = vld [vmem:[%s1397 + $0xc0] sm:$0xff]
          %v5474 = vld [vmem:[%s1397 + $0xc8] sm:$0xf]
          %v5475 = vld [vmem:[%s1397 + $0xcc] sm:$0xff]
          %v5476 = vld [vmem:[%s1397 + $0xd4] sm:$0xf]
          %v5477 = vld [vmem:[%s1397 + $0xd8] sm:$0xff]
          %v5478 = vld [vmem:[%s1397 + $0xe0] sm:$0xf]
          %v5479 = vld [vmem:[%s1397 + $0xe4] sm:$0xff]
          %v5480 = vld [vmem:[%s1397 + $0xec] sm:$0xf]
          %v5481 = vld [vmem:[%s1397 + $0xf0] sm:$0xff]
          %v5482 = vld [vmem:[%s1397 + $0xf8] sm:$0xf]
          %v5483 = vld [vmem:[%s1397 + $0xfc] sm:$0xff]
          %v5484 = vld [vmem:[%s1397 + $0x104] sm:$0xf]
          %v5485 = vld [vmem:[%s1397 + $0x108] sm:$0xff]
          %v5486 = vld [vmem:[%s1397 + $0x110] sm:$0xf]
          %v5487 = vld [vmem:[%s1397 + $0x114] sm:$0xff]
          %v5488 = vld [vmem:[%s1397 + $0x11c] sm:$0xf]
          %v5489 = vld [vmem:[%s1397 + $0x120] sm:$0xff]
          %v5490 = vld [vmem:[%s1397 + $0x128] sm:$0xf]
          %v5491 = vld [vmem:[%s1397 + $0x12c] sm:$0xff]
          %v5492 = vld [vmem:[%s1397 + $0x134] sm:$0xf]
          %v5493 = vld [vmem:[%s1397 + $0x138] sm:$0xff]
          %v5494 = vld [vmem:[%s1397 + $0x140] sm:$0xf]
          %v5495 = vld [vmem:[%s1397 + $0x144] sm:$0xff]
          %v5496 = vld [vmem:[%s1397 + $0x14c] sm:$0xf]
          %v5497 = vld [vmem:[%s1397 + $0x150] sm:$0xff]
          %v5498 = vld [vmem:[%s1397 + $0x158] sm:$0xf]
          %v5499 = vld [vmem:[%s1397 + $0x15c] sm:$0xff]
          %v5500 = vld [vmem:[%s1397 + $0x164] sm:$0xf]
          %v5501 = vld [vmem:[%s1397 + $0x168] sm:$0xff]
          %v5502 = vld [vmem:[%s1397 + $0x170] sm:$0xf]
          %v5503 = vld [vmem:[%s1397 + $0x174] sm:$0xff]
          %v5504 = vld [vmem:[%s1397 + $0x17c] sm:$0xf]
          %v5505 = vld [vmem:[%s1397 + $0x180] sm:$0xff]
          %v5506 = vld [vmem:[%s1397 + $0x188] sm:$0xf]
          %v5507 = vld [vmem:[%s1397 + $0x18c] sm:$0xff]
          %v5508 = vld [vmem:[%s1397 + $0x194] sm:$0xf]
          %v5509 = vld [vmem:[%s1397 + $0x198] sm:$0xff]
          %v5510 = vld [vmem:[%s1397 + $0x1a0] sm:$0xf]
          %v5511 = vld [vmem:[%s1397 + $0x1a4] sm:$0xff]
          %v5512 = vld [vmem:[%s1397 + $0x1ac] sm:$0xf]
          %v5513 = vld [vmem:[%s1397 + $0x1b0] sm:$0xff]
          %v5514 = vld [vmem:[%s1397 + $0x1b8] sm:$0xf]
          %v5515 = vld [vmem:[%s1397 + $0x1bc] sm:$0xff]
          %v5516 = vld [vmem:[%s1397 + $0x1c4] sm:$0xf]
          %v5517 = vld [vmem:[%s1397 + $0x1c8] sm:$0xff]
          %v5518 = vld [vmem:[%s1397 + $0x1d0] sm:$0xf]
          %v5519 = vld [vmem:[%s1397 + $0x1d4] sm:$0xff]
          %v5520 = vld [vmem:[%s1397 + $0x1dc] sm:$0xf]
          %v5521 = vld [vmem:[%s1397 + $0x1e0] sm:$0xff]
          %v5522 = vld [vmem:[%s1397 + $0x1e8] sm:$0xf]
          %v5523 = vld [vmem:[%s1397 + $0x1ec] sm:$0xff]
          %v5524 = vld [vmem:[%s1397 + $0x1f4] sm:$0xf]
          %v5525 = vld [vmem:[%s1397 + $0x1f8] sm:$0xff]
          %v5526 = vld [vmem:[%s1397 + $0x200] sm:$0xf]
          %v5527 = vld [vmem:[%s1397 + $0x204] sm:$0xff]
          %v5528 = vld [vmem:[%s1397 + $0x20c] sm:$0xf]
          %v5529 = vld [vmem:[%s1397 + $0x210] sm:$0xff]
          %v5530 = vld [vmem:[%s1397 + $0x218] sm:$0xf]
          %v5531 = vld [vmem:[%s1397 + $0x21c] sm:$0xff]
          %v5532 = vld [vmem:[%s1397 + $0x224] sm:$0xf]
          %v5533 = vld [vmem:[%s1397 + $0x228] sm:$0xff]
          %v5534 = vld [vmem:[%s1397 + $0x230] sm:$0xf]
          %v5535 = vld [vmem:[%s1397 + $0x234] sm:$0xff]
          %v5536 = vld [vmem:[%s1397 + $0x23c] sm:$0xf]
          %v5537 = vld [vmem:[%s1397 + $0x240] sm:$0xff]
          %v5538 = vld [vmem:[%s1397 + $0x248] sm:$0xf]
          %v5539 = vld [vmem:[%s1397 + $0x24c] sm:$0xff]
          %v5540 = vld [vmem:[%s1397 + $0x254] sm:$0xf]
          %v5541 = vld [vmem:[%s1397 + $0x258] sm:$0xff]
          %v5542 = vld [vmem:[%s1397 + $0x260] sm:$0xf]
          %v5543 = vld [vmem:[%s1397 + $0x264] sm:$0xff]
          %v5544 = vld [vmem:[%s1397 + $0x26c] sm:$0xf]
          %v5545 = vld [vmem:[%s1397 + $0x270] sm:$0xff]
          %v5546 = vld [vmem:[%s1397 + $0x278] sm:$0xf]
          %v5547 = vld [vmem:[%s1397 + $0x27c] sm:$0xff]
          %v5548 = vld [vmem:[%s1397 + $0x284] sm:$0xf]
          %v5549 = vld [vmem:[%s1397 + $0x288] sm:$0xff]
          %v5550 = vld [vmem:[%s1397 + $0x290] sm:$0xf]
          %v5551 = vld [vmem:[%s1397 + $0x294] sm:$0xff]
          %v5552 = vld [vmem:[%s1397 + $0x29c] sm:$0xf]
          %v5553 = vld [vmem:[%s1397 + $0x2a0] sm:$0xff]
          %v5554 = vld [vmem:[%s1397 + $0x2a8] sm:$0xf]
          %v5555 = vld [vmem:[%s1397 + $0x2ac] sm:$0xff]
          %v5556 = vld [vmem:[%s1397 + $0x2b4] sm:$0xf]
          %v5557 = vld [vmem:[%s1397 + $0x2b8] sm:$0xff]
          %v5558 = vld [vmem:[%s1397 + $0x2c0] sm:$0xf]
          %v5559 = vld [vmem:[%s1397 + $0x2c4] sm:$0xff]
          %v5560 = vld [vmem:[%s1397 + $0x2cc] sm:$0xf]
          %v5561 = vld [vmem:[%s1397 + $0x2d0] sm:$0xff]
          %v5562 = vld [vmem:[%s1397 + $0x2d8] sm:$0xf]
          %v5563 = vld [vmem:[%s1397 + $0x2dc] sm:$0xff]
          %v5564 = vld [vmem:[%s1397 + $0x2e4] sm:$0xf]
          %v5565 = vld [vmem:[%s1397 + $0x2e8] sm:$0xff]
          %v5566 = vld [vmem:[%s1397 + $0x2f0] sm:$0xf]
          %v5567 = vld [vmem:[%s1397 + $0x2f4] sm:$0xff]
          %v5568 = vld [vmem:[%s1397 + $0x2fc] sm:$0xf]
          %v5569 = vld [vmem:[%s1397 + $0x300] sm:$0xff]
          %v5570 = vld [vmem:[%s1397 + $0x308] sm:$0xf]
          %v5571 = vld [vmem:[%s1397 + $0x30c] sm:$0xff]
          %v5572 = vld [vmem:[%s1397 + $0x314] sm:$0xf]
          %v5573 = vld [vmem:[%s1397 + $0x318] sm:$0xff]
          %v5574 = vld [vmem:[%s1397 + $0x320] sm:$0xf]
          %v5575 = vld [vmem:[%s1397 + $0x324] sm:$0xff]
          %v5576 = vld [vmem:[%s1397 + $0x32c] sm:$0xf]
          %v5577 = vld [vmem:[%s1397 + $0x330] sm:$0xff]
          %v5578 = vld [vmem:[%s1397 + $0x338] sm:$0xf]
          %v5579 = vld [vmem:[%s1397 + $0x33c] sm:$0xff]
          %v5580 = vld [vmem:[%s1397 + $0x344] sm:$0xf]
          %v5581 = vld [vmem:[%s1397 + $0x348] sm:$0xff]
          %v5582 = vld [vmem:[%s1397 + $0x350] sm:$0xf]
          %v5583 = vld [vmem:[%s1397 + $0x354] sm:$0xff]
          %v5584 = vld [vmem:[%s1397 + $0x35c] sm:$0xf]
          %v5585 = vld [vmem:[%s1397 + $0x360] sm:$0xff]
          %v5586 = vld [vmem:[%s1397 + $0x368] sm:$0xf]
          %v5587 = vld [vmem:[%s1397 + $0x36c] sm:$0xff]
          %v5588 = vld [vmem:[%s1397 + $0x374] sm:$0xf]
          %v5589 = vld [vmem:[%s1397 + $0x378] sm:$0xff]
          %v5590 = vld [vmem:[%s1397 + $0x380] sm:$0xf]
          %v5591 = vld [vmem:[%s1397 + $0x384] sm:$0xff]
          %v5592 = vld [vmem:[%s1397 + $0x38c] sm:$0xf]
          %v5593 = vld [vmem:[%s1397 + $0x390] sm:$0xff]
          %v5594 = vld [vmem:[%s1397 + $0x398] sm:$0xf]
          %v5595 = vld [vmem:[%s1397 + $0x39c] sm:$0xff]
          %v5596 = vld [vmem:[%s1397 + $0x3a4] sm:$0xf]
          %v5597 = vld [vmem:[%s1397 + $0x3a8] sm:$0xff]
          %v5598 = vld [vmem:[%s1397 + $0x3b0] sm:$0xf]
          %v5599 = vld [vmem:[%s1397 + $0x3b4] sm:$0xff]
          %v5600 = vld [vmem:[%s1397 + $0x3bc] sm:$0xf]
          %v5601 = vld [vmem:[%s1397 + $0x3c0] sm:$0xff]
          %v5602 = vld [vmem:[%s1397 + $0x3c8] sm:$0xf]
          %v5603 = vld [vmem:[%s1397 + $0x3cc] sm:$0xff]
          %v5604 = vld [vmem:[%s1397 + $0x3d4] sm:$0xf]
          %v5605 = vld [vmem:[%s1397 + $0x3d8] sm:$0xff]
          %v5606 = vld [vmem:[%s1397 + $0x3e0] sm:$0xf]
          %v5607 = vld [vmem:[%s1397 + $0x3e4] sm:$0xff]
          %v5608 = vld [vmem:[%s1397 + $0x3ec] sm:$0xf]
          %v5609 = vld [vmem:[%s1397 + $0x3f0] sm:$0xff]
          %v5610 = vld [vmem:[%s1397 + $0x3f8] sm:$0xf]
          %v5611 = vld [vmem:[%s1397 + $0x3fc] sm:$0xff]
          %v5612 = vld [vmem:[%s1397 + $0x404] sm:$0xf]
          %v5613 = vld [vmem:[%s1397 + $0x408] sm:$0xff]
          %v5614 = vld [vmem:[%s1397 + $0x410] sm:$0xf]
          %v5615 = vld [vmem:[%s1397 + $0x414] sm:$0xff]
          %v5616 = vld [vmem:[%s1397 + $0x41c] sm:$0xf]
          %v5617 = vld [vmem:[%s1397 + $0x420] sm:$0xff]
          %v5618 = vld [vmem:[%s1397 + $0x428] sm:$0xf]
          %v5619 = vld [vmem:[%s1397 + $0x42c] sm:$0xff]
          %v5620 = vld [vmem:[%s1397 + $0x434] sm:$0xf]
          %v5621 = vld [vmem:[%s1397 + $0x438] sm:$0xff]
          %v5622 = vld [vmem:[%s1397 + $0x440] sm:$0xf]
          %v5623 = vld [vmem:[%s1397 + $0x444] sm:$0xff]
          %v5624 = vld [vmem:[%s1397 + $0x44c] sm:$0xf]
          %v5625 = vld [vmem:[%s1397 + $0x450] sm:$0xff]
          %v5626 = vld [vmem:[%s1397 + $0x458] sm:$0xf]
          %v5627 = vld [vmem:[%s1397 + $0x45c] sm:$0xff]
          %v5628 = vld [vmem:[%s1397 + $0x464] sm:$0xf]
          %v5629 = vld [vmem:[%s1397 + $0x468] sm:$0xff]
          %v5630 = vld [vmem:[%s1397 + $0x470] sm:$0xf]
          %v5631 = vld [vmem:[%s1397 + $0x474] sm:$0xff]
          %v5632 = vld [vmem:[%s1397 + $0x47c] sm:$0xf]
          %v5633 = vld [vmem:[%s1397 + $0x480] sm:$0xff]
          %v5634 = vld [vmem:[%s1397 + $0x488] sm:$0xf]
          %v5635 = vld [vmem:[%s1397 + $0x48c] sm:$0xff]
          %v5636 = vld [vmem:[%s1397 + $0x494] sm:$0xf]
          %v5637 = vld [vmem:[%s1397 + $0x498] sm:$0xff]
          %v5638 = vld [vmem:[%s1397 + $0x4a0] sm:$0xf]
          %v5639 = vld [vmem:[%s1397 + $0x4a4] sm:$0xff]
          %v5640 = vld [vmem:[%s1397 + $0x4ac] sm:$0xf]
          %v5641 = vld [vmem:[%s1397 + $0x4b0] sm:$0xff]
          %v5642 = vld [vmem:[%s1397 + $0x4b8] sm:$0xf]
          %v5643 = vld [vmem:[%s1397 + $0x4bc] sm:$0xff]
          %v5644 = vld [vmem:[%s1397 + $0x4c4] sm:$0xf]
          %v5645 = vld [vmem:[%s1397 + $0x4c8] sm:$0xff]
          %v5646 = vld [vmem:[%s1397 + $0x4d0] sm:$0xf]
          %v5647 = vld [vmem:[%s1397 + $0x4d4] sm:$0xff]
          %v5648 = vld [vmem:[%s1397 + $0x4dc] sm:$0xf]
          %v5649 = vld [vmem:[%s1397 + $0x4e0] sm:$0xff]
          %v5650 = vld [vmem:[%s1397 + $0x4e8] sm:$0xf]
          %v5651 = vld [vmem:[%s1397 + $0x4ec] sm:$0xff]
          %v5652 = vld [vmem:[%s1397 + $0x4f4] sm:$0xf]
          %v5653 = vld [vmem:[%s1397 + $0x4f8] sm:$0xff]
          %v5654 = vld [vmem:[%s1397 + $0x500] sm:$0xf]
          %v5655 = vld [vmem:[%s1397 + $0x504] sm:$0xff]
          %v5656 = vld [vmem:[%s1397 + $0x50c] sm:$0xf]
          %v5657 = vld [vmem:[%s1397 + $0x510] sm:$0xff]
          %v5658 = vld [vmem:[%s1397 + $0x518] sm:$0xf]
          %v5659 = vld [vmem:[%s1397 + $0x51c] sm:$0xff]
          %v5660 = vld [vmem:[%s1397 + $0x524] sm:$0xf]
          %v5661 = vld [vmem:[%s1397 + $0x528] sm:$0xff]
          %v5662 = vld [vmem:[%s1397 + $0x530] sm:$0xf]
          %v5663 = vld [vmem:[%s1397 + $0x534] sm:$0xff]
          %v5664 = vld [vmem:[%s1397 + $0x53c] sm:$0xf]
          %v5665 = vld [vmem:[%s1397 + $0x540] sm:$0xff]
          %v5666 = vld [vmem:[%s1397 + $0x548] sm:$0xf]
          %v5667 = vld [vmem:[%s1397 + $0x54c] sm:$0xff]
          %v5668 = vld [vmem:[%s1397 + $0x554] sm:$0xf]
          %v5669 = vld [vmem:[%s1397 + $0x558] sm:$0xff]
          %v5670 = vld [vmem:[%s1397 + $0x560] sm:$0xf]
          %v5671 = vld [vmem:[%s1397 + $0x564] sm:$0xff]
          %v5672 = vld [vmem:[%s1397 + $0x56c] sm:$0xf]
          %v5673 = vld [vmem:[%s1397 + $0x570] sm:$0xff]
          %v5674 = vld [vmem:[%s1397 + $0x578] sm:$0xf]
          %v5675 = vld [vmem:[%s1397 + $0x57c] sm:$0xff]
          %v5676 = vld [vmem:[%s1397 + $0x584] sm:$0xf]
          %v5677 = vld [vmem:[%s1397 + $0x588] sm:$0xff]
          %v5678 = vld [vmem:[%s1397 + $0x590] sm:$0xf]
          %v5679 = vld [vmem:[%s1397 + $0x594] sm:$0xff]
          %v5680 = vld [vmem:[%s1397 + $0x59c] sm:$0xf]
          %v5681 = vld [vmem:[%s1397 + $0x5a0] sm:$0xff]
          %v5682 = vld [vmem:[%s1397 + $0x5a8] sm:$0xf]
          %v5683 = vld [vmem:[%s1397 + $0x5ac] sm:$0xff]
          %v5684 = vld [vmem:[%s1397 + $0x5b4] sm:$0xf]
          %v5685 = vld [vmem:[%s1397 + $0x5b8] sm:$0xff]
          %v5686 = vld [vmem:[%s1397 + $0x5c0] sm:$0xf]
          %v5687 = vld [vmem:[%s1397 + $0x5c4] sm:$0xff]
          %v5688 = vld [vmem:[%s1397 + $0x5cc] sm:$0xf]
          %v5689 = vld [vmem:[%s1397 + $0x5d0] sm:$0xff]
          %v5690 = vld [vmem:[%s1397 + $0x5d8] sm:$0xf]
          %v5691 = vld [vmem:[%s1397 + $0x5dc] sm:$0xff]
          %v5692 = vld [vmem:[%s1397 + $0x5e4] sm:$0xf]
          %v5693 = vld [vmem:[%s1397 + $0x5e8] sm:$0xff]
          %v5694 = vld [vmem:[%s1397 + $0x5f0] sm:$0xf]
          %v5695 = vld [vmem:[%s1397 + $0x5f4] sm:$0xff]
          %v5696 = vld [vmem:[%s1397 + $0x5fc] sm:$0xf]
          %v5953 = vunpack.c.l.b16 %v5441
          %v5954 = vunpack.c.h.b16 %v5441
          %v5955 = vunpack.c.l.b16 %v5442
          %v5956 = vunpack.c.l.b16 %v5443
          %v5957 = vunpack.c.h.b16 %v5443
          %v5958 = vunpack.c.l.b16 %v5444
          %v5959 = vunpack.c.l.b16 %v5445
          %v5960 = vunpack.c.h.b16 %v5445
          %v5961 = vunpack.c.l.b16 %v5446
          %v5962 = vunpack.c.l.b16 %v5447
          %v5963 = vunpack.c.h.b16 %v5447
          %v5964 = vunpack.c.l.b16 %v5448
          %v5965 = vunpack.c.l.b16 %v5449
          %v5966 = vunpack.c.h.b16 %v5449
          %v5967 = vunpack.c.l.b16 %v5450
          %v5968 = vunpack.c.l.b16 %v5451
          %v5969 = vunpack.c.h.b16 %v5451
          %v5970 = vunpack.c.l.b16 %v5452
          %v5971 = vunpack.c.l.b16 %v5453
          %v5972 = vunpack.c.h.b16 %v5453
          %v5973 = vunpack.c.l.b16 %v5454
          %v5974 = vunpack.c.l.b16 %v5455
          %v5975 = vunpack.c.h.b16 %v5455
          %v5976 = vunpack.c.l.b16 %v5456
          %v5977 = vunpack.c.l.b16 %v5457
          %v5978 = vunpack.c.h.b16 %v5457
          %v5979 = vunpack.c.l.b16 %v5458
          %v5980 = vunpack.c.l.b16 %v5459
          %v5981 = vunpack.c.h.b16 %v5459
          %v5982 = vunpack.c.l.b16 %v5460
          %v5983 = vunpack.c.l.b16 %v5461
          %v5984 = vunpack.c.h.b16 %v5461
          %v5985 = vunpack.c.l.b16 %v5462
          %v5986 = vunpack.c.l.b16 %v5463
          %v5987 = vunpack.c.h.b16 %v5463
          %v5988 = vunpack.c.l.b16 %v5464
          %v5989 = vunpack.c.l.b16 %v5465
          %v5990 = vunpack.c.h.b16 %v5465
          %v5991 = vunpack.c.l.b16 %v5466
          %v5992 = vunpack.c.l.b16 %v5467
          %v5993 = vunpack.c.h.b16 %v5467
          %v5994 = vunpack.c.l.b16 %v5468
          %v5995 = vunpack.c.l.b16 %v5469
          %v5996 = vunpack.c.h.b16 %v5469
          %v5997 = vunpack.c.l.b16 %v5470
          %v5998 = vunpack.c.l.b16 %v5471
          %v5999 = vunpack.c.h.b16 %v5471
          %v6000 = vunpack.c.l.b16 %v5472
          %v6001 = vunpack.c.l.b16 %v5473
          %v6002 = vunpack.c.h.b16 %v5473
          %v6003 = vunpack.c.l.b16 %v5474
          %v6004 = vunpack.c.l.b16 %v5475
          %v6005 = vunpack.c.h.b16 %v5475
          %v6006 = vunpack.c.l.b16 %v5476
          %v6007 = vunpack.c.l.b16 %v5477
          %v6008 = vunpack.c.h.b16 %v5477
          %v6009 = vunpack.c.l.b16 %v5478
          %v6010 = vunpack.c.l.b16 %v5479
          %v6011 = vunpack.c.h.b16 %v5479
          %v6012 = vunpack.c.l.b16 %v5480
          %v6013 = vunpack.c.l.b16 %v5481
          %v6014 = vunpack.c.h.b16 %v5481
          %v6015 = vunpack.c.l.b16 %v5482
          %v6016 = vunpack.c.l.b16 %v5483
          %v6017 = vunpack.c.h.b16 %v5483
          %v6018 = vunpack.c.l.b16 %v5484
          %v6019 = vunpack.c.l.b16 %v5485
          %v6020 = vunpack.c.h.b16 %v5485
          %v6021 = vunpack.c.l.b16 %v5486
          %v6022 = vunpack.c.l.b16 %v5487
          %v6023 = vunpack.c.h.b16 %v5487
          %v6024 = vunpack.c.l.b16 %v5488
          %v6025 = vunpack.c.l.b16 %v5489
          %v6026 = vunpack.c.h.b16 %v5489
          %v6027 = vunpack.c.l.b16 %v5490
          %v6028 = vunpack.c.l.b16 %v5491
          %v6029 = vunpack.c.h.b16 %v5491
          %v6030 = vunpack.c.l.b16 %v5492
          %v6031 = vunpack.c.l.b16 %v5493
          %v6032 = vunpack.c.h.b16 %v5493
          %v6033 = vunpack.c.l.b16 %v5494
          %v6034 = vunpack.c.l.b16 %v5495
          %v6035 = vunpack.c.h.b16 %v5495
          %v6036 = vunpack.c.l.b16 %v5496
          %v6037 = vunpack.c.l.b16 %v5497
          %v6038 = vunpack.c.h.b16 %v5497
          %v6039 = vunpack.c.l.b16 %v5498
          %v6040 = vunpack.c.l.b16 %v5499
          %v6041 = vunpack.c.h.b16 %v5499
          %v6042 = vunpack.c.l.b16 %v5500
          %v6043 = vunpack.c.l.b16 %v5501
          %v6044 = vunpack.c.h.b16 %v5501
          %v6045 = vunpack.c.l.b16 %v5502
          %v6046 = vunpack.c.l.b16 %v5503
          %v6047 = vunpack.c.h.b16 %v5503
          %v6048 = vunpack.c.l.b16 %v5504
          %v6049 = vunpack.c.l.b16 %v5505
          %v6050 = vunpack.c.h.b16 %v5505
          %v6051 = vunpack.c.l.b16 %v5506
          %v6052 = vunpack.c.l.b16 %v5507
          %v6053 = vunpack.c.h.b16 %v5507
          %v6054 = vunpack.c.l.b16 %v5508
          %v6055 = vunpack.c.l.b16 %v5509
          %v6056 = vunpack.c.h.b16 %v5509
          %v6057 = vunpack.c.l.b16 %v5510
          %v6058 = vunpack.c.l.b16 %v5511
          %v6059 = vunpack.c.h.b16 %v5511
          %v6060 = vunpack.c.l.b16 %v5512
          %v6061 = vunpack.c.l.b16 %v5513
          %v6062 = vunpack.c.h.b16 %v5513
          %v6063 = vunpack.c.l.b16 %v5514
          %v6064 = vunpack.c.l.b16 %v5515
          %v6065 = vunpack.c.h.b16 %v5515
          %v6066 = vunpack.c.l.b16 %v5516
          %v6067 = vunpack.c.l.b16 %v5517
          %v6068 = vunpack.c.h.b16 %v5517
          %v6069 = vunpack.c.l.b16 %v5518
          %v6070 = vunpack.c.l.b16 %v5519
          %v6071 = vunpack.c.h.b16 %v5519
          %v6072 = vunpack.c.l.b16 %v5520
          %v6073 = vunpack.c.l.b16 %v5521
          %v6074 = vunpack.c.h.b16 %v5521
          %v6075 = vunpack.c.l.b16 %v5522
          %v6076 = vunpack.c.l.b16 %v5523
          %v6077 = vunpack.c.h.b16 %v5523
          %v6078 = vunpack.c.l.b16 %v5524
          %v6079 = vunpack.c.l.b16 %v5525
          %v6080 = vunpack.c.h.b16 %v5525
          %v6081 = vunpack.c.l.b16 %v5526
          %v6082 = vunpack.c.l.b16 %v5527
          %v6083 = vunpack.c.h.b16 %v5527
          %v6084 = vunpack.c.l.b16 %v5528
          %v6085 = vunpack.c.l.b16 %v5529
          %v6086 = vunpack.c.h.b16 %v5529
          %v6087 = vunpack.c.l.b16 %v5530
          %v6088 = vunpack.c.l.b16 %v5531
          %v6089 = vunpack.c.h.b16 %v5531
          %v6090 = vunpack.c.l.b16 %v5532
          %v6091 = vunpack.c.l.b16 %v5533
          %v6092 = vunpack.c.h.b16 %v5533
          %v6093 = vunpack.c.l.b16 %v5534
          %v6094 = vunpack.c.l.b16 %v5535
          %v6095 = vunpack.c.h.b16 %v5535
          %v6096 = vunpack.c.l.b16 %v5536
          %v6097 = vunpack.c.l.b16 %v5537
          %v6098 = vunpack.c.h.b16 %v5537
          %v6099 = vunpack.c.l.b16 %v5538
          %v6100 = vunpack.c.l.b16 %v5539
          %v6101 = vunpack.c.h.b16 %v5539
          %v6102 = vunpack.c.l.b16 %v5540
          %v6103 = vunpack.c.l.b16 %v5541
          %v6104 = vunpack.c.h.b16 %v5541
          %v6105 = vunpack.c.l.b16 %v5542
          %v6106 = vunpack.c.l.b16 %v5543
          %v6107 = vunpack.c.h.b16 %v5543
          %v6108 = vunpack.c.l.b16 %v5544
          %v6109 = vunpack.c.l.b16 %v5545
          %v6110 = vunpack.c.h.b16 %v5545
          %v6111 = vunpack.c.l.b16 %v5546
          %v6112 = vunpack.c.l.b16 %v5547
          %v6113 = vunpack.c.h.b16 %v5547
          %v6114 = vunpack.c.l.b16 %v5548
          %v6115 = vunpack.c.l.b16 %v5549
          %v6116 = vunpack.c.h.b16 %v5549
          %v6117 = vunpack.c.l.b16 %v5550
          %v6118 = vunpack.c.l.b16 %v5551
          %v6119 = vunpack.c.h.b16 %v5551
          %v6120 = vunpack.c.l.b16 %v5552
          %v6121 = vunpack.c.l.b16 %v5553
          %v6122 = vunpack.c.h.b16 %v5553
          %v6123 = vunpack.c.l.b16 %v5554
          %v6124 = vunpack.c.l.b16 %v5555
          %v6125 = vunpack.c.h.b16 %v5555
          %v6126 = vunpack.c.l.b16 %v5556
          %v6127 = vunpack.c.l.b16 %v5557
          %v6128 = vunpack.c.h.b16 %v5557
          %v6129 = vunpack.c.l.b16 %v5558
          %v6130 = vunpack.c.l.b16 %v5559
          %v6131 = vunpack.c.h.b16 %v5559
          %v6132 = vunpack.c.l.b16 %v5560
          %v6133 = vunpack.c.l.b16 %v5561
          %v6134 = vunpack.c.h.b16 %v5561
          %v6135 = vunpack.c.l.b16 %v5562
          %v6136 = vunpack.c.l.b16 %v5563
          %v6137 = vunpack.c.h.b16 %v5563
          %v6138 = vunpack.c.l.b16 %v5564
          %v6139 = vunpack.c.l.b16 %v5565
          %v6140 = vunpack.c.h.b16 %v5565
          %v6141 = vunpack.c.l.b16 %v5566
          %v6142 = vunpack.c.l.b16 %v5567
          %v6143 = vunpack.c.h.b16 %v5567
          %v6144 = vunpack.c.l.b16 %v5568
          %v6145 = vunpack.c.l.b16 %v5569
          %v6146 = vunpack.c.h.b16 %v5569
          %v6147 = vunpack.c.l.b16 %v5570
          %v6148 = vunpack.c.l.b16 %v5571
          %v6149 = vunpack.c.h.b16 %v5571
          %v6150 = vunpack.c.l.b16 %v5572
          %v6151 = vunpack.c.l.b16 %v5573
          %v6152 = vunpack.c.h.b16 %v5573
          %v6153 = vunpack.c.l.b16 %v5574
          %v6154 = vunpack.c.l.b16 %v5575
          %v6155 = vunpack.c.h.b16 %v5575
          %v6156 = vunpack.c.l.b16 %v5576
          %v6157 = vunpack.c.l.b16 %v5577
          %v6158 = vunpack.c.h.b16 %v5577
          %v6159 = vunpack.c.l.b16 %v5578
          %v6160 = vunpack.c.l.b16 %v5579
          %v6161 = vunpack.c.h.b16 %v5579
          %v6162 = vunpack.c.l.b16 %v5580
          %v6163 = vunpack.c.l.b16 %v5581
          %v6164 = vunpack.c.h.b16 %v5581
          %v6165 = vunpack.c.l.b16 %v5582
          %v6166 = vunpack.c.l.b16 %v5583
          %v6167 = vunpack.c.h.b16 %v5583
          %v6168 = vunpack.c.l.b16 %v5584
          %v6169 = vunpack.c.l.b16 %v5585
          %v6170 = vunpack.c.h.b16 %v5585
          %v6171 = vunpack.c.l.b16 %v5586
          %v6172 = vunpack.c.l.b16 %v5587
          %v6173 = vunpack.c.h.b16 %v5587
          %v6174 = vunpack.c.l.b16 %v5588
          %v6175 = vunpack.c.l.b16 %v5589
          %v6176 = vunpack.c.h.b16 %v5589
          %v6177 = vunpack.c.l.b16 %v5590
          %v6178 = vunpack.c.l.b16 %v5591
          %v6179 = vunpack.c.h.b16 %v5591
          %v6180 = vunpack.c.l.b16 %v5592
          %v6181 = vunpack.c.l.b16 %v5593
          %v6182 = vunpack.c.h.b16 %v5593
          %v6183 = vunpack.c.l.b16 %v5594
          %v6184 = vunpack.c.l.b16 %v5595
          %v6185 = vunpack.c.h.b16 %v5595
          %v6186 = vunpack.c.l.b16 %v5596
          %v6187 = vunpack.c.l.b16 %v5597
          %v6188 = vunpack.c.h.b16 %v5597
          %v6189 = vunpack.c.l.b16 %v5598
          %v6190 = vunpack.c.l.b16 %v5599
          %v6191 = vunpack.c.h.b16 %v5599
          %v6192 = vunpack.c.l.b16 %v5600
          %v6193 = vunpack.c.l.b16 %v5601
          %v6194 = vunpack.c.h.b16 %v5601
          %v6195 = vunpack.c.l.b16 %v5602
          %v6196 = vunpack.c.l.b16 %v5603
          %v6197 = vunpack.c.h.b16 %v5603
          %v6198 = vunpack.c.l.b16 %v5604
          %v6199 = vunpack.c.l.b16 %v5605
          %v6200 = vunpack.c.h.b16 %v5605
          %v6201 = vunpack.c.l.b16 %v5606
          %v6202 = vunpack.c.l.b16 %v5607
          %v6203 = vunpack.c.h.b16 %v5607
          %v6204 = vunpack.c.l.b16 %v5608
          %v6205 = vunpack.c.l.b16 %v5609
          %v6206 = vunpack.c.h.b16 %v5609
          %v6207 = vunpack.c.l.b16 %v5610
          %v6208 = vunpack.c.l.b16 %v5611
          %v6209 = vunpack.c.h.b16 %v5611
          %v6210 = vunpack.c.l.b16 %v5612
          %v6211 = vunpack.c.l.b16 %v5613
          %v6212 = vunpack.c.h.b16 %v5613
          %v6213 = vunpack.c.l.b16 %v5614
          %v6214 = vunpack.c.l.b16 %v5615
          %v6215 = vunpack.c.h.b16 %v5615
          %v6216 = vunpack.c.l.b16 %v5616
          %v6217 = vunpack.c.l.b16 %v5617
          %v6218 = vunpack.c.h.b16 %v5617
          %v6219 = vunpack.c.l.b16 %v5618
          %v6220 = vunpack.c.l.b16 %v5619
          %v6221 = vunpack.c.h.b16 %v5619
          %v6222 = vunpack.c.l.b16 %v5620
          %v6223 = vunpack.c.l.b16 %v5621
          %v6224 = vunpack.c.h.b16 %v5621
          %v6225 = vunpack.c.l.b16 %v5622
          %v6226 = vunpack.c.l.b16 %v5623
          %v6227 = vunpack.c.h.b16 %v5623
          %v6228 = vunpack.c.l.b16 %v5624
          %v6229 = vunpack.c.l.b16 %v5625
          %v6230 = vunpack.c.h.b16 %v5625
          %v6231 = vunpack.c.l.b16 %v5626
          %v6232 = vunpack.c.l.b16 %v5627
          %v6233 = vunpack.c.h.b16 %v5627
          %v6234 = vunpack.c.l.b16 %v5628
          %v6235 = vunpack.c.l.b16 %v5629
          %v6236 = vunpack.c.h.b16 %v5629
          %v6237 = vunpack.c.l.b16 %v5630
          %v6238 = vunpack.c.l.b16 %v5631
          %v6239 = vunpack.c.h.b16 %v5631
          %v6240 = vunpack.c.l.b16 %v5632
          %v6241 = vunpack.c.l.b16 %v5633
          %v6242 = vunpack.c.h.b16 %v5633
          %v6243 = vunpack.c.l.b16 %v5634
          %v6244 = vunpack.c.l.b16 %v5635
          %v6245 = vunpack.c.h.b16 %v5635
          %v6246 = vunpack.c.l.b16 %v5636
          %v6247 = vunpack.c.l.b16 %v5637
          %v6248 = vunpack.c.h.b16 %v5637
          %v6249 = vunpack.c.l.b16 %v5638
          %v6250 = vunpack.c.l.b16 %v5639
          %v6251 = vunpack.c.h.b16 %v5639
          %v6252 = vunpack.c.l.b16 %v5640
          %v6253 = vunpack.c.l.b16 %v5641
          %v6254 = vunpack.c.h.b16 %v5641
          %v6255 = vunpack.c.l.b16 %v5642
          %v6256 = vunpack.c.l.b16 %v5643
          %v6257 = vunpack.c.h.b16 %v5643
          %v6258 = vunpack.c.l.b16 %v5644
          %v6259 = vunpack.c.l.b16 %v5645
          %v6260 = vunpack.c.h.b16 %v5645
          %v6261 = vunpack.c.l.b16 %v5646
          %v6262 = vunpack.c.l.b16 %v5647
          %v6263 = vunpack.c.h.b16 %v5647
          %v6264 = vunpack.c.l.b16 %v5648
          %v6265 = vunpack.c.l.b16 %v5649
          %v6266 = vunpack.c.h.b16 %v5649
          %v6267 = vunpack.c.l.b16 %v5650
          %v6268 = vunpack.c.l.b16 %v5651
          %v6269 = vunpack.c.h.b16 %v5651
          %v6270 = vunpack.c.l.b16 %v5652
          %v6271 = vunpack.c.l.b16 %v5653
          %v6272 = vunpack.c.h.b16 %v5653
          %v6273 = vunpack.c.l.b16 %v5654
          %v6274 = vunpack.c.l.b16 %v5655
          %v6275 = vunpack.c.h.b16 %v5655
          %v6276 = vunpack.c.l.b16 %v5656
          %v6277 = vunpack.c.l.b16 %v5657
          %v6278 = vunpack.c.h.b16 %v5657
          %v6279 = vunpack.c.l.b16 %v5658
          %v6280 = vunpack.c.l.b16 %v5659
          %v6281 = vunpack.c.h.b16 %v5659
          %v6282 = vunpack.c.l.b16 %v5660
          %v6283 = vunpack.c.l.b16 %v5661
          %v6284 = vunpack.c.h.b16 %v5661
          %v6285 = vunpack.c.l.b16 %v5662
          %v6286 = vunpack.c.l.b16 %v5663
          %v6287 = vunpack.c.h.b16 %v5663
          %v6288 = vunpack.c.l.b16 %v5664
          %v6289 = vunpack.c.l.b16 %v5665
          %v6290 = vunpack.c.h.b16 %v5665
          %v6291 = vunpack.c.l.b16 %v5666
          %v6292 = vunpack.c.l.b16 %v5667
          %v6293 = vunpack.c.h.b16 %v5667
          %v6294 = vunpack.c.l.b16 %v5668
          %v6295 = vunpack.c.l.b16 %v5669
          %v6296 = vunpack.c.h.b16 %v5669
          %v6297 = vunpack.c.l.b16 %v5670
          %v6298 = vunpack.c.l.b16 %v5671
          %v6299 = vunpack.c.h.b16 %v5671
          %v6300 = vunpack.c.l.b16 %v5672
          %v6301 = vunpack.c.l.b16 %v5673
          %v6302 = vunpack.c.h.b16 %v5673
          %v6303 = vunpack.c.l.b16 %v5674
          %v6304 = vunpack.c.l.b16 %v5675
          %v6305 = vunpack.c.h.b16 %v5675
          %v6306 = vunpack.c.l.b16 %v5676
          %v6307 = vunpack.c.l.b16 %v5677
          %v6308 = vunpack.c.h.b16 %v5677
          %v6309 = vunpack.c.l.b16 %v5678
          %v6310 = vunpack.c.l.b16 %v5679
          %v6311 = vunpack.c.h.b16 %v5679
          %v6312 = vunpack.c.l.b16 %v5680
          %v6313 = vunpack.c.l.b16 %v5681
          %v6314 = vunpack.c.h.b16 %v5681
          %v6315 = vunpack.c.l.b16 %v5682
          %v6316 = vunpack.c.l.b16 %v5683
          %v6317 = vunpack.c.h.b16 %v5683
          %v6318 = vunpack.c.l.b16 %v5684
          %v6319 = vunpack.c.l.b16 %v5685
          %v6320 = vunpack.c.h.b16 %v5685
          %v6321 = vunpack.c.l.b16 %v5686
          %v6322 = vunpack.c.l.b16 %v5687
          %v6323 = vunpack.c.h.b16 %v5687
          %v6324 = vunpack.c.l.b16 %v5688
          %v6325 = vunpack.c.l.b16 %v5689
          %v6326 = vunpack.c.h.b16 %v5689
          %v6327 = vunpack.c.l.b16 %v5690
          %v6328 = vunpack.c.l.b16 %v5691
          %v6329 = vunpack.c.h.b16 %v5691
          %v6330 = vunpack.c.l.b16 %v5692
          %v6331 = vunpack.c.l.b16 %v5693
          %v6332 = vunpack.c.h.b16 %v5693
          %v6333 = vunpack.c.l.b16 %v5694
          %v6334 = vunpack.c.l.b16 %v5695
          %v6335 = vunpack.c.h.b16 %v5695
          %v6336 = vunpack.c.l.b16 %v5696
          %v6337 = vpack.c.b16 %v5956, %v5953
          %v6338 = vpack.c.b16 %v5957, %v5954
          %v6339 = vpack.c.b16 %v5958, %v5955
          %v6340 = vpack.c.b16 %v5962, %v5959
          %v6341 = vpack.c.b16 %v5963, %v5960
          %v6342 = vpack.c.b16 %v5964, %v5961
          %v6343 = vpack.c.b16 %v5968, %v5965
          %v6344 = vpack.c.b16 %v5969, %v5966
          %v6345 = vpack.c.b16 %v5970, %v5967
          %v6346 = vpack.c.b16 %v5974, %v5971
          %v6347 = vpack.c.b16 %v5975, %v5972
          %v6348 = vpack.c.b16 %v5976, %v5973
          %v6349 = vpack.c.b16 %v5980, %v5977
          %v6350 = vpack.c.b16 %v5981, %v5978
          %v6351 = vpack.c.b16 %v5982, %v5979
          %v6352 = vpack.c.b16 %v5986, %v5983
          %v6353 = vpack.c.b16 %v5987, %v5984
          %v6354 = vpack.c.b16 %v5988, %v5985
          %v6355 = vpack.c.b16 %v5992, %v5989
          %v6356 = vpack.c.b16 %v5993, %v5990
          %v6357 = vpack.c.b16 %v5994, %v5991
          %v6358 = vpack.c.b16 %v5998, %v5995
          %v6359 = vpack.c.b16 %v5999, %v5996
          %v6360 = vpack.c.b16 %v6000, %v5997
          %v6361 = vpack.c.b16 %v6004, %v6001
          %v6362 = vpack.c.b16 %v6005, %v6002
          %v6363 = vpack.c.b16 %v6006, %v6003
          %v6364 = vpack.c.b16 %v6010, %v6007
          %v6365 = vpack.c.b16 %v6011, %v6008
          %v6366 = vpack.c.b16 %v6012, %v6009
          %v6367 = vpack.c.b16 %v6016, %v6013
          %v6368 = vpack.c.b16 %v6017, %v6014
          %v6369 = vpack.c.b16 %v6018, %v6015
          %v6370 = vpack.c.b16 %v6022, %v6019
          %v6371 = vpack.c.b16 %v6023, %v6020
          %v6372 = vpack.c.b16 %v6024, %v6021
          %v6373 = vpack.c.b16 %v6028, %v6025
          %v6374 = vpack.c.b16 %v6029, %v6026
          %v6375 = vpack.c.b16 %v6030, %v6027
          %v6376 = vpack.c.b16 %v6034, %v6031
          %v6377 = vpack.c.b16 %v6035, %v6032
          %v6378 = vpack.c.b16 %v6036, %v6033
          %v6379 = vpack.c.b16 %v6040, %v6037
          %v6380 = vpack.c.b16 %v6041, %v6038
          %v6381 = vpack.c.b16 %v6042, %v6039
          %v6382 = vpack.c.b16 %v6046, %v6043
          %v6383 = vpack.c.b16 %v6047, %v6044
          %v6384 = vpack.c.b16 %v6048, %v6045
          %v6385 = vpack.c.b16 %v6052, %v6049
          %v6386 = vpack.c.b16 %v6053, %v6050
          %v6387 = vpack.c.b16 %v6054, %v6051
          %v6388 = vpack.c.b16 %v6058, %v6055
          %v6389 = vpack.c.b16 %v6059, %v6056
          %v6390 = vpack.c.b16 %v6060, %v6057
          %v6391 = vpack.c.b16 %v6064, %v6061
          %v6392 = vpack.c.b16 %v6065, %v6062
          %v6393 = vpack.c.b16 %v6066, %v6063
          %v6394 = vpack.c.b16 %v6070, %v6067
          %v6395 = vpack.c.b16 %v6071, %v6068
          %v6396 = vpack.c.b16 %v6072, %v6069
          %v6397 = vpack.c.b16 %v6076, %v6073
          %v6398 = vpack.c.b16 %v6077, %v6074
          %v6399 = vpack.c.b16 %v6078, %v6075
          %v6400 = vpack.c.b16 %v6082, %v6079
          %v6401 = vpack.c.b16 %v6083, %v6080
          %v6402 = vpack.c.b16 %v6084, %v6081
          %v6403 = vpack.c.b16 %v6088, %v6085
          %v6404 = vpack.c.b16 %v6089, %v6086
          %v6405 = vpack.c.b16 %v6090, %v6087
          %v6406 = vpack.c.b16 %v6094, %v6091
          %v6407 = vpack.c.b16 %v6095, %v6092
          %v6408 = vpack.c.b16 %v6096, %v6093
          %v6409 = vpack.c.b16 %v6100, %v6097
          %v6410 = vpack.c.b16 %v6101, %v6098
          %v6411 = vpack.c.b16 %v6102, %v6099
          %v6412 = vpack.c.b16 %v6106, %v6103
          %v6413 = vpack.c.b16 %v6107, %v6104
          %v6414 = vpack.c.b16 %v6108, %v6105
          %v6415 = vpack.c.b16 %v6112, %v6109
          %v6416 = vpack.c.b16 %v6113, %v6110
          %v6417 = vpack.c.b16 %v6114, %v6111
          %v6418 = vpack.c.b16 %v6118, %v6115
          %v6419 = vpack.c.b16 %v6119, %v6116
          %v6420 = vpack.c.b16 %v6120, %v6117
          %v6421 = vpack.c.b16 %v6124, %v6121
          %v6422 = vpack.c.b16 %v6125, %v6122
          %v6423 = vpack.c.b16 %v6126, %v6123
          %v6424 = vpack.c.b16 %v6130, %v6127
          %v6425 = vpack.c.b16 %v6131, %v6128
          %v6426 = vpack.c.b16 %v6132, %v6129
          %v6427 = vpack.c.b16 %v6136, %v6133
          %v6428 = vpack.c.b16 %v6137, %v6134
          %v6429 = vpack.c.b16 %v6138, %v6135
          %v6430 = vpack.c.b16 %v6142, %v6139
          %v6431 = vpack.c.b16 %v6143, %v6140
          %v6432 = vpack.c.b16 %v6144, %v6141
          %v6433 = vpack.c.b16 %v6148, %v6145
          %v6434 = vpack.c.b16 %v6149, %v6146
          %v6435 = vpack.c.b16 %v6150, %v6147
          %v6436 = vpack.c.b16 %v6154, %v6151
          %v6437 = vpack.c.b16 %v6155, %v6152
          %v6438 = vpack.c.b16 %v6156, %v6153
          %v6439 = vpack.c.b16 %v6160, %v6157
          %v6440 = vpack.c.b16 %v6161, %v6158
          %v6441 = vpack.c.b16 %v6162, %v6159
          %v6442 = vpack.c.b16 %v6166, %v6163
          %v6443 = vpack.c.b16 %v6167, %v6164
          %v6444 = vpack.c.b16 %v6168, %v6165
          %v6445 = vpack.c.b16 %v6172, %v6169
          %v6446 = vpack.c.b16 %v6173, %v6170
          %v6447 = vpack.c.b16 %v6174, %v6171
          %v6448 = vpack.c.b16 %v6178, %v6175
          %v6449 = vpack.c.b16 %v6179, %v6176
          %v6450 = vpack.c.b16 %v6180, %v6177
          %v6451 = vpack.c.b16 %v6184, %v6181
          %v6452 = vpack.c.b16 %v6185, %v6182
          %v6453 = vpack.c.b16 %v6186, %v6183
          %v6454 = vpack.c.b16 %v6190, %v6187
          %v6455 = vpack.c.b16 %v6191, %v6188
          %v6456 = vpack.c.b16 %v6192, %v6189
          %v6457 = vpack.c.b16 %v6196, %v6193
          %v6458 = vpack.c.b16 %v6197, %v6194
          %v6459 = vpack.c.b16 %v6198, %v6195
          %v6460 = vpack.c.b16 %v6202, %v6199
          %v6461 = vpack.c.b16 %v6203, %v6200
          %v6462 = vpack.c.b16 %v6204, %v6201
          %v6463 = vpack.c.b16 %v6208, %v6205
          %v6464 = vpack.c.b16 %v6209, %v6206
          %v6465 = vpack.c.b16 %v6210, %v6207
          %v6466 = vpack.c.b16 %v6214, %v6211
          %v6467 = vpack.c.b16 %v6215, %v6212
          %v6468 = vpack.c.b16 %v6216, %v6213
          %v6469 = vpack.c.b16 %v6220, %v6217
          %v6470 = vpack.c.b16 %v6221, %v6218
          %v6471 = vpack.c.b16 %v6222, %v6219
          %v6472 = vpack.c.b16 %v6226, %v6223
          %v6473 = vpack.c.b16 %v6227, %v6224
          %v6474 = vpack.c.b16 %v6228, %v6225
          %v6475 = vpack.c.b16 %v6232, %v6229
          %v6476 = vpack.c.b16 %v6233, %v6230
          %v6477 = vpack.c.b16 %v6234, %v6231
          %v6478 = vpack.c.b16 %v6238, %v6235
          %v6479 = vpack.c.b16 %v6239, %v6236
          %v6480 = vpack.c.b16 %v6240, %v6237
          %v6481 = vpack.c.b16 %v6244, %v6241
          %v6482 = vpack.c.b16 %v6245, %v6242
          %v6483 = vpack.c.b16 %v6246, %v6243
          %v6484 = vpack.c.b16 %v6250, %v6247
          %v6485 = vpack.c.b16 %v6251, %v6248
          %v6486 = vpack.c.b16 %v6252, %v6249
          %v6487 = vpack.c.b16 %v6256, %v6253
          %v6488 = vpack.c.b16 %v6257, %v6254
          %v6489 = vpack.c.b16 %v6258, %v6255
          %v6490 = vpack.c.b16 %v6262, %v6259
          %v6491 = vpack.c.b16 %v6263, %v6260
          %v6492 = vpack.c.b16 %v6264, %v6261
          %v6493 = vpack.c.b16 %v6268, %v6265
          %v6494 = vpack.c.b16 %v6269, %v6266
          %v6495 = vpack.c.b16 %v6270, %v6267
          %v6496 = vpack.c.b16 %v6274, %v6271
          %v6497 = vpack.c.b16 %v6275, %v6272
          %v6498 = vpack.c.b16 %v6276, %v6273
          %v6499 = vpack.c.b16 %v6280, %v6277
          %v6500 = vpack.c.b16 %v6281, %v6278
          %v6501 = vpack.c.b16 %v6282, %v6279
          %v6502 = vpack.c.b16 %v6286, %v6283
          %v6503 = vpack.c.b16 %v6287, %v6284
          %v6504 = vpack.c.b16 %v6288, %v6285
          %v6505 = vpack.c.b16 %v6292, %v6289
          %v6506 = vpack.c.b16 %v6293, %v6290
          %v6507 = vpack.c.b16 %v6294, %v6291
          %v6508 = vpack.c.b16 %v6298, %v6295
          %v6509 = vpack.c.b16 %v6299, %v6296
          %v6510 = vpack.c.b16 %v6300, %v6297
          %v6511 = vpack.c.b16 %v6304, %v6301
          %v6512 = vpack.c.b16 %v6305, %v6302
          %v6513 = vpack.c.b16 %v6306, %v6303
          %v6514 = vpack.c.b16 %v6310, %v6307
          %v6515 = vpack.c.b16 %v6311, %v6308
          %v6516 = vpack.c.b16 %v6312, %v6309
          %v6517 = vpack.c.b16 %v6316, %v6313
          %v6518 = vpack.c.b16 %v6317, %v6314
          %v6519 = vpack.c.b16 %v6318, %v6315
          %v6520 = vpack.c.b16 %v6322, %v6319
          %v6521 = vpack.c.b16 %v6323, %v6320
          %v6522 = vpack.c.b16 %v6324, %v6321
          %v6523 = vpack.c.b16 %v6328, %v6325
          %v6524 = vpack.c.b16 %v6329, %v6326
          %v6525 = vpack.c.b16 %v6330, %v6327
          %v6526 = vpack.c.b16 %v6334, %v6331
          %v6527 = vpack.c.b16 %v6335, %v6332
          %v6528 = vpack.c.b16 %v6336, %v6333
          %6721 = vmatprep.subr.bf16.mxu0 %v6338
          %6722 = vmatpush1.bf16.msra.mxu0 %v6337
          %6723 = vmatprep.subr.bf16.mxu0 %v6341
          %6724 = vmatpush1.bf16.msra.mxu0 %v6340
          %6725 = vmatprep.subr.bf16.mxu0 %v6344
          %6726 = vmatpush1.bf16.msra.mxu0 %v6343
          %6727 = vmatprep.subr.bf16.mxu0 %v6347
          %6728 = vmatpush1.bf16.msra.mxu0 %v6346
          %6729 = vmatprep.subr.bf16.mxu0 %v6350
          %6730 = vmatpush1.bf16.msra.mxu0 %v6349
          %6731 = vmatprep.subr.bf16.mxu0 %v6353
          %6732 = vmatpush1.bf16.msra.mxu0 %v6352
          %6733 = vmatprep.subr.bf16.mxu0 %v6356
          %6734 = vmatpush1.bf16.msra.mxu0 %v6355
          %6735 = vmatprep.subr.bf16.mxu0 %v6359
          %6736 = vmatpush1.bf16.msra.mxu0 %v6358
          %6737 = vmatprep.subr.bf16.mxu0 %v6362
          %6738 = vmatpush1.bf16.msra.mxu0 %v6361
          %6739 = vmatprep.subr.bf16.mxu0 %v6365
          %6740 = vmatpush1.bf16.msra.mxu0 %v6364
          %6741 = vmatprep.subr.bf16.mxu0 %v6368
          %6742 = vmatpush1.bf16.msra.mxu0 %v6367
          %6743 = vmatprep.subr.bf16.mxu0 %v6371
          %6744 = vmatpush1.bf16.msra.mxu0 %v6370
          %6745 = vmatprep.subr.bf16.mxu0 %v6374
          %6746 = vmatpush1.bf16.msra.mxu0 %v6373
          %6747 = vmatprep.subr.bf16.mxu0 %v6377
          %6748 = vmatpush1.bf16.msra.mxu0 %v6376
          %6749 = vmatprep.subr.bf16.mxu0 %v6380
          %6750 = vmatpush1.bf16.msra.mxu0 %v6379
          %6751 = vmatprep.subr.bf16.mxu0 %v6383
          %6752 = vmatpush1.bf16.msra.mxu0 %v6382
          %6753 = vmatprep.mubr.bf16.mxu0 %v5434
          %6754 = vmatmul.mubr.bf16.gmra.mrb[0].mxu0 %v5433
          %v6755 = vpop.f32.mrb[0].mxu0
          %v6756 = vadd.f32 0.0, %v6755
          %v6757 = vpop.f32.mrb[0].mxu0
          %v6758 = vadd.f32 0.0, %v6757
          %v6759 = vpop.f32.mrb[0].mxu0
          %v6760 = vadd.f32 0.0, %v6759
          %v6761 = vpop.f32.mrb[0].mxu0
          %v6762 = vadd.f32 0.0, %v6761
          %6763 = vdwg.mxu0
          %6764 = vmatprep.subr.bf16.mxu0 %v6386
          %6765 = vmatpush1.bf16.msra.mxu0 %v6385
          %6766 = vmatprep.subr.bf16.mxu0 %v6389
          %6767 = vmatpush1.bf16.msra.mxu0 %v6388
          %6768 = vmatprep.subr.bf16.mxu0 %v6392
          %6769 = vmatpush1.bf16.msra.mxu0 %v6391
          %6770 = vmatprep.subr.bf16.mxu0 %v6395
          %6771 = vmatpush1.bf16.msra.mxu0 %v6394
          %6772 = vmatprep.subr.bf16.mxu0 %v6398
          %6773 = vmatpush1.bf16.msra.mxu0 %v6397
          %6774 = vmatprep.subr.bf16.mxu0 %v6401
          %6775 = vmatpush1.bf16.msra.mxu0 %v6400
          %6776 = vmatprep.subr.bf16.mxu0 %v6404
          %6777 = vmatpush1.bf16.msra.mxu0 %v6403
          %6778 = vmatprep.subr.bf16.mxu0 %v6407
          %6779 = vmatpush1.bf16.msra.mxu0 %v6406
          %6780 = vmatprep.subr.bf16.mxu0 %v6410
          %6781 = vmatpush1.bf16.msra.mxu0 %v6409
          %6782 = vmatprep.subr.bf16.mxu0 %v6413
          %6783 = vmatpush1.bf16.msra.mxu0 %v6412
          %6784 = vmatprep.subr.bf16.mxu0 %v6416
          %6785 = vmatpush1.bf16.msra.mxu0 %v6415
          %6786 = vmatprep.subr.bf16.mxu0 %v6419
          %6787 = vmatpush1.bf16.msra.mxu0 %v6418
          %6788 = vmatprep.subr.bf16.mxu0 %v6422
          %6789 = vmatpush1.bf16.msra.mxu0 %v6421
          %6790 = vmatprep.subr.bf16.mxu0 %v6425
          %6791 = vmatpush1.bf16.msra.mxu0 %v6424
          %6792 = vmatprep.subr.bf16.mxu0 %v6428
          %6793 = vmatpush1.bf16.msra.mxu0 %v6427
          %6794 = vmatprep.subr.bf16.mxu0 %v6431
          %6795 = vmatpush1.bf16.msra.mxu0 %v6430
          %6796 = vmatprep.mubr.bf16.mxu0 %v5436
          %6797 = vmatmul.mubr.bf16.gmra.mrb[0].mxu0 %v5435
          %v6798 = vpop.f32.mrb[0].mxu0
          %v6799 = vadd.f32 %v6756, %v6798
          %v6800 = vpop.f32.mrb[0].mxu0
          %v6801 = vadd.f32 %v6758, %v6800
          %v6802 = vpop.f32.mrb[0].mxu0
          %v6803 = vadd.f32 %v6760, %v6802
          %v6804 = vpop.f32.mrb[0].mxu0
          %v6805 = vadd.f32 %v6762, %v6804
          %6806 = vdwg.mxu0
          %6807 = vmatprep.subr.bf16.mxu0 %v6434
          %6808 = vmatpush1.bf16.msra.mxu0 %v6433
          %6809 = vmatprep.subr.bf16.mxu0 %v6437
          %6810 = vmatpush1.bf16.msra.mxu0 %v6436
          %6811 = vmatprep.subr.bf16.mxu0 %v6440
          %6812 = vmatpush1.bf16.msra.mxu0 %v6439
          %6813 = vmatprep.subr.bf16.mxu0 %v6443
          %6814 = vmatpush1.bf16.msra.mxu0 %v6442
          %6815 = vmatprep.subr.bf16.mxu0 %v6446
          %6816 = vmatpush1.bf16.msra.mxu0 %v6445
          %6817 = vmatprep.subr.bf16.mxu0 %v6449
          %6818 = vmatpush1.bf16.msra.mxu0 %v6448
          %6819 = vmatprep.subr.bf16.mxu0 %v6452
          %6820 = vmatpush1.bf16.msra.mxu0 %v6451
          %6821 = vmatprep.subr.bf16.mxu0 %v6455
          %6822 = vmatpush1.bf16.msra.mxu0 %v6454
          %6823 = vmatprep.subr.bf16.mxu0 %v6458
          %6824 = vmatpush1.bf16.msra.mxu0 %v6457
          %6825 = vmatprep.subr.bf16.mxu0 %v6461
          %6826 = vmatpush1.bf16.msra.mxu0 %v6460
          %6827 = vmatprep.subr.bf16.mxu0 %v6464
          %6828 = vmatpush1.bf16.msra.mxu0 %v6463
          %6829 = vmatprep.subr.bf16.mxu0 %v6467
          %6830 = vmatpush1.bf16.msra.mxu0 %v6466
          %6831 = vmatprep.subr.bf16.mxu0 %v6470
          %6832 = vmatpush1.bf16.msra.mxu0 %v6469
          %6833 = vmatprep.subr.bf16.mxu0 %v6473
          %6834 = vmatpush1.bf16.msra.mxu0 %v6472
          %6835 = vmatprep.subr.bf16.mxu0 %v6476
          %6836 = vmatpush1.bf16.msra.mxu0 %v6475
          %6837 = vmatprep.subr.bf16.mxu0 %v6479
          %6838 = vmatpush1.bf16.msra.mxu0 %v6478
          %6839 = vmatprep.mubr.bf16.mxu0 %v5438
          %6840 = vmatmul.mubr.bf16.gmra.mrb[0].mxu0 %v5437
          %v6841 = vpop.f32.mrb[0].mxu0
          %v6842 = vadd.f32 %v6799, %v6841
          %v6843 = vpop.f32.mrb[0].mxu0
          %v6844 = vadd.f32 %v6801, %v6843
          %v6845 = vpop.f32.mrb[0].mxu0
          %v6846 = vadd.f32 %v6803, %v6845
          %v6847 = vpop.f32.mrb[0].mxu0
          %v6848 = vadd.f32 %v6805, %v6847
          %6849 = vdwg.mxu0
          %6850 = vmatprep.subr.bf16.mxu0 %v6482
          %6851 = vmatpush1.bf16.msra.mxu0 %v6481
          %6852 = vmatprep.subr.bf16.mxu0 %v6485
          %6853 = vmatpush1.bf16.msra.mxu0 %v6484
          %6854 = vmatprep.subr.bf16.mxu0 %v6488
          %6855 = vmatpush1.bf16.msra.mxu0 %v6487
          %6856 = vmatprep.subr.bf16.mxu0 %v6491
          %6857 = vmatpush1.bf16.msra.mxu0 %v6490
          %6858 = vmatprep.subr.bf16.mxu0 %v6494
          %6859 = vmatpush1.bf16.msra.mxu0 %v6493
          %6860 = vmatprep.subr.bf16.mxu0 %v6497
          %6861 = vmatpush1.bf16.msra.mxu0 %v6496
          %6862 = vmatprep.subr.bf16.mxu0 %v6500
          %6863 = vmatpush1.bf16.msra.mxu0 %v6499
          %6864 = vmatprep.subr.bf16.mxu0 %v6503
          %6865 = vmatpush1.bf16.msra.mxu0 %v6502
          %6866 = vmatprep.subr.bf16.mxu0 %v6506
          %6867 = vmatpush1.bf16.msra.mxu0 %v6505
          %6868 = vmatprep.subr.bf16.mxu0 %v6509
          %6869 = vmatpush1.bf16.msra.mxu0 %v6508
          %6870 = vmatprep.subr.bf16.mxu0 %v6512
          %6871 = vmatpush1.bf16.msra.mxu0 %v6511
          %6872 = vmatprep.subr.bf16.mxu0 %v6515
          %6873 = vmatpush1.bf16.msra.mxu0 %v6514
          %6874 = vmatprep.subr.bf16.mxu0 %v6518
          %6875 = vmatpush1.bf16.msra.mxu0 %v6517
          %6876 = vmatprep.subr.bf16.mxu0 %v6521
          %6877 = vmatpush1.bf16.msra.mxu0 %v6520
          %6878 = vmatprep.subr.bf16.mxu0 %v6524
          %6879 = vmatpush1.bf16.msra.mxu0 %v6523
          %6880 = vmatprep.subr.bf16.mxu0 %v6527
          %6881 = vmatpush1.bf16.msra.mxu0 %v6526
          %6882 = vmatprep.mubr.bf16.mxu0 %v5440
          %6883 = vmatmul.mubr.bf16.gmra.mrb[0].mxu0 %v5439
          %v6884 = vpop.f32.mrb[0].mxu0
          %v6885 = vadd.f32 %v6842, %v6884
          %v6886 = vpop.f32.mrb[0].mxu0
          %v6887 = vadd.f32 %v6844, %v6886
          %v6888 = vpop.f32.mrb[0].mxu0
          %v6889 = vadd.f32 %v6846, %v6888
          %v6890 = vpop.f32.mrb[0].mxu0
          %v6891 = vadd.f32 %v6848, %v6890
          %6892 = vdwg.mxu0
          %6893 = vmatprep.subr.bf16.mxu0 0
          %6894 = vmatpush1.bf16.msra.mxu0 %v6339
          %6895 = vmatprep.subr.bf16.mxu0 0
          %6896 = vmatpush1.bf16.msra.mxu0 %v6342
          %6897 = vmatprep.subr.bf16.mxu0 0
          %6898 = vmatpush1.bf16.msra.mxu0 %v6345
          %6899 = vmatprep.subr.bf16.mxu0 0
          %6900 = vmatpush1.bf16.msra.mxu0 %v6348
          %6901 = vmatprep.subr.bf16.mxu0 0
          %6902 = vmatpush1.bf16.msra.mxu0 %v6351
          %6903 = vmatprep.subr.bf16.mxu0 0
          %6904 = vmatpush1.bf16.msra.mxu0 %v6354
          %6905 = vmatprep.subr.bf16.mxu0 0
          %6906 = vmatpush1.bf16.msra.mxu0 %v6357
          %6907 = vmatprep.subr.bf16.mxu0 0
          %6908 = vmatpush1.bf16.msra.mxu0 %v6360
          %6909 = vmatprep.subr.bf16.mxu0 0
          %6910 = vmatpush1.bf16.msra.mxu0 %v6363
          %6911 = vmatprep.subr.bf16.mxu0 0
          %6912 = vmatpush1.bf16.msra.mxu0 %v6366
          %6913 = vmatprep.subr.bf16.mxu0 0
          %6914 = vmatpush1.bf16.msra.mxu0 %v6369
          %6915 = vmatprep.subr.bf16.mxu0 0
          %6916 = vmatpush1.bf16.msra.mxu0 %v6372
          %6917 = vmatprep.subr.bf16.mxu0 0
          %6918 = vmatpush1.bf16.msra.mxu0 %v6375
          %6919 = vmatprep.subr.bf16.mxu0 0
          %6920 = vmatpush1.bf16.msra.mxu0 %v6378
          %6921 = vmatprep.subr.bf16.mxu0 0
          %6922 = vmatpush1.bf16.msra.mxu0 %v6381
          %6923 = vmatprep.subr.bf16.mxu0 0
          %6924 = vmatpush1.bf16.msra.mxu0 %v6384
          %6925 = vmatprep.mubr.bf16.mxu0 %v5434
          %6926 = vmatmul.mubr.bf16.gmra.mrb[0].mxu0 %v5433
          %v6927 = vpop.f32.mrb[0].mxu0
          %v6928 = vadd.f32 0.0, %v6927
          %v6929 = vpop.f32.mrb[0].mxu0
          %v6930 = vpop.f32.mrb[0].mxu0
          %v6931 = vadd.f32 0.0, %v6930
          %v6932 = vpop.f32.mrb[0].mxu0
          %6933 = vdwg.mxu0
          %6934 = vmatprep.subr.bf16.mxu0 0
          %6935 = vmatpush1.bf16.msra.mxu0 %v6387
          %6936 = vmatprep.subr.bf16.mxu0 0
          %6937 = vmatpush1.bf16.msra.mxu0 %v6390
          %6938 = vmatprep.subr.bf16.mxu0 0
          %6939 = vmatpush1.bf16.msra.mxu0 %v6393
          %6940 = vmatprep.subr.bf16.mxu0 0
          %6941 = vmatpush1.bf16.msra.mxu0 %v6396
          %6942 = vmatprep.subr.bf16.mxu0 0
          %6943 = vmatpush1.bf16.msra.mxu0 %v6399
          %6944 = vmatprep.subr.bf16.mxu0 0
          %6945 = vmatpush1.bf16.msra.mxu0 %v6402
          %6946 = vmatprep.subr.bf16.mxu0 0
          %6947 = vmatpush1.bf16.msra.mxu0 %v6405
          %6948 = vmatprep.subr.bf16.mxu0 0
          %6949 = vmatpush1.bf16.msra.mxu0 %v6408
          %6950 = vmatprep.subr.bf16.mxu0 0
          %6951 = vmatpush1.bf16.msra.mxu0 %v6411
          %6952 = vmatprep.subr.bf16.mxu0 0
          %6953 = vmatpush1.bf16.msra.mxu0 %v6414
          %6954 = vmatprep.subr.bf16.mxu0 0
          %6955 = vmatpush1.bf16.msra.mxu0 %v6417
          %6956 = vmatprep.subr.bf16.mxu0 0
          %6957 = vmatpush1.bf16.msra.mxu0 %v6420
          %6958 = vmatprep.subr.bf16.mxu0 0
          %6959 = vmatpush1.bf16.msra.mxu0 %v6423
          %6960 = vmatprep.subr.bf16.mxu0 0
          %6961 = vmatpush1.bf16.msra.mxu0 %v6426
          %6962 = vmatprep.subr.bf16.mxu0 0
          %6963 = vmatpush1.bf16.msra.mxu0 %v6429
          %6964 = vmatprep.subr.bf16.mxu0 0
          %6965 = vmatpush1.bf16.msra.mxu0 %v6432
          %6966 = vmatprep.mubr.bf16.mxu0 %v5436
          %6967 = vmatmul.mubr.bf16.gmra.mrb[0].mxu0 %v5435
          %v6968 = vpop.f32.mrb[0].mxu0
          %v6969 = vadd.f32 %v6928, %v6968
          %v6970 = vpop.f32.mrb[0].mxu0
          %v6971 = vpop.f32.mrb[0].mxu0
          %v6972 = vadd.f32 %v6931, %v6971
          %v6973 = vpop.f32.mrb[0].mxu0
          %6974 = vdwg.mxu0
          %6975 = vmatprep.subr.bf16.mxu0 0
          %6976 = vmatpush1.bf16.msra.mxu0 %v6435
          %6977 = vmatprep.subr.bf16.mxu0 0
          %6978 = vmatpush1.bf16.msra.mxu0 %v6438
          %6979 = vmatprep.subr.bf16.mxu0 0
          %6980 = vmatpush1.bf16.msra.mxu0 %v6441
          %6981 = vmatprep.subr.bf16.mxu0 0
          %6982 = vmatpush1.bf16.msra.mxu0 %v6444
          %6983 = vmatprep.subr.bf16.mxu0 0
          %6984 = vmatpush1.bf16.msra.mxu0 %v6447
          %6985 = vmatprep.subr.bf16.mxu0 0
          %6986 = vmatpush1.bf16.msra.mxu0 %v6450
          %6987 = vmatprep.subr.bf16.mxu0 0
          %6988 = vmatpush1.bf16.msra.mxu0 %v6453
          %6989 = vmatprep.subr.bf16.mxu0 0
          %6990 = vmatpush1.bf16.msra.mxu0 %v6456
          %6991 = vmatprep.subr.bf16.mxu0 0
          %6992 = vmatpush1.bf16.msra.mxu0 %v6459
          %6993 = vmatprep.subr.bf16.mxu0 0
          %6994 = vmatpush1.bf16.msra.mxu0 %v6462
          %6995 = vmatprep.subr.bf16.mxu0 0
          %6996 = vmatpush1.bf16.msra.mxu0 %v6465
          %6997 = vmatprep.subr.bf16.mxu0 0
          %6998 = vmatpush1.bf16.msra.mxu0 %v6468
          %6999 = vmatprep.subr.bf16.mxu0 0
          %7000 = vmatpush1.bf16.msra.mxu0 %v6471
          %7001 = vmatprep.subr.bf16.mxu0 0
          %7002 = vmatpush1.bf16.msra.mxu0 %v6474
          %7003 = vmatprep.subr.bf16.mxu0 0
          %7004 = vmatpush1.bf16.msra.mxu0 %v6477
          %7005 = vmatprep.subr.bf16.mxu0 0
          %7006 = vmatpush1.bf16.msra.mxu0 %v6480
          %7007 = vmatprep.mubr.bf16.mxu0 %v5438
          %7008 = vmatmul.mubr.bf16.gmra.mrb[0].mxu0 %v5437
          %v7009 = vpop.f32.mrb[0].mxu0
          %v7010 = vadd.f32 %v6969, %v7009
          %v7011 = vpop.f32.mrb[0].mxu0
          %v7012 = vpop.f32.mrb[0].mxu0
          %v7013 = vadd.f32 %v6972, %v7012
          %v7014 = vpop.f32.mrb[0].mxu0
          %7015 = vdwg.mxu0
          %7016 = vmatprep.subr.bf16.mxu0 0
          %7017 = vmatpush1.bf16.msra.mxu0 %v6483
          %7018 = vmatprep.subr.bf16.mxu0 0
          %7019 = vmatpush1.bf16.msra.mxu0 %v6486
          %7020 = vmatprep.subr.bf16.mxu0 0
          %7021 = vmatpush1.bf16.msra.mxu0 %v6489
          %7022 = vmatprep.subr.bf16.mxu0 0
          %7023 = vmatpush1.bf16.msra.mxu0 %v6492
          %7024 = vmatprep.subr.bf16.mxu0 0
          %7025 = vmatpush1.bf16.msra.mxu0 %v6495
          %7026 = vmatprep.subr.bf16.mxu0 0
          %7027 = vmatpush1.bf16.msra.mxu0 %v6498
          %7028 = vmatprep.subr.bf16.mxu0 0
          %7029 = vmatpush1.bf16.msra.mxu0 %v6501
          %7030 = vmatprep.subr.bf16.mxu0 0
          %7031 = vmatpush1.bf16.msra.mxu0 %v6504
          %7032 = vmatprep.subr.bf16.mxu0 0
          %7033 = vmatpush1.bf16.msra.mxu0 %v6507
          %7034 = vmatprep.subr.bf16.mxu0 0
          %7035 = vmatpush1.bf16.msra.mxu0 %v6510
          %7036 = vmatprep.subr.bf16.mxu0 0
          %7037 = vmatpush1.bf16.msra.mxu0 %v6513
          %7038 = vmatprep.subr.bf16.mxu0 0
          %7039 = vmatpush1.bf16.msra.mxu0 %v6516
          %7040 = vmatprep.subr.bf16.mxu0 0
          %7041 = vmatpush1.bf16.msra.mxu0 %v6519
          %7042 = vmatprep.subr.bf16.mxu0 0
          %7043 = vmatpush1.bf16.msra.mxu0 %v6522
          %7044 = vmatprep.subr.bf16.mxu0 0
          %7045 = vmatpush1.bf16.msra.mxu0 %v6525
          %7046 = vmatprep.subr.bf16.mxu0 0
          %7047 = vmatpush1.bf16.msra.mxu0 %v6528
          %7048 = vmatprep.mubr.bf16.mxu0 %v5440
          %7049 = vmatmul.mubr.bf16.gmra.mrb[0].mxu0 %v5439
          %v7050 = vpop.f32.mrb[0].mxu0
          %v7051 = vadd.f32 %v7010, %v7050
          %v7052 = vpop.f32.mrb[0].mxu0
          %v7053 = vpop.f32.mrb[0].mxu0
          %v7054 = vadd.f32 %v7013, %v7053
          %v7055 = vpop.f32.mrb[0].mxu0
          %7056 = vdwg.mxu0
          %7057 = vst [vmem:[%s1403] sm:$0xff] %v6885
          %7058 = vst [vmem:[%s1403 + $0x8] sm:$0xff] %v6887
          %7059 = vst [vmem:[%s1403 + $0x10] sm:$0xff] %v7051
          %7060 = vst [vmem:[%s1403 + $0x18] sm:$0xff] %v6889
          %7061 = vst [vmem:[%s1403 + $0x20] sm:$0xff] %v6891
          %7062 = vst [vmem:[%s1403 + $0x28] sm:$0xff] %v7054
        $region94: #{predictor_forward.1} parent=77 // pred_fallthru
          _
        %p7063 = scmp.lt.s32.totalorder %s20, 1
        %s7064 = scalar_select %p7063, %s20, 1
        %s7065 = smul.addr %s7064, 6
        %s7066 = smul.addr %s7065, 8
        %s7067 = scalar_lea.vmem %s5, %s7066
        // Predicated region
        $region95: #{predictor_forward.1} parent=77 // pred_check
          %p7068 = pneg %p178
        $region96: #{predictor_forward.1} parent=77 // pred_check_branch
          %7070 = sbr.rel (%p7068) target = $region98
        $region97: #{predictor_forward.1} parent=77 // pred_region
          _
        $region98: #{predictor_forward.1} parent=77 // pred_fallthru
          _
      $region78: #{predictor_forward.1} parent=5 // pred_fallthru
        _
      %p7071 = scmp.le.s32.totalorder 2, %s11
      // Predicated region
      $region99: #{predictor_forward.1} parent=5 // pred_check
        %p7072 = pneg %p7071
      $region100: #{predictor_forward.1} parent=5 // pred_check_branch
        %7074 = sbr.rel (%p7072) target = $region102
      $region101: #{predictor_forward.1} parent=5 // pred_region
        %s7075 = ssub.s32 %s11, 2
        // Predicated region
        $region103: #{predictor_forward.1} parent=101 // pred_check
          %p7076 = pneg %p184
        $region104: #{predictor_forward.1} parent=101 // pred_check_branch
          %7078 = sbr.rel (%p7076) target = $region106
        $region105: #{predictor_forward.1} parent=101 // pred_region
          %p7079 = scmp.lt.s32.totalorder %s22, 1
          %s7080 = scalar_select %p7079, %s22, 1
          %s7081 = smul.addr %s7080, 6
          %s7082 = smul.addr %s7081, 8
          %s7083 = scalar_lea.vmem %s5, %s7082
        $region106: #{predictor_forward.1} parent=101 // pred_fallthru
          _
      $region102: #{predictor_forward.1} parent=5 // pred_fallthru
        _
    $region6: #{predictor_forward.1} parent=1 // loop_footer
      %s15 = sadd.s32 1, %s11
    $region7: #{predictor_forward.1} parent=1 // loop_footer_branch
      %10 = sbr.rel target = $region3
    $region8: #{predictor_forward.1} parent=1 // loop_exit
      _

</llo_original>
